<compile_context>
chip_gen: v7x
topology: tpu7x:2x2x1
jax: 0.10.0
libtpu: 0.0.40
codegen_flags: <defaults>
</compile_context>

<pallas_src>
import functools

import jax
import jax.numpy as jnp
import numpy as np
from jax import lax
from jax.experimental import pallas as pl
from jax.experimental.pallas import tpu as pltpu


def _resblock_kernel(x_ref, w1_ref, b1_ref, w2_ref, b2_ref, mask_ref, out_ref,
                     *, shifts):
    """One image-group per grid step: conv1 -> ReLU -> conv2 -> + residual.

    Shapes (L = images_per_step * P_pad lanes, images concatenated on lanes):
      x_ref    : (1, Cin, L)        zero-padded canvases (conv input + residual)
      w1_ref   : (K*K, Cout, Cin)   per-tap conv1 weights
      w2_ref   : (K*K, Cout, Cout)  per-tap conv2 weights
      b*_ref   : (Cout, 1)          f32 biases
      mask_ref : (1, L)             1.0 on canvas interior, 0.0 on pad ring and
                                    lane-alignment padding
      out_ref  : (1, Cout, L)       channels-first, lane-dense f32 output
    """
    x = x_ref[0]                      # (Cin, L), matmul dtype (bf16 or f32)

    def conv_taps(a, w_ref):
        # 'same' conv as K*K lane rolls (XLU) + per-tap MXU dots, f32 accum.
        acc = None
        for t, sh in enumerate(shifts):
            a_t = pltpu.roll(a, sh, 1) if sh else a
            d = jnp.dot(w_ref[t], a_t, preferred_element_type=jnp.float32)
            acc = d if acc is None else acc + d
        return acc

    # conv1 + bias + ReLU.  x's canvas pad ring is already zero, so no input
    # mask is needed; the mask zeroes conv1's (garbage) pad-ring outputs so
    # they act as conv2's 'same' zero padding.
    y1 = jnp.maximum(conv_taps(x, w1_ref) + b1_ref[...], 0.0) * mask_ref[...]
    y1 = y1.astype(x.dtype)

    # conv2 + bias + residual (all f32).
    y2 = conv_taps(y1, w2_ref) + b2_ref[...] + x.astype(jnp.float32)
    out_ref[0] = y2.astype(out_ref.dtype)


def resblock_pallas(x_btchw, w1, b1, w2, b2, *, nb=None,
                    matmul_dtype=jnp.bfloat16):
    """x_btchw: (B, T, Cin, H, W).  w*: PyTorch conv layout (Cout, Cin, K, K)."""
    B, T, Cin, H, W = x_btchw.shape
    Cout, Cin_w, K, _ = w1.shape
    if Cin_w != Cin or Cin != Cout:
        raise ValueError(
            "ResBlock residual add requires in_channels == out_channels "
            f"(got Cin={Cin}, Cout={Cout}).")
    pad = (K - 1) // 2
    N = B * T
    Hp, Wp = H + 2 * pad, W + 2 * pad
    P = Hp * Wp
    P_pad = -(-P // 128) * 128        # lane-align each image's flattened canvas

    # ---- generation-aware tiling -------------------------------------------
    try:
        vmem_cap = int(pltpu.get_tpu_info().vmem_capacity_bytes)
    except Exception:
        vmem_cap = 64 * 1024 * 1024   # conservative (v7x-sized) fallback
    vmem_limit = int(min(vmem_cap // 2, 64 * 1024 * 1024))

    bpe = jnp.dtype(matmul_dtype).itemsize
    # Per-image VMEM bytes: double-buffered x block, double-buffered f32 out
    # block, plus in-kernel live activations (x + one rolled copy, f32 y1/acc,
    # matmul-dtype y1 + one rolled copy).  Weights/bias/mask are negligible.
    per_img = P_pad * (Cin * 2 * bpe             # x block, double-buffered
                       + Cout * 2 * 4            # out block (f32), double-buf
                       + Cin * 2 * bpe           # x + rolled copy live in-kernel
                       + Cout * (2 * 4 + 2 * bpe))  # y1/acc f32 + y1 (+roll)
    nb_cap = max(1, (vmem_limit // 2) // per_img)   # keep ~50% headroom
    if nb is None:
        # >=2 grid steps when possible so both v7x TensorCores get a group; on
        # single-TC v5e/v6e the extra step costs ~0.35us (mem-bound, negligible).
        nb = int(min(max(1, -(-N // 2)), nb_cap))
    G = -(-N // nb)                   # grid steps
    Npad = G * nb                     # pad N with dummy zero images if needed
    L = nb * P_pad                    # lanes per grid step (multiple of 128)

    # ---- inputs: zero-padded per-image canvas, flattened onto lanes ---------
    x4 = x_btchw.reshape(N, Cin, H, W).astype(matmul_dtype)
    if Npad != N:
        x4 = jnp.pad(x4, ((0, Npad - N), (0, 0), (0, 0), (0, 0)))
    # The canvas pad ring IS conv1's 'same' zero padding and also carries the
    # residual; trailing lanes [P, P_pad) are pure alignment padding.
    xp = jnp.pad(x4, ((0, 0), (0, 0), (pad, pad), (pad, pad)))   # (Npad,C,Hp,Wp)
    x_flat = xp.reshape(Npad, Cin, P)
    if P_pad != P:
        x_flat = jnp.pad(x_flat, ((0, 0), (0, 0), (0, P_pad - P)))
    # Group fold: (Npad, C, P_pad) -> (G, C, nb*P_pad), images on the lane axis.
    x_g = (x_flat.reshape(G, nb, Cin, P_pad)
           .transpose(0, 2, 1, 3).reshape(G, Cin, L))

    # ---- weights / biases / mask --------------------------------------------
    w1_taps = (jnp.transpose(w1, (2, 3, 0, 1))
               .reshape(K * K, Cout, Cin).astype(matmul_dtype))
    w2_taps = (jnp.transpose(w2, (2, 3, 0, 1))
               .reshape(K * K, Cout, Cin).astype(matmul_dtype))
    b1c = b1.reshape(Cout, 1).astype(jnp.float32)
    b2c = b2.reshape(Cout, 1).astype(jnp.float32)

    # Canvas-interior mask: 1 inside the HxW image, 0 on the pad ring AND on
    # the trailing lane-alignment padding; replicated for the nb images.
    idx = jnp.arange(P_pad)
    row, col = idx // Wp, idx % Wp
    interior = ((idx < P) & (row >= pad) & (row < pad + H) &
                (col >= pad) & (col < pad + W)).astype(jnp.float32)
    mask = jnp.tile(interior, nb).reshape(1, L)

    # Tap shifts along the flattened-spatial lane axis.  The row stride stays
    # the CANVAS width Wp (alignment padding is appended after the canvas so it
    # does not change the stride).  Shifts are taken mod L so they are
    # non-negative; interior outputs never read across an image boundary
    # (max interior lane + max shift == P - 1 < P_pad).
    shifts = tuple((((pad - kh) * Wp + (pad - kw)) % L)
                   for kh in range(K) for kw in range(K))

    kernel = functools.partial(_resblock_kernel, shifts=shifts)

    out = pl.pallas_call(
        kernel,
        out_shape=jax.ShapeDtypeStruct((G, Cout, L), jnp.float32),
        grid_spec=pltpu.PrefetchScalarGridSpec(
            num_scalar_prefetch=0,
            grid=(G,),
            in_specs=[
                pl.BlockSpec((1, Cin, L), lambda g: (g, 0, 0)),
                pl.BlockSpec((K * K, Cout, Cin), lambda g: (0, 0, 0)),
                pl.BlockSpec((Cout, 1), lambda g: (0, 0)),
                pl.BlockSpec((K * K, Cout, Cin), lambda g: (0, 0, 0)),
                pl.BlockSpec((Cout, 1), lambda g: (0, 0)),
                pl.BlockSpec((1, L), lambda g: (0, 0)),
            ],
            out_specs=pl.BlockSpec((1, Cout, L), lambda g: (g, 0, 0)),
        ),
        compiler_params=pltpu.CompilerParams(
            dimension_semantics=("parallel",),
            vmem_limit_bytes=vmem_limit),
    )(x_g, w1_taps, b1c, w2_taps, b2c, mask)

    # Unfold groups, drop dummy images + alignment lanes, slice the interior
    # (output is already channels-first, so no NHWC->NCHW transpose).
    out = (out.reshape(G, Cout, nb, P_pad).transpose(0, 2, 1, 3)
           .reshape(Npad, Cout, P_pad))[:, :, :P]
    out = out.reshape(Npad, Cout, Hp, Wp)[:N, :, pad:pad + H, pad:pad + W]
    return out.reshape(B, T, Cout, H, W)


def resblock_ref(x_btchw, w1, b1, w2, b2):
    """Pure-JAX reference (matches PyTorch ResBlock with ReLU activation)."""
    B, T, Cin, H, W = x_btchw.shape
    Cout = w1.shape[0]
    N = B * T
    x = jnp.transpose(x_btchw.reshape(N, Cin, H, W), (0, 2, 3, 1))
    w1h = jnp.transpose(w1, (2, 3, 1, 0))   # HWIO
    w2h = jnp.transpose(w2, (2, 3, 1, 0))
    dn = ('NHWC', 'HWIO', 'NHWC')
    y = lax.conv_general_dilated(x, w1h, (1, 1), 'SAME',
                                 dimension_numbers=dn) + b1
    y = jnp.maximum(y, 0.0)
    y = lax.conv_general_dilated(y, w2h, (1, 1), 'SAME',
                                 dimension_numbers=dn) + b2
    y = y + x
    return jnp.transpose(y, (0, 3, 1, 2)).reshape(B, T, Cout, H, W)


if __name__ == "__main__":
    # Small shapes: batch=2, time=3, channels=4 (in == out for the residual),
    # spatial=16, kernel_size=3, activation=ReLU.
    B, T, C, H, W, K = 2, 3, 4, 16, 16, 3

    key = jax.random.PRNGKey(0)
    kx, kw1, kb1, kw2, kb2 = jax.random.split(key, 5)
    x = jax.random.normal(kx, (B, T, C, H, W), jnp.float32)
    w1 = jax.random.normal(kw1, (C, C, K, K), jnp.float32) * 0.1
    b1 = jax.random.normal(kb1, (C,), jnp.float32) * 0.1
    w2 = jax.random.normal(kw2, (C, C, K, K), jnp.float32) * 0.1
    b2 = jax.random.normal(kb2, (C,), jnp.float32) * 0.1

    ref = jax.block_until_ready(resblock_ref(x, w1, b1, w2, b2))

    # f32-operand path: tight tolerance validates the tap/shift/mask math.
    run_f32 = jax.jit(functools.partial(resblock_pallas,
                                        matmul_dtype=jnp.float32))
    out_f32 = jax.block_until_ready(run_f32(x, w1, b1, w2, b2))
    np.testing.assert_allclose(np.asarray(out_f32), np.asarray(ref),
                               rtol=1e-4, atol=1e-4)

    # Default bf16-operand path (halved streamed bytes): bf16 rounding of the
    # matmul operands needs a looser tolerance against the f32 reference.
    run_bf16 = jax.jit(resblock_pallas)
    out_bf16 = jax.block_until_ready(run_bf16(x, w1, b1, w2, b2))
    np.testing.assert_allclose(np.asarray(out_bf16), np.asarray(ref),
                               rtol=5e-2, atol=5e-2)

    print("KERNEL_OK")
</pallas_src>

<mosaic_0001>
module attributes {stable_mosaic.version = 11 : i64} {
  func.func @_resblock_kernel(%arg0: i32, %arg1: memref<1x4x1152xf32, #tpu.memory_space<vmem>>, %arg2: memref<9x4x4xf32, #tpu.memory_space<vmem>>, %arg3: memref<4x1xf32, #tpu.memory_space<vmem>>, %arg4: memref<9x4x4xf32, #tpu.memory_space<vmem>>, %arg5: memref<4x1xf32, #tpu.memory_space<vmem>>, %arg6: memref<1x1152xf32, #tpu.memory_space<vmem>>, %arg7: memref<1x4x1152xf32, #tpu.memory_space<vmem>>) attributes {dimension_semantics = [#tpu.dimension_semantics<parallel>], iteration_bounds = array<i64: 2>, scalar_prefetch = 0 : i64, scratch_operands = 0 : i64, tpu.core_type = #tpu.core_type<tc>, window_params = [{transform_indices = @transform_0, window_bounds = array<i64: 1, 4, 1152>}, {pipeline_mode = #tpu.pipeline_mode<synchronous>, transform_indices = @transform_1, window_bounds = array<i64: 9, 4, 4>}, {pipeline_mode = #tpu.pipeline_mode<synchronous>, transform_indices = @transform_2, window_bounds = array<i64: 4, 1>}, {pipeline_mode = #tpu.pipeline_mode<synchronous>, transform_indices = @transform_3, window_bounds = array<i64: 9, 4, 4>}, {pipeline_mode = #tpu.pipeline_mode<synchronous>, transform_indices = @transform_4, window_bounds = array<i64: 4, 1>}, {pipeline_mode = #tpu.pipeline_mode<synchronous>, transform_indices = @transform_5, window_bounds = array<i64: 1, 1152>}, {transform_indices = @transform_6, window_bounds = array<i64: 1, 4, 1152>}]} {
    %c0 = arith.constant 0 : index
    %c0_0 = arith.constant 0 : index
    %c0_1 = arith.constant 0 : index
    %0 = vector.load %arg1[%c0, %c0_0, %c0_1] : memref<1x4x1152xf32, #tpu.memory_space<vmem>>, vector<1x4x1152xf32>
    %1 = vector.shape_cast %0 : vector<1x4x1152xf32> to vector<4x1152xf32>
    %c19_i32 = arith.constant 19 : i32
    %2 = tpu.dynamic_rotate %1 by %c19_i32 dim 1 : vector<4x1152xf32>, i32 -> vector<4x1152xf32>
    %c0_2 = arith.constant 0 : index
    %c0_3 = arith.constant 0 : index
    %c0_4 = arith.constant 0 : index
    %3 = vector.load %arg2[%c0_2, %c0_3, %c0_4] : memref<9x4x4xf32, #tpu.memory_space<vmem>>, vector<1x4x4xf32>
    %4 = vector.shape_cast %3 : vector<1x4x4xf32> to vector<4x4xf32>
    %cst = arith.constant dense<0.000000e+00> : vector<4x1152xf32>
    %5 = tpu.matmul %4, %2, %cst {dimension_numbers = #tpu.dot_dimension_numbers<[1], [0], [0], [1], [0, 0, 1, 1], [], []>} : vector<4x4xf32>, vector<4x1152xf32>, vector<4x1152xf32> -> vector<4x1152xf32>
    %c18_i32 = arith.constant 18 : i32
    %6 = tpu.dynamic_rotate %1 by %c18_i32 dim 1 : vector<4x1152xf32>, i32 -> vector<4x1152xf32>
    %c1 = arith.constant 1 : index
    %c0_5 = arith.constant 0 : index
    %c0_6 = arith.constant 0 : index
    %7 = vector.load %arg2[%c1, %c0_5, %c0_6] : memref<9x4x4xf32, #tpu.memory_space<vmem>>, vector<1x4x4xf32>
    %8 = vector.shape_cast %7 : vector<1x4x4xf32> to vector<4x4xf32>
    %cst_7 = arith.constant dense<0.000000e+00> : vector<4x1152xf32>
    %9 = tpu.matmul %8, %6, %cst_7 {dimension_numbers = #tpu.dot_dimension_numbers<[1], [0], [0], [1], [0, 0, 1, 1], [], []>} : vector<4x4xf32>, vector<4x1152xf32>, vector<4x1152xf32> -> vector<4x1152xf32>
    %10 = arith.addf %5, %9 : vector<4x1152xf32>
    %c17_i32 = arith.constant 17 : i32
    %11 = tpu.dynamic_rotate %1 by %c17_i32 dim 1 : vector<4x1152xf32>, i32 -> vector<4x1152xf32>
    %c2 = arith.constant 2 : index
    %c0_8 = arith.constant 0 : index
    %c0_9 = arith.constant 0 : index
    %12 = vector.load %arg2[%c2, %c0_8, %c0_9] : memref<9x4x4xf32, #tpu.memory_space<vmem>>, vector<1x4x4xf32>
    %13 = vector.shape_cast %12 : vector<1x4x4xf32> to vector<4x4xf32>
    %cst_10 = arith.constant dense<0.000000e+00> : vector<4x1152xf32>
    %14 = tpu.matmul %13, %11, %cst_10 {dimension_numbers = #tpu.dot_dimension_numbers<[1], [0], [0], [1], [0, 0, 1, 1], [], []>} : vector<4x4xf32>, vector<4x1152xf32>, vector<4x1152xf32> -> vector<4x1152xf32>
    %15 = arith.addf %10, %14 : vector<4x1152xf32>
    %c1_i32 = arith.constant 1 : i32
    %16 = tpu.dynamic_rotate %1 by %c1_i32 dim 1 : vector<4x1152xf32>, i32 -> vector<4x1152xf32>
    %c3 = arith.constant 3 : index
    %c0_11 = arith.constant 0 : index
    %c0_12 = arith.constant 0 : index
    %17 = vector.load %arg2[%c3, %c0_11, %c0_12] : memref<9x4x4xf32, #tpu.memory_space<vmem>>, vector<1x4x4xf32>
    %18 = vector.shape_cast %17 : vector<1x4x4xf32> to vector<4x4xf32>
    %cst_13 = arith.constant dense<0.000000e+00> : vector<4x1152xf32>
    %19 = tpu.matmul %18, %16, %cst_13 {dimension_numbers = #tpu.dot_dimension_numbers<[1], [0], [0], [1], [0, 0, 1, 1], [], []>} : vector<4x4xf32>, vector<4x1152xf32>, vector<4x1152xf32> -> vector<4x1152xf32>
    %20 = arith.addf %15, %19 : vector<4x1152xf32>
    %c4 = arith.constant 4 : index
    %c0_14 = arith.constant 0 : index
    %c0_15 = arith.constant 0 : index
    %21 = vector.load %arg2[%c4, %c0_14, %c0_15] : memref<9x4x4xf32, #tpu.memory_space<vmem>>, vector<1x4x4xf32>
    %22 = vector.shape_cast %21 : vector<1x4x4xf32> to vector<4x4xf32>
    %cst_16 = arith.constant dense<0.000000e+00> : vector<4x1152xf32>
    %23 = tpu.matmul %22, %1, %cst_16 {dimension_numbers = #tpu.dot_dimension_numbers<[1], [0], [0], [1], [0, 0, 1, 1], [], []>} : vector<4x4xf32>, vector<4x1152xf32>, vector<4x1152xf32> -> vector<4x1152xf32>
    %24 = arith.addf %20, %23 : vector<4x1152xf32>
    %c1151_i32 = arith.constant 1151 : i32
    %25 = tpu.dynamic_rotate %1 by %c1151_i32 dim 1 : vector<4x1152xf32>, i32 -> vector<4x1152xf32>
    %c5 = arith.constant 5 : index
    %c0_17 = arith.constant 0 : index
    %c0_18 = arith.constant 0 : index
    %26 = vector.load %arg2[%c5, %c0_17, %c0_18] : memref<9x4x4xf32, #tpu.memory_space<vmem>>, vector<1x4x4xf32>
    %27 = vector.shape_cast %26 : vector<1x4x4xf32> to vector<4x4xf32>
    %cst_19 = arith.constant dense<0.000000e+00> : vector<4x1152xf32>
    %28 = tpu.matmul %27, %25, %cst_19 {dimension_numbers = #tpu.dot_dimension_numbers<[1], [0], [0], [1], [0, 0, 1, 1], [], []>} : vector<4x4xf32>, vector<4x1152xf32>, vector<4x1152xf32> -> vector<4x1152xf32>
    %29 = arith.addf %24, %28 : vector<4x1152xf32>
    %c1135_i32 = arith.constant 1135 : i32
    %30 = tpu.dynamic_rotate %1 by %c1135_i32 dim 1 : vector<4x1152xf32>, i32 -> vector<4x1152xf32>
    %c6 = arith.constant 6 : index
    %c0_20 = arith.constant 0 : index
    %c0_21 = arith.constant 0 : index
    %31 = vector.load %arg2[%c6, %c0_20, %c0_21] : memref<9x4x4xf32, #tpu.memory_space<vmem>>, vector<1x4x4xf32>
    %32 = vector.shape_cast %31 : vector<1x4x4xf32> to vector<4x4xf32>
    %cst_22 = arith.constant dense<0.000000e+00> : vector<4x1152xf32>
    %33 = tpu.matmul %32, %30, %cst_22 {dimension_numbers = #tpu.dot_dimension_numbers<[1], [0], [0], [1], [0, 0, 1, 1], [], []>} : vector<4x4xf32>, vector<4x1152xf32>, vector<4x1152xf32> -> vector<4x1152xf32>
    %34 = arith.addf %29, %33 : vector<4x1152xf32>
    %c1134_i32 = arith.constant 1134 : i32
    %35 = tpu.dynamic_rotate %1 by %c1134_i32 dim 1 : vector<4x1152xf32>, i32 -> vector<4x1152xf32>
    %c7 = arith.constant 7 : index
    %c0_23 = arith.constant 0 : index
    %c0_24 = arith.constant 0 : index
    %36 = vector.load %arg2[%c7, %c0_23, %c0_24] : memref<9x4x4xf32, #tpu.memory_space<vmem>>, vector<1x4x4xf32>
    %37 = vector.shape_cast %36 : vector<1x4x4xf32> to vector<4x4xf32>
    %cst_25 = arith.constant dense<0.000000e+00> : vector<4x1152xf32>
    %38 = tpu.matmul %37, %35, %cst_25 {dimension_numbers = #tpu.dot_dimension_numbers<[1], [0], [0], [1], [0, 0, 1, 1], [], []>} : vector<4x4xf32>, vector<4x1152xf32>, vector<4x1152xf32> -> vector<4x1152xf32>
    %39 = arith.addf %34, %38 : vector<4x1152xf32>
    %c1133_i32 = arith.constant 1133 : i32
    %40 = tpu.dynamic_rotate %1 by %c1133_i32 dim 1 : vector<4x1152xf32>, i32 -> vector<4x1152xf32>
    %c8 = arith.constant 8 : index
    %c0_26 = arith.constant 0 : index
    %c0_27 = arith.constant 0 : index
    %41 = vector.load %arg2[%c8, %c0_26, %c0_27] : memref<9x4x4xf32, #tpu.memory_space<vmem>>, vector<1x4x4xf32>
    %42 = vector.shape_cast %41 : vector<1x4x4xf32> to vector<4x4xf32>
    %cst_28 = arith.constant dense<0.000000e+00> : vector<4x1152xf32>
    %43 = tpu.matmul %42, %40, %cst_28 {dimension_numbers = #tpu.dot_dimension_numbers<[1], [0], [0], [1], [0, 0, 1, 1], [], []>} : vector<4x4xf32>, vector<4x1152xf32>, vector<4x1152xf32> -> vector<4x1152xf32>
    %44 = arith.addf %39, %43 : vector<4x1152xf32>
    %c0_29 = arith.constant 0 : index
    %c0_30 = arith.constant 0 : index
    %45 = vector.load %arg3[%c0_29, %c0_30] : memref<4x1xf32, #tpu.memory_space<vmem>>, vector<4x1xf32>
    %46 = vector.broadcast %45 : vector<4x1xf32> to vector<4x1152xf32>
    %47 = arith.addf %44, %46 : vector<4x1152xf32>
    %cst_31 = arith.constant 0.000000e+00 : f32
    %48 = vector.broadcast %cst_31 : f32 to vector<4x1152xf32>
    %49 = arith.maximumf %47, %48 : vector<4x1152xf32>
    %c0_32 = arith.constant 0 : index
    %c0_33 = arith.constant 0 : index
    %50 = vector.load %arg6[%c0_32, %c0_33] : memref<1x1152xf32, #tpu.memory_space<vmem>>, vector<1x1152xf32>
    %51 = vector.broadcast %50 : vector<1x1152xf32> to vector<4x1152xf32>
    %52 = arith.mulf %49, %51 : vector<4x1152xf32>
    %c19_i32_34 = arith.constant 19 : i32
    %53 = tpu.dynamic_rotate %52 by %c19_i32_34 dim 1 : vector<4x1152xf32>, i32 -> vector<4x1152xf32>
    %c0_35 = arith.constant 0 : index
    %c0_36 = arith.constant 0 : index
    %c0_37 = arith.constant 0 : index
    %54 = vector.load %arg4[%c0_35, %c0_36, %c0_37] : memref<9x4x4xf32, #tpu.memory_space<vmem>>, vector<1x4x4xf32>
    %55 = vector.shape_cast %54 : vector<1x4x4xf32> to vector<4x4xf32>
    %cst_38 = arith.constant dense<0.000000e+00> : vector<4x1152xf32>
    %56 = tpu.matmul %55, %53, %cst_38 {dimension_numbers = #tpu.dot_dimension_numbers<[1], [0], [0], [1], [0, 0, 1, 1], [], []>} : vector<4x4xf32>, vector<4x1152xf32>, vector<4x1152xf32> -> vector<4x1152xf32>
    %c18_i32_39 = arith.constant 18 : i32
    %57 = tpu.dynamic_rotate %52 by %c18_i32_39 dim 1 : vector<4x1152xf32>, i32 -> vector<4x1152xf32>
    %c1_40 = arith.constant 1 : index
    %c0_41 = arith.constant 0 : index
    %c0_42 = arith.constant 0 : index
    %58 = vector.load %arg4[%c1_40, %c0_41, %c0_42] : memref<9x4x4xf32, #tpu.memory_space<vmem>>, vector<1x4x4xf32>
    %59 = vector.shape_cast %58 : vector<1x4x4xf32> to vector<4x4xf32>
    %cst_43 = arith.constant dense<0.000000e+00> : vector<4x1152xf32>
    %60 = tpu.matmul %59, %57, %cst_43 {dimension_numbers = #tpu.dot_dimension_numbers<[1], [0], [0], [1], [0, 0, 1, 1], [], []>} : vector<4x4xf32>, vector<4x1152xf32>, vector<4x1152xf32> -> vector<4x1152xf32>
    %61 = arith.addf %56, %60 : vector<4x1152xf32>
    %c17_i32_44 = arith.constant 17 : i32
    %62 = tpu.dynamic_rotate %52 by %c17_i32_44 dim 1 : vector<4x1152xf32>, i32 -> vector<4x1152xf32>
    %c2_45 = arith.constant 2 : index
    %c0_46 = arith.constant 0 : index
    %c0_47 = arith.constant 0 : index
    %63 = vector.load %arg4[%c2_45, %c0_46, %c0_47] : memref<9x4x4xf32, #tpu.memory_space<vmem>>, vector<1x4x4xf32>
    %64 = vector.shape_cast %63 : vector<1x4x4xf32> to vector<4x4xf32>
    %cst_48 = arith.constant dense<0.000000e+00> : vector<4x1152xf32>
    %65 = tpu.matmul %64, %62, %cst_48 {dimension_numbers = #tpu.dot_dimension_numbers<[1], [0], [0], [1], [0, 0, 1, 1], [], []>} : vector<4x4xf32>, vector<4x1152xf32>, vector<4x1152xf32> -> vector<4x1152xf32>
    %66 = arith.addf %61, %65 : vector<4x1152xf32>
    %c1_i32_49 = arith.constant 1 : i32
    %67 = tpu.dynamic_rotate %52 by %c1_i32_49 dim 1 : vector<4x1152xf32>, i32 -> vector<4x1152xf32>
    %c3_50 = arith.constant 3 : index
    %c0_51 = arith.constant 0 : index
    %c0_52 = arith.constant 0 : index
    %68 = vector.load %arg4[%c3_50, %c0_51, %c0_52] : memref<9x4x4xf32, #tpu.memory_space<vmem>>, vector<1x4x4xf32>
    %69 = vector.shape_cast %68 : vector<1x4x4xf32> to vector<4x4xf32>
    %cst_53 = arith.constant dense<0.000000e+00> : vector<4x1152xf32>
    %70 = tpu.matmul %69, %67, %cst_53 {dimension_numbers = #tpu.dot_dimension_numbers<[1], [0], [0], [1], [0, 0, 1, 1], [], []>} : vector<4x4xf32>, vector<4x1152xf32>, vector<4x1152xf32> -> vector<4x1152xf32>
    %71 = arith.addf %66, %70 : vector<4x1152xf32>
    %c4_54 = arith.constant 4 : index
    %c0_55 = arith.constant 0 : index
    %c0_56 = arith.constant 0 : index
    %72 = vector.load %arg4[%c4_54, %c0_55, %c0_56] : memref<9x4x4xf32, #tpu.memory_space<vmem>>, vector<1x4x4xf32>
    %73 = vector.shape_cast %72 : vector<1x4x4xf32> to vector<4x4xf32>
    %cst_57 = arith.constant dense<0.000000e+00> : vector<4x1152xf32>
    %74 = tpu.matmul %73, %52, %cst_57 {dimension_numbers = #tpu.dot_dimension_numbers<[1], [0], [0], [1], [0, 0, 1, 1], [], []>} : vector<4x4xf32>, vector<4x1152xf32>, vector<4x1152xf32> -> vector<4x1152xf32>
    %75 = arith.addf %71, %74 : vector<4x1152xf32>
    %c1151_i32_58 = arith.constant 1151 : i32
    %76 = tpu.dynamic_rotate %52 by %c1151_i32_58 dim 1 : vector<4x1152xf32>, i32 -> vector<4x1152xf32>
    %c5_59 = arith.constant 5 : index
    %c0_60 = arith.constant 0 : index
    %c0_61 = arith.constant 0 : index
    %77 = vector.load %arg4[%c5_59, %c0_60, %c0_61] : memref<9x4x4xf32, #tpu.memory_space<vmem>>, vector<1x4x4xf32>
    %78 = vector.shape_cast %77 : vector<1x4x4xf32> to vector<4x4xf32>
    %cst_62 = arith.constant dense<0.000000e+00> : vector<4x1152xf32>
    %79 = tpu.matmul %78, %76, %cst_62 {dimension_numbers = #tpu.dot_dimension_numbers<[1], [0], [0], [1], [0, 0, 1, 1], [], []>} : vector<4x4xf32>, vector<4x1152xf32>, vector<4x1152xf32> -> vector<4x1152xf32>
    %80 = arith.addf %75, %79 : vector<4x1152xf32>
    %c1135_i32_63 = arith.constant 1135 : i32
    %81 = tpu.dynamic_rotate %52 by %c1135_i32_63 dim 1 : vector<4x1152xf32>, i32 -> vector<4x1152xf32>
    %c6_64 = arith.constant 6 : index
    %c0_65 = arith.constant 0 : index
    %c0_66 = arith.constant 0 : index
    %82 = vector.load %arg4[%c6_64, %c0_65, %c0_66] : memref<9x4x4xf32, #tpu.memory_space<vmem>>, vector<1x4x4xf32>
    %83 = vector.shape_cast %82 : vector<1x4x4xf32> to vector<4x4xf32>
    %cst_67 = arith.constant dense<0.000000e+00> : vector<4x1152xf32>
    %84 = tpu.matmul %83, %81, %cst_67 {dimension_numbers = #tpu.dot_dimension_numbers<[1], [0], [0], [1], [0, 0, 1, 1], [], []>} : vector<4x4xf32>, vector<4x1152xf32>, vector<4x1152xf32> -> vector<4x1152xf32>
    %85 = arith.addf %80, %84 : vector<4x1152xf32>
    %c1134_i32_68 = arith.constant 1134 : i32
    %86 = tpu.dynamic_rotate %52 by %c1134_i32_68 dim 1 : vector<4x1152xf32>, i32 -> vector<4x1152xf32>
    %c7_69 = arith.constant 7 : index
    %c0_70 = arith.constant 0 : index
    %c0_71 = arith.constant 0 : index
    %87 = vector.load %arg4[%c7_69, %c0_70, %c0_71] : memref<9x4x4xf32, #tpu.memory_space<vmem>>, vector<1x4x4xf32>
    %88 = vector.shape_cast %87 : vector<1x4x4xf32> to vector<4x4xf32>
    %cst_72 = arith.constant dense<0.000000e+00> : vector<4x1152xf32>
    %89 = tpu.matmul %88, %86, %cst_72 {dimension_numbers = #tpu.dot_dimension_numbers<[1], [0], [0], [1], [0, 0, 1, 1], [], []>} : vector<4x4xf32>, vector<4x1152xf32>, vector<4x1152xf32> -> vector<4x1152xf32>
    %90 = arith.addf %85, %89 : vector<4x1152xf32>
    %c1133_i32_73 = arith.constant 1133 : i32
    %91 = tpu.dynamic_rotate %52 by %c1133_i32_73 dim 1 : vector<4x1152xf32>, i32 -> vector<4x1152xf32>
    %c8_74 = arith.constant 8 : index
    %c0_75 = arith.constant 0 : index
    %c0_76 = arith.constant 0 : index
    %92 = vector.load %arg4[%c8_74, %c0_75, %c0_76] : memref<9x4x4xf32, #tpu.memory_space<vmem>>, vector<1x4x4xf32>
    %93 = vector.shape_cast %92 : vector<1x4x4xf32> to vector<4x4xf32>
    %cst_77 = arith.constant dense<0.000000e+00> : vector<4x1152xf32>
    %94 = tpu.matmul %93, %91, %cst_77 {dimension_numbers = #tpu.dot_dimension_numbers<[1], [0], [0], [1], [0, 0, 1, 1], [], []>} : vector<4x4xf32>, vector<4x1152xf32>, vector<4x1152xf32> -> vector<4x1152xf32>
    %95 = arith.addf %90, %94 : vector<4x1152xf32>
    %c0_78 = arith.constant 0 : index
    %c0_79 = arith.constant 0 : index
    %96 = vector.load %arg5[%c0_78, %c0_79] : memref<4x1xf32, #tpu.memory_space<vmem>>, vector<4x1xf32>
    %97 = vector.broadcast %96 : vector<4x1xf32> to vector<4x1152xf32>
    %98 = arith.addf %95, %97 : vector<4x1152xf32>
    %99 = arith.addf %98, %1 : vector<4x1152xf32>
    %c0_80 = arith.constant 0 : index
    %c0_81 = arith.constant 0 : index
    %c0_82 = arith.constant 0 : index
    %100 = vector.load %arg7[%c0_80, %c0_81, %c0_82] : memref<1x4x1152xf32, #tpu.memory_space<vmem>>, vector<1x4x1152xf32>
    %101 = vector.shape_cast %100 : vector<1x4x1152xf32> to vector<4x1152xf32>
    %102 = vector.shape_cast %99 : vector<4x1152xf32> to vector<1x4x1152xf32>
    tpu.vector_store %arg7[%c0_80, %c0_81, %c0_82], %102 {strides = array<i32>} : memref<1x4x1152xf32, #tpu.memory_space<vmem>>, vector<1x4x1152xf32>,
    return
  }
  func.func @transform_0(%arg0: i32) -> (i32, i32, i32) {
    %c0_i32 = arith.constant 0 : i32
    %c0_i32_0 = arith.constant 0 : i32
    %c0_i32_1 = arith.constant 0 : i32
    return %arg0, %c0_i32, %c0_i32_0 : i32, i32, i32
  }
  func.func @transform_1(%arg0: i32) -> (i32, i32, i32) {
    %c0_i32 = arith.constant 0 : i32
    %c0_i32_0 = arith.constant 0 : i32
    %c0_i32_1 = arith.constant 0 : i32
    %c0_i32_2 = arith.constant 0 : i32
    return %c0_i32, %c0_i32_0, %c0_i32_1 : i32, i32, i32
  }
  func.func @transform_2(%arg0: i32) -> (i32, i32) {
    %c0_i32 = arith.constant 0 : i32
    %c0_i32_0 = arith.constant 0 : i32
    %c0_i32_1 = arith.constant 0 : i32
    return %c0_i32, %c0_i32_0 : i32, i32
  }
  func.func @transform_3(%arg0: i32) -> (i32, i32, i32) {
    %c0_i32 = arith.constant 0 : i32
    %c0_i32_0 = arith.constant 0 : i32
    %c0_i32_1 = arith.constant 0 : i32
    %c0_i32_2 = arith.constant 0 : i32
    return %c0_i32, %c0_i32_0, %c0_i32_1 : i32, i32, i32
  }
  func.func @transform_4(%arg0: i32) -> (i32, i32) {
    %c0_i32 = arith.constant 0 : i32
    %c0_i32_0 = arith.constant 0 : i32
    %c0_i32_1 = arith.constant 0 : i32
    return %c0_i32, %c0_i32_0 : i32, i32
  }
  func.func @transform_5(%arg0: i32) -> (i32, i32) {
    %c0_i32 = arith.constant 0 : i32
    %c0_i32_0 = arith.constant 0 : i32
    %c0_i32_1 = arith.constant 0 : i32
    return %c0_i32, %c0_i32_0 : i32, i32
  }
  func.func @transform_6(%arg0: i32) -> (i32, i32, i32) {
    %c0_i32 = arith.constant 0 : i32
    %c0_i32_0 = arith.constant 0 : i32
    %c0_i32_1 = arith.constant 0 : i32
    return %arg0, %c0_i32, %c0_i32_0 : i32, i32, i32
  }
}

</mosaic_0001>

<llo_original>
// kernel: resblock_pallas.1
$region0: #{resblock_pallas.1}
  #allocation0 [shape = 'u32[]', space=smem, size = 0x4, offset = 0x4, fixed_abs, tag = 'smem constant byte address 0x4 - core index']
  #allocation1 [shape = 'u32[144,128]{1,0:T(1,128)}', space=vmem, size = 0x12000, scoped, tag = 'internal scratch']
  %s0 = inlined_call_operand.vmem [shape: f32[2,4,1152], index: 0, kind: input, shape index: {}]
  %s1 = inlined_call_operand.vmem [shape: f32[9,4,4], index: 1, kind: input, shape index: {}]
  %s2 = inlined_call_operand.vmem [shape: f32[4,1], index: 2, kind: input, shape index: {}]
  %s3 = inlined_call_operand.vmem [shape: f32[9,4,4], index: 3, kind: input, shape index: {}]
  %s4 = inlined_call_operand.vmem [shape: f32[4,1], index: 4, kind: input, shape index: {}]
  %s5 = inlined_call_operand.vmem [shape: f32[1,1152], index: 5, kind: input, shape index: {}]
  %s6 = inlined_call_operand.vmem [shape: f32[2,4,1152], index: 6, kind: output, shape index: {}]
  %s7 = sld [smem:[#allocation0]]
  $region57: #{resblock_pallas.1} parent=0
    _
  %s9 = ssub.s32 1, %s7
  %s10 = scalar_select 0, %s9, %s7
  loop: start=0, step=1, limit=4
  $region2: #{resblock_pallas.1} parent=0 // loop_pre_header
    _
  $region3: #{resblock_pallas.1} parent=0 // loop_header
    %s12 = sphi 0, %s16
    %p13 = scmp.ge.s32.totalorder %s12, 4
    %s22 = sphi 0, %s24
    %s25 = sphi 0, %s22
    %s26 = sphi 0, %s25
    %s42 = sphi 0, %s26
    %s46 = sphi 0, %s46
    %s48 = sphi 0, %s46
    %s49 = sphi 0, %s48
    %s63 = sphi 0, %s49
    %s67 = sphi 0, %s67
    %s69 = sphi 0, %s67
    %s70 = sphi 0, %s69
    %s84 = sphi 0, %s70
    %s88 = sphi 0, %s88
    %s90 = sphi 0, %s88
    %s91 = sphi 0, %s90
    %s105 = sphi 0, %s91
    %s109 = sphi 0, %s109
    %s111 = sphi 0, %s109
    %s112 = sphi 0, %s111
    %s126 = sphi 0, %s112
    %s130 = sphi 0, %s130
    %s132 = sphi 0, %s130
    %s133 = sphi 0, %s132
    %s147 = sphi 0, %s133
    %s153 = sphi 0, %s155
    %s156 = sphi 0, %s153
    %s157 = sphi 0, %s156
    %s173 = sphi 0, %s157
  $region4: #{resblock_pallas.1} parent=0 // loop_header_branch
    %15 = sbr.rel (%p13) target = $region8
  $region5: #{resblock_pallas.1} parent=0 // loop_body
    %s17 = ssub.s32 %s12, 1
    %s18 = ssub.s32 %s12, 2
    %s19 = sadd.s32 %s12, 1
    %s20 = ssub.s32 %s12, %s19
    %p21 = scmp.eq.s32.totalorder %s20, 0
    %s23 = sadd.s32 %s22, 1
    %s24 = scalar_select %p21, %s22, %s23
    %p27 = pneg %p21
    %p28 = scmp.eq.s32.totalorder %s12, 1
    %p29 = por %p27, %p28
    %p30 = scmp.ne.s32.totalorder %s22, %s25
    %p31 = scmp.eq.s32.totalorder %s12, 0
    %p32 = por %p30, %p31
    %p33 = scmp.ne.s32.totalorder %s22, %s25
    %p34 = scmp.eq.s32.totalorder %s17, 1
    %p35 = por %p33, %p34
    %p36 = scmp.ne.s32.totalorder %s25, %s26
    %p37 = scmp.eq.s32.totalorder %s17, 0
    %p38 = por %p36, %p37
    %p39 = scmp.ne.s32.totalorder %s25, %s26
    %p40 = scmp.eq.s32.totalorder %s18, 1
    %p41 = por %p39, %p40
    %p43 = scmp.ne.s32.totalorder %s26, %s42
    %p44 = scmp.eq.s32.totalorder %s18, 0
    %p45 = por %p43, %p44
    %s47 = sadd.s32 %s46, 1
    %p50 = scmp.eq.s32.totalorder %s12, 1
    %p51 = scmp.ne.s32.totalorder %s46, %s48
    %p52 = scmp.eq.s32.totalorder %s12, 0
    %p53 = por %p51, %p52
    %p54 = scmp.ne.s32.totalorder %s46, %s48
    %p55 = scmp.eq.s32.totalorder %s17, 1
    %p56 = por %p54, %p55
    %p57 = scmp.ne.s32.totalorder %s48, %s49
    %p58 = scmp.eq.s32.totalorder %s17, 0
    %p59 = por %p57, %p58
    %p60 = scmp.ne.s32.totalorder %s48, %s49
    %p61 = scmp.eq.s32.totalorder %s18, 1
    %p62 = por %p60, %p61
    %p64 = scmp.ne.s32.totalorder %s49, %s63
    %p65 = scmp.eq.s32.totalorder %s18, 0
    %p66 = por %p64, %p65
    %s68 = sadd.s32 %s67, 1
    %p71 = scmp.eq.s32.totalorder %s12, 1
    %p72 = scmp.ne.s32.totalorder %s67, %s69
    %p73 = scmp.eq.s32.totalorder %s12, 0
    %p74 = por %p72, %p73
    %p75 = scmp.ne.s32.totalorder %s67, %s69
    %p76 = scmp.eq.s32.totalorder %s17, 1
    %p77 = por %p75, %p76
    %p78 = scmp.ne.s32.totalorder %s69, %s70
    %p79 = scmp.eq.s32.totalorder %s17, 0
    %p80 = por %p78, %p79
    %p81 = scmp.ne.s32.totalorder %s69, %s70
    %p82 = scmp.eq.s32.totalorder %s18, 1
    %p83 = por %p81, %p82
    %p85 = scmp.ne.s32.totalorder %s70, %s84
    %p86 = scmp.eq.s32.totalorder %s18, 0
    %p87 = por %p85, %p86
    %s89 = sadd.s32 %s88, 1
    %p92 = scmp.eq.s32.totalorder %s12, 1
    %p93 = scmp.ne.s32.totalorder %s88, %s90
    %p94 = scmp.eq.s32.totalorder %s12, 0
    %p95 = por %p93, %p94
    %p96 = scmp.ne.s32.totalorder %s88, %s90
    %p97 = scmp.eq.s32.totalorder %s17, 1
    %p98 = por %p96, %p97
    %p99 = scmp.ne.s32.totalorder %s90, %s91
    %p100 = scmp.eq.s32.totalorder %s17, 0
    %p101 = por %p99, %p100
    %p102 = scmp.ne.s32.totalorder %s90, %s91
    %p103 = scmp.eq.s32.totalorder %s18, 1
    %p104 = por %p102, %p103
    %p106 = scmp.ne.s32.totalorder %s91, %s105
    %p107 = scmp.eq.s32.totalorder %s18, 0
    %p108 = por %p106, %p107
    %s110 = sadd.s32 %s109, 1
    %p113 = scmp.eq.s32.totalorder %s12, 1
    %p114 = scmp.ne.s32.totalorder %s109, %s111
    %p115 = scmp.eq.s32.totalorder %s12, 0
    %p116 = por %p114, %p115
    %p117 = scmp.ne.s32.totalorder %s109, %s111
    %p118 = scmp.eq.s32.totalorder %s17, 1
    %p119 = por %p117, %p118
    %p120 = scmp.ne.s32.totalorder %s111, %s112
    %p121 = scmp.eq.s32.totalorder %s17, 0
    %p122 = por %p120, %p121
    %p123 = scmp.ne.s32.totalorder %s111, %s112
    %p124 = scmp.eq.s32.totalorder %s18, 1
    %p125 = por %p123, %p124
    %p127 = scmp.ne.s32.totalorder %s112, %s126
    %p128 = scmp.eq.s32.totalorder %s18, 0
    %p129 = por %p127, %p128
    %s131 = sadd.s32 %s130, 1
    %p134 = scmp.eq.s32.totalorder %s12, 1
    %p135 = scmp.ne.s32.totalorder %s130, %s132
    %p136 = scmp.eq.s32.totalorder %s12, 0
    %p137 = por %p135, %p136
    %p138 = scmp.ne.s32.totalorder %s130, %s132
    %p139 = scmp.eq.s32.totalorder %s17, 1
    %p140 = por %p138, %p139
    %p141 = scmp.ne.s32.totalorder %s132, %s133
    %p142 = scmp.eq.s32.totalorder %s17, 0
    %p143 = por %p141, %p142
    %p144 = scmp.ne.s32.totalorder %s132, %s133
    %p145 = scmp.eq.s32.totalorder %s18, 1
    %p146 = por %p144, %p145
    %p148 = scmp.ne.s32.totalorder %s133, %s147
    %p149 = scmp.eq.s32.totalorder %s18, 0
    %p150 = por %p148, %p149
    %s151 = ssub.s32 %s12, %s19
    %p152 = scmp.eq.s32.totalorder %s151, 0
    %s154 = sadd.s32 %s153, 1
    %s155 = scalar_select %p152, %s153, %s154
    %p158 = pneg %p152
    %p159 = scmp.eq.s32.totalorder %s12, 1
    %p160 = por %p158, %p159
    %p161 = scmp.ne.s32.totalorder %s153, %s156
    %p162 = scmp.eq.s32.totalorder %s12, 0
    %p163 = por %p161, %p162
    %p164 = scmp.ne.s32.totalorder %s153, %s156
    %p165 = scmp.eq.s32.totalorder %s17, 1
    %p166 = por %p164, %p165
    %p167 = scmp.ne.s32.totalorder %s156, %s157
    %p168 = scmp.eq.s32.totalorder %s17, 0
    %p169 = por %p167, %p168
    %p170 = scmp.ne.s32.totalorder %s156, %s157
    %p171 = scmp.eq.s32.totalorder %s18, 1
    %p172 = por %p170, %p171
    %p174 = scmp.ne.s32.totalorder %s157, %s173
    %p175 = scmp.eq.s32.totalorder %s18, 0
    %p176 = por %p174, %p175
    %p177 = scmp.le.s32.totalorder 1, %s12
    %p178 = scmp.lt.s32.totalorder %s12, 3
    %p179 = pnand %p177, %p178
    %p180 = pneg %p179
    // Predicated region
    $region9: #{resblock_pallas.1} parent=5 // pred_check
      _
    $region10: #{resblock_pallas.1} parent=5 // pred_check_branch
      %182 = sbr.rel (%p179) target = $region12
    $region11: #{resblock_pallas.1} parent=5 // pred_region
      %s183 = ssub.s32 %s12, 1
      // Predicated region
      $region13: #{resblock_pallas.1} parent=11 // pred_check
        %p184 = pneg %p59
      $region14: #{resblock_pallas.1} parent=11 // pred_check_branch
        %186 = sbr.rel (%p184) target = $region16
      $region15: #{resblock_pallas.1} parent=11 // pred_region
        _
      $region16: #{resblock_pallas.1} parent=11 // pred_fallthru
        _
      // Predicated region
      $region17: #{resblock_pallas.1} parent=11 // pred_check
        %p187 = pneg %p80
      $region18: #{resblock_pallas.1} parent=11 // pred_check_branch
        %189 = sbr.rel (%p187) target = $region20
      $region19: #{resblock_pallas.1} parent=11 // pred_region
        _
      $region20: #{resblock_pallas.1} parent=11 // pred_fallthru
        _
      // Predicated region
      $region21: #{resblock_pallas.1} parent=11 // pred_check
        %p190 = pneg %p101
      $region22: #{resblock_pallas.1} parent=11 // pred_check_branch
        %192 = sbr.rel (%p190) target = $region24
      $region23: #{resblock_pallas.1} parent=11 // pred_region
        _
      $region24: #{resblock_pallas.1} parent=11 // pred_fallthru
        _
      // Predicated region
      $region25: #{resblock_pallas.1} parent=11 // pred_check
        %p193 = pneg %p122
      $region26: #{resblock_pallas.1} parent=11 // pred_check_branch
        %195 = sbr.rel (%p193) target = $region28
      $region27: #{resblock_pallas.1} parent=11 // pred_region
        _
      $region28: #{resblock_pallas.1} parent=11 // pred_fallthru
        _
      // Predicated region
      $region29: #{resblock_pallas.1} parent=11 // pred_check
        %p196 = pneg %p143
      $region30: #{resblock_pallas.1} parent=11 // pred_check_branch
        %198 = sbr.rel (%p196) target = $region32
      $region31: #{resblock_pallas.1} parent=11 // pred_region
        _
      $region32: #{resblock_pallas.1} parent=11 // pred_fallthru
        _
    $region12: #{resblock_pallas.1} parent=5 // pred_fallthru
      _
    %p199 = scmp.lt.s32.totalorder %s12, 2
    // Predicated region
    $region33: #{resblock_pallas.1} parent=5 // pred_check
      %p200 = pneg %p199
    $region34: #{resblock_pallas.1} parent=5 // pred_check_branch
      %202 = sbr.rel (%p200) target = $region36
    $region35: #{resblock_pallas.1} parent=5 // pred_region
      // Predicated region
      $region37: #{resblock_pallas.1} parent=35 // pred_check
        %p203 = pneg %p32
      $region38: #{resblock_pallas.1} parent=35 // pred_check_branch
        %205 = sbr.rel (%p203) target = $region40
      $region39: #{resblock_pallas.1} parent=35 // pred_region
        %p206 = scmp.lt.s32.totalorder %s12, 1
        %s207 = scalar_select %p206, %s12, 1
        %s208 = smul.addr %s207, 9
        %s209 = smul.addr %s208, 4
        %s210 = scalar_lea.vmem %s0, %s209
      $region40: #{resblock_pallas.1} parent=35 // pred_fallthru
        _
    $region36: #{resblock_pallas.1} parent=5 // pred_fallthru
      _
    %p211 = scmp.le.s32.totalorder 1, %s12
    %p212 = scmp.lt.s32.totalorder %s12, 3
    %p213 = pnand %p211, %p212
    %p214 = pneg %p213
    // Predicated region
    $region41: #{resblock_pallas.1} parent=5 // pred_check
      _
    $region42: #{resblock_pallas.1} parent=5 // pred_check_branch
      %216 = sbr.rel (%p213) target = $region44
    $region43: #{resblock_pallas.1} parent=5 // pred_region
      %s217 = ssub.s32 %s12, 1
      %p218 = scmp.lt.s32.totalorder %s17, 1
      %s219 = scalar_select %p218, %s17, 1
      %s220 = smul.addr %s219, 9
      %s221 = smul.addr %s220, 4
      %s222 = scalar_lea.vmem %s0, %s221
      %p223 = pneg %p38
      %p224 = pneg %p35
      %p225 = pneg %p59
      %p226 = pneg %p56
      %p227 = pneg %p80
      %p228 = pneg %p77
      %p229 = pneg %p101
      %p230 = pneg %p98
      %p231 = pneg %p122
      %p232 = pneg %p119
      %p233 = pneg %p143
      %p234 = pneg %p140
      %p235 = pneg %p169
      %p236 = pneg %p166
      %p237 = scmp.lt.s32.totalorder %s17, 1
      %s238 = scalar_select %p237, %s17, 1
      %s239 = smul.addr %s238, 9
      %s240 = smul.addr %s239, 4
      %s241 = scalar_lea.vmem %s6, %s240
      %p242 = scmp.lt.s32.totalorder %s17, 1
      %s243 = scalar_select %p242, %s17, 1
      %s244 = smul.addr %s243, 9
      %s245 = smul.addr %s244, 4
      %s246 = scalar_lea.vmem %s0, %s245
      %p247 = scmp.lt.s32.totalorder %s17, 1
      %s248 = scalar_select %p247, %s17, 1
      %s249 = smul.addr %s248, 9
      %s250 = smul.addr %s249, 4
      %s251 = scalar_lea.vmem %s6, %s250
      %v252 = vld [vmem:[%s246] sm:$0xff]
      %v253 = vld [vmem:[%s246 + $0x8] sm:$0xff]
      %v254 = vld [vmem:[%s246 + $0x10] sm:$0xff]
      %v255 = vld [vmem:[%s246 + $0x18] sm:$0xff]
      %v256 = vld [vmem:[%s246 + $0x20] sm:$0xf]
      %v262 = vcombine.high %v252, %v252
      %v263 = vcombine.high %v253, %v253
      %v264 = vcombine.high %v254, %v254
      %v265 = vcombine.high %v255, %v255
      %270 = vrot.lane.b32.xlu0 %v252, 19
      %v271 = vpop.permute.xlu0 %270
      %272 = vrot.lane.b32.xlu0 %v262, 19
      %v273 = vpop.permute.xlu0 %272
      %274 = vrot.lane.b32.xlu0 %v253, 19
      %v275 = vpop.permute.xlu0 %274
      %276 = vrot.lane.b32.xlu0 %v263, 19
      %v277 = vpop.permute.xlu0 %276
      %278 = vrot.lane.b32.xlu0 %v254, 19
      %v279 = vpop.permute.xlu0 %278
      %280 = vrot.lane.b32.xlu0 %v264, 19
      %v281 = vpop.permute.xlu0 %280
      %282 = vrot.lane.b32.xlu0 %v255, 19
      %v283 = vpop.permute.xlu0 %282
      %284 = vrot.lane.b32.xlu0 %v265, 19
      %v285 = vpop.permute.xlu0 %284
      %286 = vrot.lane.b32.xlu0 %v256, 19
      %v287 = vpop.permute.xlu0 %286
      %v288 = vlaneseq
      %v289 = vand.u32 %v288, 127
      %vm290 = vcmp.lt.s32.totalorder %v289, 19
      %v291 = vsel %vm290, %v285, %v287
      %v292 = vsel %vm290, %v283, %v285
      %v293 = vsel %vm290, %v281, %v283
      %v294 = vsel %vm290, %v279, %v281
      %v295 = vsel %vm290, %v277, %v279
      %v296 = vsel %vm290, %v275, %v277
      %v297 = vsel %vm290, %v273, %v275
      %v298 = vsel %vm290, %v271, %v273
      %v299 = vsel %vm290, %v287, %v271
      %v300 = vld [vmem:[%s1] sm:$0xf]
      %301 = vrot.lane.b32.xlu0 %v252, 18
      %v302 = vpop.permute.xlu0 %301
      %303 = vrot.lane.b32.xlu0 %v262, 18
      %v304 = vpop.permute.xlu0 %303
      %305 = vrot.lane.b32.xlu0 %v253, 18
      %v306 = vpop.permute.xlu0 %305
      %307 = vrot.lane.b32.xlu0 %v263, 18
      %v308 = vpop.permute.xlu0 %307
      %309 = vrot.lane.b32.xlu0 %v254, 18
      %v310 = vpop.permute.xlu0 %309
      %311 = vrot.lane.b32.xlu0 %v264, 18
      %v312 = vpop.permute.xlu0 %311
      %313 = vrot.lane.b32.xlu0 %v255, 18
      %v314 = vpop.permute.xlu0 %313
      %315 = vrot.lane.b32.xlu0 %v265, 18
      %v316 = vpop.permute.xlu0 %315
      %317 = vrot.lane.b32.xlu0 %v256, 18
      %v318 = vpop.permute.xlu0 %317
      %vm319 = vcmp.lt.s32.totalorder %v289, 18
      %v320 = vsel %vm319, %v316, %v318
      %v321 = vsel %vm319, %v314, %v316
      %v322 = vsel %vm319, %v312, %v314
      %v323 = vsel %vm319, %v310, %v312
      %v324 = vsel %vm319, %v308, %v310
      %v325 = vsel %vm319, %v306, %v308
      %v326 = vsel %vm319, %v304, %v306
      %v327 = vsel %vm319, %v302, %v304
      %v328 = vsel %vm319, %v318, %v302
      %s329 = scalar_lea.vmem %s1, 4
      %v330 = vld [vmem:[%s329] sm:$0xf]
      %vm331 = vcmask 31744
      %v333 = vsel %vm331, %v330, 0
      %vm335 = vcmask 1043456
      %v337 = vsel %vm335, %v328, 0
      %v340 = vsel %vm335, %v327, 0
      %v343 = vsel %vm335, %v326, 0
      %v346 = vsel %vm335, %v325, 0
      %v349 = vsel %vm335, %v324, 0
      %v352 = vsel %vm335, %v323, 0
      %v355 = vsel %vm335, %v322, 0
      %v358 = vsel %vm335, %v321, 0
      %v361 = vsel %vm335, %v320, 0
      %363 = vmatprep.subr.mxu0 %v340
      %364 = vmatpush1.msra.mxu0 %v337
      %365 = vmatprep.subr.mxu0 0.0
      %366 = vmatpush1.msra.mxu0 0.0
      %367 = vmatprep.subr.mxu0 0.0
      %368 = vmatpush1.msra.mxu0 0.0
      %369 = vmatprep.subr.mxu0 0.0
      %370 = vmatpush1.msra.mxu0 0.0
      %371 = vmatprep.subr.mxu0 0.0
      %372 = vmatpush1.msra.mxu0 0.0
      %373 = vmatprep.subr.mxu0 0.0
      %374 = vmatpush1.msra.mxu0 0.0
      %375 = vmatprep.subr.mxu0 0.0
      %376 = vmatpush1.msra.mxu0 0.0
      %377 = vmatprep.subr.mxu0 0.0
      %378 = vmatpush1.msra.mxu0 0.0
      %379 = vmatprep.subr.mxu0 0.0
      %380 = vmatpush1.msra.mxu0 0.0
      %381 = vmatprep.subr.mxu0 0.0
      %382 = vmatpush1.msra.mxu0 0.0
      %383 = vmatprep.subr.mxu0 0.0
      %384 = vmatpush1.msra.mxu0 0.0
      %385 = vmatprep.subr.mxu0 0.0
      %386 = vmatpush1.msra.mxu0 0.0
      %387 = vmatprep.subr.mxu0 0.0
      %388 = vmatpush1.msra.mxu0 0.0
      %389 = vmatprep.subr.mxu0 0.0
      %390 = vmatpush1.msra.mxu0 0.0
      %391 = vmatprep.subr.mxu0 0.0
      %392 = vmatpush1.msra.mxu0 0.0
      %393 = vmatprep.subr.mxu0 0.0
      %394 = vmatpush1.msra.mxu0 0.0
      %395 = vmatprep.subr.mxu0 0.0
      %396 = vmatpush1.msra.mxu0 0.0
      %397 = vmatprep.subr.mxu0 0.0
      %398 = vmatpush1.msra.mxu0 0.0
      %399 = vmatprep.subr.mxu0 0.0
      %400 = vmatpush1.msra.mxu0 0.0
      %401 = vmatprep.subr.mxu0 0.0
      %402 = vmatpush1.msra.mxu0 0.0
      %403 = vmatprep.subr.mxu0 0.0
      %404 = vmatpush1.msra.mxu0 0.0
      %405 = vmatprep.subr.mxu0 0.0
      %406 = vmatpush1.msra.mxu0 0.0
      %407 = vmatprep.subr.mxu0 0.0
      %408 = vmatpush1.msra.mxu0 0.0
      %409 = vmatprep.subr.mxu0 0.0
      %410 = vmatpush1.msra.mxu0 0.0
      %411 = vmatprep.subr.mxu0 0.0
      %412 = vmatpush1.msra.mxu0 0.0
      %413 = vmatprep.subr.mxu0 0.0
      %414 = vmatpush1.msra.mxu0 0.0
      %415 = vmatprep.subr.mxu0 0.0
      %416 = vmatpush1.msra.mxu0 0.0
      %417 = vmatprep.subr.mxu0 0.0
      %418 = vmatpush1.msra.mxu0 0.0
      %419 = vmatprep.subr.mxu0 0.0
      %420 = vmatpush1.msra.mxu0 0.0
      %421 = vmatprep.subr.mxu0 0.0
      %422 = vmatpush1.msra.mxu0 0.0
      %423 = vmatprep.subr.mxu0 0.0
      %424 = vmatpush1.msra.mxu0 0.0
      %425 = vmatprep.subr.mxu0 0.0
      %426 = vmatpush1.msra.mxu0 0.0
      %427 = vmatprep.mubr.f32.mxu0 0.0
      %428 = vmatmul.mubr.f32.gmra.mrb[0].mxu0 %v333
      %v429 = vpop.f32.mrb[0].mxu0
      %v430 = vadd.f32 0.0, %v429
      %v431 = vpop.f32.mrb[0].mxu0
      %v432 = vadd.f32 0.0, %v431
      %433 = vdwg.mxu0
      %434 = vmatprep.subr.mxu0 %v346
      %435 = vmatpush1.msra.mxu0 %v343
      %436 = vmatprep.subr.mxu0 0.0
      %437 = vmatpush1.msra.mxu0 0.0
      %438 = vmatprep.subr.mxu0 0.0
      %439 = vmatpush1.msra.mxu0 0.0
      %440 = vmatprep.subr.mxu0 0.0
      %441 = vmatpush1.msra.mxu0 0.0
      %442 = vmatprep.subr.mxu0 0.0
      %443 = vmatpush1.msra.mxu0 0.0
      %444 = vmatprep.subr.mxu0 0.0
      %445 = vmatpush1.msra.mxu0 0.0
      %446 = vmatprep.subr.mxu0 0.0
      %447 = vmatpush1.msra.mxu0 0.0
      %448 = vmatprep.subr.mxu0 0.0
      %449 = vmatpush1.msra.mxu0 0.0
      %450 = vmatprep.subr.mxu0 0.0
      %451 = vmatpush1.msra.mxu0 0.0
      %452 = vmatprep.subr.mxu0 0.0
      %453 = vmatpush1.msra.mxu0 0.0
      %454 = vmatprep.subr.mxu0 0.0
      %455 = vmatpush1.msra.mxu0 0.0
      %456 = vmatprep.subr.mxu0 0.0
      %457 = vmatpush1.msra.mxu0 0.0
      %458 = vmatprep.subr.mxu0 0.0
      %459 = vmatpush1.msra.mxu0 0.0
      %460 = vmatprep.subr.mxu0 0.0
      %461 = vmatpush1.msra.mxu0 0.0
      %462 = vmatprep.subr.mxu0 0.0
      %463 = vmatpush1.msra.mxu0 0.0
      %464 = vmatprep.subr.mxu0 0.0
      %465 = vmatpush1.msra.mxu0 0.0
      %466 = vmatprep.subr.mxu0 0.0
      %467 = vmatpush1.msra.mxu0 0.0
      %468 = vmatprep.subr.mxu0 0.0
      %469 = vmatpush1.msra.mxu0 0.0
      %470 = vmatprep.subr.mxu0 0.0
      %471 = vmatpush1.msra.mxu0 0.0
      %472 = vmatprep.subr.mxu0 0.0
      %473 = vmatpush1.msra.mxu0 0.0
      %474 = vmatprep.subr.mxu0 0.0
      %475 = vmatpush1.msra.mxu0 0.0
      %476 = vmatprep.subr.mxu0 0.0
      %477 = vmatpush1.msra.mxu0 0.0
      %478 = vmatprep.subr.mxu0 0.0
      %479 = vmatpush1.msra.mxu0 0.0
      %480 = vmatprep.subr.mxu0 0.0
      %481 = vmatpush1.msra.mxu0 0.0
      %482 = vmatprep.subr.mxu0 0.0
      %483 = vmatpush1.msra.mxu0 0.0
      %484 = vmatprep.subr.mxu0 0.0
      %485 = vmatpush1.msra.mxu0 0.0
      %486 = vmatprep.subr.mxu0 0.0
      %487 = vmatpush1.msra.mxu0 0.0
      %488 = vmatprep.subr.mxu0 0.0
      %489 = vmatpush1.msra.mxu0 0.0
      %490 = vmatprep.subr.mxu0 0.0
      %491 = vmatpush1.msra.mxu0 0.0
      %492 = vmatprep.subr.mxu0 0.0
      %493 = vmatpush1.msra.mxu0 0.0
      %494 = vmatprep.subr.mxu0 0.0
      %495 = vmatpush1.msra.mxu0 0.0
      %496 = vmatprep.subr.mxu0 0.0
      %497 = vmatpush1.msra.mxu0 0.0
      %498 = vmatprep.mubr.f32.mxu0 0.0
      %499 = vmatmul.mubr.f32.gmra.mrb[0].mxu0 %v333
      %v500 = vpop.f32.mrb[0].mxu0
      %v501 = vadd.f32 0.0, %v500
      %v502 = vpop.f32.mrb[0].mxu0
      %v503 = vadd.f32 0.0, %v502
      %504 = vdwg.mxu0
      %505 = vmatprep.subr.mxu0 %v352
      %506 = vmatpush1.msra.mxu0 %v349
      %507 = vmatprep.subr.mxu0 0.0
      %508 = vmatpush1.msra.mxu0 0.0
      %509 = vmatprep.subr.mxu0 0.0
      %510 = vmatpush1.msra.mxu0 0.0
      %511 = vmatprep.subr.mxu0 0.0
      %512 = vmatpush1.msra.mxu0 0.0
      %513 = vmatprep.subr.mxu0 0.0
      %514 = vmatpush1.msra.mxu0 0.0
      %515 = vmatprep.subr.mxu0 0.0
      %516 = vmatpush1.msra.mxu0 0.0
      %517 = vmatprep.subr.mxu0 0.0
      %518 = vmatpush1.msra.mxu0 0.0
      %519 = vmatprep.subr.mxu0 0.0
      %520 = vmatpush1.msra.mxu0 0.0
      %521 = vmatprep.subr.mxu0 0.0
      %522 = vmatpush1.msra.mxu0 0.0
      %523 = vmatprep.subr.mxu0 0.0
      %524 = vmatpush1.msra.mxu0 0.0
      %525 = vmatprep.subr.mxu0 0.0
      %526 = vmatpush1.msra.mxu0 0.0
      %527 = vmatprep.subr.mxu0 0.0
      %528 = vmatpush1.msra.mxu0 0.0
      %529 = vmatprep.subr.mxu0 0.0
      %530 = vmatpush1.msra.mxu0 0.0
      %531 = vmatprep.subr.mxu0 0.0
      %532 = vmatpush1.msra.mxu0 0.0
      %533 = vmatprep.subr.mxu0 0.0
      %534 = vmatpush1.msra.mxu0 0.0
      %535 = vmatprep.subr.mxu0 0.0
      %536 = vmatpush1.msra.mxu0 0.0
      %537 = vmatprep.subr.mxu0 0.0
      %538 = vmatpush1.msra.mxu0 0.0
      %539 = vmatprep.subr.mxu0 0.0
      %540 = vmatpush1.msra.mxu0 0.0
      %541 = vmatprep.subr.mxu0 0.0
      %542 = vmatpush1.msra.mxu0 0.0
      %543 = vmatprep.subr.mxu0 0.0
      %544 = vmatpush1.msra.mxu0 0.0
      %545 = vmatprep.subr.mxu0 0.0
      %546 = vmatpush1.msra.mxu0 0.0
      %547 = vmatprep.subr.mxu0 0.0
      %548 = vmatpush1.msra.mxu0 0.0
      %549 = vmatprep.subr.mxu0 0.0
      %550 = vmatpush1.msra.mxu0 0.0
      %551 = vmatprep.subr.mxu0 0.0
      %552 = vmatpush1.msra.mxu0 0.0
      %553 = vmatprep.subr.mxu0 0.0
      %554 = vmatpush1.msra.mxu0 0.0
      %555 = vmatprep.subr.mxu0 0.0
      %556 = vmatpush1.msra.mxu0 0.0
      %557 = vmatprep.subr.mxu0 0.0
      %558 = vmatpush1.msra.mxu0 0.0
      %559 = vmatprep.subr.mxu0 0.0
      %560 = vmatpush1.msra.mxu0 0.0
      %561 = vmatprep.subr.mxu0 0.0
      %562 = vmatpush1.msra.mxu0 0.0
      %563 = vmatprep.subr.mxu0 0.0
      %564 = vmatpush1.msra.mxu0 0.0
      %565 = vmatprep.subr.mxu0 0.0
      %566 = vmatpush1.msra.mxu0 0.0
      %567 = vmatprep.subr.mxu0 0.0
      %568 = vmatpush1.msra.mxu0 0.0
      %569 = vmatprep.mubr.f32.mxu0 0.0
      %570 = vmatmul.mubr.f32.gmra.mrb[0].mxu0 %v333
      %v571 = vpop.f32.mrb[0].mxu0
      %v572 = vadd.f32 0.0, %v571
      %v573 = vpop.f32.mrb[0].mxu0
      %v574 = vadd.f32 0.0, %v573
      %575 = vdwg.mxu0
      %576 = vmatprep.subr.mxu0 %v358
      %577 = vmatpush1.msra.mxu0 %v355
      %578 = vmatprep.subr.mxu0 0.0
      %579 = vmatpush1.msra.mxu0 0.0
      %580 = vmatprep.subr.mxu0 0.0
      %581 = vmatpush1.msra.mxu0 0.0
      %582 = vmatprep.subr.mxu0 0.0
      %583 = vmatpush1.msra.mxu0 0.0
      %584 = vmatprep.subr.mxu0 0.0
      %585 = vmatpush1.msra.mxu0 0.0
      %586 = vmatprep.subr.mxu0 0.0
      %587 = vmatpush1.msra.mxu0 0.0
      %588 = vmatprep.subr.mxu0 0.0
      %589 = vmatpush1.msra.mxu0 0.0
      %590 = vmatprep.subr.mxu0 0.0
      %591 = vmatpush1.msra.mxu0 0.0
      %592 = vmatprep.subr.mxu0 0.0
      %593 = vmatpush1.msra.mxu0 0.0
      %594 = vmatprep.subr.mxu0 0.0
      %595 = vmatpush1.msra.mxu0 0.0
      %596 = vmatprep.subr.mxu0 0.0
      %597 = vmatpush1.msra.mxu0 0.0
      %598 = vmatprep.subr.mxu0 0.0
      %599 = vmatpush1.msra.mxu0 0.0
      %600 = vmatprep.subr.mxu0 0.0
      %601 = vmatpush1.msra.mxu0 0.0
      %602 = vmatprep.subr.mxu0 0.0
      %603 = vmatpush1.msra.mxu0 0.0
      %604 = vmatprep.subr.mxu0 0.0
      %605 = vmatpush1.msra.mxu0 0.0
      %606 = vmatprep.subr.mxu0 0.0
      %607 = vmatpush1.msra.mxu0 0.0
      %608 = vmatprep.subr.mxu0 0.0
      %609 = vmatpush1.msra.mxu0 0.0
      %610 = vmatprep.subr.mxu0 0.0
      %611 = vmatpush1.msra.mxu0 0.0
      %612 = vmatprep.subr.mxu0 0.0
      %613 = vmatpush1.msra.mxu0 0.0
      %614 = vmatprep.subr.mxu0 0.0
      %615 = vmatpush1.msra.mxu0 0.0
      %616 = vmatprep.subr.mxu0 0.0
      %617 = vmatpush1.msra.mxu0 0.0
      %618 = vmatprep.subr.mxu0 0.0
      %619 = vmatpush1.msra.mxu0 0.0
      %620 = vmatprep.subr.mxu0 0.0
      %621 = vmatpush1.msra.mxu0 0.0
      %622 = vmatprep.subr.mxu0 0.0
      %623 = vmatpush1.msra.mxu0 0.0
      %624 = vmatprep.subr.mxu0 0.0
      %625 = vmatpush1.msra.mxu0 0.0
      %626 = vmatprep.subr.mxu0 0.0
      %627 = vmatpush1.msra.mxu0 0.0
      %628 = vmatprep.subr.mxu0 0.0
      %629 = vmatpush1.msra.mxu0 0.0
      %630 = vmatprep.subr.mxu0 0.0
      %631 = vmatpush1.msra.mxu0 0.0
      %632 = vmatprep.subr.mxu0 0.0
      %633 = vmatpush1.msra.mxu0 0.0
      %634 = vmatprep.subr.mxu0 0.0
      %635 = vmatpush1.msra.mxu0 0.0
      %636 = vmatprep.subr.mxu0 0.0
      %637 = vmatpush1.msra.mxu0 0.0
      %638 = vmatprep.subr.mxu0 0.0
      %639 = vmatpush1.msra.mxu0 0.0
      %640 = vmatprep.mubr.f32.mxu0 0.0
      %641 = vmatmul.mubr.f32.gmra.mrb[0].mxu0 %v333
      %v642 = vpop.f32.mrb[0].mxu0
      %v643 = vadd.f32 0.0, %v642
      %v644 = vpop.f32.mrb[0].mxu0
      %v645 = vadd.f32 0.0, %v644
      %646 = vdwg.mxu0
      %647 = vmatprep.subr.mxu0 0.0
      %648 = vmatpush1.msra.mxu0 %v361
      %649 = vmatprep.subr.mxu0 0.0
      %650 = vmatpush1.msra.mxu0 0.0
      %651 = vmatprep.subr.mxu0 0.0
      %652 = vmatpush1.msra.mxu0 0.0
      %653 = vmatprep.subr.mxu0 0.0
      %654 = vmatpush1.msra.mxu0 0.0
      %655 = vmatprep.subr.mxu0 0.0
      %656 = vmatpush1.msra.mxu0 0.0
      %657 = vmatprep.subr.mxu0 0.0
      %658 = vmatpush1.msra.mxu0 0.0
      %659 = vmatprep.subr.mxu0 0.0
      %660 = vmatpush1.msra.mxu0 0.0
      %661 = vmatprep.subr.mxu0 0.0
      %662 = vmatpush1.msra.mxu0 0.0
      %663 = vmatprep.subr.mxu0 0.0
      %664 = vmatpush1.msra.mxu0 0.0
      %665 = vmatprep.subr.mxu0 0.0
      %666 = vmatpush1.msra.mxu0 0.0
      %667 = vmatprep.subr.mxu0 0.0
      %668 = vmatpush1.msra.mxu0 0.0
      %669 = vmatprep.subr.mxu0 0.0
      %670 = vmatpush1.msra.mxu0 0.0
      %671 = vmatprep.subr.mxu0 0.0
      %672 = vmatpush1.msra.mxu0 0.0
      %673 = vmatprep.subr.mxu0 0.0
      %674 = vmatpush1.msra.mxu0 0.0
      %675 = vmatprep.subr.mxu0 0.0
      %676 = vmatpush1.msra.mxu0 0.0
      %677 = vmatprep.subr.mxu0 0.0
      %678 = vmatpush1.msra.mxu0 0.0
      %679 = vmatprep.subr.mxu0 0.0
      %680 = vmatpush1.msra.mxu0 0.0
      %681 = vmatprep.subr.mxu0 0.0
      %682 = vmatpush1.msra.mxu0 0.0
      %683 = vmatprep.subr.mxu0 0.0
      %684 = vmatpush1.msra.mxu0 0.0
      %685 = vmatprep.subr.mxu0 0.0
      %686 = vmatpush1.msra.mxu0 0.0
      %687 = vmatprep.subr.mxu0 0.0
      %688 = vmatpush1.msra.mxu0 0.0
      %689 = vmatprep.subr.mxu0 0.0
      %690 = vmatpush1.msra.mxu0 0.0
      %691 = vmatprep.subr.mxu0 0.0
      %692 = vmatpush1.msra.mxu0 0.0
      %693 = vmatprep.subr.mxu0 0.0
      %694 = vmatpush1.msra.mxu0 0.0
      %695 = vmatprep.subr.mxu0 0.0
      %696 = vmatpush1.msra.mxu0 0.0
      %697 = vmatprep.subr.mxu0 0.0
      %698 = vmatpush1.msra.mxu0 0.0
      %699 = vmatprep.subr.mxu0 0.0
      %700 = vmatpush1.msra.mxu0 0.0
      %701 = vmatprep.subr.mxu0 0.0
      %702 = vmatpush1.msra.mxu0 0.0
      %703 = vmatprep.subr.mxu0 0.0
      %704 = vmatpush1.msra.mxu0 0.0
      %705 = vmatprep.subr.mxu0 0.0
      %706 = vmatpush1.msra.mxu0 0.0
      %707 = vmatprep.subr.mxu0 0.0
      %708 = vmatpush1.msra.mxu0 0.0
      %709 = vmatprep.subr.mxu0 0.0
      %710 = vmatpush1.msra.mxu0 0.0
      %711 = vmatprep.mubr.f32.mxu0 0.0
      %712 = vmatmul.mubr.f32.gmra.mrb[0].mxu0 %v333
      %v713 = vpop.f32.mrb[0].mxu0
      %v714 = vadd.f32 0.0, %v713
      %v715 = vpop.f32.mrb[0].mxu0
      %716 = vdwg.mxu0
      %v718 = vsel %vm331, %v300, 0
      %v721 = vsel %vm335, %v299, 0
      %v724 = vsel %vm335, %v298, 0
      %v727 = vsel %vm335, %v297, 0
      %v730 = vsel %vm335, %v296, 0
      %v733 = vsel %vm335, %v295, 0
      %v736 = vsel %vm335, %v294, 0
      %v739 = vsel %vm335, %v293, 0
      %v742 = vsel %vm335, %v292, 0
      %v745 = vsel %vm335, %v291, 0
      %747 = vmatprep.subr.mxu0 %v724
      %748 = vmatpush1.msra.mxu0 %v721
      %749 = vmatprep.subr.mxu0 0.0
      %750 = vmatpush1.msra.mxu0 0.0
      %751 = vmatprep.subr.mxu0 0.0
      %752 = vmatpush1.msra.mxu0 0.0
      %753 = vmatprep.subr.mxu0 0.0
      %754 = vmatpush1.msra.mxu0 0.0
      %755 = vmatprep.subr.mxu0 0.0
      %756 = vmatpush1.msra.mxu0 0.0
      %757 = vmatprep.subr.mxu0 0.0
      %758 = vmatpush1.msra.mxu0 0.0
      %759 = vmatprep.subr.mxu0 0.0
      %760 = vmatpush1.msra.mxu0 0.0
      %761 = vmatprep.subr.mxu0 0.0
      %762 = vmatpush1.msra.mxu0 0.0
      %763 = vmatprep.subr.mxu0 0.0
      %764 = vmatpush1.msra.mxu0 0.0
      %765 = vmatprep.subr.mxu0 0.0
      %766 = vmatpush1.msra.mxu0 0.0
      %767 = vmatprep.subr.mxu0 0.0
      %768 = vmatpush1.msra.mxu0 0.0
      %769 = vmatprep.subr.mxu0 0.0
      %770 = vmatpush1.msra.mxu0 0.0
      %771 = vmatprep.subr.mxu0 0.0
      %772 = vmatpush1.msra.mxu0 0.0
      %773 = vmatprep.subr.mxu0 0.0
      %774 = vmatpush1.msra.mxu0 0.0
      %775 = vmatprep.subr.mxu0 0.0
      %776 = vmatpush1.msra.mxu0 0.0
      %777 = vmatprep.subr.mxu0 0.0
      %778 = vmatpush1.msra.mxu0 0.0
      %779 = vmatprep.subr.mxu0 0.0
      %780 = vmatpush1.msra.mxu0 0.0
      %781 = vmatprep.subr.mxu0 0.0
      %782 = vmatpush1.msra.mxu0 0.0
      %783 = vmatprep.subr.mxu0 0.0
      %784 = vmatpush1.msra.mxu0 0.0
      %785 = vmatprep.subr.mxu0 0.0
      %786 = vmatpush1.msra.mxu0 0.0
      %787 = vmatprep.subr.mxu0 0.0
      %788 = vmatpush1.msra.mxu0 0.0
      %789 = vmatprep.subr.mxu0 0.0
      %790 = vmatpush1.msra.mxu0 0.0
      %791 = vmatprep.subr.mxu0 0.0
      %792 = vmatpush1.msra.mxu0 0.0
      %793 = vmatprep.subr.mxu0 0.0
      %794 = vmatpush1.msra.mxu0 0.0
      %795 = vmatprep.subr.mxu0 0.0
      %796 = vmatpush1.msra.mxu0 0.0
      %797 = vmatprep.subr.mxu0 0.0
      %798 = vmatpush1.msra.mxu0 0.0
      %799 = vmatprep.subr.mxu0 0.0
      %800 = vmatpush1.msra.mxu0 0.0
      %801 = vmatprep.subr.mxu0 0.0
      %802 = vmatpush1.msra.mxu0 0.0
      %803 = vmatprep.subr.mxu0 0.0
      %804 = vmatpush1.msra.mxu0 0.0
      %805 = vmatprep.subr.mxu0 0.0
      %806 = vmatpush1.msra.mxu0 0.0
      %807 = vmatprep.subr.mxu0 0.0
      %808 = vmatpush1.msra.mxu0 0.0
      %809 = vmatprep.subr.mxu0 0.0
      %810 = vmatpush1.msra.mxu0 0.0
      %811 = vmatprep.mubr.f32.mxu0 0.0
      %812 = vmatmul.mubr.f32.gmra.mrb[0].mxu0 %v718
      %v813 = vpop.f32.mrb[0].mxu0
      %v814 = vadd.f32 %v430, %v813
      %v815 = vpop.f32.mrb[0].mxu0
      %v816 = vadd.f32 %v432, %v815
      %817 = vdwg.mxu0
      %818 = vmatprep.subr.mxu0 %v730
      %819 = vmatpush1.msra.mxu0 %v727
      %820 = vmatprep.subr.mxu0 0.0
      %821 = vmatpush1.msra.mxu0 0.0
      %822 = vmatprep.subr.mxu0 0.0
      %823 = vmatpush1.msra.mxu0 0.0
      %824 = vmatprep.subr.mxu0 0.0
      %825 = vmatpush1.msra.mxu0 0.0
      %826 = vmatprep.subr.mxu0 0.0
      %827 = vmatpush1.msra.mxu0 0.0
      %828 = vmatprep.subr.mxu0 0.0
      %829 = vmatpush1.msra.mxu0 0.0
      %830 = vmatprep.subr.mxu0 0.0
      %831 = vmatpush1.msra.mxu0 0.0
      %832 = vmatprep.subr.mxu0 0.0
      %833 = vmatpush1.msra.mxu0 0.0
      %834 = vmatprep.subr.mxu0 0.0
      %835 = vmatpush1.msra.mxu0 0.0
      %836 = vmatprep.subr.mxu0 0.0
      %837 = vmatpush1.msra.mxu0 0.0
      %838 = vmatprep.subr.mxu0 0.0
      %839 = vmatpush1.msra.mxu0 0.0
      %840 = vmatprep.subr.mxu0 0.0
      %841 = vmatpush1.msra.mxu0 0.0
      %842 = vmatprep.subr.mxu0 0.0
      %843 = vmatpush1.msra.mxu0 0.0
      %844 = vmatprep.subr.mxu0 0.0
      %845 = vmatpush1.msra.mxu0 0.0
      %846 = vmatprep.subr.mxu0 0.0
      %847 = vmatpush1.msra.mxu0 0.0
      %848 = vmatprep.subr.mxu0 0.0
      %849 = vmatpush1.msra.mxu0 0.0
      %850 = vmatprep.subr.mxu0 0.0
      %851 = vmatpush1.msra.mxu0 0.0
      %852 = vmatprep.subr.mxu0 0.0
      %853 = vmatpush1.msra.mxu0 0.0
      %854 = vmatprep.subr.mxu0 0.0
      %855 = vmatpush1.msra.mxu0 0.0
      %856 = vmatprep.subr.mxu0 0.0
      %857 = vmatpush1.msra.mxu0 0.0
      %858 = vmatprep.subr.mxu0 0.0
      %859 = vmatpush1.msra.mxu0 0.0
      %860 = vmatprep.subr.mxu0 0.0
      %861 = vmatpush1.msra.mxu0 0.0
      %862 = vmatprep.subr.mxu0 0.0
      %863 = vmatpush1.msra.mxu0 0.0
      %864 = vmatprep.subr.mxu0 0.0
      %865 = vmatpush1.msra.mxu0 0.0
      %866 = vmatprep.subr.mxu0 0.0
      %867 = vmatpush1.msra.mxu0 0.0
      %868 = vmatprep.subr.mxu0 0.0
      %869 = vmatpush1.msra.mxu0 0.0
      %870 = vmatprep.subr.mxu0 0.0
      %871 = vmatpush1.msra.mxu0 0.0
      %872 = vmatprep.subr.mxu0 0.0
      %873 = vmatpush1.msra.mxu0 0.0
      %874 = vmatprep.subr.mxu0 0.0
      %875 = vmatpush1.msra.mxu0 0.0
      %876 = vmatprep.subr.mxu0 0.0
      %877 = vmatpush1.msra.mxu0 0.0
      %878 = vmatprep.subr.mxu0 0.0
      %879 = vmatpush1.msra.mxu0 0.0
      %880 = vmatprep.subr.mxu0 0.0
      %881 = vmatpush1.msra.mxu0 0.0
      %882 = vmatprep.mubr.f32.mxu0 0.0
      %883 = vmatmul.mubr.f32.gmra.mrb[0].mxu0 %v718
      %v884 = vpop.f32.mrb[0].mxu0
      %v885 = vadd.f32 %v501, %v884
      %v886 = vpop.f32.mrb[0].mxu0
      %v887 = vadd.f32 %v503, %v886
      %888 = vdwg.mxu0
      %889 = vmatprep.subr.mxu0 %v736
      %890 = vmatpush1.msra.mxu0 %v733
      %891 = vmatprep.subr.mxu0 0.0
      %892 = vmatpush1.msra.mxu0 0.0
      %893 = vmatprep.subr.mxu0 0.0
      %894 = vmatpush1.msra.mxu0 0.0
      %895 = vmatprep.subr.mxu0 0.0
      %896 = vmatpush1.msra.mxu0 0.0
      %897 = vmatprep.subr.mxu0 0.0
      %898 = vmatpush1.msra.mxu0 0.0
      %899 = vmatprep.subr.mxu0 0.0
      %900 = vmatpush1.msra.mxu0 0.0
      %901 = vmatprep.subr.mxu0 0.0
      %902 = vmatpush1.msra.mxu0 0.0
      %903 = vmatprep.subr.mxu0 0.0
      %904 = vmatpush1.msra.mxu0 0.0
      %905 = vmatprep.subr.mxu0 0.0
      %906 = vmatpush1.msra.mxu0 0.0
      %907 = vmatprep.subr.mxu0 0.0
      %908 = vmatpush1.msra.mxu0 0.0
      %909 = vmatprep.subr.mxu0 0.0
      %910 = vmatpush1.msra.mxu0 0.0
      %911 = vmatprep.subr.mxu0 0.0
      %912 = vmatpush1.msra.mxu0 0.0
      %913 = vmatprep.subr.mxu0 0.0
      %914 = vmatpush1.msra.mxu0 0.0
      %915 = vmatprep.subr.mxu0 0.0
      %916 = vmatpush1.msra.mxu0 0.0
      %917 = vmatprep.subr.mxu0 0.0
      %918 = vmatpush1.msra.mxu0 0.0
      %919 = vmatprep.subr.mxu0 0.0
      %920 = vmatpush1.msra.mxu0 0.0
      %921 = vmatprep.subr.mxu0 0.0
      %922 = vmatpush1.msra.mxu0 0.0
      %923 = vmatprep.subr.mxu0 0.0
      %924 = vmatpush1.msra.mxu0 0.0
      %925 = vmatprep.subr.mxu0 0.0
      %926 = vmatpush1.msra.mxu0 0.0
      %927 = vmatprep.subr.mxu0 0.0
      %928 = vmatpush1.msra.mxu0 0.0
      %929 = vmatprep.subr.mxu0 0.0
      %930 = vmatpush1.msra.mxu0 0.0
      %931 = vmatprep.subr.mxu0 0.0
      %932 = vmatpush1.msra.mxu0 0.0
      %933 = vmatprep.subr.mxu0 0.0
      %934 = vmatpush1.msra.mxu0 0.0
      %935 = vmatprep.subr.mxu0 0.0
      %936 = vmatpush1.msra.mxu0 0.0
      %937 = vmatprep.subr.mxu0 0.0
      %938 = vmatpush1.msra.mxu0 0.0
      %939 = vmatprep.subr.mxu0 0.0
      %940 = vmatpush1.msra.mxu0 0.0
      %941 = vmatprep.subr.mxu0 0.0
      %942 = vmatpush1.msra.mxu0 0.0
      %943 = vmatprep.subr.mxu0 0.0
      %944 = vmatpush1.msra.mxu0 0.0
      %945 = vmatprep.subr.mxu0 0.0
      %946 = vmatpush1.msra.mxu0 0.0
      %947 = vmatprep.subr.mxu0 0.0
      %948 = vmatpush1.msra.mxu0 0.0
      %949 = vmatprep.subr.mxu0 0.0
      %950 = vmatpush1.msra.mxu0 0.0
      %951 = vmatprep.subr.mxu0 0.0
      %952 = vmatpush1.msra.mxu0 0.0
      %953 = vmatprep.mubr.f32.mxu0 0.0
      %954 = vmatmul.mubr.f32.gmra.mrb[0].mxu0 %v718
      %v955 = vpop.f32.mrb[0].mxu0
      %v956 = vadd.f32 %v572, %v955
      %v957 = vpop.f32.mrb[0].mxu0
      %v958 = vadd.f32 %v574, %v957
      %959 = vdwg.mxu0
      %960 = vmatprep.subr.mxu0 %v742
      %961 = vmatpush1.msra.mxu0 %v739
      %962 = vmatprep.subr.mxu0 0.0
      %963 = vmatpush1.msra.mxu0 0.0
      %964 = vmatprep.subr.mxu0 0.0
      %965 = vmatpush1.msra.mxu0 0.0
      %966 = vmatprep.subr.mxu0 0.0
      %967 = vmatpush1.msra.mxu0 0.0
      %968 = vmatprep.subr.mxu0 0.0
      %969 = vmatpush1.msra.mxu0 0.0
      %970 = vmatprep.subr.mxu0 0.0
      %971 = vmatpush1.msra.mxu0 0.0
      %972 = vmatprep.subr.mxu0 0.0
      %973 = vmatpush1.msra.mxu0 0.0
      %974 = vmatprep.subr.mxu0 0.0
      %975 = vmatpush1.msra.mxu0 0.0
      %976 = vmatprep.subr.mxu0 0.0
      %977 = vmatpush1.msra.mxu0 0.0
      %978 = vmatprep.subr.mxu0 0.0
      %979 = vmatpush1.msra.mxu0 0.0
      %980 = vmatprep.subr.mxu0 0.0
      %981 = vmatpush1.msra.mxu0 0.0
      %982 = vmatprep.subr.mxu0 0.0
      %983 = vmatpush1.msra.mxu0 0.0
      %984 = vmatprep.subr.mxu0 0.0
      %985 = vmatpush1.msra.mxu0 0.0
      %986 = vmatprep.subr.mxu0 0.0
      %987 = vmatpush1.msra.mxu0 0.0
      %988 = vmatprep.subr.mxu0 0.0
      %989 = vmatpush1.msra.mxu0 0.0
      %990 = vmatprep.subr.mxu0 0.0
      %991 = vmatpush1.msra.mxu0 0.0
      %992 = vmatprep.subr.mxu0 0.0
      %993 = vmatpush1.msra.mxu0 0.0
      %994 = vmatprep.subr.mxu0 0.0
      %995 = vmatpush1.msra.mxu0 0.0
      %996 = vmatprep.subr.mxu0 0.0
      %997 = vmatpush1.msra.mxu0 0.0
      %998 = vmatprep.subr.mxu0 0.0
      %999 = vmatpush1.msra.mxu0 0.0
      %1000 = vmatprep.subr.mxu0 0.0
      %1001 = vmatpush1.msra.mxu0 0.0
      %1002 = vmatprep.subr.mxu0 0.0
      %1003 = vmatpush1.msra.mxu0 0.0
      %1004 = vmatprep.subr.mxu0 0.0
      %1005 = vmatpush1.msra.mxu0 0.0
      %1006 = vmatprep.subr.mxu0 0.0
      %1007 = vmatpush1.msra.mxu0 0.0
      %1008 = vmatprep.subr.mxu0 0.0
      %1009 = vmatpush1.msra.mxu0 0.0
      %1010 = vmatprep.subr.mxu0 0.0
      %1011 = vmatpush1.msra.mxu0 0.0
      %1012 = vmatprep.subr.mxu0 0.0
      %1013 = vmatpush1.msra.mxu0 0.0
      %1014 = vmatprep.subr.mxu0 0.0
      %1015 = vmatpush1.msra.mxu0 0.0
      %1016 = vmatprep.subr.mxu0 0.0
      %1017 = vmatpush1.msra.mxu0 0.0
      %1018 = vmatprep.subr.mxu0 0.0
      %1019 = vmatpush1.msra.mxu0 0.0
      %1020 = vmatprep.subr.mxu0 0.0
      %1021 = vmatpush1.msra.mxu0 0.0
      %1022 = vmatprep.subr.mxu0 0.0
      %1023 = vmatpush1.msra.mxu0 0.0
      %1024 = vmatprep.mubr.f32.mxu0 0.0
      %1025 = vmatmul.mubr.f32.gmra.mrb[0].mxu0 %v718
      %v1026 = vpop.f32.mrb[0].mxu0
      %v1027 = vadd.f32 %v643, %v1026
      %v1028 = vpop.f32.mrb[0].mxu0
      %v1029 = vadd.f32 %v645, %v1028
      %1030 = vdwg.mxu0
      %1031 = vmatprep.subr.mxu0 0.0
      %1032 = vmatpush1.msra.mxu0 %v745
      %1033 = vmatprep.subr.mxu0 0.0
      %1034 = vmatpush1.msra.mxu0 0.0
      %1035 = vmatprep.subr.mxu0 0.0
      %1036 = vmatpush1.msra.mxu0 0.0
      %1037 = vmatprep.subr.mxu0 0.0
      %1038 = vmatpush1.msra.mxu0 0.0
      %1039 = vmatprep.subr.mxu0 0.0
      %1040 = vmatpush1.msra.mxu0 0.0
      %1041 = vmatprep.subr.mxu0 0.0
      %1042 = vmatpush1.msra.mxu0 0.0
      %1043 = vmatprep.subr.mxu0 0.0
      %1044 = vmatpush1.msra.mxu0 0.0
      %1045 = vmatprep.subr.mxu0 0.0
      %1046 = vmatpush1.msra.mxu0 0.0
      %1047 = vmatprep.subr.mxu0 0.0
      %1048 = vmatpush1.msra.mxu0 0.0
      %1049 = vmatprep.subr.mxu0 0.0
      %1050 = vmatpush1.msra.mxu0 0.0
      %1051 = vmatprep.subr.mxu0 0.0
      %1052 = vmatpush1.msra.mxu0 0.0
      %1053 = vmatprep.subr.mxu0 0.0
      %1054 = vmatpush1.msra.mxu0 0.0
      %1055 = vmatprep.subr.mxu0 0.0
      %1056 = vmatpush1.msra.mxu0 0.0
      %1057 = vmatprep.subr.mxu0 0.0
      %1058 = vmatpush1.msra.mxu0 0.0
      %1059 = vmatprep.subr.mxu0 0.0
      %1060 = vmatpush1.msra.mxu0 0.0
      %1061 = vmatprep.subr.mxu0 0.0
      %1062 = vmatpush1.msra.mxu0 0.0
      %1063 = vmatprep.subr.mxu0 0.0
      %1064 = vmatpush1.msra.mxu0 0.0
      %1065 = vmatprep.subr.mxu0 0.0
      %1066 = vmatpush1.msra.mxu0 0.0
      %1067 = vmatprep.subr.mxu0 0.0
      %1068 = vmatpush1.msra.mxu0 0.0
      %1069 = vmatprep.subr.mxu0 0.0
      %1070 = vmatpush1.msra.mxu0 0.0
      %1071 = vmatprep.subr.mxu0 0.0
      %1072 = vmatpush1.msra.mxu0 0.0
      %1073 = vmatprep.subr.mxu0 0.0
      %1074 = vmatpush1.msra.mxu0 0.0
      %1075 = vmatprep.subr.mxu0 0.0
      %1076 = vmatpush1.msra.mxu0 0.0
      %1077 = vmatprep.subr.mxu0 0.0
      %1078 = vmatpush1.msra.mxu0 0.0
      %1079 = vmatprep.subr.mxu0 0.0
      %1080 = vmatpush1.msra.mxu0 0.0
      %1081 = vmatprep.subr.mxu0 0.0
      %1082 = vmatpush1.msra.mxu0 0.0
      %1083 = vmatprep.subr.mxu0 0.0
      %1084 = vmatpush1.msra.mxu0 0.0
      %1085 = vmatprep.subr.mxu0 0.0
      %1086 = vmatpush1.msra.mxu0 0.0
      %1087 = vmatprep.subr.mxu0 0.0
      %1088 = vmatpush1.msra.mxu0 0.0
      %1089 = vmatprep.subr.mxu0 0.0
      %1090 = vmatpush1.msra.mxu0 0.0
      %1091 = vmatprep.subr.mxu0 0.0
      %1092 = vmatpush1.msra.mxu0 0.0
      %1093 = vmatprep.subr.mxu0 0.0
      %1094 = vmatpush1.msra.mxu0 0.0
      %1095 = vmatprep.mubr.f32.mxu0 0.0
      %1096 = vmatmul.mubr.f32.gmra.mrb[0].mxu0 %v718
      %v1097 = vpop.f32.mrb[0].mxu0
      %v1098 = vadd.f32 %v714, %v1097
      %v1099 = vpop.f32.mrb[0].mxu0
      %1100 = vdwg.mxu0
      %1101 = vrot.lane.b32.xlu0 %v252, 17
      %v1102 = vpop.permute.xlu0 %1101
      %1103 = vrot.lane.b32.xlu0 %v262, 17
      %v1104 = vpop.permute.xlu0 %1103
      %1105 = vrot.lane.b32.xlu0 %v253, 17
      %v1106 = vpop.permute.xlu0 %1105
      %1107 = vrot.lane.b32.xlu0 %v263, 17
      %v1108 = vpop.permute.xlu0 %1107
      %1109 = vrot.lane.b32.xlu0 %v254, 17
      %v1110 = vpop.permute.xlu0 %1109
      %1111 = vrot.lane.b32.xlu0 %v264, 17
      %v1112 = vpop.permute.xlu0 %1111
      %1113 = vrot.lane.b32.xlu0 %v255, 17
      %v1114 = vpop.permute.xlu0 %1113
      %1115 = vrot.lane.b32.xlu0 %v265, 17
      %v1116 = vpop.permute.xlu0 %1115
      %1117 = vrot.lane.b32.xlu0 %v256, 17
      %v1118 = vpop.permute.xlu0 %1117
      %vm1119 = vcmp.lt.s32.totalorder %v289, 17
      %v1120 = vsel %vm1119, %v1116, %v1118
      %v1121 = vsel %vm1119, %v1114, %v1116
      %v1122 = vsel %vm1119, %v1112, %v1114
      %v1123 = vsel %vm1119, %v1110, %v1112
      %v1124 = vsel %vm1119, %v1108, %v1110
      %v1125 = vsel %vm1119, %v1106, %v1108
      %v1126 = vsel %vm1119, %v1104, %v1106
      %v1127 = vsel %vm1119, %v1102, %v1104
      %v1128 = vsel %vm1119, %v1118, %v1102
      %s1129 = scalar_lea.vmem %s1, 8
      %v1130 = vld [vmem:[%s1129] sm:$0xf]
      %v1132 = vsel %vm331, %v1130, 0
      %v1135 = vsel %vm335, %v1128, 0
      %v1138 = vsel %vm335, %v1127, 0
      %v1141 = vsel %vm335, %v1126, 0
      %v1144 = vsel %vm335, %v1125, 0
      %v1147 = vsel %vm335, %v1124, 0
      %v1150 = vsel %vm335, %v1123, 0
      %v1153 = vsel %vm335, %v1122, 0
      %v1156 = vsel %vm335, %v1121, 0
      %v1159 = vsel %vm335, %v1120, 0
      %1161 = vmatprep.subr.mxu0 %v1138
      %1162 = vmatpush1.msra.mxu0 %v1135
      %1163 = vmatprep.subr.mxu0 0.0
      %1164 = vmatpush1.msra.mxu0 0.0
      %1165 = vmatprep.subr.mxu0 0.0
      %1166 = vmatpush1.msra.mxu0 0.0
      %1167 = vmatprep.subr.mxu0 0.0
      %1168 = vmatpush1.msra.mxu0 0.0
      %1169 = vmatprep.subr.mxu0 0.0
      %1170 = vmatpush1.msra.mxu0 0.0
      %1171 = vmatprep.subr.mxu0 0.0
      %1172 = vmatpush1.msra.mxu0 0.0
      %1173 = vmatprep.subr.mxu0 0.0
      %1174 = vmatpush1.msra.mxu0 0.0
      %1175 = vmatprep.subr.mxu0 0.0
      %1176 = vmatpush1.msra.mxu0 0.0
      %1177 = vmatprep.subr.mxu0 0.0
      %1178 = vmatpush1.msra.mxu0 0.0
      %1179 = vmatprep.subr.mxu0 0.0
      %1180 = vmatpush1.msra.mxu0 0.0
      %1181 = vmatprep.subr.mxu0 0.0
      %1182 = vmatpush1.msra.mxu0 0.0
      %1183 = vmatprep.subr.mxu0 0.0
      %1184 = vmatpush1.msra.mxu0 0.0
      %1185 = vmatprep.subr.mxu0 0.0
      %1186 = vmatpush1.msra.mxu0 0.0
      %1187 = vmatprep.subr.mxu0 0.0
      %1188 = vmatpush1.msra.mxu0 0.0
      %1189 = vmatprep.subr.mxu0 0.0
      %1190 = vmatpush1.msra.mxu0 0.0
      %1191 = vmatprep.subr.mxu0 0.0
      %1192 = vmatpush1.msra.mxu0 0.0
      %1193 = vmatprep.subr.mxu0 0.0
      %1194 = vmatpush1.msra.mxu0 0.0
      %1195 = vmatprep.subr.mxu0 0.0
      %1196 = vmatpush1.msra.mxu0 0.0
      %1197 = vmatprep.subr.mxu0 0.0
      %1198 = vmatpush1.msra.mxu0 0.0
      %1199 = vmatprep.subr.mxu0 0.0
      %1200 = vmatpush1.msra.mxu0 0.0
      %1201 = vmatprep.subr.mxu0 0.0
      %1202 = vmatpush1.msra.mxu0 0.0
      %1203 = vmatprep.subr.mxu0 0.0
      %1204 = vmatpush1.msra.mxu0 0.0
      %1205 = vmatprep.subr.mxu0 0.0
      %1206 = vmatpush1.msra.mxu0 0.0
      %1207 = vmatprep.subr.mxu0 0.0
      %1208 = vmatpush1.msra.mxu0 0.0
      %1209 = vmatprep.subr.mxu0 0.0
      %1210 = vmatpush1.msra.mxu0 0.0
      %1211 = vmatprep.subr.mxu0 0.0
      %1212 = vmatpush1.msra.mxu0 0.0
      %1213 = vmatprep.subr.mxu0 0.0
      %1214 = vmatpush1.msra.mxu0 0.0
      %1215 = vmatprep.subr.mxu0 0.0
      %1216 = vmatpush1.msra.mxu0 0.0
      %1217 = vmatprep.subr.mxu0 0.0
      %1218 = vmatpush1.msra.mxu0 0.0
      %1219 = vmatprep.subr.mxu0 0.0
      %1220 = vmatpush1.msra.mxu0 0.0
      %1221 = vmatprep.subr.mxu0 0.0
      %1222 = vmatpush1.msra.mxu0 0.0
      %1223 = vmatprep.subr.mxu0 0.0
      %1224 = vmatpush1.msra.mxu0 0.0
      %1225 = vmatprep.mubr.f32.mxu0 0.0
      %1226 = vmatmul.mubr.f32.gmra.mrb[0].mxu0 %v1132
      %v1227 = vpop.f32.mrb[0].mxu0
      %v1228 = vadd.f32 0.0, %v1227
      %v1229 = vpop.f32.mrb[0].mxu0
      %v1230 = vadd.f32 0.0, %v1229
      %1231 = vdwg.mxu0
      %1232 = vmatprep.subr.mxu0 %v1144
      %1233 = vmatpush1.msra.mxu0 %v1141
      %1234 = vmatprep.subr.mxu0 0.0
      %1235 = vmatpush1.msra.mxu0 0.0
      %1236 = vmatprep.subr.mxu0 0.0
      %1237 = vmatpush1.msra.mxu0 0.0
      %1238 = vmatprep.subr.mxu0 0.0
      %1239 = vmatpush1.msra.mxu0 0.0
      %1240 = vmatprep.subr.mxu0 0.0
      %1241 = vmatpush1.msra.mxu0 0.0
      %1242 = vmatprep.subr.mxu0 0.0
      %1243 = vmatpush1.msra.mxu0 0.0
      %1244 = vmatprep.subr.mxu0 0.0
      %1245 = vmatpush1.msra.mxu0 0.0
      %1246 = vmatprep.subr.mxu0 0.0
      %1247 = vmatpush1.msra.mxu0 0.0
      %1248 = vmatprep.subr.mxu0 0.0
      %1249 = vmatpush1.msra.mxu0 0.0
      %1250 = vmatprep.subr.mxu0 0.0
      %1251 = vmatpush1.msra.mxu0 0.0
      %1252 = vmatprep.subr.mxu0 0.0
      %1253 = vmatpush1.msra.mxu0 0.0
      %1254 = vmatprep.subr.mxu0 0.0
      %1255 = vmatpush1.msra.mxu0 0.0
      %1256 = vmatprep.subr.mxu0 0.0
      %1257 = vmatpush1.msra.mxu0 0.0
      %1258 = vmatprep.subr.mxu0 0.0
      %1259 = vmatpush1.msra.mxu0 0.0
      %1260 = vmatprep.subr.mxu0 0.0
      %1261 = vmatpush1.msra.mxu0 0.0
      %1262 = vmatprep.subr.mxu0 0.0
      %1263 = vmatpush1.msra.mxu0 0.0
      %1264 = vmatprep.subr.mxu0 0.0
      %1265 = vmatpush1.msra.mxu0 0.0
      %1266 = vmatprep.subr.mxu0 0.0
      %1267 = vmatpush1.msra.mxu0 0.0
      %1268 = vmatprep.subr.mxu0 0.0
      %1269 = vmatpush1.msra.mxu0 0.0
      %1270 = vmatprep.subr.mxu0 0.0
      %1271 = vmatpush1.msra.mxu0 0.0
      %1272 = vmatprep.subr.mxu0 0.0
      %1273 = vmatpush1.msra.mxu0 0.0
      %1274 = vmatprep.subr.mxu0 0.0
      %1275 = vmatpush1.msra.mxu0 0.0
      %1276 = vmatprep.subr.mxu0 0.0
      %1277 = vmatpush1.msra.mxu0 0.0
      %1278 = vmatprep.subr.mxu0 0.0
      %1279 = vmatpush1.msra.mxu0 0.0
      %1280 = vmatprep.subr.mxu0 0.0
      %1281 = vmatpush1.msra.mxu0 0.0
      %1282 = vmatprep.subr.mxu0 0.0
      %1283 = vmatpush1.msra.mxu0 0.0
      %1284 = vmatprep.subr.mxu0 0.0
      %1285 = vmatpush1.msra.mxu0 0.0
      %1286 = vmatprep.subr.mxu0 0.0
      %1287 = vmatpush1.msra.mxu0 0.0
      %1288 = vmatprep.subr.mxu0 0.0
      %1289 = vmatpush1.msra.mxu0 0.0
      %1290 = vmatprep.subr.mxu0 0.0
      %1291 = vmatpush1.msra.mxu0 0.0
      %1292 = vmatprep.subr.mxu0 0.0
      %1293 = vmatpush1.msra.mxu0 0.0
      %1294 = vmatprep.subr.mxu0 0.0
      %1295 = vmatpush1.msra.mxu0 0.0
      %1296 = vmatprep.mubr.f32.mxu0 0.0
      %1297 = vmatmul.mubr.f32.gmra.mrb[0].mxu0 %v1132
      %v1298 = vpop.f32.mrb[0].mxu0
      %v1299 = vadd.f32 0.0, %v1298
      %v1300 = vpop.f32.mrb[0].mxu0
      %v1301 = vadd.f32 0.0, %v1300
      %1302 = vdwg.mxu0
      %1303 = vmatprep.subr.mxu0 %v1150
      %1304 = vmatpush1.msra.mxu0 %v1147
      %1305 = vmatprep.subr.mxu0 0.0
      %1306 = vmatpush1.msra.mxu0 0.0
      %1307 = vmatprep.subr.mxu0 0.0
      %1308 = vmatpush1.msra.mxu0 0.0
      %1309 = vmatprep.subr.mxu0 0.0
      %1310 = vmatpush1.msra.mxu0 0.0
      %1311 = vmatprep.subr.mxu0 0.0
      %1312 = vmatpush1.msra.mxu0 0.0
      %1313 = vmatprep.subr.mxu0 0.0
      %1314 = vmatpush1.msra.mxu0 0.0
      %1315 = vmatprep.subr.mxu0 0.0
      %1316 = vmatpush1.msra.mxu0 0.0
      %1317 = vmatprep.subr.mxu0 0.0
      %1318 = vmatpush1.msra.mxu0 0.0
      %1319 = vmatprep.subr.mxu0 0.0
      %1320 = vmatpush1.msra.mxu0 0.0
      %1321 = vmatprep.subr.mxu0 0.0
      %1322 = vmatpush1.msra.mxu0 0.0
      %1323 = vmatprep.subr.mxu0 0.0
      %1324 = vmatpush1.msra.mxu0 0.0
      %1325 = vmatprep.subr.mxu0 0.0
      %1326 = vmatpush1.msra.mxu0 0.0
      %1327 = vmatprep.subr.mxu0 0.0
      %1328 = vmatpush1.msra.mxu0 0.0
      %1329 = vmatprep.subr.mxu0 0.0
      %1330 = vmatpush1.msra.mxu0 0.0
      %1331 = vmatprep.subr.mxu0 0.0
      %1332 = vmatpush1.msra.mxu0 0.0
      %1333 = vmatprep.subr.mxu0 0.0
      %1334 = vmatpush1.msra.mxu0 0.0
      %1335 = vmatprep.subr.mxu0 0.0
      %1336 = vmatpush1.msra.mxu0 0.0
      %1337 = vmatprep.subr.mxu0 0.0
      %1338 = vmatpush1.msra.mxu0 0.0
      %1339 = vmatprep.subr.mxu0 0.0
      %1340 = vmatpush1.msra.mxu0 0.0
      %1341 = vmatprep.subr.mxu0 0.0
      %1342 = vmatpush1.msra.mxu0 0.0
      %1343 = vmatprep.subr.mxu0 0.0
      %1344 = vmatpush1.msra.mxu0 0.0
      %1345 = vmatprep.subr.mxu0 0.0
      %1346 = vmatpush1.msra.mxu0 0.0
      %1347 = vmatprep.subr.mxu0 0.0
      %1348 = vmatpush1.msra.mxu0 0.0
      %1349 = vmatprep.subr.mxu0 0.0
      %1350 = vmatpush1.msra.mxu0 0.0
      %1351 = vmatprep.subr.mxu0 0.0
      %1352 = vmatpush1.msra.mxu0 0.0
      %1353 = vmatprep.subr.mxu0 0.0
      %1354 = vmatpush1.msra.mxu0 0.0
      %1355 = vmatprep.subr.mxu0 0.0
      %1356 = vmatpush1.msra.mxu0 0.0
      %1357 = vmatprep.subr.mxu0 0.0
      %1358 = vmatpush1.msra.mxu0 0.0
      %1359 = vmatprep.subr.mxu0 0.0
      %1360 = vmatpush1.msra.mxu0 0.0
      %1361 = vmatprep.subr.mxu0 0.0
      %1362 = vmatpush1.msra.mxu0 0.0
      %1363 = vmatprep.subr.mxu0 0.0
      %1364 = vmatpush1.msra.mxu0 0.0
      %1365 = vmatprep.subr.mxu0 0.0
      %1366 = vmatpush1.msra.mxu0 0.0
      %1367 = vmatprep.mubr.f32.mxu0 0.0
      %1368 = vmatmul.mubr.f32.gmra.mrb[0].mxu0 %v1132
      %v1369 = vpop.f32.mrb[0].mxu0
      %v1370 = vadd.f32 0.0, %v1369
      %v1371 = vpop.f32.mrb[0].mxu0
      %v1372 = vadd.f32 0.0, %v1371
      %1373 = vdwg.mxu0
      %1374 = vmatprep.subr.mxu0 %v1156
      %1375 = vmatpush1.msra.mxu0 %v1153
      %1376 = vmatprep.subr.mxu0 0.0
      %1377 = vmatpush1.msra.mxu0 0.0
      %1378 = vmatprep.subr.mxu0 0.0
      %1379 = vmatpush1.msra.mxu0 0.0
      %1380 = vmatprep.subr.mxu0 0.0
      %1381 = vmatpush1.msra.mxu0 0.0
      %1382 = vmatprep.subr.mxu0 0.0
      %1383 = vmatpush1.msra.mxu0 0.0
      %1384 = vmatprep.subr.mxu0 0.0
      %1385 = vmatpush1.msra.mxu0 0.0
      %1386 = vmatprep.subr.mxu0 0.0
      %1387 = vmatpush1.msra.mxu0 0.0
      %1388 = vmatprep.subr.mxu0 0.0
      %1389 = vmatpush1.msra.mxu0 0.0
      %1390 = vmatprep.subr.mxu0 0.0
      %1391 = vmatpush1.msra.mxu0 0.0
      %1392 = vmatprep.subr.mxu0 0.0
      %1393 = vmatpush1.msra.mxu0 0.0
      %1394 = vmatprep.subr.mxu0 0.0
      %1395 = vmatpush1.msra.mxu0 0.0
      %1396 = vmatprep.subr.mxu0 0.0
      %1397 = vmatpush1.msra.mxu0 0.0
      %1398 = vmatprep.subr.mxu0 0.0
      %1399 = vmatpush1.msra.mxu0 0.0
      %1400 = vmatprep.subr.mxu0 0.0
      %1401 = vmatpush1.msra.mxu0 0.0
      %1402 = vmatprep.subr.mxu0 0.0
      %1403 = vmatpush1.msra.mxu0 0.0
      %1404 = vmatprep.subr.mxu0 0.0
      %1405 = vmatpush1.msra.mxu0 0.0
      %1406 = vmatprep.subr.mxu0 0.0
      %1407 = vmatpush1.msra.mxu0 0.0
      %1408 = vmatprep.subr.mxu0 0.0
      %1409 = vmatpush1.msra.mxu0 0.0
      %1410 = vmatprep.subr.mxu0 0.0
      %1411 = vmatpush1.msra.mxu0 0.0
      %1412 = vmatprep.subr.mxu0 0.0
      %1413 = vmatpush1.msra.mxu0 0.0
      %1414 = vmatprep.subr.mxu0 0.0
      %1415 = vmatpush1.msra.mxu0 0.0
      %1416 = vmatprep.subr.mxu0 0.0
      %1417 = vmatpush1.msra.mxu0 0.0
      %1418 = vmatprep.subr.mxu0 0.0
      %1419 = vmatpush1.msra.mxu0 0.0
      %1420 = vmatprep.subr.mxu0 0.0
      %1421 = vmatpush1.msra.mxu0 0.0
      %1422 = vmatprep.subr.mxu0 0.0
      %1423 = vmatpush1.msra.mxu0 0.0
      %1424 = vmatprep.subr.mxu0 0.0
      %1425 = vmatpush1.msra.mxu0 0.0
      %1426 = vmatprep.subr.mxu0 0.0
      %1427 = vmatpush1.msra.mxu0 0.0
      %1428 = vmatprep.subr.mxu0 0.0
      %1429 = vmatpush1.msra.mxu0 0.0
      %1430 = vmatprep.subr.mxu0 0.0
      %1431 = vmatpush1.msra.mxu0 0.0
      %1432 = vmatprep.subr.mxu0 0.0
      %1433 = vmatpush1.msra.mxu0 0.0
      %1434 = vmatprep.subr.mxu0 0.0
      %1435 = vmatpush1.msra.mxu0 0.0
      %1436 = vmatprep.subr.mxu0 0.0
      %1437 = vmatpush1.msra.mxu0 0.0
      %1438 = vmatprep.mubr.f32.mxu0 0.0
      %1439 = vmatmul.mubr.f32.gmra.mrb[0].mxu0 %v1132
      %v1440 = vpop.f32.mrb[0].mxu0
      %v1441 = vadd.f32 0.0, %v1440
      %v1442 = vpop.f32.mrb[0].mxu0
      %v1443 = vadd.f32 0.0, %v1442
      %1444 = vdwg.mxu0
      %1445 = vmatprep.subr.mxu0 0.0
      %1446 = vmatpush1.msra.mxu0 %v1159
      %1447 = vmatprep.subr.mxu0 0.0
      %1448 = vmatpush1.msra.mxu0 0.0
      %1449 = vmatprep.subr.mxu0 0.0
      %1450 = vmatpush1.msra.mxu0 0.0
      %1451 = vmatprep.subr.mxu0 0.0
      %1452 = vmatpush1.msra.mxu0 0.0
      %1453 = vmatprep.subr.mxu0 0.0
      %1454 = vmatpush1.msra.mxu0 0.0
      %1455 = vmatprep.subr.mxu0 0.0
      %1456 = vmatpush1.msra.mxu0 0.0
      %1457 = vmatprep.subr.mxu0 0.0
      %1458 = vmatpush1.msra.mxu0 0.0
      %1459 = vmatprep.subr.mxu0 0.0
      %1460 = vmatpush1.msra.mxu0 0.0
      %1461 = vmatprep.subr.mxu0 0.0
      %1462 = vmatpush1.msra.mxu0 0.0
      %1463 = vmatprep.subr.mxu0 0.0
      %1464 = vmatpush1.msra.mxu0 0.0
      %1465 = vmatprep.subr.mxu0 0.0
      %1466 = vmatpush1.msra.mxu0 0.0
      %1467 = vmatprep.subr.mxu0 0.0
      %1468 = vmatpush1.msra.mxu0 0.0
      %1469 = vmatprep.subr.mxu0 0.0
      %1470 = vmatpush1.msra.mxu0 0.0
      %1471 = vmatprep.subr.mxu0 0.0
      %1472 = vmatpush1.msra.mxu0 0.0
      %1473 = vmatprep.subr.mxu0 0.0
      %1474 = vmatpush1.msra.mxu0 0.0
      %1475 = vmatprep.subr.mxu0 0.0
      %1476 = vmatpush1.msra.mxu0 0.0
      %1477 = vmatprep.subr.mxu0 0.0
      %1478 = vmatpush1.msra.mxu0 0.0
      %1479 = vmatprep.subr.mxu0 0.0
      %1480 = vmatpush1.msra.mxu0 0.0
      %1481 = vmatprep.subr.mxu0 0.0
      %1482 = vmatpush1.msra.mxu0 0.0
      %1483 = vmatprep.subr.mxu0 0.0
      %1484 = vmatpush1.msra.mxu0 0.0
      %1485 = vmatprep.subr.mxu0 0.0
      %1486 = vmatpush1.msra.mxu0 0.0
      %1487 = vmatprep.subr.mxu0 0.0
      %1488 = vmatpush1.msra.mxu0 0.0
      %1489 = vmatprep.subr.mxu0 0.0
      %1490 = vmatpush1.msra.mxu0 0.0
      %1491 = vmatprep.subr.mxu0 0.0
      %1492 = vmatpush1.msra.mxu0 0.0
      %1493 = vmatprep.subr.mxu0 0.0
      %1494 = vmatpush1.msra.mxu0 0.0
      %1495 = vmatprep.subr.mxu0 0.0
      %1496 = vmatpush1.msra.mxu0 0.0
      %1497 = vmatprep.subr.mxu0 0.0
      %1498 = vmatpush1.msra.mxu0 0.0
      %1499 = vmatprep.subr.mxu0 0.0
      %1500 = vmatpush1.msra.mxu0 0.0
      %1501 = vmatprep.subr.mxu0 0.0
      %1502 = vmatpush1.msra.mxu0 0.0
      %1503 = vmatprep.subr.mxu0 0.0
      %1504 = vmatpush1.msra.mxu0 0.0
      %1505 = vmatprep.subr.mxu0 0.0
      %1506 = vmatpush1.msra.mxu0 0.0
      %1507 = vmatprep.subr.mxu0 0.0
      %1508 = vmatpush1.msra.mxu0 0.0
      %1509 = vmatprep.mubr.f32.mxu0 0.0
      %1510 = vmatmul.mubr.f32.gmra.mrb[0].mxu0 %v1132
      %v1511 = vpop.f32.mrb[0].mxu0
      %v1512 = vadd.f32 0.0, %v1511
      %v1513 = vpop.f32.mrb[0].mxu0
      %1514 = vdwg.mxu0
      %v1515 = vadd.f32 %v814, %v1228
      %v1516 = vadd.f32 %v816, %v1230
      %v1517 = vadd.f32 %v885, %v1299
      %v1518 = vadd.f32 %v887, %v1301
      %v1519 = vadd.f32 %v956, %v1370
      %v1520 = vadd.f32 %v958, %v1372
      %v1521 = vadd.f32 %v1027, %v1441
      %v1522 = vadd.f32 %v1029, %v1443
      %v1523 = vadd.f32 %v1098, %v1512
      %1524 = vrot.lane.b32.xlu0 %v252, 1
      %v1525 = vpop.permute.xlu0 %1524
      %1526 = vrot.lane.b32.xlu0 %v262, 1
      %v1527 = vpop.permute.xlu0 %1526
      %1528 = vrot.lane.b32.xlu0 %v253, 1
      %v1529 = vpop.permute.xlu0 %1528
      %1530 = vrot.lane.b32.xlu0 %v263, 1
      %v1531 = vpop.permute.xlu0 %1530
      %1532 = vrot.lane.b32.xlu0 %v254, 1
      %v1533 = vpop.permute.xlu0 %1532
      %1534 = vrot.lane.b32.xlu0 %v264, 1
      %v1535 = vpop.permute.xlu0 %1534
      %1536 = vrot.lane.b32.xlu0 %v255, 1
      %v1537 = vpop.permute.xlu0 %1536
      %1538 = vrot.lane.b32.xlu0 %v265, 1
      %v1539 = vpop.permute.xlu0 %1538
      %1540 = vrot.lane.b32.xlu0 %v256, 1
      %v1541 = vpop.permute.xlu0 %1540
      %vm1542 = vcmp.lt.s32.totalorder %v289, 1
      %v1543 = vsel %vm1542, %v1539, %v1541
      %v1544 = vsel %vm1542, %v1537, %v1539
      %v1545 = vsel %vm1542, %v1535, %v1537
      %v1546 = vsel %vm1542, %v1533, %v1535
      %v1547 = vsel %vm1542, %v1531, %v1533
      %v1548 = vsel %vm1542, %v1529, %v1531
      %v1549 = vsel %vm1542, %v1527, %v1529
      %v1550 = vsel %vm1542, %v1525, %v1527
      %v1551 = vsel %vm1542, %v1541, %v1525
      %s1552 = scalar_lea.vmem %s1, 12
      %v1553 = vld [vmem:[%s1552] sm:$0xf]
      %v1555 = vsel %vm331, %v1553, 0
      %v1558 = vsel %vm335, %v1551, 0
      %v1561 = vsel %vm335, %v1550, 0
      %v1564 = vsel %vm335, %v1549, 0
      %v1567 = vsel %vm335, %v1548, 0
      %v1570 = vsel %vm335, %v1547, 0
      %v1573 = vsel %vm335, %v1546, 0
      %v1576 = vsel %vm335, %v1545, 0
      %v1579 = vsel %vm335, %v1544, 0
      %v1582 = vsel %vm335, %v1543, 0
      %1584 = vmatprep.subr.mxu0 %v1561
      %1585 = vmatpush1.msra.mxu0 %v1558
      %1586 = vmatprep.subr.mxu0 0.0
      %1587 = vmatpush1.msra.mxu0 0.0
      %1588 = vmatprep.subr.mxu0 0.0
      %1589 = vmatpush1.msra.mxu0 0.0
      %1590 = vmatprep.subr.mxu0 0.0
      %1591 = vmatpush1.msra.mxu0 0.0
      %1592 = vmatprep.subr.mxu0 0.0
      %1593 = vmatpush1.msra.mxu0 0.0
      %1594 = vmatprep.subr.mxu0 0.0
      %1595 = vmatpush1.msra.mxu0 0.0
      %1596 = vmatprep.subr.mxu0 0.0
      %1597 = vmatpush1.msra.mxu0 0.0
      %1598 = vmatprep.subr.mxu0 0.0
      %1599 = vmatpush1.msra.mxu0 0.0
      %1600 = vmatprep.subr.mxu0 0.0
      %1601 = vmatpush1.msra.mxu0 0.0
      %1602 = vmatprep.subr.mxu0 0.0
      %1603 = vmatpush1.msra.mxu0 0.0
      %1604 = vmatprep.subr.mxu0 0.0
      %1605 = vmatpush1.msra.mxu0 0.0
      %1606 = vmatprep.subr.mxu0 0.0
      %1607 = vmatpush1.msra.mxu0 0.0
      %1608 = vmatprep.subr.mxu0 0.0
      %1609 = vmatpush1.msra.mxu0 0.0
      %1610 = vmatprep.subr.mxu0 0.0
      %1611 = vmatpush1.msra.mxu0 0.0
      %1612 = vmatprep.subr.mxu0 0.0
      %1613 = vmatpush1.msra.mxu0 0.0
      %1614 = vmatprep.subr.mxu0 0.0
      %1615 = vmatpush1.msra.mxu0 0.0
      %1616 = vmatprep.subr.mxu0 0.0
      %1617 = vmatpush1.msra.mxu0 0.0
      %1618 = vmatprep.subr.mxu0 0.0
      %1619 = vmatpush1.msra.mxu0 0.0
      %1620 = vmatprep.subr.mxu0 0.0
      %1621 = vmatpush1.msra.mxu0 0.0
      %1622 = vmatprep.subr.mxu0 0.0
      %1623 = vmatpush1.msra.mxu0 0.0
      %1624 = vmatprep.subr.mxu0 0.0
      %1625 = vmatpush1.msra.mxu0 0.0
      %1626 = vmatprep.subr.mxu0 0.0
      %1627 = vmatpush1.msra.mxu0 0.0
      %1628 = vmatprep.subr.mxu0 0.0
      %1629 = vmatpush1.msra.mxu0 0.0
      %1630 = vmatprep.subr.mxu0 0.0
      %1631 = vmatpush1.msra.mxu0 0.0
      %1632 = vmatprep.subr.mxu0 0.0
      %1633 = vmatpush1.msra.mxu0 0.0
      %1634 = vmatprep.subr.mxu0 0.0
      %1635 = vmatpush1.msra.mxu0 0.0
      %1636 = vmatprep.subr.mxu0 0.0
      %1637 = vmatpush1.msra.mxu0 0.0
      %1638 = vmatprep.subr.mxu0 0.0
      %1639 = vmatpush1.msra.mxu0 0.0
      %1640 = vmatprep.subr.mxu0 0.0
      %1641 = vmatpush1.msra.mxu0 0.0
      %1642 = vmatprep.subr.mxu0 0.0
      %1643 = vmatpush1.msra.mxu0 0.0
      %1644 = vmatprep.subr.mxu0 0.0
      %1645 = vmatpush1.msra.mxu0 0.0
      %1646 = vmatprep.subr.mxu0 0.0
      %1647 = vmatpush1.msra.mxu0 0.0
      %1648 = vmatprep.mubr.f32.mxu0 0.0
      %1649 = vmatmul.mubr.f32.gmra.mrb[0].mxu0 %v1555
      %v1650 = vpop.f32.mrb[0].mxu0
      %v1651 = vadd.f32 0.0, %v1650
      %v1652 = vpop.f32.mrb[0].mxu0
      %v1653 = vadd.f32 0.0, %v1652
      %1654 = vdwg.mxu0
      %1655 = vmatprep.subr.mxu0 %v1567
      %1656 = vmatpush1.msra.mxu0 %v1564
      %1657 = vmatprep.subr.mxu0 0.0
      %1658 = vmatpush1.msra.mxu0 0.0
      %1659 = vmatprep.subr.mxu0 0.0
      %1660 = vmatpush1.msra.mxu0 0.0
      %1661 = vmatprep.subr.mxu0 0.0
      %1662 = vmatpush1.msra.mxu0 0.0
      %1663 = vmatprep.subr.mxu0 0.0
      %1664 = vmatpush1.msra.mxu0 0.0
      %1665 = vmatprep.subr.mxu0 0.0
      %1666 = vmatpush1.msra.mxu0 0.0
      %1667 = vmatprep.subr.mxu0 0.0
      %1668 = vmatpush1.msra.mxu0 0.0
      %1669 = vmatprep.subr.mxu0 0.0
      %1670 = vmatpush1.msra.mxu0 0.0
      %1671 = vmatprep.subr.mxu0 0.0
      %1672 = vmatpush1.msra.mxu0 0.0
      %1673 = vmatprep.subr.mxu0 0.0
      %1674 = vmatpush1.msra.mxu0 0.0
      %1675 = vmatprep.subr.mxu0 0.0
      %1676 = vmatpush1.msra.mxu0 0.0
      %1677 = vmatprep.subr.mxu0 0.0
      %1678 = vmatpush1.msra.mxu0 0.0
      %1679 = vmatprep.subr.mxu0 0.0
      %1680 = vmatpush1.msra.mxu0 0.0
      %1681 = vmatprep.subr.mxu0 0.0
      %1682 = vmatpush1.msra.mxu0 0.0
      %1683 = vmatprep.subr.mxu0 0.0
      %1684 = vmatpush1.msra.mxu0 0.0
      %1685 = vmatprep.subr.mxu0 0.0
      %1686 = vmatpush1.msra.mxu0 0.0
      %1687 = vmatprep.subr.mxu0 0.0
      %1688 = vmatpush1.msra.mxu0 0.0
      %1689 = vmatprep.subr.mxu0 0.0
      %1690 = vmatpush1.msra.mxu0 0.0
      %1691 = vmatprep.subr.mxu0 0.0
      %1692 = vmatpush1.msra.mxu0 0.0
      %1693 = vmatprep.subr.mxu0 0.0
      %1694 = vmatpush1.msra.mxu0 0.0
      %1695 = vmatprep.subr.mxu0 0.0
      %1696 = vmatpush1.msra.mxu0 0.0
      %1697 = vmatprep.subr.mxu0 0.0
      %1698 = vmatpush1.msra.mxu0 0.0
      %1699 = vmatprep.subr.mxu0 0.0
      %1700 = vmatpush1.msra.mxu0 0.0
      %1701 = vmatprep.subr.mxu0 0.0
      %1702 = vmatpush1.msra.mxu0 0.0
      %1703 = vmatprep.subr.mxu0 0.0
      %1704 = vmatpush1.msra.mxu0 0.0
      %1705 = vmatprep.subr.mxu0 0.0
      %1706 = vmatpush1.msra.mxu0 0.0
      %1707 = vmatprep.subr.mxu0 0.0
      %1708 = vmatpush1.msra.mxu0 0.0
      %1709 = vmatprep.subr.mxu0 0.0
      %1710 = vmatpush1.msra.mxu0 0.0
      %1711 = vmatprep.subr.mxu0 0.0
      %1712 = vmatpush1.msra.mxu0 0.0
      %1713 = vmatprep.subr.mxu0 0.0
      %1714 = vmatpush1.msra.mxu0 0.0
      %1715 = vmatprep.subr.mxu0 0.0
      %1716 = vmatpush1.msra.mxu0 0.0
      %1717 = vmatprep.subr.mxu0 0.0
      %1718 = vmatpush1.msra.mxu0 0.0
      %1719 = vmatprep.mubr.f32.mxu0 0.0
      %1720 = vmatmul.mubr.f32.gmra.mrb[0].mxu0 %v1555
      %v1721 = vpop.f32.mrb[0].mxu0
      %v1722 = vadd.f32 0.0, %v1721
      %v1723 = vpop.f32.mrb[0].mxu0
      %v1724 = vadd.f32 0.0, %v1723
      %1725 = vdwg.mxu0
      %1726 = vmatprep.subr.mxu0 %v1573
      %1727 = vmatpush1.msra.mxu0 %v1570
      %1728 = vmatprep.subr.mxu0 0.0
      %1729 = vmatpush1.msra.mxu0 0.0
      %1730 = vmatprep.subr.mxu0 0.0
      %1731 = vmatpush1.msra.mxu0 0.0
      %1732 = vmatprep.subr.mxu0 0.0
      %1733 = vmatpush1.msra.mxu0 0.0
      %1734 = vmatprep.subr.mxu0 0.0
      %1735 = vmatpush1.msra.mxu0 0.0
      %1736 = vmatprep.subr.mxu0 0.0
      %1737 = vmatpush1.msra.mxu0 0.0
      %1738 = vmatprep.subr.mxu0 0.0
      %1739 = vmatpush1.msra.mxu0 0.0
      %1740 = vmatprep.subr.mxu0 0.0
      %1741 = vmatpush1.msra.mxu0 0.0
      %1742 = vmatprep.subr.mxu0 0.0
      %1743 = vmatpush1.msra.mxu0 0.0
      %1744 = vmatprep.subr.mxu0 0.0
      %1745 = vmatpush1.msra.mxu0 0.0
      %1746 = vmatprep.subr.mxu0 0.0
      %1747 = vmatpush1.msra.mxu0 0.0
      %1748 = vmatprep.subr.mxu0 0.0
      %1749 = vmatpush1.msra.mxu0 0.0
      %1750 = vmatprep.subr.mxu0 0.0
      %1751 = vmatpush1.msra.mxu0 0.0
      %1752 = vmatprep.subr.mxu0 0.0
      %1753 = vmatpush1.msra.mxu0 0.0
      %1754 = vmatprep.subr.mxu0 0.0
      %1755 = vmatpush1.msra.mxu0 0.0
      %1756 = vmatprep.subr.mxu0 0.0
      %1757 = vmatpush1.msra.mxu0 0.0
      %1758 = vmatprep.subr.mxu0 0.0
      %1759 = vmatpush1.msra.mxu0 0.0
      %1760 = vmatprep.subr.mxu0 0.0
      %1761 = vmatpush1.msra.mxu0 0.0
      %1762 = vmatprep.subr.mxu0 0.0
      %1763 = vmatpush1.msra.mxu0 0.0
      %1764 = vmatprep.subr.mxu0 0.0
      %1765 = vmatpush1.msra.mxu0 0.0
      %1766 = vmatprep.subr.mxu0 0.0
      %1767 = vmatpush1.msra.mxu0 0.0
      %1768 = vmatprep.subr.mxu0 0.0
      %1769 = vmatpush1.msra.mxu0 0.0
      %1770 = vmatprep.subr.mxu0 0.0
      %1771 = vmatpush1.msra.mxu0 0.0
      %1772 = vmatprep.subr.mxu0 0.0
      %1773 = vmatpush1.msra.mxu0 0.0
      %1774 = vmatprep.subr.mxu0 0.0
      %1775 = vmatpush1.msra.mxu0 0.0
      %1776 = vmatprep.subr.mxu0 0.0
      %1777 = vmatpush1.msra.mxu0 0.0
      %1778 = vmatprep.subr.mxu0 0.0
      %1779 = vmatpush1.msra.mxu0 0.0
      %1780 = vmatprep.subr.mxu0 0.0
      %1781 = vmatpush1.msra.mxu0 0.0
      %1782 = vmatprep.subr.mxu0 0.0
      %1783 = vmatpush1.msra.mxu0 0.0
      %1784 = vmatprep.subr.mxu0 0.0
      %1785 = vmatpush1.msra.mxu0 0.0
      %1786 = vmatprep.subr.mxu0 0.0
      %1787 = vmatpush1.msra.mxu0 0.0
      %1788 = vmatprep.subr.mxu0 0.0
      %1789 = vmatpush1.msra.mxu0 0.0
      %1790 = vmatprep.mubr.f32.mxu0 0.0
      %1791 = vmatmul.mubr.f32.gmra.mrb[0].mxu0 %v1555
      %v1792 = vpop.f32.mrb[0].mxu0
      %v1793 = vadd.f32 0.0, %v1792
      %v1794 = vpop.f32.mrb[0].mxu0
      %v1795 = vadd.f32 0.0, %v1794
      %1796 = vdwg.mxu0
      %1797 = vmatprep.subr.mxu0 %v1579
      %1798 = vmatpush1.msra.mxu0 %v1576
      %1799 = vmatprep.subr.mxu0 0.0
      %1800 = vmatpush1.msra.mxu0 0.0
      %1801 = vmatprep.subr.mxu0 0.0
      %1802 = vmatpush1.msra.mxu0 0.0
      %1803 = vmatprep.subr.mxu0 0.0
      %1804 = vmatpush1.msra.mxu0 0.0
      %1805 = vmatprep.subr.mxu0 0.0
      %1806 = vmatpush1.msra.mxu0 0.0
      %1807 = vmatprep.subr.mxu0 0.0
      %1808 = vmatpush1.msra.mxu0 0.0
      %1809 = vmatprep.subr.mxu0 0.0
      %1810 = vmatpush1.msra.mxu0 0.0
      %1811 = vmatprep.subr.mxu0 0.0
      %1812 = vmatpush1.msra.mxu0 0.0
      %1813 = vmatprep.subr.mxu0 0.0
      %1814 = vmatpush1.msra.mxu0 0.0
      %1815 = vmatprep.subr.mxu0 0.0
      %1816 = vmatpush1.msra.mxu0 0.0
      %1817 = vmatprep.subr.mxu0 0.0
      %1818 = vmatpush1.msra.mxu0 0.0
      %1819 = vmatprep.subr.mxu0 0.0
      %1820 = vmatpush1.msra.mxu0 0.0
      %1821 = vmatprep.subr.mxu0 0.0
      %1822 = vmatpush1.msra.mxu0 0.0
      %1823 = vmatprep.subr.mxu0 0.0
      %1824 = vmatpush1.msra.mxu0 0.0
      %1825 = vmatprep.subr.mxu0 0.0
      %1826 = vmatpush1.msra.mxu0 0.0
      %1827 = vmatprep.subr.mxu0 0.0
      %1828 = vmatpush1.msra.mxu0 0.0
      %1829 = vmatprep.subr.mxu0 0.0
      %1830 = vmatpush1.msra.mxu0 0.0
      %1831 = vmatprep.subr.mxu0 0.0
      %1832 = vmatpush1.msra.mxu0 0.0
      %1833 = vmatprep.subr.mxu0 0.0
      %1834 = vmatpush1.msra.mxu0 0.0
      %1835 = vmatprep.subr.mxu0 0.0
      %1836 = vmatpush1.msra.mxu0 0.0
      %1837 = vmatprep.subr.mxu0 0.0
      %1838 = vmatpush1.msra.mxu0 0.0
      %1839 = vmatprep.subr.mxu0 0.0
      %1840 = vmatpush1.msra.mxu0 0.0
      %1841 = vmatprep.subr.mxu0 0.0
      %1842 = vmatpush1.msra.mxu0 0.0
      %1843 = vmatprep.subr.mxu0 0.0
      %1844 = vmatpush1.msra.mxu0 0.0
      %1845 = vmatprep.subr.mxu0 0.0
      %1846 = vmatpush1.msra.mxu0 0.0
      %1847 = vmatprep.subr.mxu0 0.0
      %1848 = vmatpush1.msra.mxu0 0.0
      %1849 = vmatprep.subr.mxu0 0.0
      %1850 = vmatpush1.msra.mxu0 0.0
      %1851 = vmatprep.subr.mxu0 0.0
      %1852 = vmatpush1.msra.mxu0 0.0
      %1853 = vmatprep.subr.mxu0 0.0
      %1854 = vmatpush1.msra.mxu0 0.0
      %1855 = vmatprep.subr.mxu0 0.0
      %1856 = vmatpush1.msra.mxu0 0.0
      %1857 = vmatprep.subr.mxu0 0.0
      %1858 = vmatpush1.msra.mxu0 0.0
      %1859 = vmatprep.subr.mxu0 0.0
      %1860 = vmatpush1.msra.mxu0 0.0
      %1861 = vmatprep.mubr.f32.mxu0 0.0
      %1862 = vmatmul.mubr.f32.gmra.mrb[0].mxu0 %v1555
      %v1863 = vpop.f32.mrb[0].mxu0
      %v1864 = vadd.f32 0.0, %v1863
      %v1865 = vpop.f32.mrb[0].mxu0
      %v1866 = vadd.f32 0.0, %v1865
      %1867 = vdwg.mxu0
      %1868 = vmatprep.subr.mxu0 0.0
      %1869 = vmatpush1.msra.mxu0 %v1582
      %1870 = vmatprep.subr.mxu0 0.0
      %1871 = vmatpush1.msra.mxu0 0.0
      %1872 = vmatprep.subr.mxu0 0.0
      %1873 = vmatpush1.msra.mxu0 0.0
      %1874 = vmatprep.subr.mxu0 0.0
      %1875 = vmatpush1.msra.mxu0 0.0
      %1876 = vmatprep.subr.mxu0 0.0
      %1877 = vmatpush1.msra.mxu0 0.0
      %1878 = vmatprep.subr.mxu0 0.0
      %1879 = vmatpush1.msra.mxu0 0.0
      %1880 = vmatprep.subr.mxu0 0.0
      %1881 = vmatpush1.msra.mxu0 0.0
      %1882 = vmatprep.subr.mxu0 0.0
      %1883 = vmatpush1.msra.mxu0 0.0
      %1884 = vmatprep.subr.mxu0 0.0
      %1885 = vmatpush1.msra.mxu0 0.0
      %1886 = vmatprep.subr.mxu0 0.0
      %1887 = vmatpush1.msra.mxu0 0.0
      %1888 = vmatprep.subr.mxu0 0.0
      %1889 = vmatpush1.msra.mxu0 0.0
      %1890 = vmatprep.subr.mxu0 0.0
      %1891 = vmatpush1.msra.mxu0 0.0
      %1892 = vmatprep.subr.mxu0 0.0
      %1893 = vmatpush1.msra.mxu0 0.0
      %1894 = vmatprep.subr.mxu0 0.0
      %1895 = vmatpush1.msra.mxu0 0.0
      %1896 = vmatprep.subr.mxu0 0.0
      %1897 = vmatpush1.msra.mxu0 0.0
      %1898 = vmatprep.subr.mxu0 0.0
      %1899 = vmatpush1.msra.mxu0 0.0
      %1900 = vmatprep.subr.mxu0 0.0
      %1901 = vmatpush1.msra.mxu0 0.0
      %1902 = vmatprep.subr.mxu0 0.0
      %1903 = vmatpush1.msra.mxu0 0.0
      %1904 = vmatprep.subr.mxu0 0.0
      %1905 = vmatpush1.msra.mxu0 0.0
      %1906 = vmatprep.subr.mxu0 0.0
      %1907 = vmatpush1.msra.mxu0 0.0
      %1908 = vmatprep.subr.mxu0 0.0
      %1909 = vmatpush1.msra.mxu0 0.0
      %1910 = vmatprep.subr.mxu0 0.0
      %1911 = vmatpush1.msra.mxu0 0.0
      %1912 = vmatprep.subr.mxu0 0.0
      %1913 = vmatpush1.msra.mxu0 0.0
      %1914 = vmatprep.subr.mxu0 0.0
      %1915 = vmatpush1.msra.mxu0 0.0
      %1916 = vmatprep.subr.mxu0 0.0
      %1917 = vmatpush1.msra.mxu0 0.0
      %1918 = vmatprep.subr.mxu0 0.0
      %1919 = vmatpush1.msra.mxu0 0.0
      %1920 = vmatprep.subr.mxu0 0.0
      %1921 = vmatpush1.msra.mxu0 0.0
      %1922 = vmatprep.subr.mxu0 0.0
      %1923 = vmatpush1.msra.mxu0 0.0
      %1924 = vmatprep.subr.mxu0 0.0
      %1925 = vmatpush1.msra.mxu0 0.0
      %1926 = vmatprep.subr.mxu0 0.0
      %1927 = vmatpush1.msra.mxu0 0.0
      %1928 = vmatprep.subr.mxu0 0.0
      %1929 = vmatpush1.msra.mxu0 0.0
      %1930 = vmatprep.subr.mxu0 0.0
      %1931 = vmatpush1.msra.mxu0 0.0
      %1932 = vmatprep.mubr.f32.mxu0 0.0
      %1933 = vmatmul.mubr.f32.gmra.mrb[0].mxu0 %v1555
      %v1934 = vpop.f32.mrb[0].mxu0
      %v1935 = vadd.f32 0.0, %v1934
      %v1936 = vpop.f32.mrb[0].mxu0
      %1937 = vdwg.mxu0
      %v1938 = vadd.f32 %v1515, %v1651
      %v1939 = vadd.f32 %v1516, %v1653
      %v1940 = vadd.f32 %v1517, %v1722
      %v1941 = vadd.f32 %v1518, %v1724
      %v1942 = vadd.f32 %v1519, %v1793
      %v1943 = vadd.f32 %v1520, %v1795
      %v1944 = vadd.f32 %v1521, %v1864
      %v1945 = vadd.f32 %v1522, %v1866
      %v1946 = vadd.f32 %v1523, %v1935
      %s1947 = scalar_lea.vmem %s1, 16
      %v1948 = vld [vmem:[%s1947] sm:$0xf]
      %v1950 = vsel %vm331, %v1948, 0
      %v1952 = vsel %vm335, %v252, 0
      %v1954 = vsel %vm335, %v262, 0
      %v1956 = vsel %vm335, %v253, 0
      %v1958 = vsel %vm335, %v263, 0
      %v1960 = vsel %vm335, %v254, 0
      %v1962 = vsel %vm335, %v264, 0
      %v1964 = vsel %vm335, %v255, 0
      %v1966 = vsel %vm335, %v265, 0
      %v1968 = vsel %vm335, %v256, 0
      %1970 = vmatprep.subr.mxu0 %v1954
      %1971 = vmatpush1.msra.mxu0 %v1952
      %1972 = vmatprep.subr.mxu0 0.0
      %1973 = vmatpush1.msra.mxu0 0.0
      %1974 = vmatprep.subr.mxu0 0.0
      %1975 = vmatpush1.msra.mxu0 0.0
      %1976 = vmatprep.subr.mxu0 0.0
      %1977 = vmatpush1.msra.mxu0 0.0
      %1978 = vmatprep.subr.mxu0 0.0
      %1979 = vmatpush1.msra.mxu0 0.0
      %1980 = vmatprep.subr.mxu0 0.0
      %1981 = vmatpush1.msra.mxu0 0.0
      %1982 = vmatprep.subr.mxu0 0.0
      %1983 = vmatpush1.msra.mxu0 0.0
      %1984 = vmatprep.subr.mxu0 0.0
      %1985 = vmatpush1.msra.mxu0 0.0
      %1986 = vmatprep.subr.mxu0 0.0
      %1987 = vmatpush1.msra.mxu0 0.0
      %1988 = vmatprep.subr.mxu0 0.0
      %1989 = vmatpush1.msra.mxu0 0.0
      %1990 = vmatprep.subr.mxu0 0.0
      %1991 = vmatpush1.msra.mxu0 0.0
      %1992 = vmatprep.subr.mxu0 0.0
      %1993 = vmatpush1.msra.mxu0 0.0
      %1994 = vmatprep.subr.mxu0 0.0
      %1995 = vmatpush1.msra.mxu0 0.0
      %1996 = vmatprep.subr.mxu0 0.0
      %1997 = vmatpush1.msra.mxu0 0.0
      %1998 = vmatprep.subr.mxu0 0.0
      %1999 = vmatpush1.msra.mxu0 0.0
      %2000 = vmatprep.subr.mxu0 0.0
      %2001 = vmatpush1.msra.mxu0 0.0
      %2002 = vmatprep.subr.mxu0 0.0
      %2003 = vmatpush1.msra.mxu0 0.0
      %2004 = vmatprep.subr.mxu0 0.0
      %2005 = vmatpush1.msra.mxu0 0.0
      %2006 = vmatprep.subr.mxu0 0.0
      %2007 = vmatpush1.msra.mxu0 0.0
      %2008 = vmatprep.subr.mxu0 0.0
      %2009 = vmatpush1.msra.mxu0 0.0
      %2010 = vmatprep.subr.mxu0 0.0
      %2011 = vmatpush1.msra.mxu0 0.0
      %2012 = vmatprep.subr.mxu0 0.0
      %2013 = vmatpush1.msra.mxu0 0.0
      %2014 = vmatprep.subr.mxu0 0.0
      %2015 = vmatpush1.msra.mxu0 0.0
      %2016 = vmatprep.subr.mxu0 0.0
      %2017 = vmatpush1.msra.mxu0 0.0
      %2018 = vmatprep.subr.mxu0 0.0
      %2019 = vmatpush1.msra.mxu0 0.0
      %2020 = vmatprep.subr.mxu0 0.0
      %2021 = vmatpush1.msra.mxu0 0.0
      %2022 = vmatprep.subr.mxu0 0.0
      %2023 = vmatpush1.msra.mxu0 0.0
      %2024 = vmatprep.subr.mxu0 0.0
      %2025 = vmatpush1.msra.mxu0 0.0
      %2026 = vmatprep.subr.mxu0 0.0
      %2027 = vmatpush1.msra.mxu0 0.0
      %2028 = vmatprep.subr.mxu0 0.0
      %2029 = vmatpush1.msra.mxu0 0.0
      %2030 = vmatprep.subr.mxu0 0.0
      %2031 = vmatpush1.msra.mxu0 0.0
      %2032 = vmatprep.subr.mxu0 0.0
      %2033 = vmatpush1.msra.mxu0 0.0
      %2034 = vmatprep.mubr.f32.mxu0 0.0
      %2035 = vmatmul.mubr.f32.gmra.mrb[0].mxu0 %v1950
      %v2036 = vpop.f32.mrb[0].mxu0
      %v2037 = vadd.f32 0.0, %v2036
      %v2038 = vpop.f32.mrb[0].mxu0
      %v2039 = vadd.f32 0.0, %v2038
      %2040 = vdwg.mxu0
      %2041 = vmatprep.subr.mxu0 %v1958
      %2042 = vmatpush1.msra.mxu0 %v1956
      %2043 = vmatprep.subr.mxu0 0.0
      %2044 = vmatpush1.msra.mxu0 0.0
      %2045 = vmatprep.subr.mxu0 0.0
      %2046 = vmatpush1.msra.mxu0 0.0
      %2047 = vmatprep.subr.mxu0 0.0
      %2048 = vmatpush1.msra.mxu0 0.0
      %2049 = vmatprep.subr.mxu0 0.0
      %2050 = vmatpush1.msra.mxu0 0.0
      %2051 = vmatprep.subr.mxu0 0.0
      %2052 = vmatpush1.msra.mxu0 0.0
      %2053 = vmatprep.subr.mxu0 0.0
      %2054 = vmatpush1.msra.mxu0 0.0
      %2055 = vmatprep.subr.mxu0 0.0
      %2056 = vmatpush1.msra.mxu0 0.0
      %2057 = vmatprep.subr.mxu0 0.0
      %2058 = vmatpush1.msra.mxu0 0.0
      %2059 = vmatprep.subr.mxu0 0.0
      %2060 = vmatpush1.msra.mxu0 0.0
      %2061 = vmatprep.subr.mxu0 0.0
      %2062 = vmatpush1.msra.mxu0 0.0
      %2063 = vmatprep.subr.mxu0 0.0
      %2064 = vmatpush1.msra.mxu0 0.0
      %2065 = vmatprep.subr.mxu0 0.0
      %2066 = vmatpush1.msra.mxu0 0.0
      %2067 = vmatprep.subr.mxu0 0.0
      %2068 = vmatpush1.msra.mxu0 0.0
      %2069 = vmatprep.subr.mxu0 0.0
      %2070 = vmatpush1.msra.mxu0 0.0
      %2071 = vmatprep.subr.mxu0 0.0
      %2072 = vmatpush1.msra.mxu0 0.0
      %2073 = vmatprep.subr.mxu0 0.0
      %2074 = vmatpush1.msra.mxu0 0.0
      %2075 = vmatprep.subr.mxu0 0.0
      %2076 = vmatpush1.msra.mxu0 0.0
      %2077 = vmatprep.subr.mxu0 0.0
      %2078 = vmatpush1.msra.mxu0 0.0
      %2079 = vmatprep.subr.mxu0 0.0
      %2080 = vmatpush1.msra.mxu0 0.0
      %2081 = vmatprep.subr.mxu0 0.0
      %2082 = vmatpush1.msra.mxu0 0.0
      %2083 = vmatprep.subr.mxu0 0.0
      %2084 = vmatpush1.msra.mxu0 0.0
      %2085 = vmatprep.subr.mxu0 0.0
      %2086 = vmatpush1.msra.mxu0 0.0
      %2087 = vmatprep.subr.mxu0 0.0
      %2088 = vmatpush1.msra.mxu0 0.0
      %2089 = vmatprep.subr.mxu0 0.0
      %2090 = vmatpush1.msra.mxu0 0.0
      %2091 = vmatprep.subr.mxu0 0.0
      %2092 = vmatpush1.msra.mxu0 0.0
      %2093 = vmatprep.subr.mxu0 0.0
      %2094 = vmatpush1.msra.mxu0 0.0
      %2095 = vmatprep.subr.mxu0 0.0
      %2096 = vmatpush1.msra.mxu0 0.0
      %2097 = vmatprep.subr.mxu0 0.0
      %2098 = vmatpush1.msra.mxu0 0.0
      %2099 = vmatprep.subr.mxu0 0.0
      %2100 = vmatpush1.msra.mxu0 0.0
      %2101 = vmatprep.subr.mxu0 0.0
      %2102 = vmatpush1.msra.mxu0 0.0
      %2103 = vmatprep.subr.mxu0 0.0
      %2104 = vmatpush1.msra.mxu0 0.0
      %2105 = vmatprep.mubr.f32.mxu0 0.0
      %2106 = vmatmul.mubr.f32.gmra.mrb[0].mxu0 %v1950
      %v2107 = vpop.f32.mrb[0].mxu0
      %v2108 = vadd.f32 0.0, %v2107
      %v2109 = vpop.f32.mrb[0].mxu0
      %v2110 = vadd.f32 0.0, %v2109
      %2111 = vdwg.mxu0
      %2112 = vmatprep.subr.mxu0 %v1962
      %2113 = vmatpush1.msra.mxu0 %v1960
      %2114 = vmatprep.subr.mxu0 0.0
      %2115 = vmatpush1.msra.mxu0 0.0
      %2116 = vmatprep.subr.mxu0 0.0
      %2117 = vmatpush1.msra.mxu0 0.0
      %2118 = vmatprep.subr.mxu0 0.0
      %2119 = vmatpush1.msra.mxu0 0.0
      %2120 = vmatprep.subr.mxu0 0.0
      %2121 = vmatpush1.msra.mxu0 0.0
      %2122 = vmatprep.subr.mxu0 0.0
      %2123 = vmatpush1.msra.mxu0 0.0
      %2124 = vmatprep.subr.mxu0 0.0
      %2125 = vmatpush1.msra.mxu0 0.0
      %2126 = vmatprep.subr.mxu0 0.0
      %2127 = vmatpush1.msra.mxu0 0.0
      %2128 = vmatprep.subr.mxu0 0.0
      %2129 = vmatpush1.msra.mxu0 0.0
      %2130 = vmatprep.subr.mxu0 0.0
      %2131 = vmatpush1.msra.mxu0 0.0
      %2132 = vmatprep.subr.mxu0 0.0
      %2133 = vmatpush1.msra.mxu0 0.0
      %2134 = vmatprep.subr.mxu0 0.0
      %2135 = vmatpush1.msra.mxu0 0.0
      %2136 = vmatprep.subr.mxu0 0.0
      %2137 = vmatpush1.msra.mxu0 0.0
      %2138 = vmatprep.subr.mxu0 0.0
      %2139 = vmatpush1.msra.mxu0 0.0
      %2140 = vmatprep.subr.mxu0 0.0
      %2141 = vmatpush1.msra.mxu0 0.0
      %2142 = vmatprep.subr.mxu0 0.0
      %2143 = vmatpush1.msra.mxu0 0.0
      %2144 = vmatprep.subr.mxu0 0.0
      %2145 = vmatpush1.msra.mxu0 0.0
      %2146 = vmatprep.subr.mxu0 0.0
      %2147 = vmatpush1.msra.mxu0 0.0
      %2148 = vmatprep.subr.mxu0 0.0
      %2149 = vmatpush1.msra.mxu0 0.0
      %2150 = vmatprep.subr.mxu0 0.0
      %2151 = vmatpush1.msra.mxu0 0.0
      %2152 = vmatprep.subr.mxu0 0.0
      %2153 = vmatpush1.msra.mxu0 0.0
      %2154 = vmatprep.subr.mxu0 0.0
      %2155 = vmatpush1.msra.mxu0 0.0
      %2156 = vmatprep.subr.mxu0 0.0
      %2157 = vmatpush1.msra.mxu0 0.0
      %2158 = vmatprep.subr.mxu0 0.0
      %2159 = vmatpush1.msra.mxu0 0.0
      %2160 = vmatprep.subr.mxu0 0.0
      %2161 = vmatpush1.msra.mxu0 0.0
      %2162 = vmatprep.subr.mxu0 0.0
      %2163 = vmatpush1.msra.mxu0 0.0
      %2164 = vmatprep.subr.mxu0 0.0
      %2165 = vmatpush1.msra.mxu0 0.0
      %2166 = vmatprep.subr.mxu0 0.0
      %2167 = vmatpush1.msra.mxu0 0.0
      %2168 = vmatprep.subr.mxu0 0.0
      %2169 = vmatpush1.msra.mxu0 0.0
      %2170 = vmatprep.subr.mxu0 0.0
      %2171 = vmatpush1.msra.mxu0 0.0
      %2172 = vmatprep.subr.mxu0 0.0
      %2173 = vmatpush1.msra.mxu0 0.0
      %2174 = vmatprep.subr.mxu0 0.0
      %2175 = vmatpush1.msra.mxu0 0.0
      %2176 = vmatprep.mubr.f32.mxu0 0.0
      %2177 = vmatmul.mubr.f32.gmra.mrb[0].mxu0 %v1950
      %v2178 = vpop.f32.mrb[0].mxu0
      %v2179 = vadd.f32 0.0, %v2178
      %v2180 = vpop.f32.mrb[0].mxu0
      %v2181 = vadd.f32 0.0, %v2180
      %2182 = vdwg.mxu0
      %2183 = vmatprep.subr.mxu0 %v1966
      %2184 = vmatpush1.msra.mxu0 %v1964
      %2185 = vmatprep.subr.mxu0 0.0
      %2186 = vmatpush1.msra.mxu0 0.0
      %2187 = vmatprep.subr.mxu0 0.0
      %2188 = vmatpush1.msra.mxu0 0.0
      %2189 = vmatprep.subr.mxu0 0.0
      %2190 = vmatpush1.msra.mxu0 0.0
      %2191 = vmatprep.subr.mxu0 0.0
      %2192 = vmatpush1.msra.mxu0 0.0
      %2193 = vmatprep.subr.mxu0 0.0
      %2194 = vmatpush1.msra.mxu0 0.0
      %2195 = vmatprep.subr.mxu0 0.0
      %2196 = vmatpush1.msra.mxu0 0.0
      %2197 = vmatprep.subr.mxu0 0.0
      %2198 = vmatpush1.msra.mxu0 0.0
      %2199 = vmatprep.subr.mxu0 0.0
      %2200 = vmatpush1.msra.mxu0 0.0
      %2201 = vmatprep.subr.mxu0 0.0
      %2202 = vmatpush1.msra.mxu0 0.0
      %2203 = vmatprep.subr.mxu0 0.0
      %2204 = vmatpush1.msra.mxu0 0.0
      %2205 = vmatprep.subr.mxu0 0.0
      %2206 = vmatpush1.msra.mxu0 0.0
      %2207 = vmatprep.subr.mxu0 0.0
      %2208 = vmatpush1.msra.mxu0 0.0
      %2209 = vmatprep.subr.mxu0 0.0
      %2210 = vmatpush1.msra.mxu0 0.0
      %2211 = vmatprep.subr.mxu0 0.0
      %2212 = vmatpush1.msra.mxu0 0.0
      %2213 = vmatprep.subr.mxu0 0.0
      %2214 = vmatpush1.msra.mxu0 0.0
      %2215 = vmatprep.subr.mxu0 0.0
      %2216 = vmatpush1.msra.mxu0 0.0
      %2217 = vmatprep.subr.mxu0 0.0
      %2218 = vmatpush1.msra.mxu0 0.0
      %2219 = vmatprep.subr.mxu0 0.0
      %2220 = vmatpush1.msra.mxu0 0.0
      %2221 = vmatprep.subr.mxu0 0.0
      %2222 = vmatpush1.msra.mxu0 0.0
      %2223 = vmatprep.subr.mxu0 0.0
      %2224 = vmatpush1.msra.mxu0 0.0
      %2225 = vmatprep.subr.mxu0 0.0
      %2226 = vmatpush1.msra.mxu0 0.0
      %2227 = vmatprep.subr.mxu0 0.0
      %2228 = vmatpush1.msra.mxu0 0.0
      %2229 = vmatprep.subr.mxu0 0.0
      %2230 = vmatpush1.msra.mxu0 0.0
      %2231 = vmatprep.subr.mxu0 0.0
      %2232 = vmatpush1.msra.mxu0 0.0
      %2233 = vmatprep.subr.mxu0 0.0
      %2234 = vmatpush1.msra.mxu0 0.0
      %2235 = vmatprep.subr.mxu0 0.0
      %2236 = vmatpush1.msra.mxu0 0.0
      %2237 = vmatprep.subr.mxu0 0.0
      %2238 = vmatpush1.msra.mxu0 0.0
      %2239 = vmatprep.subr.mxu0 0.0
      %2240 = vmatpush1.msra.mxu0 0.0
      %2241 = vmatprep.subr.mxu0 0.0
      %2242 = vmatpush1.msra.mxu0 0.0
      %2243 = vmatprep.subr.mxu0 0.0
      %2244 = vmatpush1.msra.mxu0 0.0
      %2245 = vmatprep.subr.mxu0 0.0
      %2246 = vmatpush1.msra.mxu0 0.0
      %2247 = vmatprep.mubr.f32.mxu0 0.0
      %2248 = vmatmul.mubr.f32.gmra.mrb[0].mxu0 %v1950
      %v2249 = vpop.f32.mrb[0].mxu0
      %v2250 = vadd.f32 0.0, %v2249
      %v2251 = vpop.f32.mrb[0].mxu0
      %v2252 = vadd.f32 0.0, %v2251
      %2253 = vdwg.mxu0
      %2254 = vmatprep.subr.mxu0 0.0
      %2255 = vmatpush1.msra.mxu0 %v1968
      %2256 = vmatprep.subr.mxu0 0.0
      %2257 = vmatpush1.msra.mxu0 0.0
      %2258 = vmatprep.subr.mxu0 0.0
      %2259 = vmatpush1.msra.mxu0 0.0
      %2260 = vmatprep.subr.mxu0 0.0
      %2261 = vmatpush1.msra.mxu0 0.0
      %2262 = vmatprep.subr.mxu0 0.0
      %2263 = vmatpush1.msra.mxu0 0.0
      %2264 = vmatprep.subr.mxu0 0.0
      %2265 = vmatpush1.msra.mxu0 0.0
      %2266 = vmatprep.subr.mxu0 0.0
      %2267 = vmatpush1.msra.mxu0 0.0
      %2268 = vmatprep.subr.mxu0 0.0
      %2269 = vmatpush1.msra.mxu0 0.0
      %2270 = vmatprep.subr.mxu0 0.0
      %2271 = vmatpush1.msra.mxu0 0.0
      %2272 = vmatprep.subr.mxu0 0.0
      %2273 = vmatpush1.msra.mxu0 0.0
      %2274 = vmatprep.subr.mxu0 0.0
      %2275 = vmatpush1.msra.mxu0 0.0
      %2276 = vmatprep.subr.mxu0 0.0
      %2277 = vmatpush1.msra.mxu0 0.0
      %2278 = vmatprep.subr.mxu0 0.0
      %2279 = vmatpush1.msra.mxu0 0.0
      %2280 = vmatprep.subr.mxu0 0.0
      %2281 = vmatpush1.msra.mxu0 0.0
      %2282 = vmatprep.subr.mxu0 0.0
      %2283 = vmatpush1.msra.mxu0 0.0
      %2284 = vmatprep.subr.mxu0 0.0
      %2285 = vmatpush1.msra.mxu0 0.0
      %2286 = vmatprep.subr.mxu0 0.0
      %2287 = vmatpush1.msra.mxu0 0.0
      %2288 = vmatprep.subr.mxu0 0.0
      %2289 = vmatpush1.msra.mxu0 0.0
      %2290 = vmatprep.subr.mxu0 0.0
      %2291 = vmatpush1.msra.mxu0 0.0
      %2292 = vmatprep.subr.mxu0 0.0
      %2293 = vmatpush1.msra.mxu0 0.0
      %2294 = vmatprep.subr.mxu0 0.0
      %2295 = vmatpush1.msra.mxu0 0.0
      %2296 = vmatprep.subr.mxu0 0.0
      %2297 = vmatpush1.msra.mxu0 0.0
      %2298 = vmatprep.subr.mxu0 0.0
      %2299 = vmatpush1.msra.mxu0 0.0
      %2300 = vmatprep.subr.mxu0 0.0
      %2301 = vmatpush1.msra.mxu0 0.0
      %2302 = vmatprep.subr.mxu0 0.0
      %2303 = vmatpush1.msra.mxu0 0.0
      %2304 = vmatprep.subr.mxu0 0.0
      %2305 = vmatpush1.msra.mxu0 0.0
      %2306 = vmatprep.subr.mxu0 0.0
      %2307 = vmatpush1.msra.mxu0 0.0
      %2308 = vmatprep.subr.mxu0 0.0
      %2309 = vmatpush1.msra.mxu0 0.0
      %2310 = vmatprep.subr.mxu0 0.0
      %2311 = vmatpush1.msra.mxu0 0.0
      %2312 = vmatprep.subr.mxu0 0.0
      %2313 = vmatpush1.msra.mxu0 0.0
      %2314 = vmatprep.subr.mxu0 0.0
      %2315 = vmatpush1.msra.mxu0 0.0
      %2316 = vmatprep.subr.mxu0 0.0
      %2317 = vmatpush1.msra.mxu0 0.0
      %2318 = vmatprep.mubr.f32.mxu0 0.0
      %2319 = vmatmul.mubr.f32.gmra.mrb[0].mxu0 %v1950
      %v2320 = vpop.f32.mrb[0].mxu0
      %v2321 = vadd.f32 0.0, %v2320
      %v2322 = vpop.f32.mrb[0].mxu0
      %2323 = vdwg.mxu0
      %v2324 = vadd.f32 %v1938, %v2037
      %v2325 = vadd.f32 %v1939, %v2039
      %v2326 = vadd.f32 %v1940, %v2108
      %v2327 = vadd.f32 %v1941, %v2110
      %v2328 = vadd.f32 %v1942, %v2179
      %v2329 = vadd.f32 %v1943, %v2181
      %v2330 = vadd.f32 %v1944, %v2250
      %v2331 = vadd.f32 %v1945, %v2252
      %v2332 = vadd.f32 %v1946, %v2321
      %2333 = vrot.lane.b32.xlu0 %v252, 127
      %v2334 = vpop.permute.xlu0 %2333
      %2335 = vrot.lane.b32.xlu0 %v262, 127
      %v2336 = vpop.permute.xlu0 %2335
      %2337 = vrot.lane.b32.xlu0 %v253, 127
      %v2338 = vpop.permute.xlu0 %2337
      %2339 = vrot.lane.b32.xlu0 %v263, 127
      %v2340 = vpop.permute.xlu0 %2339
      %2341 = vrot.lane.b32.xlu0 %v254, 127
      %v2342 = vpop.permute.xlu0 %2341
      %2343 = vrot.lane.b32.xlu0 %v264, 127
      %v2344 = vpop.permute.xlu0 %2343
      %2345 = vrot.lane.b32.xlu0 %v255, 127
      %v2346 = vpop.permute.xlu0 %2345
      %2347 = vrot.lane.b32.xlu0 %v265, 127
      %v2348 = vpop.permute.xlu0 %2347
      %2349 = vrot.lane.b32.xlu0 %v256, 127
      %v2350 = vpop.permute.xlu0 %2349
      %vm2351 = vcmp.lt.s32.totalorder %v289, 127
      %v2352 = vsel %vm2351, %v2348, %v2350
      %v2353 = vsel %vm2351, %v2346, %v2348
      %v2354 = vsel %vm2351, %v2344, %v2346
      %v2355 = vsel %vm2351, %v2342, %v2344
      %v2356 = vsel %vm2351, %v2340, %v2342
      %v2357 = vsel %vm2351, %v2338, %v2340
      %v2358 = vsel %vm2351, %v2336, %v2338
      %v2359 = vsel %vm2351, %v2334, %v2336
      %v2360 = vsel %vm2351, %v2350, %v2334
      %s2361 = scalar_lea.vmem %s1, 20
      %v2362 = vld [vmem:[%s2361] sm:$0xf]
      %v2364 = vsel %vm331, %v2362, 0
      %v2367 = vsel %vm335, %v2359, 0
      %v2370 = vsel %vm335, %v2358, 0
      %v2373 = vsel %vm335, %v2357, 0
      %v2376 = vsel %vm335, %v2356, 0
      %v2379 = vsel %vm335, %v2355, 0
      %v2382 = vsel %vm335, %v2354, 0
      %v2385 = vsel %vm335, %v2353, 0
      %v2388 = vsel %vm335, %v2352, 0
      %v2391 = vsel %vm335, %v2360, 0
      %2393 = vmatprep.subr.mxu0 %v2370
      %2394 = vmatpush1.msra.mxu0 %v2367
      %2395 = vmatprep.subr.mxu0 0.0
      %2396 = vmatpush1.msra.mxu0 0.0
      %2397 = vmatprep.subr.mxu0 0.0
      %2398 = vmatpush1.msra.mxu0 0.0
      %2399 = vmatprep.subr.mxu0 0.0
      %2400 = vmatpush1.msra.mxu0 0.0
      %2401 = vmatprep.subr.mxu0 0.0
      %2402 = vmatpush1.msra.mxu0 0.0
      %2403 = vmatprep.subr.mxu0 0.0
      %2404 = vmatpush1.msra.mxu0 0.0
      %2405 = vmatprep.subr.mxu0 0.0
      %2406 = vmatpush1.msra.mxu0 0.0
      %2407 = vmatprep.subr.mxu0 0.0
      %2408 = vmatpush1.msra.mxu0 0.0
      %2409 = vmatprep.subr.mxu0 0.0
      %2410 = vmatpush1.msra.mxu0 0.0
      %2411 = vmatprep.subr.mxu0 0.0
      %2412 = vmatpush1.msra.mxu0 0.0
      %2413 = vmatprep.subr.mxu0 0.0
      %2414 = vmatpush1.msra.mxu0 0.0
      %2415 = vmatprep.subr.mxu0 0.0
      %2416 = vmatpush1.msra.mxu0 0.0
      %2417 = vmatprep.subr.mxu0 0.0
      %2418 = vmatpush1.msra.mxu0 0.0
      %2419 = vmatprep.subr.mxu0 0.0
      %2420 = vmatpush1.msra.mxu0 0.0
      %2421 = vmatprep.subr.mxu0 0.0
      %2422 = vmatpush1.msra.mxu0 0.0
      %2423 = vmatprep.subr.mxu0 0.0
      %2424 = vmatpush1.msra.mxu0 0.0
      %2425 = vmatprep.subr.mxu0 0.0
      %2426 = vmatpush1.msra.mxu0 0.0
      %2427 = vmatprep.subr.mxu0 0.0
      %2428 = vmatpush1.msra.mxu0 0.0
      %2429 = vmatprep.subr.mxu0 0.0
      %2430 = vmatpush1.msra.mxu0 0.0
      %2431 = vmatprep.subr.mxu0 0.0
      %2432 = vmatpush1.msra.mxu0 0.0
      %2433 = vmatprep.subr.mxu0 0.0
      %2434 = vmatpush1.msra.mxu0 0.0
      %2435 = vmatprep.subr.mxu0 0.0
      %2436 = vmatpush1.msra.mxu0 0.0
      %2437 = vmatprep.subr.mxu0 0.0
      %2438 = vmatpush1.msra.mxu0 0.0
      %2439 = vmatprep.subr.mxu0 0.0
      %2440 = vmatpush1.msra.mxu0 0.0
      %2441 = vmatprep.subr.mxu0 0.0
      %2442 = vmatpush1.msra.mxu0 0.0
      %2443 = vmatprep.subr.mxu0 0.0
      %2444 = vmatpush1.msra.mxu0 0.0
      %2445 = vmatprep.subr.mxu0 0.0
      %2446 = vmatpush1.msra.mxu0 0.0
      %2447 = vmatprep.subr.mxu0 0.0
      %2448 = vmatpush1.msra.mxu0 0.0
      %2449 = vmatprep.subr.mxu0 0.0
      %2450 = vmatpush1.msra.mxu0 0.0
      %2451 = vmatprep.subr.mxu0 0.0
      %2452 = vmatpush1.msra.mxu0 0.0
      %2453 = vmatprep.subr.mxu0 0.0
      %2454 = vmatpush1.msra.mxu0 0.0
      %2455 = vmatprep.subr.mxu0 0.0
      %2456 = vmatpush1.msra.mxu0 0.0
      %2457 = vmatprep.mubr.f32.mxu0 0.0
      %2458 = vmatmul.mubr.f32.gmra.mrb[0].mxu0 %v2364
      %v2459 = vpop.f32.mrb[0].mxu0
      %v2460 = vadd.f32 0.0, %v2459
      %v2461 = vpop.f32.mrb[0].mxu0
      %v2462 = vadd.f32 0.0, %v2461
      %2463 = vdwg.mxu0
      %2464 = vmatprep.subr.mxu0 %v2376
      %2465 = vmatpush1.msra.mxu0 %v2373
      %2466 = vmatprep.subr.mxu0 0.0
      %2467 = vmatpush1.msra.mxu0 0.0
      %2468 = vmatprep.subr.mxu0 0.0
      %2469 = vmatpush1.msra.mxu0 0.0
      %2470 = vmatprep.subr.mxu0 0.0
      %2471 = vmatpush1.msra.mxu0 0.0
      %2472 = vmatprep.subr.mxu0 0.0
      %2473 = vmatpush1.msra.mxu0 0.0
      %2474 = vmatprep.subr.mxu0 0.0
      %2475 = vmatpush1.msra.mxu0 0.0
      %2476 = vmatprep.subr.mxu0 0.0
      %2477 = vmatpush1.msra.mxu0 0.0
      %2478 = vmatprep.subr.mxu0 0.0
      %2479 = vmatpush1.msra.mxu0 0.0
      %2480 = vmatprep.subr.mxu0 0.0
      %2481 = vmatpush1.msra.mxu0 0.0
      %2482 = vmatprep.subr.mxu0 0.0
      %2483 = vmatpush1.msra.mxu0 0.0
      %2484 = vmatprep.subr.mxu0 0.0
      %2485 = vmatpush1.msra.mxu0 0.0
      %2486 = vmatprep.subr.mxu0 0.0
      %2487 = vmatpush1.msra.mxu0 0.0
      %2488 = vmatprep.subr.mxu0 0.0
      %2489 = vmatpush1.msra.mxu0 0.0
      %2490 = vmatprep.subr.mxu0 0.0
      %2491 = vmatpush1.msra.mxu0 0.0
      %2492 = vmatprep.subr.mxu0 0.0
      %2493 = vmatpush1.msra.mxu0 0.0
      %2494 = vmatprep.subr.mxu0 0.0
      %2495 = vmatpush1.msra.mxu0 0.0
      %2496 = vmatprep.subr.mxu0 0.0
      %2497 = vmatpush1.msra.mxu0 0.0
      %2498 = vmatprep.subr.mxu0 0.0
      %2499 = vmatpush1.msra.mxu0 0.0
      %2500 = vmatprep.subr.mxu0 0.0
      %2501 = vmatpush1.msra.mxu0 0.0
      %2502 = vmatprep.subr.mxu0 0.0
      %2503 = vmatpush1.msra.mxu0 0.0
      %2504 = vmatprep.subr.mxu0 0.0
      %2505 = vmatpush1.msra.mxu0 0.0
      %2506 = vmatprep.subr.mxu0 0.0
      %2507 = vmatpush1.msra.mxu0 0.0
      %2508 = vmatprep.subr.mxu0 0.0
      %2509 = vmatpush1.msra.mxu0 0.0
      %2510 = vmatprep.subr.mxu0 0.0
      %2511 = vmatpush1.msra.mxu0 0.0
      %2512 = vmatprep.subr.mxu0 0.0
      %2513 = vmatpush1.msra.mxu0 0.0
      %2514 = vmatprep.subr.mxu0 0.0
      %2515 = vmatpush1.msra.mxu0 0.0
      %2516 = vmatprep.subr.mxu0 0.0
      %2517 = vmatpush1.msra.mxu0 0.0
      %2518 = vmatprep.subr.mxu0 0.0
      %2519 = vmatpush1.msra.mxu0 0.0
      %2520 = vmatprep.subr.mxu0 0.0
      %2521 = vmatpush1.msra.mxu0 0.0
      %2522 = vmatprep.subr.mxu0 0.0
      %2523 = vmatpush1.msra.mxu0 0.0
      %2524 = vmatprep.subr.mxu0 0.0
      %2525 = vmatpush1.msra.mxu0 0.0
      %2526 = vmatprep.subr.mxu0 0.0
      %2527 = vmatpush1.msra.mxu0 0.0
      %2528 = vmatprep.mubr.f32.mxu0 0.0
      %2529 = vmatmul.mubr.f32.gmra.mrb[0].mxu0 %v2364
      %v2530 = vpop.f32.mrb[0].mxu0
      %v2531 = vadd.f32 0.0, %v2530
      %v2532 = vpop.f32.mrb[0].mxu0
      %v2533 = vadd.f32 0.0, %v2532
      %2534 = vdwg.mxu0
      %2535 = vmatprep.subr.mxu0 %v2382
      %2536 = vmatpush1.msra.mxu0 %v2379
      %2537 = vmatprep.subr.mxu0 0.0
      %2538 = vmatpush1.msra.mxu0 0.0
      %2539 = vmatprep.subr.mxu0 0.0
      %2540 = vmatpush1.msra.mxu0 0.0
      %2541 = vmatprep.subr.mxu0 0.0
      %2542 = vmatpush1.msra.mxu0 0.0
      %2543 = vmatprep.subr.mxu0 0.0
      %2544 = vmatpush1.msra.mxu0 0.0
      %2545 = vmatprep.subr.mxu0 0.0
      %2546 = vmatpush1.msra.mxu0 0.0
      %2547 = vmatprep.subr.mxu0 0.0
      %2548 = vmatpush1.msra.mxu0 0.0
      %2549 = vmatprep.subr.mxu0 0.0
      %2550 = vmatpush1.msra.mxu0 0.0
      %2551 = vmatprep.subr.mxu0 0.0
      %2552 = vmatpush1.msra.mxu0 0.0
      %2553 = vmatprep.subr.mxu0 0.0
      %2554 = vmatpush1.msra.mxu0 0.0
      %2555 = vmatprep.subr.mxu0 0.0
      %2556 = vmatpush1.msra.mxu0 0.0
      %2557 = vmatprep.subr.mxu0 0.0
      %2558 = vmatpush1.msra.mxu0 0.0
      %2559 = vmatprep.subr.mxu0 0.0
      %2560 = vmatpush1.msra.mxu0 0.0
      %2561 = vmatprep.subr.mxu0 0.0
      %2562 = vmatpush1.msra.mxu0 0.0
      %2563 = vmatprep.subr.mxu0 0.0
      %2564 = vmatpush1.msra.mxu0 0.0
      %2565 = vmatprep.subr.mxu0 0.0
      %2566 = vmatpush1.msra.mxu0 0.0
      %2567 = vmatprep.subr.mxu0 0.0
      %2568 = vmatpush1.msra.mxu0 0.0
      %2569 = vmatprep.subr.mxu0 0.0
      %2570 = vmatpush1.msra.mxu0 0.0
      %2571 = vmatprep.subr.mxu0 0.0
      %2572 = vmatpush1.msra.mxu0 0.0
      %2573 = vmatprep.subr.mxu0 0.0
      %2574 = vmatpush1.msra.mxu0 0.0
      %2575 = vmatprep.subr.mxu0 0.0
      %2576 = vmatpush1.msra.mxu0 0.0
      %2577 = vmatprep.subr.mxu0 0.0
      %2578 = vmatpush1.msra.mxu0 0.0
      %2579 = vmatprep.subr.mxu0 0.0
      %2580 = vmatpush1.msra.mxu0 0.0
      %2581 = vmatprep.subr.mxu0 0.0
      %2582 = vmatpush1.msra.mxu0 0.0
      %2583 = vmatprep.subr.mxu0 0.0
      %2584 = vmatpush1.msra.mxu0 0.0
      %2585 = vmatprep.subr.mxu0 0.0
      %2586 = vmatpush1.msra.mxu0 0.0
      %2587 = vmatprep.subr.mxu0 0.0
      %2588 = vmatpush1.msra.mxu0 0.0
      %2589 = vmatprep.subr.mxu0 0.0
      %2590 = vmatpush1.msra.mxu0 0.0
      %2591 = vmatprep.subr.mxu0 0.0
      %2592 = vmatpush1.msra.mxu0 0.0
      %2593 = vmatprep.subr.mxu0 0.0
      %2594 = vmatpush1.msra.mxu0 0.0
      %2595 = vmatprep.subr.mxu0 0.0
      %2596 = vmatpush1.msra.mxu0 0.0
      %2597 = vmatprep.subr.mxu0 0.0
      %2598 = vmatpush1.msra.mxu0 0.0
      %2599 = vmatprep.mubr.f32.mxu0 0.0
      %2600 = vmatmul.mubr.f32.gmra.mrb[0].mxu0 %v2364
      %v2601 = vpop.f32.mrb[0].mxu0
      %v2602 = vadd.f32 0.0, %v2601
      %v2603 = vpop.f32.mrb[0].mxu0
      %v2604 = vadd.f32 0.0, %v2603
      %2605 = vdwg.mxu0
      %2606 = vmatprep.subr.mxu0 %v2388
      %2607 = vmatpush1.msra.mxu0 %v2385
      %2608 = vmatprep.subr.mxu0 0.0
      %2609 = vmatpush1.msra.mxu0 0.0
      %2610 = vmatprep.subr.mxu0 0.0
      %2611 = vmatpush1.msra.mxu0 0.0
      %2612 = vmatprep.subr.mxu0 0.0
      %2613 = vmatpush1.msra.mxu0 0.0
      %2614 = vmatprep.subr.mxu0 0.0
      %2615 = vmatpush1.msra.mxu0 0.0
      %2616 = vmatprep.subr.mxu0 0.0
      %2617 = vmatpush1.msra.mxu0 0.0
      %2618 = vmatprep.subr.mxu0 0.0
      %2619 = vmatpush1.msra.mxu0 0.0
      %2620 = vmatprep.subr.mxu0 0.0
      %2621 = vmatpush1.msra.mxu0 0.0
      %2622 = vmatprep.subr.mxu0 0.0
      %2623 = vmatpush1.msra.mxu0 0.0
      %2624 = vmatprep.subr.mxu0 0.0
      %2625 = vmatpush1.msra.mxu0 0.0
      %2626 = vmatprep.subr.mxu0 0.0
      %2627 = vmatpush1.msra.mxu0 0.0
      %2628 = vmatprep.subr.mxu0 0.0
      %2629 = vmatpush1.msra.mxu0 0.0
      %2630 = vmatprep.subr.mxu0 0.0
      %2631 = vmatpush1.msra.mxu0 0.0
      %2632 = vmatprep.subr.mxu0 0.0
      %2633 = vmatpush1.msra.mxu0 0.0
      %2634 = vmatprep.subr.mxu0 0.0
      %2635 = vmatpush1.msra.mxu0 0.0
      %2636 = vmatprep.subr.mxu0 0.0
      %2637 = vmatpush1.msra.mxu0 0.0
      %2638 = vmatprep.subr.mxu0 0.0
      %2639 = vmatpush1.msra.mxu0 0.0
      %2640 = vmatprep.subr.mxu0 0.0
      %2641 = vmatpush1.msra.mxu0 0.0
      %2642 = vmatprep.subr.mxu0 0.0
      %2643 = vmatpush1.msra.mxu0 0.0
      %2644 = vmatprep.subr.mxu0 0.0
      %2645 = vmatpush1.msra.mxu0 0.0
      %2646 = vmatprep.subr.mxu0 0.0
      %2647 = vmatpush1.msra.mxu0 0.0
      %2648 = vmatprep.subr.mxu0 0.0
      %2649 = vmatpush1.msra.mxu0 0.0
      %2650 = vmatprep.subr.mxu0 0.0
      %2651 = vmatpush1.msra.mxu0 0.0
      %2652 = vmatprep.subr.mxu0 0.0
      %2653 = vmatpush1.msra.mxu0 0.0
      %2654 = vmatprep.subr.mxu0 0.0
      %2655 = vmatpush1.msra.mxu0 0.0
      %2656 = vmatprep.subr.mxu0 0.0
      %2657 = vmatpush1.msra.mxu0 0.0
      %2658 = vmatprep.subr.mxu0 0.0
      %2659 = vmatpush1.msra.mxu0 0.0
      %2660 = vmatprep.subr.mxu0 0.0
      %2661 = vmatpush1.msra.mxu0 0.0
      %2662 = vmatprep.subr.mxu0 0.0
      %2663 = vmatpush1.msra.mxu0 0.0
      %2664 = vmatprep.subr.mxu0 0.0
      %2665 = vmatpush1.msra.mxu0 0.0
      %2666 = vmatprep.subr.mxu0 0.0
      %2667 = vmatpush1.msra.mxu0 0.0
      %2668 = vmatprep.subr.mxu0 0.0
      %2669 = vmatpush1.msra.mxu0 0.0
      %2670 = vmatprep.mubr.f32.mxu0 0.0
      %2671 = vmatmul.mubr.f32.gmra.mrb[0].mxu0 %v2364
      %v2672 = vpop.f32.mrb[0].mxu0
      %v2673 = vadd.f32 0.0, %v2672
      %v2674 = vpop.f32.mrb[0].mxu0
      %v2675 = vadd.f32 0.0, %v2674
      %2676 = vdwg.mxu0
      %2677 = vmatprep.subr.mxu0 0.0
      %2678 = vmatpush1.msra.mxu0 %v2391
      %2679 = vmatprep.subr.mxu0 0.0
      %2680 = vmatpush1.msra.mxu0 0.0
      %2681 = vmatprep.subr.mxu0 0.0
      %2682 = vmatpush1.msra.mxu0 0.0
      %2683 = vmatprep.subr.mxu0 0.0
      %2684 = vmatpush1.msra.mxu0 0.0
      %2685 = vmatprep.subr.mxu0 0.0
      %2686 = vmatpush1.msra.mxu0 0.0
      %2687 = vmatprep.subr.mxu0 0.0
      %2688 = vmatpush1.msra.mxu0 0.0
      %2689 = vmatprep.subr.mxu0 0.0
      %2690 = vmatpush1.msra.mxu0 0.0
      %2691 = vmatprep.subr.mxu0 0.0
      %2692 = vmatpush1.msra.mxu0 0.0
      %2693 = vmatprep.subr.mxu0 0.0
      %2694 = vmatpush1.msra.mxu0 0.0
      %2695 = vmatprep.subr.mxu0 0.0
      %2696 = vmatpush1.msra.mxu0 0.0
      %2697 = vmatprep.subr.mxu0 0.0
      %2698 = vmatpush1.msra.mxu0 0.0
      %2699 = vmatprep.subr.mxu0 0.0
      %2700 = vmatpush1.msra.mxu0 0.0
      %2701 = vmatprep.subr.mxu0 0.0
      %2702 = vmatpush1.msra.mxu0 0.0
      %2703 = vmatprep.subr.mxu0 0.0
      %2704 = vmatpush1.msra.mxu0 0.0
      %2705 = vmatprep.subr.mxu0 0.0
      %2706 = vmatpush1.msra.mxu0 0.0
      %2707 = vmatprep.subr.mxu0 0.0
      %2708 = vmatpush1.msra.mxu0 0.0
      %2709 = vmatprep.subr.mxu0 0.0
      %2710 = vmatpush1.msra.mxu0 0.0
      %2711 = vmatprep.subr.mxu0 0.0
      %2712 = vmatpush1.msra.mxu0 0.0
      %2713 = vmatprep.subr.mxu0 0.0
      %2714 = vmatpush1.msra.mxu0 0.0
      %2715 = vmatprep.subr.mxu0 0.0
      %2716 = vmatpush1.msra.mxu0 0.0
      %2717 = vmatprep.subr.mxu0 0.0
      %2718 = vmatpush1.msra.mxu0 0.0
      %2719 = vmatprep.subr.mxu0 0.0
      %2720 = vmatpush1.msra.mxu0 0.0
      %2721 = vmatprep.subr.mxu0 0.0
      %2722 = vmatpush1.msra.mxu0 0.0
      %2723 = vmatprep.subr.mxu0 0.0
      %2724 = vmatpush1.msra.mxu0 0.0
      %2725 = vmatprep.subr.mxu0 0.0
      %2726 = vmatpush1.msra.mxu0 0.0
      %2727 = vmatprep.subr.mxu0 0.0
      %2728 = vmatpush1.msra.mxu0 0.0
      %2729 = vmatprep.subr.mxu0 0.0
      %2730 = vmatpush1.msra.mxu0 0.0
      %2731 = vmatprep.subr.mxu0 0.0
      %2732 = vmatpush1.msra.mxu0 0.0
      %2733 = vmatprep.subr.mxu0 0.0
      %2734 = vmatpush1.msra.mxu0 0.0
      %2735 = vmatprep.subr.mxu0 0.0
      %2736 = vmatpush1.msra.mxu0 0.0
      %2737 = vmatprep.subr.mxu0 0.0
      %2738 = vmatpush1.msra.mxu0 0.0
      %2739 = vmatprep.subr.mxu0 0.0
      %2740 = vmatpush1.msra.mxu0 0.0
      %2741 = vmatprep.mubr.f32.mxu0 0.0
      %2742 = vmatmul.mubr.f32.gmra.mrb[0].mxu0 %v2364
      %v2743 = vpop.f32.mrb[0].mxu0
      %v2744 = vadd.f32 0.0, %v2743
      %v2745 = vpop.f32.mrb[0].mxu0
      %2746 = vdwg.mxu0
      %v2747 = vadd.f32 %v2324, %v2460
      %v2748 = vadd.f32 %v2325, %v2462
      %v2749 = vadd.f32 %v2326, %v2531
      %v2750 = vadd.f32 %v2327, %v2533
      %v2751 = vadd.f32 %v2328, %v2602
      %v2752 = vadd.f32 %v2329, %v2604
      %v2753 = vadd.f32 %v2330, %v2673
      %v2754 = vadd.f32 %v2331, %v2675
      %v2755 = vadd.f32 %v2332, %v2744
      %2756 = vrot.lane.b32.xlu0 %v252, 111
      %v2757 = vpop.permute.xlu0 %2756
      %2758 = vrot.lane.b32.xlu0 %v262, 111
      %v2759 = vpop.permute.xlu0 %2758
      %2760 = vrot.lane.b32.xlu0 %v253, 111
      %v2761 = vpop.permute.xlu0 %2760
      %2762 = vrot.lane.b32.xlu0 %v263, 111
      %v2763 = vpop.permute.xlu0 %2762
      %2764 = vrot.lane.b32.xlu0 %v254, 111
      %v2765 = vpop.permute.xlu0 %2764
      %2766 = vrot.lane.b32.xlu0 %v264, 111
      %v2767 = vpop.permute.xlu0 %2766
      %2768 = vrot.lane.b32.xlu0 %v255, 111
      %v2769 = vpop.permute.xlu0 %2768
      %2770 = vrot.lane.b32.xlu0 %v265, 111
      %v2771 = vpop.permute.xlu0 %2770
      %2772 = vrot.lane.b32.xlu0 %v256, 111
      %v2773 = vpop.permute.xlu0 %2772
      %vm2774 = vcmp.lt.s32.totalorder %v289, 111
      %v2775 = vsel %vm2774, %v2771, %v2773
      %v2776 = vsel %vm2774, %v2769, %v2771
      %v2777 = vsel %vm2774, %v2767, %v2769
      %v2778 = vsel %vm2774, %v2765, %v2767
      %v2779 = vsel %vm2774, %v2763, %v2765
      %v2780 = vsel %vm2774, %v2761, %v2763
      %v2781 = vsel %vm2774, %v2759, %v2761
      %v2782 = vsel %vm2774, %v2757, %v2759
      %v2783 = vsel %vm2774, %v2773, %v2757
      %s2784 = scalar_lea.vmem %s1, 24
      %v2785 = vld [vmem:[%s2784] sm:$0xf]
      %v2787 = vsel %vm331, %v2785, 0
      %v2790 = vsel %vm335, %v2782, 0
      %v2793 = vsel %vm335, %v2781, 0
      %v2796 = vsel %vm335, %v2780, 0
      %v2799 = vsel %vm335, %v2779, 0
      %v2802 = vsel %vm335, %v2778, 0
      %v2805 = vsel %vm335, %v2777, 0
      %v2808 = vsel %vm335, %v2776, 0
      %v2811 = vsel %vm335, %v2775, 0
      %v2814 = vsel %vm335, %v2783, 0
      %2816 = vmatprep.subr.mxu0 %v2793
      %2817 = vmatpush1.msra.mxu0 %v2790
      %2818 = vmatprep.subr.mxu0 0.0
      %2819 = vmatpush1.msra.mxu0 0.0
      %2820 = vmatprep.subr.mxu0 0.0
      %2821 = vmatpush1.msra.mxu0 0.0
      %2822 = vmatprep.subr.mxu0 0.0
      %2823 = vmatpush1.msra.mxu0 0.0
      %2824 = vmatprep.subr.mxu0 0.0
      %2825 = vmatpush1.msra.mxu0 0.0
      %2826 = vmatprep.subr.mxu0 0.0
      %2827 = vmatpush1.msra.mxu0 0.0
      %2828 = vmatprep.subr.mxu0 0.0
      %2829 = vmatpush1.msra.mxu0 0.0
      %2830 = vmatprep.subr.mxu0 0.0
      %2831 = vmatpush1.msra.mxu0 0.0
      %2832 = vmatprep.subr.mxu0 0.0
      %2833 = vmatpush1.msra.mxu0 0.0
      %2834 = vmatprep.subr.mxu0 0.0
      %2835 = vmatpush1.msra.mxu0 0.0
      %2836 = vmatprep.subr.mxu0 0.0
      %2837 = vmatpush1.msra.mxu0 0.0
      %2838 = vmatprep.subr.mxu0 0.0
      %2839 = vmatpush1.msra.mxu0 0.0
      %2840 = vmatprep.subr.mxu0 0.0
      %2841 = vmatpush1.msra.mxu0 0.0
      %2842 = vmatprep.subr.mxu0 0.0
      %2843 = vmatpush1.msra.mxu0 0.0
      %2844 = vmatprep.subr.mxu0 0.0
      %2845 = vmatpush1.msra.mxu0 0.0
      %2846 = vmatprep.subr.mxu0 0.0
      %2847 = vmatpush1.msra.mxu0 0.0
      %2848 = vmatprep.subr.mxu0 0.0
      %2849 = vmatpush1.msra.mxu0 0.0
      %2850 = vmatprep.subr.mxu0 0.0
      %2851 = vmatpush1.msra.mxu0 0.0
      %2852 = vmatprep.subr.mxu0 0.0
      %2853 = vmatpush1.msra.mxu0 0.0
      %2854 = vmatprep.subr.mxu0 0.0
      %2855 = vmatpush1.msra.mxu0 0.0
      %2856 = vmatprep.subr.mxu0 0.0
      %2857 = vmatpush1.msra.mxu0 0.0
      %2858 = vmatprep.subr.mxu0 0.0
      %2859 = vmatpush1.msra.mxu0 0.0
      %2860 = vmatprep.subr.mxu0 0.0
      %2861 = vmatpush1.msra.mxu0 0.0
      %2862 = vmatprep.subr.mxu0 0.0
      %2863 = vmatpush1.msra.mxu0 0.0
      %2864 = vmatprep.subr.mxu0 0.0
      %2865 = vmatpush1.msra.mxu0 0.0
      %2866 = vmatprep.subr.mxu0 0.0
      %2867 = vmatpush1.msra.mxu0 0.0
      %2868 = vmatprep.subr.mxu0 0.0
      %2869 = vmatpush1.msra.mxu0 0.0
      %2870 = vmatprep.subr.mxu0 0.0
      %2871 = vmatpush1.msra.mxu0 0.0
      %2872 = vmatprep.subr.mxu0 0.0
      %2873 = vmatpush1.msra.mxu0 0.0
      %2874 = vmatprep.subr.mxu0 0.0
      %2875 = vmatpush1.msra.mxu0 0.0
      %2876 = vmatprep.subr.mxu0 0.0
      %2877 = vmatpush1.msra.mxu0 0.0
      %2878 = vmatprep.subr.mxu0 0.0
      %2879 = vmatpush1.msra.mxu0 0.0
      %2880 = vmatprep.mubr.f32.mxu0 0.0
      %2881 = vmatmul.mubr.f32.gmra.mrb[0].mxu0 %v2787
      %v2882 = vpop.f32.mrb[0].mxu0
      %v2883 = vadd.f32 0.0, %v2882
      %v2884 = vpop.f32.mrb[0].mxu0
      %v2885 = vadd.f32 0.0, %v2884
      %2886 = vdwg.mxu0
      %2887 = vmatprep.subr.mxu0 %v2799
      %2888 = vmatpush1.msra.mxu0 %v2796
      %2889 = vmatprep.subr.mxu0 0.0
      %2890 = vmatpush1.msra.mxu0 0.0
      %2891 = vmatprep.subr.mxu0 0.0
      %2892 = vmatpush1.msra.mxu0 0.0
      %2893 = vmatprep.subr.mxu0 0.0
      %2894 = vmatpush1.msra.mxu0 0.0
      %2895 = vmatprep.subr.mxu0 0.0
      %2896 = vmatpush1.msra.mxu0 0.0
      %2897 = vmatprep.subr.mxu0 0.0
      %2898 = vmatpush1.msra.mxu0 0.0
      %2899 = vmatprep.subr.mxu0 0.0
      %2900 = vmatpush1.msra.mxu0 0.0
      %2901 = vmatprep.subr.mxu0 0.0
      %2902 = vmatpush1.msra.mxu0 0.0
      %2903 = vmatprep.subr.mxu0 0.0
      %2904 = vmatpush1.msra.mxu0 0.0
      %2905 = vmatprep.subr.mxu0 0.0
      %2906 = vmatpush1.msra.mxu0 0.0
      %2907 = vmatprep.subr.mxu0 0.0
      %2908 = vmatpush1.msra.mxu0 0.0
      %2909 = vmatprep.subr.mxu0 0.0
      %2910 = vmatpush1.msra.mxu0 0.0
      %2911 = vmatprep.subr.mxu0 0.0
      %2912 = vmatpush1.msra.mxu0 0.0
      %2913 = vmatprep.subr.mxu0 0.0
      %2914 = vmatpush1.msra.mxu0 0.0
      %2915 = vmatprep.subr.mxu0 0.0
      %2916 = vmatpush1.msra.mxu0 0.0
      %2917 = vmatprep.subr.mxu0 0.0
      %2918 = vmatpush1.msra.mxu0 0.0
      %2919 = vmatprep.subr.mxu0 0.0
      %2920 = vmatpush1.msra.mxu0 0.0
      %2921 = vmatprep.subr.mxu0 0.0
      %2922 = vmatpush1.msra.mxu0 0.0
      %2923 = vmatprep.subr.mxu0 0.0
      %2924 = vmatpush1.msra.mxu0 0.0
      %2925 = vmatprep.subr.mxu0 0.0
      %2926 = vmatpush1.msra.mxu0 0.0
      %2927 = vmatprep.subr.mxu0 0.0
      %2928 = vmatpush1.msra.mxu0 0.0
      %2929 = vmatprep.subr.mxu0 0.0
      %2930 = vmatpush1.msra.mxu0 0.0
      %2931 = vmatprep.subr.mxu0 0.0
      %2932 = vmatpush1.msra.mxu0 0.0
      %2933 = vmatprep.subr.mxu0 0.0
      %2934 = vmatpush1.msra.mxu0 0.0
      %2935 = vmatprep.subr.mxu0 0.0
      %2936 = vmatpush1.msra.mxu0 0.0
      %2937 = vmatprep.subr.mxu0 0.0
      %2938 = vmatpush1.msra.mxu0 0.0
      %2939 = vmatprep.subr.mxu0 0.0
      %2940 = vmatpush1.msra.mxu0 0.0
      %2941 = vmatprep.subr.mxu0 0.0
      %2942 = vmatpush1.msra.mxu0 0.0
      %2943 = vmatprep.subr.mxu0 0.0
      %2944 = vmatpush1.msra.mxu0 0.0
      %2945 = vmatprep.subr.mxu0 0.0
      %2946 = vmatpush1.msra.mxu0 0.0
      %2947 = vmatprep.subr.mxu0 0.0
      %2948 = vmatpush1.msra.mxu0 0.0
      %2949 = vmatprep.subr.mxu0 0.0
      %2950 = vmatpush1.msra.mxu0 0.0
      %2951 = vmatprep.mubr.f32.mxu0 0.0
      %2952 = vmatmul.mubr.f32.gmra.mrb[0].mxu0 %v2787
      %v2953 = vpop.f32.mrb[0].mxu0
      %v2954 = vadd.f32 0.0, %v2953
      %v2955 = vpop.f32.mrb[0].mxu0
      %v2956 = vadd.f32 0.0, %v2955
      %2957 = vdwg.mxu0
      %2958 = vmatprep.subr.mxu0 %v2805
      %2959 = vmatpush1.msra.mxu0 %v2802
      %2960 = vmatprep.subr.mxu0 0.0
      %2961 = vmatpush1.msra.mxu0 0.0
      %2962 = vmatprep.subr.mxu0 0.0
      %2963 = vmatpush1.msra.mxu0 0.0
      %2964 = vmatprep.subr.mxu0 0.0
      %2965 = vmatpush1.msra.mxu0 0.0
      %2966 = vmatprep.subr.mxu0 0.0
      %2967 = vmatpush1.msra.mxu0 0.0
      %2968 = vmatprep.subr.mxu0 0.0
      %2969 = vmatpush1.msra.mxu0 0.0
      %2970 = vmatprep.subr.mxu0 0.0
      %2971 = vmatpush1.msra.mxu0 0.0
      %2972 = vmatprep.subr.mxu0 0.0
      %2973 = vmatpush1.msra.mxu0 0.0
      %2974 = vmatprep.subr.mxu0 0.0
      %2975 = vmatpush1.msra.mxu0 0.0
      %2976 = vmatprep.subr.mxu0 0.0
      %2977 = vmatpush1.msra.mxu0 0.0
      %2978 = vmatprep.subr.mxu0 0.0
      %2979 = vmatpush1.msra.mxu0 0.0
      %2980 = vmatprep.subr.mxu0 0.0
      %2981 = vmatpush1.msra.mxu0 0.0
      %2982 = vmatprep.subr.mxu0 0.0
      %2983 = vmatpush1.msra.mxu0 0.0
      %2984 = vmatprep.subr.mxu0 0.0
      %2985 = vmatpush1.msra.mxu0 0.0
      %2986 = vmatprep.subr.mxu0 0.0
      %2987 = vmatpush1.msra.mxu0 0.0
      %2988 = vmatprep.subr.mxu0 0.0
      %2989 = vmatpush1.msra.mxu0 0.0
      %2990 = vmatprep.subr.mxu0 0.0
      %2991 = vmatpush1.msra.mxu0 0.0
      %2992 = vmatprep.subr.mxu0 0.0
      %2993 = vmatpush1.msra.mxu0 0.0
      %2994 = vmatprep.subr.mxu0 0.0
      %2995 = vmatpush1.msra.mxu0 0.0
      %2996 = vmatprep.subr.mxu0 0.0
      %2997 = vmatpush1.msra.mxu0 0.0
      %2998 = vmatprep.subr.mxu0 0.0
      %2999 = vmatpush1.msra.mxu0 0.0
      %3000 = vmatprep.subr.mxu0 0.0
      %3001 = vmatpush1.msra.mxu0 0.0
      %3002 = vmatprep.subr.mxu0 0.0
      %3003 = vmatpush1.msra.mxu0 0.0
      %3004 = vmatprep.subr.mxu0 0.0
      %3005 = vmatpush1.msra.mxu0 0.0
      %3006 = vmatprep.subr.mxu0 0.0
      %3007 = vmatpush1.msra.mxu0 0.0
      %3008 = vmatprep.subr.mxu0 0.0
      %3009 = vmatpush1.msra.mxu0 0.0
      %3010 = vmatprep.subr.mxu0 0.0
      %3011 = vmatpush1.msra.mxu0 0.0
      %3012 = vmatprep.subr.mxu0 0.0
      %3013 = vmatpush1.msra.mxu0 0.0
      %3014 = vmatprep.subr.mxu0 0.0
      %3015 = vmatpush1.msra.mxu0 0.0
      %3016 = vmatprep.subr.mxu0 0.0
      %3017 = vmatpush1.msra.mxu0 0.0
      %3018 = vmatprep.subr.mxu0 0.0
      %3019 = vmatpush1.msra.mxu0 0.0
      %3020 = vmatprep.subr.mxu0 0.0
      %3021 = vmatpush1.msra.mxu0 0.0
      %3022 = vmatprep.mubr.f32.mxu0 0.0
      %3023 = vmatmul.mubr.f32.gmra.mrb[0].mxu0 %v2787
      %v3024 = vpop.f32.mrb[0].mxu0
      %v3025 = vadd.f32 0.0, %v3024
      %v3026 = vpop.f32.mrb[0].mxu0
      %v3027 = vadd.f32 0.0, %v3026
      %3028 = vdwg.mxu0
      %3029 = vmatprep.subr.mxu0 %v2811
      %3030 = vmatpush1.msra.mxu0 %v2808
      %3031 = vmatprep.subr.mxu0 0.0
      %3032 = vmatpush1.msra.mxu0 0.0
      %3033 = vmatprep.subr.mxu0 0.0
      %3034 = vmatpush1.msra.mxu0 0.0
      %3035 = vmatprep.subr.mxu0 0.0
      %3036 = vmatpush1.msra.mxu0 0.0
      %3037 = vmatprep.subr.mxu0 0.0
      %3038 = vmatpush1.msra.mxu0 0.0
      %3039 = vmatprep.subr.mxu0 0.0
      %3040 = vmatpush1.msra.mxu0 0.0
      %3041 = vmatprep.subr.mxu0 0.0
      %3042 = vmatpush1.msra.mxu0 0.0
      %3043 = vmatprep.subr.mxu0 0.0
      %3044 = vmatpush1.msra.mxu0 0.0
      %3045 = vmatprep.subr.mxu0 0.0
      %3046 = vmatpush1.msra.mxu0 0.0
      %3047 = vmatprep.subr.mxu0 0.0
      %3048 = vmatpush1.msra.mxu0 0.0
      %3049 = vmatprep.subr.mxu0 0.0
      %3050 = vmatpush1.msra.mxu0 0.0
      %3051 = vmatprep.subr.mxu0 0.0
      %3052 = vmatpush1.msra.mxu0 0.0
      %3053 = vmatprep.subr.mxu0 0.0
      %3054 = vmatpush1.msra.mxu0 0.0
      %3055 = vmatprep.subr.mxu0 0.0
      %3056 = vmatpush1.msra.mxu0 0.0
      %3057 = vmatprep.subr.mxu0 0.0
      %3058 = vmatpush1.msra.mxu0 0.0
      %3059 = vmatprep.subr.mxu0 0.0
      %3060 = vmatpush1.msra.mxu0 0.0
      %3061 = vmatprep.subr.mxu0 0.0
      %3062 = vmatpush1.msra.mxu0 0.0
      %3063 = vmatprep.subr.mxu0 0.0
      %3064 = vmatpush1.msra.mxu0 0.0
      %3065 = vmatprep.subr.mxu0 0.0
      %3066 = vmatpush1.msra.mxu0 0.0
      %3067 = vmatprep.subr.mxu0 0.0
      %3068 = vmatpush1.msra.mxu0 0.0
      %3069 = vmatprep.subr.mxu0 0.0
      %3070 = vmatpush1.msra.mxu0 0.0
      %3071 = vmatprep.subr.mxu0 0.0
      %3072 = vmatpush1.msra.mxu0 0.0
      %3073 = vmatprep.subr.mxu0 0.0
      %3074 = vmatpush1.msra.mxu0 0.0
      %3075 = vmatprep.subr.mxu0 0.0
      %3076 = vmatpush1.msra.mxu0 0.0
      %3077 = vmatprep.subr.mxu0 0.0
      %3078 = vmatpush1.msra.mxu0 0.0
      %3079 = vmatprep.subr.mxu0 0.0
      %3080 = vmatpush1.msra.mxu0 0.0
      %3081 = vmatprep.subr.mxu0 0.0
      %3082 = vmatpush1.msra.mxu0 0.0
      %3083 = vmatprep.subr.mxu0 0.0
      %3084 = vmatpush1.msra.mxu0 0.0
      %3085 = vmatprep.subr.mxu0 0.0
      %3086 = vmatpush1.msra.mxu0 0.0
      %3087 = vmatprep.subr.mxu0 0.0
      %3088 = vmatpush1.msra.mxu0 0.0
      %3089 = vmatprep.subr.mxu0 0.0
      %3090 = vmatpush1.msra.mxu0 0.0
      %3091 = vmatprep.subr.mxu0 0.0
      %3092 = vmatpush1.msra.mxu0 0.0
      %3093 = vmatprep.mubr.f32.mxu0 0.0
      %3094 = vmatmul.mubr.f32.gmra.mrb[0].mxu0 %v2787
      %v3095 = vpop.f32.mrb[0].mxu0
      %v3096 = vadd.f32 0.0, %v3095
      %v3097 = vpop.f32.mrb[0].mxu0
      %v3098 = vadd.f32 0.0, %v3097
      %3099 = vdwg.mxu0
      %3100 = vmatprep.subr.mxu0 0.0
      %3101 = vmatpush1.msra.mxu0 %v2814
      %3102 = vmatprep.subr.mxu0 0.0
      %3103 = vmatpush1.msra.mxu0 0.0
      %3104 = vmatprep.subr.mxu0 0.0
      %3105 = vmatpush1.msra.mxu0 0.0
      %3106 = vmatprep.subr.mxu0 0.0
      %3107 = vmatpush1.msra.mxu0 0.0
      %3108 = vmatprep.subr.mxu0 0.0
      %3109 = vmatpush1.msra.mxu0 0.0
      %3110 = vmatprep.subr.mxu0 0.0
      %3111 = vmatpush1.msra.mxu0 0.0
      %3112 = vmatprep.subr.mxu0 0.0
      %3113 = vmatpush1.msra.mxu0 0.0
      %3114 = vmatprep.subr.mxu0 0.0
      %3115 = vmatpush1.msra.mxu0 0.0
      %3116 = vmatprep.subr.mxu0 0.0
      %3117 = vmatpush1.msra.mxu0 0.0
      %3118 = vmatprep.subr.mxu0 0.0
      %3119 = vmatpush1.msra.mxu0 0.0
      %3120 = vmatprep.subr.mxu0 0.0
      %3121 = vmatpush1.msra.mxu0 0.0
      %3122 = vmatprep.subr.mxu0 0.0
      %3123 = vmatpush1.msra.mxu0 0.0
      %3124 = vmatprep.subr.mxu0 0.0
      %3125 = vmatpush1.msra.mxu0 0.0
      %3126 = vmatprep.subr.mxu0 0.0
      %3127 = vmatpush1.msra.mxu0 0.0
      %3128 = vmatprep.subr.mxu0 0.0
      %3129 = vmatpush1.msra.mxu0 0.0
      %3130 = vmatprep.subr.mxu0 0.0
      %3131 = vmatpush1.msra.mxu0 0.0
      %3132 = vmatprep.subr.mxu0 0.0
      %3133 = vmatpush1.msra.mxu0 0.0
      %3134 = vmatprep.subr.mxu0 0.0
      %3135 = vmatpush1.msra.mxu0 0.0
      %3136 = vmatprep.subr.mxu0 0.0
      %3137 = vmatpush1.msra.mxu0 0.0
      %3138 = vmatprep.subr.mxu0 0.0
      %3139 = vmatpush1.msra.mxu0 0.0
      %3140 = vmatprep.subr.mxu0 0.0
      %3141 = vmatpush1.msra.mxu0 0.0
      %3142 = vmatprep.subr.mxu0 0.0
      %3143 = vmatpush1.msra.mxu0 0.0
      %3144 = vmatprep.subr.mxu0 0.0
      %3145 = vmatpush1.msra.mxu0 0.0
      %3146 = vmatprep.subr.mxu0 0.0
      %3147 = vmatpush1.msra.mxu0 0.0
      %3148 = vmatprep.subr.mxu0 0.0
      %3149 = vmatpush1.msra.mxu0 0.0
      %3150 = vmatprep.subr.mxu0 0.0
      %3151 = vmatpush1.msra.mxu0 0.0
      %3152 = vmatprep.subr.mxu0 0.0
      %3153 = vmatpush1.msra.mxu0 0.0
      %3154 = vmatprep.subr.mxu0 0.0
      %3155 = vmatpush1.msra.mxu0 0.0
      %3156 = vmatprep.subr.mxu0 0.0
      %3157 = vmatpush1.msra.mxu0 0.0
      %3158 = vmatprep.subr.mxu0 0.0
      %3159 = vmatpush1.msra.mxu0 0.0
      %3160 = vmatprep.subr.mxu0 0.0
      %3161 = vmatpush1.msra.mxu0 0.0
      %3162 = vmatprep.subr.mxu0 0.0
      %3163 = vmatpush1.msra.mxu0 0.0
      %3164 = vmatprep.mubr.f32.mxu0 0.0
      %3165 = vmatmul.mubr.f32.gmra.mrb[0].mxu0 %v2787
      %v3166 = vpop.f32.mrb[0].mxu0
      %v3167 = vadd.f32 0.0, %v3166
      %v3168 = vpop.f32.mrb[0].mxu0
      %3169 = vdwg.mxu0
      %v3170 = vadd.f32 %v2747, %v2883
      %v3171 = vadd.f32 %v2748, %v2885
      %v3172 = vadd.f32 %v2749, %v2954
      %v3173 = vadd.f32 %v2750, %v2956
      %v3174 = vadd.f32 %v2751, %v3025
      %v3175 = vadd.f32 %v2752, %v3027
      %v3176 = vadd.f32 %v2753, %v3096
      %v3177 = vadd.f32 %v2754, %v3098
      %v3178 = vadd.f32 %v2755, %v3167
      %3179 = vrot.lane.b32.xlu0 %v252, 110
      %v3180 = vpop.permute.xlu0 %3179
      %3181 = vrot.lane.b32.xlu0 %v262, 110
      %v3182 = vpop.permute.xlu0 %3181
      %3183 = vrot.lane.b32.xlu0 %v253, 110
      %v3184 = vpop.permute.xlu0 %3183
      %3185 = vrot.lane.b32.xlu0 %v263, 110
      %v3186 = vpop.permute.xlu0 %3185
      %3187 = vrot.lane.b32.xlu0 %v254, 110
      %v3188 = vpop.permute.xlu0 %3187
      %3189 = vrot.lane.b32.xlu0 %v264, 110
      %v3190 = vpop.permute.xlu0 %3189
      %3191 = vrot.lane.b32.xlu0 %v255, 110
      %v3192 = vpop.permute.xlu0 %3191
      %3193 = vrot.lane.b32.xlu0 %v265, 110
      %v3194 = vpop.permute.xlu0 %3193
      %3195 = vrot.lane.b32.xlu0 %v256, 110
      %v3196 = vpop.permute.xlu0 %3195
      %vm3197 = vcmp.lt.s32.totalorder %v289, 110
      %v3198 = vsel %vm3197, %v3194, %v3196
      %v3199 = vsel %vm3197, %v3192, %v3194
      %v3200 = vsel %vm3197, %v3190, %v3192
      %v3201 = vsel %vm3197, %v3188, %v3190
      %v3202 = vsel %vm3197, %v3186, %v3188
      %v3203 = vsel %vm3197, %v3184, %v3186
      %v3204 = vsel %vm3197, %v3182, %v3184
      %v3205 = vsel %vm3197, %v3180, %v3182
      %v3206 = vsel %vm3197, %v3196, %v3180
      %s3207 = scalar_lea.vmem %s1, 28
      %v3208 = vld [vmem:[%s3207] sm:$0xf]
      %v3210 = vsel %vm331, %v3208, 0
      %v3213 = vsel %vm335, %v3205, 0
      %v3216 = vsel %vm335, %v3204, 0
      %v3219 = vsel %vm335, %v3203, 0
      %v3222 = vsel %vm335, %v3202, 0
      %v3225 = vsel %vm335, %v3201, 0
      %v3228 = vsel %vm335, %v3200, 0
      %v3231 = vsel %vm335, %v3199, 0
      %v3234 = vsel %vm335, %v3198, 0
      %v3237 = vsel %vm335, %v3206, 0
      %3239 = vmatprep.subr.mxu0 %v3216
      %3240 = vmatpush1.msra.mxu0 %v3213
      %3241 = vmatprep.subr.mxu0 0.0
      %3242 = vmatpush1.msra.mxu0 0.0
      %3243 = vmatprep.subr.mxu0 0.0
      %3244 = vmatpush1.msra.mxu0 0.0
      %3245 = vmatprep.subr.mxu0 0.0
      %3246 = vmatpush1.msra.mxu0 0.0
      %3247 = vmatprep.subr.mxu0 0.0
      %3248 = vmatpush1.msra.mxu0 0.0
      %3249 = vmatprep.subr.mxu0 0.0
      %3250 = vmatpush1.msra.mxu0 0.0
      %3251 = vmatprep.subr.mxu0 0.0
      %3252 = vmatpush1.msra.mxu0 0.0
      %3253 = vmatprep.subr.mxu0 0.0
      %3254 = vmatpush1.msra.mxu0 0.0
      %3255 = vmatprep.subr.mxu0 0.0
      %3256 = vmatpush1.msra.mxu0 0.0
      %3257 = vmatprep.subr.mxu0 0.0
      %3258 = vmatpush1.msra.mxu0 0.0
      %3259 = vmatprep.subr.mxu0 0.0
      %3260 = vmatpush1.msra.mxu0 0.0
      %3261 = vmatprep.subr.mxu0 0.0
      %3262 = vmatpush1.msra.mxu0 0.0
      %3263 = vmatprep.subr.mxu0 0.0
      %3264 = vmatpush1.msra.mxu0 0.0
      %3265 = vmatprep.subr.mxu0 0.0
      %3266 = vmatpush1.msra.mxu0 0.0
      %3267 = vmatprep.subr.mxu0 0.0
      %3268 = vmatpush1.msra.mxu0 0.0
      %3269 = vmatprep.subr.mxu0 0.0
      %3270 = vmatpush1.msra.mxu0 0.0
      %3271 = vmatprep.subr.mxu0 0.0
      %3272 = vmatpush1.msra.mxu0 0.0
      %3273 = vmatprep.subr.mxu0 0.0
      %3274 = vmatpush1.msra.mxu0 0.0
      %3275 = vmatprep.subr.mxu0 0.0
      %3276 = vmatpush1.msra.mxu0 0.0
      %3277 = vmatprep.subr.mxu0 0.0
      %3278 = vmatpush1.msra.mxu0 0.0
      %3279 = vmatprep.subr.mxu0 0.0
      %3280 = vmatpush1.msra.mxu0 0.0
      %3281 = vmatprep.subr.mxu0 0.0
      %3282 = vmatpush1.msra.mxu0 0.0
      %3283 = vmatprep.subr.mxu0 0.0
      %3284 = vmatpush1.msra.mxu0 0.0
      %3285 = vmatprep.subr.mxu0 0.0
      %3286 = vmatpush1.msra.mxu0 0.0
      %3287 = vmatprep.subr.mxu0 0.0
      %3288 = vmatpush1.msra.mxu0 0.0
      %3289 = vmatprep.subr.mxu0 0.0
      %3290 = vmatpush1.msra.mxu0 0.0
      %3291 = vmatprep.subr.mxu0 0.0
      %3292 = vmatpush1.msra.mxu0 0.0
      %3293 = vmatprep.subr.mxu0 0.0
      %3294 = vmatpush1.msra.mxu0 0.0
      %3295 = vmatprep.subr.mxu0 0.0
      %3296 = vmatpush1.msra.mxu0 0.0
      %3297 = vmatprep.subr.mxu0 0.0
      %3298 = vmatpush1.msra.mxu0 0.0
      %3299 = vmatprep.subr.mxu0 0.0
      %3300 = vmatpush1.msra.mxu0 0.0
      %3301 = vmatprep.subr.mxu0 0.0
      %3302 = vmatpush1.msra.mxu0 0.0
      %3303 = vmatprep.mubr.f32.mxu0 0.0
      %3304 = vmatmul.mubr.f32.gmra.mrb[0].mxu0 %v3210
      %v3305 = vpop.f32.mrb[0].mxu0
      %v3306 = vadd.f32 0.0, %v3305
      %v3307 = vpop.f32.mrb[0].mxu0
      %v3308 = vadd.f32 0.0, %v3307
      %3309 = vdwg.mxu0
      %3310 = vmatprep.subr.mxu0 %v3222
      %3311 = vmatpush1.msra.mxu0 %v3219
      %3312 = vmatprep.subr.mxu0 0.0
      %3313 = vmatpush1.msra.mxu0 0.0
      %3314 = vmatprep.subr.mxu0 0.0
      %3315 = vmatpush1.msra.mxu0 0.0
      %3316 = vmatprep.subr.mxu0 0.0
      %3317 = vmatpush1.msra.mxu0 0.0
      %3318 = vmatprep.subr.mxu0 0.0
      %3319 = vmatpush1.msra.mxu0 0.0
      %3320 = vmatprep.subr.mxu0 0.0
      %3321 = vmatpush1.msra.mxu0 0.0
      %3322 = vmatprep.subr.mxu0 0.0
      %3323 = vmatpush1.msra.mxu0 0.0
      %3324 = vmatprep.subr.mxu0 0.0
      %3325 = vmatpush1.msra.mxu0 0.0
      %3326 = vmatprep.subr.mxu0 0.0
      %3327 = vmatpush1.msra.mxu0 0.0
      %3328 = vmatprep.subr.mxu0 0.0
      %3329 = vmatpush1.msra.mxu0 0.0
      %3330 = vmatprep.subr.mxu0 0.0
      %3331 = vmatpush1.msra.mxu0 0.0
      %3332 = vmatprep.subr.mxu0 0.0
      %3333 = vmatpush1.msra.mxu0 0.0
      %3334 = vmatprep.subr.mxu0 0.0
      %3335 = vmatpush1.msra.mxu0 0.0
      %3336 = vmatprep.subr.mxu0 0.0
      %3337 = vmatpush1.msra.mxu0 0.0
      %3338 = vmatprep.subr.mxu0 0.0
      %3339 = vmatpush1.msra.mxu0 0.0
      %3340 = vmatprep.subr.mxu0 0.0
      %3341 = vmatpush1.msra.mxu0 0.0
      %3342 = vmatprep.subr.mxu0 0.0
      %3343 = vmatpush1.msra.mxu0 0.0
      %3344 = vmatprep.subr.mxu0 0.0
      %3345 = vmatpush1.msra.mxu0 0.0
      %3346 = vmatprep.subr.mxu0 0.0
      %3347 = vmatpush1.msra.mxu0 0.0
      %3348 = vmatprep.subr.mxu0 0.0
      %3349 = vmatpush1.msra.mxu0 0.0
      %3350 = vmatprep.subr.mxu0 0.0
      %3351 = vmatpush1.msra.mxu0 0.0
      %3352 = vmatprep.subr.mxu0 0.0
      %3353 = vmatpush1.msra.mxu0 0.0
      %3354 = vmatprep.subr.mxu0 0.0
      %3355 = vmatpush1.msra.mxu0 0.0
      %3356 = vmatprep.subr.mxu0 0.0
      %3357 = vmatpush1.msra.mxu0 0.0
      %3358 = vmatprep.subr.mxu0 0.0
      %3359 = vmatpush1.msra.mxu0 0.0
      %3360 = vmatprep.subr.mxu0 0.0
      %3361 = vmatpush1.msra.mxu0 0.0
      %3362 = vmatprep.subr.mxu0 0.0
      %3363 = vmatpush1.msra.mxu0 0.0
      %3364 = vmatprep.subr.mxu0 0.0
      %3365 = vmatpush1.msra.mxu0 0.0
      %3366 = vmatprep.subr.mxu0 0.0
      %3367 = vmatpush1.msra.mxu0 0.0
      %3368 = vmatprep.subr.mxu0 0.0
      %3369 = vmatpush1.msra.mxu0 0.0
      %3370 = vmatprep.subr.mxu0 0.0
      %3371 = vmatpush1.msra.mxu0 0.0
      %3372 = vmatprep.subr.mxu0 0.0
      %3373 = vmatpush1.msra.mxu0 0.0
      %3374 = vmatprep.mubr.f32.mxu0 0.0
      %3375 = vmatmul.mubr.f32.gmra.mrb[0].mxu0 %v3210
      %v3376 = vpop.f32.mrb[0].mxu0
      %v3377 = vadd.f32 0.0, %v3376
      %v3378 = vpop.f32.mrb[0].mxu0
      %v3379 = vadd.f32 0.0, %v3378
      %3380 = vdwg.mxu0
      %3381 = vmatprep.subr.mxu0 %v3228
      %3382 = vmatpush1.msra.mxu0 %v3225
      %3383 = vmatprep.subr.mxu0 0.0
      %3384 = vmatpush1.msra.mxu0 0.0
      %3385 = vmatprep.subr.mxu0 0.0
      %3386 = vmatpush1.msra.mxu0 0.0
      %3387 = vmatprep.subr.mxu0 0.0
      %3388 = vmatpush1.msra.mxu0 0.0
      %3389 = vmatprep.subr.mxu0 0.0
      %3390 = vmatpush1.msra.mxu0 0.0
      %3391 = vmatprep.subr.mxu0 0.0
      %3392 = vmatpush1.msra.mxu0 0.0
      %3393 = vmatprep.subr.mxu0 0.0
      %3394 = vmatpush1.msra.mxu0 0.0
      %3395 = vmatprep.subr.mxu0 0.0
      %3396 = vmatpush1.msra.mxu0 0.0
      %3397 = vmatprep.subr.mxu0 0.0
      %3398 = vmatpush1.msra.mxu0 0.0
      %3399 = vmatprep.subr.mxu0 0.0
      %3400 = vmatpush1.msra.mxu0 0.0
      %3401 = vmatprep.subr.mxu0 0.0
      %3402 = vmatpush1.msra.mxu0 0.0
      %3403 = vmatprep.subr.mxu0 0.0
      %3404 = vmatpush1.msra.mxu0 0.0
      %3405 = vmatprep.subr.mxu0 0.0
      %3406 = vmatpush1.msra.mxu0 0.0
      %3407 = vmatprep.subr.mxu0 0.0
      %3408 = vmatpush1.msra.mxu0 0.0
      %3409 = vmatprep.subr.mxu0 0.0
      %3410 = vmatpush1.msra.mxu0 0.0
      %3411 = vmatprep.subr.mxu0 0.0
      %3412 = vmatpush1.msra.mxu0 0.0
      %3413 = vmatprep.subr.mxu0 0.0
      %3414 = vmatpush1.msra.mxu0 0.0
      %3415 = vmatprep.subr.mxu0 0.0
      %3416 = vmatpush1.msra.mxu0 0.0
      %3417 = vmatprep.subr.mxu0 0.0
      %3418 = vmatpush1.msra.mxu0 0.0
      %3419 = vmatprep.subr.mxu0 0.0
      %3420 = vmatpush1.msra.mxu0 0.0
      %3421 = vmatprep.subr.mxu0 0.0
      %3422 = vmatpush1.msra.mxu0 0.0
      %3423 = vmatprep.subr.mxu0 0.0
      %3424 = vmatpush1.msra.mxu0 0.0
      %3425 = vmatprep.subr.mxu0 0.0
      %3426 = vmatpush1.msra.mxu0 0.0
      %3427 = vmatprep.subr.mxu0 0.0
      %3428 = vmatpush1.msra.mxu0 0.0
      %3429 = vmatprep.subr.mxu0 0.0
      %3430 = vmatpush1.msra.mxu0 0.0
      %3431 = vmatprep.subr.mxu0 0.0
      %3432 = vmatpush1.msra.mxu0 0.0
      %3433 = vmatprep.subr.mxu0 0.0
      %3434 = vmatpush1.msra.mxu0 0.0
      %3435 = vmatprep.subr.mxu0 0.0
      %3436 = vmatpush1.msra.mxu0 0.0
      %3437 = vmatprep.subr.mxu0 0.0
      %3438 = vmatpush1.msra.mxu0 0.0
      %3439 = vmatprep.subr.mxu0 0.0
      %3440 = vmatpush1.msra.mxu0 0.0
      %3441 = vmatprep.subr.mxu0 0.0
      %3442 = vmatpush1.msra.mxu0 0.0
      %3443 = vmatprep.subr.mxu0 0.0
      %3444 = vmatpush1.msra.mxu0 0.0
      %3445 = vmatprep.mubr.f32.mxu0 0.0
      %3446 = vmatmul.mubr.f32.gmra.mrb[0].mxu0 %v3210
      %v3447 = vpop.f32.mrb[0].mxu0
      %v3448 = vadd.f32 0.0, %v3447
      %v3449 = vpop.f32.mrb[0].mxu0
      %v3450 = vadd.f32 0.0, %v3449
      %3451 = vdwg.mxu0
      %3452 = vmatprep.subr.mxu0 %v3234
      %3453 = vmatpush1.msra.mxu0 %v3231
      %3454 = vmatprep.subr.mxu0 0.0
      %3455 = vmatpush1.msra.mxu0 0.0
      %3456 = vmatprep.subr.mxu0 0.0
      %3457 = vmatpush1.msra.mxu0 0.0
      %3458 = vmatprep.subr.mxu0 0.0
      %3459 = vmatpush1.msra.mxu0 0.0
      %3460 = vmatprep.subr.mxu0 0.0
      %3461 = vmatpush1.msra.mxu0 0.0
      %3462 = vmatprep.subr.mxu0 0.0
      %3463 = vmatpush1.msra.mxu0 0.0
      %3464 = vmatprep.subr.mxu0 0.0
      %3465 = vmatpush1.msra.mxu0 0.0
      %3466 = vmatprep.subr.mxu0 0.0
      %3467 = vmatpush1.msra.mxu0 0.0
      %3468 = vmatprep.subr.mxu0 0.0
      %3469 = vmatpush1.msra.mxu0 0.0
      %3470 = vmatprep.subr.mxu0 0.0
      %3471 = vmatpush1.msra.mxu0 0.0
      %3472 = vmatprep.subr.mxu0 0.0
      %3473 = vmatpush1.msra.mxu0 0.0
      %3474 = vmatprep.subr.mxu0 0.0
      %3475 = vmatpush1.msra.mxu0 0.0
      %3476 = vmatprep.subr.mxu0 0.0
      %3477 = vmatpush1.msra.mxu0 0.0
      %3478 = vmatprep.subr.mxu0 0.0
      %3479 = vmatpush1.msra.mxu0 0.0
      %3480 = vmatprep.subr.mxu0 0.0
      %3481 = vmatpush1.msra.mxu0 0.0
      %3482 = vmatprep.subr.mxu0 0.0
      %3483 = vmatpush1.msra.mxu0 0.0
      %3484 = vmatprep.subr.mxu0 0.0
      %3485 = vmatpush1.msra.mxu0 0.0
      %3486 = vmatprep.subr.mxu0 0.0
      %3487 = vmatpush1.msra.mxu0 0.0
      %3488 = vmatprep.subr.mxu0 0.0
      %3489 = vmatpush1.msra.mxu0 0.0
      %3490 = vmatprep.subr.mxu0 0.0
      %3491 = vmatpush1.msra.mxu0 0.0
      %3492 = vmatprep.subr.mxu0 0.0
      %3493 = vmatpush1.msra.mxu0 0.0
      %3494 = vmatprep.subr.mxu0 0.0
      %3495 = vmatpush1.msra.mxu0 0.0
      %3496 = vmatprep.subr.mxu0 0.0
      %3497 = vmatpush1.msra.mxu0 0.0
      %3498 = vmatprep.subr.mxu0 0.0
      %3499 = vmatpush1.msra.mxu0 0.0
      %3500 = vmatprep.subr.mxu0 0.0
      %3501 = vmatpush1.msra.mxu0 0.0
      %3502 = vmatprep.subr.mxu0 0.0
      %3503 = vmatpush1.msra.mxu0 0.0
      %3504 = vmatprep.subr.mxu0 0.0
      %3505 = vmatpush1.msra.mxu0 0.0
      %3506 = vmatprep.subr.mxu0 0.0
      %3507 = vmatpush1.msra.mxu0 0.0
      %3508 = vmatprep.subr.mxu0 0.0
      %3509 = vmatpush1.msra.mxu0 0.0
      %3510 = vmatprep.subr.mxu0 0.0
      %3511 = vmatpush1.msra.mxu0 0.0
      %3512 = vmatprep.subr.mxu0 0.0
      %3513 = vmatpush1.msra.mxu0 0.0
      %3514 = vmatprep.subr.mxu0 0.0
      %3515 = vmatpush1.msra.mxu0 0.0
      %3516 = vmatprep.mubr.f32.mxu0 0.0
      %3517 = vmatmul.mubr.f32.gmra.mrb[0].mxu0 %v3210
      %v3518 = vpop.f32.mrb[0].mxu0
      %v3519 = vadd.f32 0.0, %v3518
      %v3520 = vpop.f32.mrb[0].mxu0
      %v3521 = vadd.f32 0.0, %v3520
      %3522 = vdwg.mxu0
      %3523 = vmatprep.subr.mxu0 0.0
      %3524 = vmatpush1.msra.mxu0 %v3237
      %3525 = vmatprep.subr.mxu0 0.0
      %3526 = vmatpush1.msra.mxu0 0.0
      %3527 = vmatprep.subr.mxu0 0.0
      %3528 = vmatpush1.msra.mxu0 0.0
      %3529 = vmatprep.subr.mxu0 0.0
      %3530 = vmatpush1.msra.mxu0 0.0
      %3531 = vmatprep.subr.mxu0 0.0
      %3532 = vmatpush1.msra.mxu0 0.0
      %3533 = vmatprep.subr.mxu0 0.0
      %3534 = vmatpush1.msra.mxu0 0.0
      %3535 = vmatprep.subr.mxu0 0.0
      %3536 = vmatpush1.msra.mxu0 0.0
      %3537 = vmatprep.subr.mxu0 0.0
      %3538 = vmatpush1.msra.mxu0 0.0
      %3539 = vmatprep.subr.mxu0 0.0
      %3540 = vmatpush1.msra.mxu0 0.0
      %3541 = vmatprep.subr.mxu0 0.0
      %3542 = vmatpush1.msra.mxu0 0.0
      %3543 = vmatprep.subr.mxu0 0.0
      %3544 = vmatpush1.msra.mxu0 0.0
      %3545 = vmatprep.subr.mxu0 0.0
      %3546 = vmatpush1.msra.mxu0 0.0
      %3547 = vmatprep.subr.mxu0 0.0
      %3548 = vmatpush1.msra.mxu0 0.0
      %3549 = vmatprep.subr.mxu0 0.0
      %3550 = vmatpush1.msra.mxu0 0.0
      %3551 = vmatprep.subr.mxu0 0.0
      %3552 = vmatpush1.msra.mxu0 0.0
      %3553 = vmatprep.subr.mxu0 0.0
      %3554 = vmatpush1.msra.mxu0 0.0
      %3555 = vmatprep.subr.mxu0 0.0
      %3556 = vmatpush1.msra.mxu0 0.0
      %3557 = vmatprep.subr.mxu0 0.0
      %3558 = vmatpush1.msra.mxu0 0.0
      %3559 = vmatprep.subr.mxu0 0.0
      %3560 = vmatpush1.msra.mxu0 0.0
      %3561 = vmatprep.subr.mxu0 0.0
      %3562 = vmatpush1.msra.mxu0 0.0
      %3563 = vmatprep.subr.mxu0 0.0
      %3564 = vmatpush1.msra.mxu0 0.0
      %3565 = vmatprep.subr.mxu0 0.0
      %3566 = vmatpush1.msra.mxu0 0.0
      %3567 = vmatprep.subr.mxu0 0.0
      %3568 = vmatpush1.msra.mxu0 0.0
      %3569 = vmatprep.subr.mxu0 0.0
      %3570 = vmatpush1.msra.mxu0 0.0
      %3571 = vmatprep.subr.mxu0 0.0
      %3572 = vmatpush1.msra.mxu0 0.0
      %3573 = vmatprep.subr.mxu0 0.0
      %3574 = vmatpush1.msra.mxu0 0.0
      %3575 = vmatprep.subr.mxu0 0.0
      %3576 = vmatpush1.msra.mxu0 0.0
      %3577 = vmatprep.subr.mxu0 0.0
      %3578 = vmatpush1.msra.mxu0 0.0
      %3579 = vmatprep.subr.mxu0 0.0
      %3580 = vmatpush1.msra.mxu0 0.0
      %3581 = vmatprep.subr.mxu0 0.0
      %3582 = vmatpush1.msra.mxu0 0.0
      %3583 = vmatprep.subr.mxu0 0.0
      %3584 = vmatpush1.msra.mxu0 0.0
      %3585 = vmatprep.subr.mxu0 0.0
      %3586 = vmatpush1.msra.mxu0 0.0
      %3587 = vmatprep.mubr.f32.mxu0 0.0
      %3588 = vmatmul.mubr.f32.gmra.mrb[0].mxu0 %v3210
      %v3589 = vpop.f32.mrb[0].mxu0
      %v3590 = vadd.f32 0.0, %v3589
      %v3591 = vpop.f32.mrb[0].mxu0
      %3592 = vdwg.mxu0
      %v3593 = vadd.f32 %v3170, %v3306
      %v3594 = vadd.f32 %v3171, %v3308
      %v3595 = vadd.f32 %v3172, %v3377
      %v3596 = vadd.f32 %v3173, %v3379
      %v3597 = vadd.f32 %v3174, %v3448
      %v3598 = vadd.f32 %v3175, %v3450
      %v3599 = vadd.f32 %v3176, %v3519
      %v3600 = vadd.f32 %v3177, %v3521
      %v3601 = vadd.f32 %v3178, %v3590
      %3602 = vrot.lane.b32.xlu0 %v252, 109
      %v3603 = vpop.permute.xlu0 %3602
      %3604 = vrot.lane.b32.xlu0 %v262, 109
      %v3605 = vpop.permute.xlu0 %3604
      %3606 = vrot.lane.b32.xlu0 %v253, 109
      %v3607 = vpop.permute.xlu0 %3606
      %3608 = vrot.lane.b32.xlu0 %v263, 109
      %v3609 = vpop.permute.xlu0 %3608
      %3610 = vrot.lane.b32.xlu0 %v254, 109
      %v3611 = vpop.permute.xlu0 %3610
      %3612 = vrot.lane.b32.xlu0 %v264, 109
      %v3613 = vpop.permute.xlu0 %3612
      %3614 = vrot.lane.b32.xlu0 %v255, 109
      %v3615 = vpop.permute.xlu0 %3614
      %3616 = vrot.lane.b32.xlu0 %v265, 109
      %v3617 = vpop.permute.xlu0 %3616
      %3618 = vrot.lane.b32.xlu0 %v256, 109
      %v3619 = vpop.permute.xlu0 %3618
      %vm3620 = vcmp.lt.s32.totalorder %v289, 109
      %v3621 = vsel %vm3620, %v3617, %v3619
      %v3622 = vsel %vm3620, %v3615, %v3617
      %v3623 = vsel %vm3620, %v3613, %v3615
      %v3624 = vsel %vm3620, %v3611, %v3613
      %v3625 = vsel %vm3620, %v3609, %v3611
      %v3626 = vsel %vm3620, %v3607, %v3609
      %v3627 = vsel %vm3620, %v3605, %v3607
      %v3628 = vsel %vm3620, %v3603, %v3605
      %v3629 = vsel %vm3620, %v3619, %v3603
      %s3630 = scalar_lea.vmem %s1, 32
      %v3631 = vld [vmem:[%s3630] sm:$0xf]
      %v3633 = vsel %vm331, %v3631, 0
      %v3636 = vsel %vm335, %v3628, 0
      %v3639 = vsel %vm335, %v3627, 0
      %v3642 = vsel %vm335, %v3626, 0
      %v3645 = vsel %vm335, %v3625, 0
      %v3648 = vsel %vm335, %v3624, 0
      %v3651 = vsel %vm335, %v3623, 0
      %v3654 = vsel %vm335, %v3622, 0
      %v3657 = vsel %vm335, %v3621, 0
      %v3660 = vsel %vm335, %v3629, 0
      %3662 = vmatprep.subr.mxu0 %v3639
      %3663 = vmatpush1.msra.mxu0 %v3636
      %3664 = vmatprep.subr.mxu0 0.0
      %3665 = vmatpush1.msra.mxu0 0.0
      %3666 = vmatprep.subr.mxu0 0.0
      %3667 = vmatpush1.msra.mxu0 0.0
      %3668 = vmatprep.subr.mxu0 0.0
      %3669 = vmatpush1.msra.mxu0 0.0
      %3670 = vmatprep.subr.mxu0 0.0
      %3671 = vmatpush1.msra.mxu0 0.0
      %3672 = vmatprep.subr.mxu0 0.0
      %3673 = vmatpush1.msra.mxu0 0.0
      %3674 = vmatprep.subr.mxu0 0.0
      %3675 = vmatpush1.msra.mxu0 0.0
      %3676 = vmatprep.subr.mxu0 0.0
      %3677 = vmatpush1.msra.mxu0 0.0
      %3678 = vmatprep.subr.mxu0 0.0
      %3679 = vmatpush1.msra.mxu0 0.0
      %3680 = vmatprep.subr.mxu0 0.0
      %3681 = vmatpush1.msra.mxu0 0.0
      %3682 = vmatprep.subr.mxu0 0.0
      %3683 = vmatpush1.msra.mxu0 0.0
      %3684 = vmatprep.subr.mxu0 0.0
      %3685 = vmatpush1.msra.mxu0 0.0
      %3686 = vmatprep.subr.mxu0 0.0
      %3687 = vmatpush1.msra.mxu0 0.0
      %3688 = vmatprep.subr.mxu0 0.0
      %3689 = vmatpush1.msra.mxu0 0.0
      %3690 = vmatprep.subr.mxu0 0.0
      %3691 = vmatpush1.msra.mxu0 0.0
      %3692 = vmatprep.subr.mxu0 0.0
      %3693 = vmatpush1.msra.mxu0 0.0
      %3694 = vmatprep.subr.mxu0 0.0
      %3695 = vmatpush1.msra.mxu0 0.0
      %3696 = vmatprep.subr.mxu0 0.0
      %3697 = vmatpush1.msra.mxu0 0.0
      %3698 = vmatprep.subr.mxu0 0.0
      %3699 = vmatpush1.msra.mxu0 0.0
      %3700 = vmatprep.subr.mxu0 0.0
      %3701 = vmatpush1.msra.mxu0 0.0
      %3702 = vmatprep.subr.mxu0 0.0
      %3703 = vmatpush1.msra.mxu0 0.0
      %3704 = vmatprep.subr.mxu0 0.0
      %3705 = vmatpush1.msra.mxu0 0.0
      %3706 = vmatprep.subr.mxu0 0.0
      %3707 = vmatpush1.msra.mxu0 0.0
      %3708 = vmatprep.subr.mxu0 0.0
      %3709 = vmatpush1.msra.mxu0 0.0
      %3710 = vmatprep.subr.mxu0 0.0
      %3711 = vmatpush1.msra.mxu0 0.0
      %3712 = vmatprep.subr.mxu0 0.0
      %3713 = vmatpush1.msra.mxu0 0.0
      %3714 = vmatprep.subr.mxu0 0.0
      %3715 = vmatpush1.msra.mxu0 0.0
      %3716 = vmatprep.subr.mxu0 0.0
      %3717 = vmatpush1.msra.mxu0 0.0
      %3718 = vmatprep.subr.mxu0 0.0
      %3719 = vmatpush1.msra.mxu0 0.0
      %3720 = vmatprep.subr.mxu0 0.0
      %3721 = vmatpush1.msra.mxu0 0.0
      %3722 = vmatprep.subr.mxu0 0.0
      %3723 = vmatpush1.msra.mxu0 0.0
      %3724 = vmatprep.subr.mxu0 0.0
      %3725 = vmatpush1.msra.mxu0 0.0
      %3726 = vmatprep.mubr.f32.mxu0 0.0
      %3727 = vmatmul.mubr.f32.gmra.mrb[0].mxu0 %v3633
      %v3728 = vpop.f32.mrb[0].mxu0
      %v3729 = vadd.f32 0.0, %v3728
      %v3730 = vpop.f32.mrb[0].mxu0
      %v3731 = vadd.f32 0.0, %v3730
      %3732 = vdwg.mxu0
      %3733 = vmatprep.subr.mxu0 %v3645
      %3734 = vmatpush1.msra.mxu0 %v3642
      %3735 = vmatprep.subr.mxu0 0.0
      %3736 = vmatpush1.msra.mxu0 0.0
      %3737 = vmatprep.subr.mxu0 0.0
      %3738 = vmatpush1.msra.mxu0 0.0
      %3739 = vmatprep.subr.mxu0 0.0
      %3740 = vmatpush1.msra.mxu0 0.0
      %3741 = vmatprep.subr.mxu0 0.0
      %3742 = vmatpush1.msra.mxu0 0.0
      %3743 = vmatprep.subr.mxu0 0.0
      %3744 = vmatpush1.msra.mxu0 0.0
      %3745 = vmatprep.subr.mxu0 0.0
      %3746 = vmatpush1.msra.mxu0 0.0
      %3747 = vmatprep.subr.mxu0 0.0
      %3748 = vmatpush1.msra.mxu0 0.0
      %3749 = vmatprep.subr.mxu0 0.0
      %3750 = vmatpush1.msra.mxu0 0.0
      %3751 = vmatprep.subr.mxu0 0.0
      %3752 = vmatpush1.msra.mxu0 0.0
      %3753 = vmatprep.subr.mxu0 0.0
      %3754 = vmatpush1.msra.mxu0 0.0
      %3755 = vmatprep.subr.mxu0 0.0
      %3756 = vmatpush1.msra.mxu0 0.0
      %3757 = vmatprep.subr.mxu0 0.0
      %3758 = vmatpush1.msra.mxu0 0.0
      %3759 = vmatprep.subr.mxu0 0.0
      %3760 = vmatpush1.msra.mxu0 0.0
      %3761 = vmatprep.subr.mxu0 0.0
      %3762 = vmatpush1.msra.mxu0 0.0
      %3763 = vmatprep.subr.mxu0 0.0
      %3764 = vmatpush1.msra.mxu0 0.0
      %3765 = vmatprep.subr.mxu0 0.0
      %3766 = vmatpush1.msra.mxu0 0.0
      %3767 = vmatprep.subr.mxu0 0.0
      %3768 = vmatpush1.msra.mxu0 0.0
      %3769 = vmatprep.subr.mxu0 0.0
      %3770 = vmatpush1.msra.mxu0 0.0
      %3771 = vmatprep.subr.mxu0 0.0
      %3772 = vmatpush1.msra.mxu0 0.0
      %3773 = vmatprep.subr.mxu0 0.0
      %3774 = vmatpush1.msra.mxu0 0.0
      %3775 = vmatprep.subr.mxu0 0.0
      %3776 = vmatpush1.msra.mxu0 0.0
      %3777 = vmatprep.subr.mxu0 0.0
      %3778 = vmatpush1.msra.mxu0 0.0
      %3779 = vmatprep.subr.mxu0 0.0
      %3780 = vmatpush1.msra.mxu0 0.0
      %3781 = vmatprep.subr.mxu0 0.0
      %3782 = vmatpush1.msra.mxu0 0.0
      %3783 = vmatprep.subr.mxu0 0.0
      %3784 = vmatpush1.msra.mxu0 0.0
      %3785 = vmatprep.subr.mxu0 0.0
      %3786 = vmatpush1.msra.mxu0 0.0
      %3787 = vmatprep.subr.mxu0 0.0
      %3788 = vmatpush1.msra.mxu0 0.0
      %3789 = vmatprep.subr.mxu0 0.0
      %3790 = vmatpush1.msra.mxu0 0.0
      %3791 = vmatprep.subr.mxu0 0.0
      %3792 = vmatpush1.msra.mxu0 0.0
      %3793 = vmatprep.subr.mxu0 0.0
      %3794 = vmatpush1.msra.mxu0 0.0
      %3795 = vmatprep.subr.mxu0 0.0
      %3796 = vmatpush1.msra.mxu0 0.0
      %3797 = vmatprep.mubr.f32.mxu0 0.0
      %3798 = vmatmul.mubr.f32.gmra.mrb[0].mxu0 %v3633
      %v3799 = vpop.f32.mrb[0].mxu0
      %v3800 = vadd.f32 0.0, %v3799
      %v3801 = vpop.f32.mrb[0].mxu0
      %v3802 = vadd.f32 0.0, %v3801
      %3803 = vdwg.mxu0
      %3804 = vmatprep.subr.mxu0 %v3651
      %3805 = vmatpush1.msra.mxu0 %v3648
      %3806 = vmatprep.subr.mxu0 0.0
      %3807 = vmatpush1.msra.mxu0 0.0
      %3808 = vmatprep.subr.mxu0 0.0
      %3809 = vmatpush1.msra.mxu0 0.0
      %3810 = vmatprep.subr.mxu0 0.0
      %3811 = vmatpush1.msra.mxu0 0.0
      %3812 = vmatprep.subr.mxu0 0.0
      %3813 = vmatpush1.msra.mxu0 0.0
      %3814 = vmatprep.subr.mxu0 0.0
      %3815 = vmatpush1.msra.mxu0 0.0
      %3816 = vmatprep.subr.mxu0 0.0
      %3817 = vmatpush1.msra.mxu0 0.0
      %3818 = vmatprep.subr.mxu0 0.0
      %3819 = vmatpush1.msra.mxu0 0.0
      %3820 = vmatprep.subr.mxu0 0.0
      %3821 = vmatpush1.msra.mxu0 0.0
      %3822 = vmatprep.subr.mxu0 0.0
      %3823 = vmatpush1.msra.mxu0 0.0
      %3824 = vmatprep.subr.mxu0 0.0
      %3825 = vmatpush1.msra.mxu0 0.0
      %3826 = vmatprep.subr.mxu0 0.0
      %3827 = vmatpush1.msra.mxu0 0.0
      %3828 = vmatprep.subr.mxu0 0.0
      %3829 = vmatpush1.msra.mxu0 0.0
      %3830 = vmatprep.subr.mxu0 0.0
      %3831 = vmatpush1.msra.mxu0 0.0
      %3832 = vmatprep.subr.mxu0 0.0
      %3833 = vmatpush1.msra.mxu0 0.0
      %3834 = vmatprep.subr.mxu0 0.0
      %3835 = vmatpush1.msra.mxu0 0.0
      %3836 = vmatprep.subr.mxu0 0.0
      %3837 = vmatpush1.msra.mxu0 0.0
      %3838 = vmatprep.subr.mxu0 0.0
      %3839 = vmatpush1.msra.mxu0 0.0
      %3840 = vmatprep.subr.mxu0 0.0
      %3841 = vmatpush1.msra.mxu0 0.0
      %3842 = vmatprep.subr.mxu0 0.0
      %3843 = vmatpush1.msra.mxu0 0.0
      %3844 = vmatprep.subr.mxu0 0.0
      %3845 = vmatpush1.msra.mxu0 0.0
      %3846 = vmatprep.subr.mxu0 0.0
      %3847 = vmatpush1.msra.mxu0 0.0
      %3848 = vmatprep.subr.mxu0 0.0
      %3849 = vmatpush1.msra.mxu0 0.0
      %3850 = vmatprep.subr.mxu0 0.0
      %3851 = vmatpush1.msra.mxu0 0.0
      %3852 = vmatprep.subr.mxu0 0.0
      %3853 = vmatpush1.msra.mxu0 0.0
      %3854 = vmatprep.subr.mxu0 0.0
      %3855 = vmatpush1.msra.mxu0 0.0
      %3856 = vmatprep.subr.mxu0 0.0
      %3857 = vmatpush1.msra.mxu0 0.0
      %3858 = vmatprep.subr.mxu0 0.0
      %3859 = vmatpush1.msra.mxu0 0.0
      %3860 = vmatprep.subr.mxu0 0.0
      %3861 = vmatpush1.msra.mxu0 0.0
      %3862 = vmatprep.subr.mxu0 0.0
      %3863 = vmatpush1.msra.mxu0 0.0
      %3864 = vmatprep.subr.mxu0 0.0
      %3865 = vmatpush1.msra.mxu0 0.0
      %3866 = vmatprep.subr.mxu0 0.0
      %3867 = vmatpush1.msra.mxu0 0.0
      %3868 = vmatprep.mubr.f32.mxu0 0.0
      %3869 = vmatmul.mubr.f32.gmra.mrb[0].mxu0 %v3633
      %v3870 = vpop.f32.mrb[0].mxu0
      %v3871 = vadd.f32 0.0, %v3870
      %v3872 = vpop.f32.mrb[0].mxu0
      %v3873 = vadd.f32 0.0, %v3872
      %3874 = vdwg.mxu0
      %3875 = vmatprep.subr.mxu0 %v3657
      %3876 = vmatpush1.msra.mxu0 %v3654
      %3877 = vmatprep.subr.mxu0 0.0
      %3878 = vmatpush1.msra.mxu0 0.0
      %3879 = vmatprep.subr.mxu0 0.0
      %3880 = vmatpush1.msra.mxu0 0.0
      %3881 = vmatprep.subr.mxu0 0.0
      %3882 = vmatpush1.msra.mxu0 0.0
      %3883 = vmatprep.subr.mxu0 0.0
      %3884 = vmatpush1.msra.mxu0 0.0
      %3885 = vmatprep.subr.mxu0 0.0
      %3886 = vmatpush1.msra.mxu0 0.0
      %3887 = vmatprep.subr.mxu0 0.0
      %3888 = vmatpush1.msra.mxu0 0.0
      %3889 = vmatprep.subr.mxu0 0.0
      %3890 = vmatpush1.msra.mxu0 0.0
      %3891 = vmatprep.subr.mxu0 0.0
      %3892 = vmatpush1.msra.mxu0 0.0
      %3893 = vmatprep.subr.mxu0 0.0
      %3894 = vmatpush1.msra.mxu0 0.0
      %3895 = vmatprep.subr.mxu0 0.0
      %3896 = vmatpush1.msra.mxu0 0.0
      %3897 = vmatprep.subr.mxu0 0.0
      %3898 = vmatpush1.msra.mxu0 0.0
      %3899 = vmatprep.subr.mxu0 0.0
      %3900 = vmatpush1.msra.mxu0 0.0
      %3901 = vmatprep.subr.mxu0 0.0
      %3902 = vmatpush1.msra.mxu0 0.0
      %3903 = vmatprep.subr.mxu0 0.0
      %3904 = vmatpush1.msra.mxu0 0.0
      %3905 = vmatprep.subr.mxu0 0.0
      %3906 = vmatpush1.msra.mxu0 0.0
      %3907 = vmatprep.subr.mxu0 0.0
      %3908 = vmatpush1.msra.mxu0 0.0
      %3909 = vmatprep.subr.mxu0 0.0
      %3910 = vmatpush1.msra.mxu0 0.0
      %3911 = vmatprep.subr.mxu0 0.0
      %3912 = vmatpush1.msra.mxu0 0.0
      %3913 = vmatprep.subr.mxu0 0.0
      %3914 = vmatpush1.msra.mxu0 0.0
      %3915 = vmatprep.subr.mxu0 0.0
      %3916 = vmatpush1.msra.mxu0 0.0
      %3917 = vmatprep.subr.mxu0 0.0
      %3918 = vmatpush1.msra.mxu0 0.0
      %3919 = vmatprep.subr.mxu0 0.0
      %3920 = vmatpush1.msra.mxu0 0.0
      %3921 = vmatprep.subr.mxu0 0.0
      %3922 = vmatpush1.msra.mxu0 0.0
      %3923 = vmatprep.subr.mxu0 0.0
      %3924 = vmatpush1.msra.mxu0 0.0
      %3925 = vmatprep.subr.mxu0 0.0
      %3926 = vmatpush1.msra.mxu0 0.0
      %3927 = vmatprep.subr.mxu0 0.0
      %3928 = vmatpush1.msra.mxu0 0.0
      %3929 = vmatprep.subr.mxu0 0.0
      %3930 = vmatpush1.msra.mxu0 0.0
      %3931 = vmatprep.subr.mxu0 0.0
      %3932 = vmatpush1.msra.mxu0 0.0
      %3933 = vmatprep.subr.mxu0 0.0
      %3934 = vmatpush1.msra.mxu0 0.0
      %3935 = vmatprep.subr.mxu0 0.0
      %3936 = vmatpush1.msra.mxu0 0.0
      %3937 = vmatprep.subr.mxu0 0.0
      %3938 = vmatpush1.msra.mxu0 0.0
      %3939 = vmatprep.mubr.f32.mxu0 0.0
      %3940 = vmatmul.mubr.f32.gmra.mrb[0].mxu0 %v3633
      %v3941 = vpop.f32.mrb[0].mxu0
      %v3942 = vadd.f32 0.0, %v3941
      %v3943 = vpop.f32.mrb[0].mxu0
      %v3944 = vadd.f32 0.0, %v3943
      %3945 = vdwg.mxu0
      %3946 = vmatprep.subr.mxu0 0.0
      %3947 = vmatpush1.msra.mxu0 %v3660
      %3948 = vmatprep.subr.mxu0 0.0
      %3949 = vmatpush1.msra.mxu0 0.0
      %3950 = vmatprep.subr.mxu0 0.0
      %3951 = vmatpush1.msra.mxu0 0.0
      %3952 = vmatprep.subr.mxu0 0.0
      %3953 = vmatpush1.msra.mxu0 0.0
      %3954 = vmatprep.subr.mxu0 0.0
      %3955 = vmatpush1.msra.mxu0 0.0
      %3956 = vmatprep.subr.mxu0 0.0
      %3957 = vmatpush1.msra.mxu0 0.0
      %3958 = vmatprep.subr.mxu0 0.0
      %3959 = vmatpush1.msra.mxu0 0.0
      %3960 = vmatprep.subr.mxu0 0.0
      %3961 = vmatpush1.msra.mxu0 0.0
      %3962 = vmatprep.subr.mxu0 0.0
      %3963 = vmatpush1.msra.mxu0 0.0
      %3964 = vmatprep.subr.mxu0 0.0
      %3965 = vmatpush1.msra.mxu0 0.0
      %3966 = vmatprep.subr.mxu0 0.0
      %3967 = vmatpush1.msra.mxu0 0.0
      %3968 = vmatprep.subr.mxu0 0.0
      %3969 = vmatpush1.msra.mxu0 0.0
      %3970 = vmatprep.subr.mxu0 0.0
      %3971 = vmatpush1.msra.mxu0 0.0
      %3972 = vmatprep.subr.mxu0 0.0
      %3973 = vmatpush1.msra.mxu0 0.0
      %3974 = vmatprep.subr.mxu0 0.0
      %3975 = vmatpush1.msra.mxu0 0.0
      %3976 = vmatprep.subr.mxu0 0.0
      %3977 = vmatpush1.msra.mxu0 0.0
      %3978 = vmatprep.subr.mxu0 0.0
      %3979 = vmatpush1.msra.mxu0 0.0
      %3980 = vmatprep.subr.mxu0 0.0
      %3981 = vmatpush1.msra.mxu0 0.0
      %3982 = vmatprep.subr.mxu0 0.0
      %3983 = vmatpush1.msra.mxu0 0.0
      %3984 = vmatprep.subr.mxu0 0.0
      %3985 = vmatpush1.msra.mxu0 0.0
      %3986 = vmatprep.subr.mxu0 0.0
      %3987 = vmatpush1.msra.mxu0 0.0
      %3988 = vmatprep.subr.mxu0 0.0
      %3989 = vmatpush1.msra.mxu0 0.0
      %3990 = vmatprep.subr.mxu0 0.0
      %3991 = vmatpush1.msra.mxu0 0.0
      %3992 = vmatprep.subr.mxu0 0.0
      %3993 = vmatpush1.msra.mxu0 0.0
      %3994 = vmatprep.subr.mxu0 0.0
      %3995 = vmatpush1.msra.mxu0 0.0
      %3996 = vmatprep.subr.mxu0 0.0
      %3997 = vmatpush1.msra.mxu0 0.0
      %3998 = vmatprep.subr.mxu0 0.0
      %3999 = vmatpush1.msra.mxu0 0.0
      %4000 = vmatprep.subr.mxu0 0.0
      %4001 = vmatpush1.msra.mxu0 0.0
      %4002 = vmatprep.subr.mxu0 0.0
      %4003 = vmatpush1.msra.mxu0 0.0
      %4004 = vmatprep.subr.mxu0 0.0
      %4005 = vmatpush1.msra.mxu0 0.0
      %4006 = vmatprep.subr.mxu0 0.0
      %4007 = vmatpush1.msra.mxu0 0.0
      %4008 = vmatprep.subr.mxu0 0.0
      %4009 = vmatpush1.msra.mxu0 0.0
      %4010 = vmatprep.mubr.f32.mxu0 0.0
      %4011 = vmatmul.mubr.f32.gmra.mrb[0].mxu0 %v3633
      %v4012 = vpop.f32.mrb[0].mxu0
      %v4013 = vadd.f32 0.0, %v4012
      %v4014 = vpop.f32.mrb[0].mxu0
      %4015 = vdwg.mxu0
      %v4016 = vadd.f32 %v3593, %v3729
      %v4017 = vadd.f32 %v3594, %v3731
      %v4018 = vadd.f32 %v3595, %v3800
      %v4019 = vadd.f32 %v3596, %v3802
      %v4020 = vadd.f32 %v3597, %v3871
      %v4021 = vadd.f32 %v3598, %v3873
      %v4022 = vadd.f32 %v3599, %v3942
      %v4023 = vadd.f32 %v3600, %v3944
      %v4024 = vadd.f32 %v3601, %v4013
      %v4025 = vld [vmem:[%s2] sm:$0xf]
      %4027 = vset.pattern.permute.xlu0 0
      %4028 = vperm.xlu0 %4027, %v4025
      %v4029 = vpop.permute.xlu0 %4028
      %v4031 = vadd.f32 %v4016, %v4029
      %v4032 = vadd.f32 %v4017, %v4029
      %v4033 = vadd.f32 %v4018, %v4029
      %v4034 = vadd.f32 %v4019, %v4029
      %v4035 = vadd.f32 %v4020, %v4029
      %v4036 = vadd.f32 %v4021, %v4029
      %v4037 = vadd.f32 %v4022, %v4029
      %v4038 = vadd.f32 %v4023, %v4029
      %v4039 = vadd.f32 %v4024, %v4029
      %v4040 = vmax.f32 %v4031, 0.0
      %v4041 = vmax.f32 %v4032, 0.0
      %v4042 = vmax.f32 %v4033, 0.0
      %v4043 = vmax.f32 %v4034, 0.0
      %v4044 = vmax.f32 %v4035, 0.0
      %v4045 = vmax.f32 %v4036, 0.0
      %v4046 = vmax.f32 %v4037, 0.0
      %v4047 = vmax.f32 %v4038, 0.0
      %v4048 = vmax.f32 %v4039, 0.0
      %v4049 = vld [vmem:[%s5] sm:$0xff]
      %v4050 = vld [vmem:[%s5 + $0x8] sm:$0x1]
      %v4053 = vlaneseq
      %v4054 = vshrl.u32 %v4053, 7
      %v4055 = vsub.s32 0, %v4054
      %v4056 = vrot.slane %v4049, %v4055
      %v4057 = vlaneseq
      %v4058 = vshrl.u32 %v4057, 7
      %v4059 = vsub.s32 1, %v4058
      %v4060 = vrot.slane %v4049, %v4059
      %v4061 = vlaneseq
      %v4062 = vshrl.u32 %v4061, 7
      %v4063 = vsub.s32 2, %v4062
      %v4064 = vrot.slane %v4049, %v4063
      %v4065 = vlaneseq
      %v4066 = vshrl.u32 %v4065, 7
      %v4067 = vsub.s32 3, %v4066
      %v4068 = vrot.slane %v4049, %v4067
      %v4069 = vlaneseq
      %v4070 = vshrl.u32 %v4069, 7
      %v4071 = vsub.s32 4, %v4070
      %v4072 = vrot.slane %v4049, %v4071
      %v4073 = vlaneseq
      %v4074 = vshrl.u32 %v4073, 7
      %v4075 = vsub.s32 5, %v4074
      %v4076 = vrot.slane %v4049, %v4075
      %v4077 = vlaneseq
      %v4078 = vshrl.u32 %v4077, 7
      %v4079 = vsub.s32 6, %v4078
      %v4080 = vrot.slane %v4049, %v4079
      %v4081 = vlaneseq
      %v4082 = vshrl.u32 %v4081, 7
      %v4083 = vsub.s32 7, %v4082
      %v4084 = vrot.slane %v4049, %v4083
      %v4085 = vlaneseq
      %v4086 = vshrl.u32 %v4085, 7
      %v4087 = vsub.s32 0, %v4086
      %v4088 = vrot.slane %v4050, %v4087
      %v4098 = vmul.f32 %v4040, %v4056
      %v4099 = vmul.f32 %v4041, %v4060
      %v4100 = vmul.f32 %v4042, %v4064
      %v4101 = vmul.f32 %v4043, %v4068
      %v4102 = vmul.f32 %v4044, %v4072
      %v4103 = vmul.f32 %v4045, %v4076
      %v4104 = vmul.f32 %v4046, %v4080
      %v4105 = vmul.f32 %v4047, %v4084
      %v4106 = vmul.f32 %v4048, %v4088
      %4107 = vrot.lane.b32.xlu0 %v4098, 19
      %v4108 = vpop.permute.xlu0 %4107
      %4109 = vrot.lane.b32.xlu0 %v4099, 19
      %v4110 = vpop.permute.xlu0 %4109
      %4111 = vrot.lane.b32.xlu0 %v4100, 19
      %v4112 = vpop.permute.xlu0 %4111
      %4113 = vrot.lane.b32.xlu0 %v4101, 19
      %v4114 = vpop.permute.xlu0 %4113
      %4115 = vrot.lane.b32.xlu0 %v4102, 19
      %v4116 = vpop.permute.xlu0 %4115
      %4117 = vrot.lane.b32.xlu0 %v4103, 19
      %v4118 = vpop.permute.xlu0 %4117
      %4119 = vrot.lane.b32.xlu0 %v4104, 19
      %v4120 = vpop.permute.xlu0 %4119
      %4121 = vrot.lane.b32.xlu0 %v4105, 19
      %v4122 = vpop.permute.xlu0 %4121
      %4123 = vrot.lane.b32.xlu0 %v4106, 19
      %v4124 = vpop.permute.xlu0 %4123
      %v4125 = vsel %vm290, %v4122, %v4124
      %v4126 = vsel %vm290, %v4120, %v4122
      %v4127 = vsel %vm290, %v4118, %v4120
      %v4128 = vsel %vm290, %v4116, %v4118
      %v4129 = vsel %vm290, %v4114, %v4116
      %v4130 = vsel %vm290, %v4112, %v4114
      %v4131 = vsel %vm290, %v4110, %v4112
      %v4132 = vsel %vm290, %v4108, %v4110
      %v4133 = vsel %vm290, %v4124, %v4108
      %v4134 = vld [vmem:[%s3] sm:$0xf]
      %4135 = vrot.lane.b32.xlu0 %v4098, 18
      %v4136 = vpop.permute.xlu0 %4135
      %4137 = vrot.lane.b32.xlu0 %v4099, 18
      %v4138 = vpop.permute.xlu0 %4137
      %4139 = vrot.lane.b32.xlu0 %v4100, 18
      %v4140 = vpop.permute.xlu0 %4139
      %4141 = vrot.lane.b32.xlu0 %v4101, 18
      %v4142 = vpop.permute.xlu0 %4141
      %4143 = vrot.lane.b32.xlu0 %v4102, 18
      %v4144 = vpop.permute.xlu0 %4143
      %4145 = vrot.lane.b32.xlu0 %v4103, 18
      %v4146 = vpop.permute.xlu0 %4145
      %4147 = vrot.lane.b32.xlu0 %v4104, 18
      %v4148 = vpop.permute.xlu0 %4147
      %4149 = vrot.lane.b32.xlu0 %v4105, 18
      %v4150 = vpop.permute.xlu0 %4149
      %4151 = vrot.lane.b32.xlu0 %v4106, 18
      %v4152 = vpop.permute.xlu0 %4151
      %v4153 = vsel %vm319, %v4150, %v4152
      %v4154 = vsel %vm319, %v4148, %v4150
      %v4155 = vsel %vm319, %v4146, %v4148
      %v4156 = vsel %vm319, %v4144, %v4146
      %v4157 = vsel %vm319, %v4142, %v4144
      %v4158 = vsel %vm319, %v4140, %v4142
      %v4159 = vsel %vm319, %v4138, %v4140
      %v4160 = vsel %vm319, %v4136, %v4138
      %v4161 = vsel %vm319, %v4152, %v4136
      %s4162 = scalar_lea.vmem %s3, 4
      %v4163 = vld [vmem:[%s4162] sm:$0xf]
      %v4165 = vsel %vm331, %v4163, 0
      %v4168 = vsel %vm335, %v4161, 0
      %v4171 = vsel %vm335, %v4160, 0
      %v4174 = vsel %vm335, %v4159, 0
      %v4177 = vsel %vm335, %v4158, 0
      %v4180 = vsel %vm335, %v4157, 0
      %v4183 = vsel %vm335, %v4156, 0
      %v4186 = vsel %vm335, %v4155, 0
      %v4189 = vsel %vm335, %v4154, 0
      %v4192 = vsel %vm335, %v4153, 0
      %4194 = vmatprep.subr.mxu0 %v4171
      %4195 = vmatpush1.msra.mxu0 %v4168
      %4196 = vmatprep.subr.mxu0 0.0
      %4197 = vmatpush1.msra.mxu0 0.0
      %4198 = vmatprep.subr.mxu0 0.0
      %4199 = vmatpush1.msra.mxu0 0.0
      %4200 = vmatprep.subr.mxu0 0.0
      %4201 = vmatpush1.msra.mxu0 0.0
      %4202 = vmatprep.subr.mxu0 0.0
      %4203 = vmatpush1.msra.mxu0 0.0
      %4204 = vmatprep.subr.mxu0 0.0
      %4205 = vmatpush1.msra.mxu0 0.0
      %4206 = vmatprep.subr.mxu0 0.0
      %4207 = vmatpush1.msra.mxu0 0.0
      %4208 = vmatprep.subr.mxu0 0.0
      %4209 = vmatpush1.msra.mxu0 0.0
      %4210 = vmatprep.subr.mxu0 0.0
      %4211 = vmatpush1.msra.mxu0 0.0
      %4212 = vmatprep.subr.mxu0 0.0
      %4213 = vmatpush1.msra.mxu0 0.0
      %4214 = vmatprep.subr.mxu0 0.0
      %4215 = vmatpush1.msra.mxu0 0.0
      %4216 = vmatprep.subr.mxu0 0.0
      %4217 = vmatpush1.msra.mxu0 0.0
      %4218 = vmatprep.subr.mxu0 0.0
      %4219 = vmatpush1.msra.mxu0 0.0
      %4220 = vmatprep.subr.mxu0 0.0
      %4221 = vmatpush1.msra.mxu0 0.0
      %4222 = vmatprep.subr.mxu0 0.0
      %4223 = vmatpush1.msra.mxu0 0.0
      %4224 = vmatprep.subr.mxu0 0.0
      %4225 = vmatpush1.msra.mxu0 0.0
      %4226 = vmatprep.subr.mxu0 0.0
      %4227 = vmatpush1.msra.mxu0 0.0
      %4228 = vmatprep.subr.mxu0 0.0
      %4229 = vmatpush1.msra.mxu0 0.0
      %4230 = vmatprep.subr.mxu0 0.0
      %4231 = vmatpush1.msra.mxu0 0.0
      %4232 = vmatprep.subr.mxu0 0.0
      %4233 = vmatpush1.msra.mxu0 0.0
      %4234 = vmatprep.subr.mxu0 0.0
      %4235 = vmatpush1.msra.mxu0 0.0
      %4236 = vmatprep.subr.mxu0 0.0
      %4237 = vmatpush1.msra.mxu0 0.0
      %4238 = vmatprep.subr.mxu0 0.0
      %4239 = vmatpush1.msra.mxu0 0.0
      %4240 = vmatprep.subr.mxu0 0.0
      %4241 = vmatpush1.msra.mxu0 0.0
      %4242 = vmatprep.subr.mxu0 0.0
      %4243 = vmatpush1.msra.mxu0 0.0
      %4244 = vmatprep.subr.mxu0 0.0
      %4245 = vmatpush1.msra.mxu0 0.0
      %4246 = vmatprep.subr.mxu0 0.0
      %4247 = vmatpush1.msra.mxu0 0.0
      %4248 = vmatprep.subr.mxu0 0.0
      %4249 = vmatpush1.msra.mxu0 0.0
      %4250 = vmatprep.subr.mxu0 0.0
      %4251 = vmatpush1.msra.mxu0 0.0
      %4252 = vmatprep.subr.mxu0 0.0
      %4253 = vmatpush1.msra.mxu0 0.0
      %4254 = vmatprep.subr.mxu0 0.0
      %4255 = vmatpush1.msra.mxu0 0.0
      %4256 = vmatprep.subr.mxu0 0.0
      %4257 = vmatpush1.msra.mxu0 0.0
      %4258 = vmatprep.mubr.f32.mxu0 0.0
      %4259 = vmatmul.mubr.f32.gmra.mrb[0].mxu0 %v4165
      %v4260 = vpop.f32.mrb[0].mxu0
      %v4261 = vadd.f32 0.0, %v4260
      %v4262 = vpop.f32.mrb[0].mxu0
      %v4263 = vadd.f32 0.0, %v4262
      %4264 = vdwg.mxu0
      %4265 = vmatprep.subr.mxu0 %v4177
      %4266 = vmatpush1.msra.mxu0 %v4174
      %4267 = vmatprep.subr.mxu0 0.0
      %4268 = vmatpush1.msra.mxu0 0.0
      %4269 = vmatprep.subr.mxu0 0.0
      %4270 = vmatpush1.msra.mxu0 0.0
      %4271 = vmatprep.subr.mxu0 0.0
      %4272 = vmatpush1.msra.mxu0 0.0
      %4273 = vmatprep.subr.mxu0 0.0
      %4274 = vmatpush1.msra.mxu0 0.0
      %4275 = vmatprep.subr.mxu0 0.0
      %4276 = vmatpush1.msra.mxu0 0.0
      %4277 = vmatprep.subr.mxu0 0.0
      %4278 = vmatpush1.msra.mxu0 0.0
      %4279 = vmatprep.subr.mxu0 0.0
      %4280 = vmatpush1.msra.mxu0 0.0
      %4281 = vmatprep.subr.mxu0 0.0
      %4282 = vmatpush1.msra.mxu0 0.0
      %4283 = vmatprep.subr.mxu0 0.0
      %4284 = vmatpush1.msra.mxu0 0.0
      %4285 = vmatprep.subr.mxu0 0.0
      %4286 = vmatpush1.msra.mxu0 0.0
      %4287 = vmatprep.subr.mxu0 0.0
      %4288 = vmatpush1.msra.mxu0 0.0
      %4289 = vmatprep.subr.mxu0 0.0
      %4290 = vmatpush1.msra.mxu0 0.0
      %4291 = vmatprep.subr.mxu0 0.0
      %4292 = vmatpush1.msra.mxu0 0.0
      %4293 = vmatprep.subr.mxu0 0.0
      %4294 = vmatpush1.msra.mxu0 0.0
      %4295 = vmatprep.subr.mxu0 0.0
      %4296 = vmatpush1.msra.mxu0 0.0
      %4297 = vmatprep.subr.mxu0 0.0
      %4298 = vmatpush1.msra.mxu0 0.0
      %4299 = vmatprep.subr.mxu0 0.0
      %4300 = vmatpush1.msra.mxu0 0.0
      %4301 = vmatprep.subr.mxu0 0.0
      %4302 = vmatpush1.msra.mxu0 0.0
      %4303 = vmatprep.subr.mxu0 0.0
      %4304 = vmatpush1.msra.mxu0 0.0
      %4305 = vmatprep.subr.mxu0 0.0
      %4306 = vmatpush1.msra.mxu0 0.0
      %4307 = vmatprep.subr.mxu0 0.0
      %4308 = vmatpush1.msra.mxu0 0.0
      %4309 = vmatprep.subr.mxu0 0.0
      %4310 = vmatpush1.msra.mxu0 0.0
      %4311 = vmatprep.subr.mxu0 0.0
      %4312 = vmatpush1.msra.mxu0 0.0
      %4313 = vmatprep.subr.mxu0 0.0
      %4314 = vmatpush1.msra.mxu0 0.0
      %4315 = vmatprep.subr.mxu0 0.0
      %4316 = vmatpush1.msra.mxu0 0.0
      %4317 = vmatprep.subr.mxu0 0.0
      %4318 = vmatpush1.msra.mxu0 0.0
      %4319 = vmatprep.subr.mxu0 0.0
      %4320 = vmatpush1.msra.mxu0 0.0
      %4321 = vmatprep.subr.mxu0 0.0
      %4322 = vmatpush1.msra.mxu0 0.0
      %4323 = vmatprep.subr.mxu0 0.0
      %4324 = vmatpush1.msra.mxu0 0.0
      %4325 = vmatprep.subr.mxu0 0.0
      %4326 = vmatpush1.msra.mxu0 0.0
      %4327 = vmatprep.subr.mxu0 0.0
      %4328 = vmatpush1.msra.mxu0 0.0
      %4329 = vmatprep.mubr.f32.mxu0 0.0
      %4330 = vmatmul.mubr.f32.gmra.mrb[0].mxu0 %v4165
      %v4331 = vpop.f32.mrb[0].mxu0
      %v4332 = vadd.f32 0.0, %v4331
      %v4333 = vpop.f32.mrb[0].mxu0
      %v4334 = vadd.f32 0.0, %v4333
      %4335 = vdwg.mxu0
      %4336 = vmatprep.subr.mxu0 %v4183
      %4337 = vmatpush1.msra.mxu0 %v4180
      %4338 = vmatprep.subr.mxu0 0.0
      %4339 = vmatpush1.msra.mxu0 0.0
      %4340 = vmatprep.subr.mxu0 0.0
      %4341 = vmatpush1.msra.mxu0 0.0
      %4342 = vmatprep.subr.mxu0 0.0
      %4343 = vmatpush1.msra.mxu0 0.0
      %4344 = vmatprep.subr.mxu0 0.0
      %4345 = vmatpush1.msra.mxu0 0.0
      %4346 = vmatprep.subr.mxu0 0.0
      %4347 = vmatpush1.msra.mxu0 0.0
      %4348 = vmatprep.subr.mxu0 0.0
      %4349 = vmatpush1.msra.mxu0 0.0
      %4350 = vmatprep.subr.mxu0 0.0
      %4351 = vmatpush1.msra.mxu0 0.0
      %4352 = vmatprep.subr.mxu0 0.0
      %4353 = vmatpush1.msra.mxu0 0.0
      %4354 = vmatprep.subr.mxu0 0.0
      %4355 = vmatpush1.msra.mxu0 0.0
      %4356 = vmatprep.subr.mxu0 0.0
      %4357 = vmatpush1.msra.mxu0 0.0
      %4358 = vmatprep.subr.mxu0 0.0
      %4359 = vmatpush1.msra.mxu0 0.0
      %4360 = vmatprep.subr.mxu0 0.0
      %4361 = vmatpush1.msra.mxu0 0.0
      %4362 = vmatprep.subr.mxu0 0.0
      %4363 = vmatpush1.msra.mxu0 0.0
      %4364 = vmatprep.subr.mxu0 0.0
      %4365 = vmatpush1.msra.mxu0 0.0
      %4366 = vmatprep.subr.mxu0 0.0
      %4367 = vmatpush1.msra.mxu0 0.0
      %4368 = vmatprep.subr.mxu0 0.0
      %4369 = vmatpush1.msra.mxu0 0.0
      %4370 = vmatprep.subr.mxu0 0.0
      %4371 = vmatpush1.msra.mxu0 0.0
      %4372 = vmatprep.subr.mxu0 0.0
      %4373 = vmatpush1.msra.mxu0 0.0
      %4374 = vmatprep.subr.mxu0 0.0
      %4375 = vmatpush1.msra.mxu0 0.0
      %4376 = vmatprep.subr.mxu0 0.0
      %4377 = vmatpush1.msra.mxu0 0.0
      %4378 = vmatprep.subr.mxu0 0.0
      %4379 = vmatpush1.msra.mxu0 0.0
      %4380 = vmatprep.subr.mxu0 0.0
      %4381 = vmatpush1.msra.mxu0 0.0
      %4382 = vmatprep.subr.mxu0 0.0
      %4383 = vmatpush1.msra.mxu0 0.0
      %4384 = vmatprep.subr.mxu0 0.0
      %4385 = vmatpush1.msra.mxu0 0.0
      %4386 = vmatprep.subr.mxu0 0.0
      %4387 = vmatpush1.msra.mxu0 0.0
      %4388 = vmatprep.subr.mxu0 0.0
      %4389 = vmatpush1.msra.mxu0 0.0
      %4390 = vmatprep.subr.mxu0 0.0
      %4391 = vmatpush1.msra.mxu0 0.0
      %4392 = vmatprep.subr.mxu0 0.0
      %4393 = vmatpush1.msra.mxu0 0.0
      %4394 = vmatprep.subr.mxu0 0.0
      %4395 = vmatpush1.msra.mxu0 0.0
      %4396 = vmatprep.subr.mxu0 0.0
      %4397 = vmatpush1.msra.mxu0 0.0
      %4398 = vmatprep.subr.mxu0 0.0
      %4399 = vmatpush1.msra.mxu0 0.0
      %4400 = vmatprep.mubr.f32.mxu0 0.0
      %4401 = vmatmul.mubr.f32.gmra.mrb[0].mxu0 %v4165
      %v4402 = vpop.f32.mrb[0].mxu0
      %v4403 = vadd.f32 0.0, %v4402
      %v4404 = vpop.f32.mrb[0].mxu0
      %v4405 = vadd.f32 0.0, %v4404
      %4406 = vdwg.mxu0
      %4407 = vmatprep.subr.mxu0 %v4189
      %4408 = vmatpush1.msra.mxu0 %v4186
      %4409 = vmatprep.subr.mxu0 0.0
      %4410 = vmatpush1.msra.mxu0 0.0
      %4411 = vmatprep.subr.mxu0 0.0
      %4412 = vmatpush1.msra.mxu0 0.0
      %4413 = vmatprep.subr.mxu0 0.0
      %4414 = vmatpush1.msra.mxu0 0.0
      %4415 = vmatprep.subr.mxu0 0.0
      %4416 = vmatpush1.msra.mxu0 0.0
      %4417 = vmatprep.subr.mxu0 0.0
      %4418 = vmatpush1.msra.mxu0 0.0
      %4419 = vmatprep.subr.mxu0 0.0
      %4420 = vmatpush1.msra.mxu0 0.0
      %4421 = vmatprep.subr.mxu0 0.0
      %4422 = vmatpush1.msra.mxu0 0.0
      %4423 = vmatprep.subr.mxu0 0.0
      %4424 = vmatpush1.msra.mxu0 0.0
      %4425 = vmatprep.subr.mxu0 0.0
      %4426 = vmatpush1.msra.mxu0 0.0
      %4427 = vmatprep.subr.mxu0 0.0
      %4428 = vmatpush1.msra.mxu0 0.0
      %4429 = vmatprep.subr.mxu0 0.0
      %4430 = vmatpush1.msra.mxu0 0.0
      %4431 = vmatprep.subr.mxu0 0.0
      %4432 = vmatpush1.msra.mxu0 0.0
      %4433 = vmatprep.subr.mxu0 0.0
      %4434 = vmatpush1.msra.mxu0 0.0
      %4435 = vmatprep.subr.mxu0 0.0
      %4436 = vmatpush1.msra.mxu0 0.0
      %4437 = vmatprep.subr.mxu0 0.0
      %4438 = vmatpush1.msra.mxu0 0.0
      %4439 = vmatprep.subr.mxu0 0.0
      %4440 = vmatpush1.msra.mxu0 0.0
      %4441 = vmatprep.subr.mxu0 0.0
      %4442 = vmatpush1.msra.mxu0 0.0
      %4443 = vmatprep.subr.mxu0 0.0
      %4444 = vmatpush1.msra.mxu0 0.0
      %4445 = vmatprep.subr.mxu0 0.0
      %4446 = vmatpush1.msra.mxu0 0.0
      %4447 = vmatprep.subr.mxu0 0.0
      %4448 = vmatpush1.msra.mxu0 0.0
      %4449 = vmatprep.subr.mxu0 0.0
      %4450 = vmatpush1.msra.mxu0 0.0
      %4451 = vmatprep.subr.mxu0 0.0
      %4452 = vmatpush1.msra.mxu0 0.0
      %4453 = vmatprep.subr.mxu0 0.0
      %4454 = vmatpush1.msra.mxu0 0.0
      %4455 = vmatprep.subr.mxu0 0.0
      %4456 = vmatpush1.msra.mxu0 0.0
      %4457 = vmatprep.subr.mxu0 0.0
      %4458 = vmatpush1.msra.mxu0 0.0
      %4459 = vmatprep.subr.mxu0 0.0
      %4460 = vmatpush1.msra.mxu0 0.0
      %4461 = vmatprep.subr.mxu0 0.0
      %4462 = vmatpush1.msra.mxu0 0.0
      %4463 = vmatprep.subr.mxu0 0.0
      %4464 = vmatpush1.msra.mxu0 0.0
      %4465 = vmatprep.subr.mxu0 0.0
      %4466 = vmatpush1.msra.mxu0 0.0
      %4467 = vmatprep.subr.mxu0 0.0
      %4468 = vmatpush1.msra.mxu0 0.0
      %4469 = vmatprep.subr.mxu0 0.0
      %4470 = vmatpush1.msra.mxu0 0.0
      %4471 = vmatprep.mubr.f32.mxu0 0.0
      %4472 = vmatmul.mubr.f32.gmra.mrb[0].mxu0 %v4165
      %v4473 = vpop.f32.mrb[0].mxu0
      %v4474 = vadd.f32 0.0, %v4473
      %v4475 = vpop.f32.mrb[0].mxu0
      %v4476 = vadd.f32 0.0, %v4475
      %4477 = vdwg.mxu0
      %4478 = vmatprep.subr.mxu0 0.0
      %4479 = vmatpush1.msra.mxu0 %v4192
      %4480 = vmatprep.subr.mxu0 0.0
      %4481 = vmatpush1.msra.mxu0 0.0
      %4482 = vmatprep.subr.mxu0 0.0
      %4483 = vmatpush1.msra.mxu0 0.0
      %4484 = vmatprep.subr.mxu0 0.0
      %4485 = vmatpush1.msra.mxu0 0.0
      %4486 = vmatprep.subr.mxu0 0.0
      %4487 = vmatpush1.msra.mxu0 0.0
      %4488 = vmatprep.subr.mxu0 0.0
      %4489 = vmatpush1.msra.mxu0 0.0
      %4490 = vmatprep.subr.mxu0 0.0
      %4491 = vmatpush1.msra.mxu0 0.0
      %4492 = vmatprep.subr.mxu0 0.0
      %4493 = vmatpush1.msra.mxu0 0.0
      %4494 = vmatprep.subr.mxu0 0.0
      %4495 = vmatpush1.msra.mxu0 0.0
      %4496 = vmatprep.subr.mxu0 0.0
      %4497 = vmatpush1.msra.mxu0 0.0
      %4498 = vmatprep.subr.mxu0 0.0
      %4499 = vmatpush1.msra.mxu0 0.0
      %4500 = vmatprep.subr.mxu0 0.0
      %4501 = vmatpush1.msra.mxu0 0.0
      %4502 = vmatprep.subr.mxu0 0.0
      %4503 = vmatpush1.msra.mxu0 0.0
      %4504 = vmatprep.subr.mxu0 0.0
      %4505 = vmatpush1.msra.mxu0 0.0
      %4506 = vmatprep.subr.mxu0 0.0
      %4507 = vmatpush1.msra.mxu0 0.0
      %4508 = vmatprep.subr.mxu0 0.0
      %4509 = vmatpush1.msra.mxu0 0.0
      %4510 = vmatprep.subr.mxu0 0.0
      %4511 = vmatpush1.msra.mxu0 0.0
      %4512 = vmatprep.subr.mxu0 0.0
      %4513 = vmatpush1.msra.mxu0 0.0
      %4514 = vmatprep.subr.mxu0 0.0
      %4515 = vmatpush1.msra.mxu0 0.0
      %4516 = vmatprep.subr.mxu0 0.0
      %4517 = vmatpush1.msra.mxu0 0.0
      %4518 = vmatprep.subr.mxu0 0.0
      %4519 = vmatpush1.msra.mxu0 0.0
      %4520 = vmatprep.subr.mxu0 0.0
      %4521 = vmatpush1.msra.mxu0 0.0
      %4522 = vmatprep.subr.mxu0 0.0
      %4523 = vmatpush1.msra.mxu0 0.0
      %4524 = vmatprep.subr.mxu0 0.0
      %4525 = vmatpush1.msra.mxu0 0.0
      %4526 = vmatprep.subr.mxu0 0.0
      %4527 = vmatpush1.msra.mxu0 0.0
      %4528 = vmatprep.subr.mxu0 0.0
      %4529 = vmatpush1.msra.mxu0 0.0
      %4530 = vmatprep.subr.mxu0 0.0
      %4531 = vmatpush1.msra.mxu0 0.0
      %4532 = vmatprep.subr.mxu0 0.0
      %4533 = vmatpush1.msra.mxu0 0.0
      %4534 = vmatprep.subr.mxu0 0.0
      %4535 = vmatpush1.msra.mxu0 0.0
      %4536 = vmatprep.subr.mxu0 0.0
      %4537 = vmatpush1.msra.mxu0 0.0
      %4538 = vmatprep.subr.mxu0 0.0
      %4539 = vmatpush1.msra.mxu0 0.0
      %4540 = vmatprep.subr.mxu0 0.0
      %4541 = vmatpush1.msra.mxu0 0.0
      %4542 = vmatprep.mubr.f32.mxu0 0.0
      %4543 = vmatmul.mubr.f32.gmra.mrb[0].mxu0 %v4165
      %v4544 = vpop.f32.mrb[0].mxu0
      %v4545 = vadd.f32 0.0, %v4544
      %v4546 = vpop.f32.mrb[0].mxu0
      %4547 = vdwg.mxu0
      %v4549 = vsel %vm331, %v4134, 0
      %v4552 = vsel %vm335, %v4133, 0
      %v4555 = vsel %vm335, %v4132, 0
      %v4558 = vsel %vm335, %v4131, 0
      %v4561 = vsel %vm335, %v4130, 0
      %v4564 = vsel %vm335, %v4129, 0
      %v4567 = vsel %vm335, %v4128, 0
      %v4570 = vsel %vm335, %v4127, 0
      %v4573 = vsel %vm335, %v4126, 0
      %v4576 = vsel %vm335, %v4125, 0
      %4578 = vmatprep.subr.mxu0 %v4555
      %4579 = vmatpush1.msra.mxu0 %v4552
      %4580 = vmatprep.subr.mxu0 0.0
      %4581 = vmatpush1.msra.mxu0 0.0
      %4582 = vmatprep.subr.mxu0 0.0
      %4583 = vmatpush1.msra.mxu0 0.0
      %4584 = vmatprep.subr.mxu0 0.0
      %4585 = vmatpush1.msra.mxu0 0.0
      %4586 = vmatprep.subr.mxu0 0.0
      %4587 = vmatpush1.msra.mxu0 0.0
      %4588 = vmatprep.subr.mxu0 0.0
      %4589 = vmatpush1.msra.mxu0 0.0
      %4590 = vmatprep.subr.mxu0 0.0
      %4591 = vmatpush1.msra.mxu0 0.0
      %4592 = vmatprep.subr.mxu0 0.0
      %4593 = vmatpush1.msra.mxu0 0.0
      %4594 = vmatprep.subr.mxu0 0.0
      %4595 = vmatpush1.msra.mxu0 0.0
      %4596 = vmatprep.subr.mxu0 0.0
      %4597 = vmatpush1.msra.mxu0 0.0
      %4598 = vmatprep.subr.mxu0 0.0
      %4599 = vmatpush1.msra.mxu0 0.0
      %4600 = vmatprep.subr.mxu0 0.0
      %4601 = vmatpush1.msra.mxu0 0.0
      %4602 = vmatprep.subr.mxu0 0.0
      %4603 = vmatpush1.msra.mxu0 0.0
      %4604 = vmatprep.subr.mxu0 0.0
      %4605 = vmatpush1.msra.mxu0 0.0
      %4606 = vmatprep.subr.mxu0 0.0
      %4607 = vmatpush1.msra.mxu0 0.0
      %4608 = vmatprep.subr.mxu0 0.0
      %4609 = vmatpush1.msra.mxu0 0.0
      %4610 = vmatprep.subr.mxu0 0.0
      %4611 = vmatpush1.msra.mxu0 0.0
      %4612 = vmatprep.subr.mxu0 0.0
      %4613 = vmatpush1.msra.mxu0 0.0
      %4614 = vmatprep.subr.mxu0 0.0
      %4615 = vmatpush1.msra.mxu0 0.0
      %4616 = vmatprep.subr.mxu0 0.0
      %4617 = vmatpush1.msra.mxu0 0.0
      %4618 = vmatprep.subr.mxu0 0.0
      %4619 = vmatpush1.msra.mxu0 0.0
      %4620 = vmatprep.subr.mxu0 0.0
      %4621 = vmatpush1.msra.mxu0 0.0
      %4622 = vmatprep.subr.mxu0 0.0
      %4623 = vmatpush1.msra.mxu0 0.0
      %4624 = vmatprep.subr.mxu0 0.0
      %4625 = vmatpush1.msra.mxu0 0.0
      %4626 = vmatprep.subr.mxu0 0.0
      %4627 = vmatpush1.msra.mxu0 0.0
      %4628 = vmatprep.subr.mxu0 0.0
      %4629 = vmatpush1.msra.mxu0 0.0
      %4630 = vmatprep.subr.mxu0 0.0
      %4631 = vmatpush1.msra.mxu0 0.0
      %4632 = vmatprep.subr.mxu0 0.0
      %4633 = vmatpush1.msra.mxu0 0.0
      %4634 = vmatprep.subr.mxu0 0.0
      %4635 = vmatpush1.msra.mxu0 0.0
      %4636 = vmatprep.subr.mxu0 0.0
      %4637 = vmatpush1.msra.mxu0 0.0
      %4638 = vmatprep.subr.mxu0 0.0
      %4639 = vmatpush1.msra.mxu0 0.0
      %4640 = vmatprep.subr.mxu0 0.0
      %4641 = vmatpush1.msra.mxu0 0.0
      %4642 = vmatprep.mubr.f32.mxu0 0.0
      %4643 = vmatmul.mubr.f32.gmra.mrb[0].mxu0 %v4549
      %v4644 = vpop.f32.mrb[0].mxu0
      %v4645 = vadd.f32 %v4261, %v4644
      %v4646 = vpop.f32.mrb[0].mxu0
      %v4647 = vadd.f32 %v4263, %v4646
      %4648 = vdwg.mxu0
      %4649 = vmatprep.subr.mxu0 %v4561
      %4650 = vmatpush1.msra.mxu0 %v4558
      %4651 = vmatprep.subr.mxu0 0.0
      %4652 = vmatpush1.msra.mxu0 0.0
      %4653 = vmatprep.subr.mxu0 0.0
      %4654 = vmatpush1.msra.mxu0 0.0
      %4655 = vmatprep.subr.mxu0 0.0
      %4656 = vmatpush1.msra.mxu0 0.0
      %4657 = vmatprep.subr.mxu0 0.0
      %4658 = vmatpush1.msra.mxu0 0.0
      %4659 = vmatprep.subr.mxu0 0.0
      %4660 = vmatpush1.msra.mxu0 0.0
      %4661 = vmatprep.subr.mxu0 0.0
      %4662 = vmatpush1.msra.mxu0 0.0
      %4663 = vmatprep.subr.mxu0 0.0
      %4664 = vmatpush1.msra.mxu0 0.0
      %4665 = vmatprep.subr.mxu0 0.0
      %4666 = vmatpush1.msra.mxu0 0.0
      %4667 = vmatprep.subr.mxu0 0.0
      %4668 = vmatpush1.msra.mxu0 0.0
      %4669 = vmatprep.subr.mxu0 0.0
      %4670 = vmatpush1.msra.mxu0 0.0
      %4671 = vmatprep.subr.mxu0 0.0
      %4672 = vmatpush1.msra.mxu0 0.0
      %4673 = vmatprep.subr.mxu0 0.0
      %4674 = vmatpush1.msra.mxu0 0.0
      %4675 = vmatprep.subr.mxu0 0.0
      %4676 = vmatpush1.msra.mxu0 0.0
      %4677 = vmatprep.subr.mxu0 0.0
      %4678 = vmatpush1.msra.mxu0 0.0
      %4679 = vmatprep.subr.mxu0 0.0
      %4680 = vmatpush1.msra.mxu0 0.0
      %4681 = vmatprep.subr.mxu0 0.0
      %4682 = vmatpush1.msra.mxu0 0.0
      %4683 = vmatprep.subr.mxu0 0.0
      %4684 = vmatpush1.msra.mxu0 0.0
      %4685 = vmatprep.subr.mxu0 0.0
      %4686 = vmatpush1.msra.mxu0 0.0
      %4687 = vmatprep.subr.mxu0 0.0
      %4688 = vmatpush1.msra.mxu0 0.0
      %4689 = vmatprep.subr.mxu0 0.0
      %4690 = vmatpush1.msra.mxu0 0.0
      %4691 = vmatprep.subr.mxu0 0.0
      %4692 = vmatpush1.msra.mxu0 0.0
      %4693 = vmatprep.subr.mxu0 0.0
      %4694 = vmatpush1.msra.mxu0 0.0
      %4695 = vmatprep.subr.mxu0 0.0
      %4696 = vmatpush1.msra.mxu0 0.0
      %4697 = vmatprep.subr.mxu0 0.0
      %4698 = vmatpush1.msra.mxu0 0.0
      %4699 = vmatprep.subr.mxu0 0.0
      %4700 = vmatpush1.msra.mxu0 0.0
      %4701 = vmatprep.subr.mxu0 0.0
      %4702 = vmatpush1.msra.mxu0 0.0
      %4703 = vmatprep.subr.mxu0 0.0
      %4704 = vmatpush1.msra.mxu0 0.0
      %4705 = vmatprep.subr.mxu0 0.0
      %4706 = vmatpush1.msra.mxu0 0.0
      %4707 = vmatprep.subr.mxu0 0.0
      %4708 = vmatpush1.msra.mxu0 0.0
      %4709 = vmatprep.subr.mxu0 0.0
      %4710 = vmatpush1.msra.mxu0 0.0
      %4711 = vmatprep.subr.mxu0 0.0
      %4712 = vmatpush1.msra.mxu0 0.0
      %4713 = vmatprep.mubr.f32.mxu0 0.0
      %4714 = vmatmul.mubr.f32.gmra.mrb[0].mxu0 %v4549
      %v4715 = vpop.f32.mrb[0].mxu0
      %v4716 = vadd.f32 %v4332, %v4715
      %v4717 = vpop.f32.mrb[0].mxu0
      %v4718 = vadd.f32 %v4334, %v4717
      %4719 = vdwg.mxu0
      %4720 = vmatprep.subr.mxu0 %v4567
      %4721 = vmatpush1.msra.mxu0 %v4564
      %4722 = vmatprep.subr.mxu0 0.0
      %4723 = vmatpush1.msra.mxu0 0.0
      %4724 = vmatprep.subr.mxu0 0.0
      %4725 = vmatpush1.msra.mxu0 0.0
      %4726 = vmatprep.subr.mxu0 0.0
      %4727 = vmatpush1.msra.mxu0 0.0
      %4728 = vmatprep.subr.mxu0 0.0
      %4729 = vmatpush1.msra.mxu0 0.0
      %4730 = vmatprep.subr.mxu0 0.0
      %4731 = vmatpush1.msra.mxu0 0.0
      %4732 = vmatprep.subr.mxu0 0.0
      %4733 = vmatpush1.msra.mxu0 0.0
      %4734 = vmatprep.subr.mxu0 0.0
      %4735 = vmatpush1.msra.mxu0 0.0
      %4736 = vmatprep.subr.mxu0 0.0
      %4737 = vmatpush1.msra.mxu0 0.0
      %4738 = vmatprep.subr.mxu0 0.0
      %4739 = vmatpush1.msra.mxu0 0.0
      %4740 = vmatprep.subr.mxu0 0.0
      %4741 = vmatpush1.msra.mxu0 0.0
      %4742 = vmatprep.subr.mxu0 0.0
      %4743 = vmatpush1.msra.mxu0 0.0
      %4744 = vmatprep.subr.mxu0 0.0
      %4745 = vmatpush1.msra.mxu0 0.0
      %4746 = vmatprep.subr.mxu0 0.0
      %4747 = vmatpush1.msra.mxu0 0.0
      %4748 = vmatprep.subr.mxu0 0.0
      %4749 = vmatpush1.msra.mxu0 0.0
      %4750 = vmatprep.subr.mxu0 0.0
      %4751 = vmatpush1.msra.mxu0 0.0
      %4752 = vmatprep.subr.mxu0 0.0
      %4753 = vmatpush1.msra.mxu0 0.0
      %4754 = vmatprep.subr.mxu0 0.0
      %4755 = vmatpush1.msra.mxu0 0.0
      %4756 = vmatprep.subr.mxu0 0.0
      %4757 = vmatpush1.msra.mxu0 0.0
      %4758 = vmatprep.subr.mxu0 0.0
      %4759 = vmatpush1.msra.mxu0 0.0
      %4760 = vmatprep.subr.mxu0 0.0
      %4761 = vmatpush1.msra.mxu0 0.0
      %4762 = vmatprep.subr.mxu0 0.0
      %4763 = vmatpush1.msra.mxu0 0.0
      %4764 = vmatprep.subr.mxu0 0.0
      %4765 = vmatpush1.msra.mxu0 0.0
      %4766 = vmatprep.subr.mxu0 0.0
      %4767 = vmatpush1.msra.mxu0 0.0
      %4768 = vmatprep.subr.mxu0 0.0
      %4769 = vmatpush1.msra.mxu0 0.0
      %4770 = vmatprep.subr.mxu0 0.0
      %4771 = vmatpush1.msra.mxu0 0.0
      %4772 = vmatprep.subr.mxu0 0.0
      %4773 = vmatpush1.msra.mxu0 0.0
      %4774 = vmatprep.subr.mxu0 0.0
      %4775 = vmatpush1.msra.mxu0 0.0
      %4776 = vmatprep.subr.mxu0 0.0
      %4777 = vmatpush1.msra.mxu0 0.0
      %4778 = vmatprep.subr.mxu0 0.0
      %4779 = vmatpush1.msra.mxu0 0.0
      %4780 = vmatprep.subr.mxu0 0.0
      %4781 = vmatpush1.msra.mxu0 0.0
      %4782 = vmatprep.subr.mxu0 0.0
      %4783 = vmatpush1.msra.mxu0 0.0
      %4784 = vmatprep.mubr.f32.mxu0 0.0
      %4785 = vmatmul.mubr.f32.gmra.mrb[0].mxu0 %v4549
      %v4786 = vpop.f32.mrb[0].mxu0
      %v4787 = vadd.f32 %v4403, %v4786
      %v4788 = vpop.f32.mrb[0].mxu0
      %v4789 = vadd.f32 %v4405, %v4788
      %4790 = vdwg.mxu0
      %4791 = vmatprep.subr.mxu0 %v4573
      %4792 = vmatpush1.msra.mxu0 %v4570
      %4793 = vmatprep.subr.mxu0 0.0
      %4794 = vmatpush1.msra.mxu0 0.0
      %4795 = vmatprep.subr.mxu0 0.0
      %4796 = vmatpush1.msra.mxu0 0.0
      %4797 = vmatprep.subr.mxu0 0.0
      %4798 = vmatpush1.msra.mxu0 0.0
      %4799 = vmatprep.subr.mxu0 0.0
      %4800 = vmatpush1.msra.mxu0 0.0
      %4801 = vmatprep.subr.mxu0 0.0
      %4802 = vmatpush1.msra.mxu0 0.0
      %4803 = vmatprep.subr.mxu0 0.0
      %4804 = vmatpush1.msra.mxu0 0.0
      %4805 = vmatprep.subr.mxu0 0.0
      %4806 = vmatpush1.msra.mxu0 0.0
      %4807 = vmatprep.subr.mxu0 0.0
      %4808 = vmatpush1.msra.mxu0 0.0
      %4809 = vmatprep.subr.mxu0 0.0
      %4810 = vmatpush1.msra.mxu0 0.0
      %4811 = vmatprep.subr.mxu0 0.0
      %4812 = vmatpush1.msra.mxu0 0.0
      %4813 = vmatprep.subr.mxu0 0.0
      %4814 = vmatpush1.msra.mxu0 0.0
      %4815 = vmatprep.subr.mxu0 0.0
      %4816 = vmatpush1.msra.mxu0 0.0
      %4817 = vmatprep.subr.mxu0 0.0
      %4818 = vmatpush1.msra.mxu0 0.0
      %4819 = vmatprep.subr.mxu0 0.0
      %4820 = vmatpush1.msra.mxu0 0.0
      %4821 = vmatprep.subr.mxu0 0.0
      %4822 = vmatpush1.msra.mxu0 0.0
      %4823 = vmatprep.subr.mxu0 0.0
      %4824 = vmatpush1.msra.mxu0 0.0
      %4825 = vmatprep.subr.mxu0 0.0
      %4826 = vmatpush1.msra.mxu0 0.0
      %4827 = vmatprep.subr.mxu0 0.0
      %4828 = vmatpush1.msra.mxu0 0.0
      %4829 = vmatprep.subr.mxu0 0.0
      %4830 = vmatpush1.msra.mxu0 0.0
      %4831 = vmatprep.subr.mxu0 0.0
      %4832 = vmatpush1.msra.mxu0 0.0
      %4833 = vmatprep.subr.mxu0 0.0
      %4834 = vmatpush1.msra.mxu0 0.0
      %4835 = vmatprep.subr.mxu0 0.0
      %4836 = vmatpush1.msra.mxu0 0.0
      %4837 = vmatprep.subr.mxu0 0.0
      %4838 = vmatpush1.msra.mxu0 0.0
      %4839 = vmatprep.subr.mxu0 0.0
      %4840 = vmatpush1.msra.mxu0 0.0
      %4841 = vmatprep.subr.mxu0 0.0
      %4842 = vmatpush1.msra.mxu0 0.0
      %4843 = vmatprep.subr.mxu0 0.0
      %4844 = vmatpush1.msra.mxu0 0.0
      %4845 = vmatprep.subr.mxu0 0.0
      %4846 = vmatpush1.msra.mxu0 0.0
      %4847 = vmatprep.subr.mxu0 0.0
      %4848 = vmatpush1.msra.mxu0 0.0
      %4849 = vmatprep.subr.mxu0 0.0
      %4850 = vmatpush1.msra.mxu0 0.0
      %4851 = vmatprep.subr.mxu0 0.0
      %4852 = vmatpush1.msra.mxu0 0.0
      %4853 = vmatprep.subr.mxu0 0.0
      %4854 = vmatpush1.msra.mxu0 0.0
      %4855 = vmatprep.mubr.f32.mxu0 0.0
      %4856 = vmatmul.mubr.f32.gmra.mrb[0].mxu0 %v4549
      %v4857 = vpop.f32.mrb[0].mxu0
      %v4858 = vadd.f32 %v4474, %v4857
      %v4859 = vpop.f32.mrb[0].mxu0
      %v4860 = vadd.f32 %v4476, %v4859
      %4861 = vdwg.mxu0
      %4862 = vmatprep.subr.mxu0 0.0
      %4863 = vmatpush1.msra.mxu0 %v4576
      %4864 = vmatprep.subr.mxu0 0.0
      %4865 = vmatpush1.msra.mxu0 0.0
      %4866 = vmatprep.subr.mxu0 0.0
      %4867 = vmatpush1.msra.mxu0 0.0
      %4868 = vmatprep.subr.mxu0 0.0
      %4869 = vmatpush1.msra.mxu0 0.0
      %4870 = vmatprep.subr.mxu0 0.0
      %4871 = vmatpush1.msra.mxu0 0.0
      %4872 = vmatprep.subr.mxu0 0.0
      %4873 = vmatpush1.msra.mxu0 0.0
      %4874 = vmatprep.subr.mxu0 0.0
      %4875 = vmatpush1.msra.mxu0 0.0
      %4876 = vmatprep.subr.mxu0 0.0
      %4877 = vmatpush1.msra.mxu0 0.0
      %4878 = vmatprep.subr.mxu0 0.0
      %4879 = vmatpush1.msra.mxu0 0.0
      %4880 = vmatprep.subr.mxu0 0.0
      %4881 = vmatpush1.msra.mxu0 0.0
      %4882 = vmatprep.subr.mxu0 0.0
      %4883 = vmatpush1.msra.mxu0 0.0
      %4884 = vmatprep.subr.mxu0 0.0
      %4885 = vmatpush1.msra.mxu0 0.0
      %4886 = vmatprep.subr.mxu0 0.0
      %4887 = vmatpush1.msra.mxu0 0.0
      %4888 = vmatprep.subr.mxu0 0.0
      %4889 = vmatpush1.msra.mxu0 0.0
      %4890 = vmatprep.subr.mxu0 0.0
      %4891 = vmatpush1.msra.mxu0 0.0
      %4892 = vmatprep.subr.mxu0 0.0
      %4893 = vmatpush1.msra.mxu0 0.0
      %4894 = vmatprep.subr.mxu0 0.0
      %4895 = vmatpush1.msra.mxu0 0.0
      %4896 = vmatprep.subr.mxu0 0.0
      %4897 = vmatpush1.msra.mxu0 0.0
      %4898 = vmatprep.subr.mxu0 0.0
      %4899 = vmatpush1.msra.mxu0 0.0
      %4900 = vmatprep.subr.mxu0 0.0
      %4901 = vmatpush1.msra.mxu0 0.0
      %4902 = vmatprep.subr.mxu0 0.0
      %4903 = vmatpush1.msra.mxu0 0.0
      %4904 = vmatprep.subr.mxu0 0.0
      %4905 = vmatpush1.msra.mxu0 0.0
      %4906 = vmatprep.subr.mxu0 0.0
      %4907 = vmatpush1.msra.mxu0 0.0
      %4908 = vmatprep.subr.mxu0 0.0
      %4909 = vmatpush1.msra.mxu0 0.0
      %4910 = vmatprep.subr.mxu0 0.0
      %4911 = vmatpush1.msra.mxu0 0.0
      %4912 = vmatprep.subr.mxu0 0.0
      %4913 = vmatpush1.msra.mxu0 0.0
      %4914 = vmatprep.subr.mxu0 0.0
      %4915 = vmatpush1.msra.mxu0 0.0
      %4916 = vmatprep.subr.mxu0 0.0
      %4917 = vmatpush1.msra.mxu0 0.0
      %4918 = vmatprep.subr.mxu0 0.0
      %4919 = vmatpush1.msra.mxu0 0.0
      %4920 = vmatprep.subr.mxu0 0.0
      %4921 = vmatpush1.msra.mxu0 0.0
      %4922 = vmatprep.subr.mxu0 0.0
      %4923 = vmatpush1.msra.mxu0 0.0
      %4924 = vmatprep.subr.mxu0 0.0
      %4925 = vmatpush1.msra.mxu0 0.0
      %4926 = vmatprep.mubr.f32.mxu0 0.0
      %4927 = vmatmul.mubr.f32.gmra.mrb[0].mxu0 %v4549
      %v4928 = vpop.f32.mrb[0].mxu0
      %v4929 = vadd.f32 %v4545, %v4928
      %v4930 = vpop.f32.mrb[0].mxu0
      %4931 = vdwg.mxu0
      %4932 = vrot.lane.b32.xlu0 %v4098, 17
      %v4933 = vpop.permute.xlu0 %4932
      %4934 = vrot.lane.b32.xlu0 %v4099, 17
      %v4935 = vpop.permute.xlu0 %4934
      %4936 = vrot.lane.b32.xlu0 %v4100, 17
      %v4937 = vpop.permute.xlu0 %4936
      %4938 = vrot.lane.b32.xlu0 %v4101, 17
      %v4939 = vpop.permute.xlu0 %4938
      %4940 = vrot.lane.b32.xlu0 %v4102, 17
      %v4941 = vpop.permute.xlu0 %4940
      %4942 = vrot.lane.b32.xlu0 %v4103, 17
      %v4943 = vpop.permute.xlu0 %4942
      %4944 = vrot.lane.b32.xlu0 %v4104, 17
      %v4945 = vpop.permute.xlu0 %4944
      %4946 = vrot.lane.b32.xlu0 %v4105, 17
      %v4947 = vpop.permute.xlu0 %4946
      %4948 = vrot.lane.b32.xlu0 %v4106, 17
      %v4949 = vpop.permute.xlu0 %4948
      %v4950 = vsel %vm1119, %v4947, %v4949
      %v4951 = vsel %vm1119, %v4945, %v4947
      %v4952 = vsel %vm1119, %v4943, %v4945
      %v4953 = vsel %vm1119, %v4941, %v4943
      %v4954 = vsel %vm1119, %v4939, %v4941
      %v4955 = vsel %vm1119, %v4937, %v4939
      %v4956 = vsel %vm1119, %v4935, %v4937
      %v4957 = vsel %vm1119, %v4933, %v4935
      %v4958 = vsel %vm1119, %v4949, %v4933
      %s4959 = scalar_lea.vmem %s3, 8
      %v4960 = vld [vmem:[%s4959] sm:$0xf]
      %v4962 = vsel %vm331, %v4960, 0
      %v4965 = vsel %vm335, %v4958, 0
      %v4968 = vsel %vm335, %v4957, 0
      %v4971 = vsel %vm335, %v4956, 0
      %v4974 = vsel %vm335, %v4955, 0
      %v4977 = vsel %vm335, %v4954, 0
      %v4980 = vsel %vm335, %v4953, 0
      %v4983 = vsel %vm335, %v4952, 0
      %v4986 = vsel %vm335, %v4951, 0
      %v4989 = vsel %vm335, %v4950, 0
      %4991 = vmatprep.subr.mxu0 %v4968
      %4992 = vmatpush1.msra.mxu0 %v4965
      %4993 = vmatprep.subr.mxu0 0.0
      %4994 = vmatpush1.msra.mxu0 0.0
      %4995 = vmatprep.subr.mxu0 0.0
      %4996 = vmatpush1.msra.mxu0 0.0
      %4997 = vmatprep.subr.mxu0 0.0
      %4998 = vmatpush1.msra.mxu0 0.0
      %4999 = vmatprep.subr.mxu0 0.0
      %5000 = vmatpush1.msra.mxu0 0.0
      %5001 = vmatprep.subr.mxu0 0.0
      %5002 = vmatpush1.msra.mxu0 0.0
      %5003 = vmatprep.subr.mxu0 0.0
      %5004 = vmatpush1.msra.mxu0 0.0
      %5005 = vmatprep.subr.mxu0 0.0
      %5006 = vmatpush1.msra.mxu0 0.0
      %5007 = vmatprep.subr.mxu0 0.0
      %5008 = vmatpush1.msra.mxu0 0.0
      %5009 = vmatprep.subr.mxu0 0.0
      %5010 = vmatpush1.msra.mxu0 0.0
      %5011 = vmatprep.subr.mxu0 0.0
      %5012 = vmatpush1.msra.mxu0 0.0
      %5013 = vmatprep.subr.mxu0 0.0
      %5014 = vmatpush1.msra.mxu0 0.0
      %5015 = vmatprep.subr.mxu0 0.0
      %5016 = vmatpush1.msra.mxu0 0.0
      %5017 = vmatprep.subr.mxu0 0.0
      %5018 = vmatpush1.msra.mxu0 0.0
      %5019 = vmatprep.subr.mxu0 0.0
      %5020 = vmatpush1.msra.mxu0 0.0
      %5021 = vmatprep.subr.mxu0 0.0
      %5022 = vmatpush1.msra.mxu0 0.0
      %5023 = vmatprep.subr.mxu0 0.0
      %5024 = vmatpush1.msra.mxu0 0.0
      %5025 = vmatprep.subr.mxu0 0.0
      %5026 = vmatpush1.msra.mxu0 0.0
      %5027 = vmatprep.subr.mxu0 0.0
      %5028 = vmatpush1.msra.mxu0 0.0
      %5029 = vmatprep.subr.mxu0 0.0
      %5030 = vmatpush1.msra.mxu0 0.0
      %5031 = vmatprep.subr.mxu0 0.0
      %5032 = vmatpush1.msra.mxu0 0.0
      %5033 = vmatprep.subr.mxu0 0.0
      %5034 = vmatpush1.msra.mxu0 0.0
      %5035 = vmatprep.subr.mxu0 0.0
      %5036 = vmatpush1.msra.mxu0 0.0
      %5037 = vmatprep.subr.mxu0 0.0
      %5038 = vmatpush1.msra.mxu0 0.0
      %5039 = vmatprep.subr.mxu0 0.0
      %5040 = vmatpush1.msra.mxu0 0.0
      %5041 = vmatprep.subr.mxu0 0.0
      %5042 = vmatpush1.msra.mxu0 0.0
      %5043 = vmatprep.subr.mxu0 0.0
      %5044 = vmatpush1.msra.mxu0 0.0
      %5045 = vmatprep.subr.mxu0 0.0
      %5046 = vmatpush1.msra.mxu0 0.0
      %5047 = vmatprep.subr.mxu0 0.0
      %5048 = vmatpush1.msra.mxu0 0.0
      %5049 = vmatprep.subr.mxu0 0.0
      %5050 = vmatpush1.msra.mxu0 0.0
      %5051 = vmatprep.subr.mxu0 0.0
      %5052 = vmatpush1.msra.mxu0 0.0
      %5053 = vmatprep.subr.mxu0 0.0
      %5054 = vmatpush1.msra.mxu0 0.0
      %5055 = vmatprep.mubr.f32.mxu0 0.0
      %5056 = vmatmul.mubr.f32.gmra.mrb[0].mxu0 %v4962
      %v5057 = vpop.f32.mrb[0].mxu0
      %v5058 = vadd.f32 0.0, %v5057
      %v5059 = vpop.f32.mrb[0].mxu0
      %v5060 = vadd.f32 0.0, %v5059
      %5061 = vdwg.mxu0
      %5062 = vmatprep.subr.mxu0 %v4974
      %5063 = vmatpush1.msra.mxu0 %v4971
      %5064 = vmatprep.subr.mxu0 0.0
      %5065 = vmatpush1.msra.mxu0 0.0
      %5066 = vmatprep.subr.mxu0 0.0
      %5067 = vmatpush1.msra.mxu0 0.0
      %5068 = vmatprep.subr.mxu0 0.0
      %5069 = vmatpush1.msra.mxu0 0.0
      %5070 = vmatprep.subr.mxu0 0.0
      %5071 = vmatpush1.msra.mxu0 0.0
      %5072 = vmatprep.subr.mxu0 0.0
      %5073 = vmatpush1.msra.mxu0 0.0
      %5074 = vmatprep.subr.mxu0 0.0
      %5075 = vmatpush1.msra.mxu0 0.0
      %5076 = vmatprep.subr.mxu0 0.0
      %5077 = vmatpush1.msra.mxu0 0.0
      %5078 = vmatprep.subr.mxu0 0.0
      %5079 = vmatpush1.msra.mxu0 0.0
      %5080 = vmatprep.subr.mxu0 0.0
      %5081 = vmatpush1.msra.mxu0 0.0
      %5082 = vmatprep.subr.mxu0 0.0
      %5083 = vmatpush1.msra.mxu0 0.0
      %5084 = vmatprep.subr.mxu0 0.0
      %5085 = vmatpush1.msra.mxu0 0.0
      %5086 = vmatprep.subr.mxu0 0.0
      %5087 = vmatpush1.msra.mxu0 0.0
      %5088 = vmatprep.subr.mxu0 0.0
      %5089 = vmatpush1.msra.mxu0 0.0
      %5090 = vmatprep.subr.mxu0 0.0
      %5091 = vmatpush1.msra.mxu0 0.0
      %5092 = vmatprep.subr.mxu0 0.0
      %5093 = vmatpush1.msra.mxu0 0.0
      %5094 = vmatprep.subr.mxu0 0.0
      %5095 = vmatpush1.msra.mxu0 0.0
      %5096 = vmatprep.subr.mxu0 0.0
      %5097 = vmatpush1.msra.mxu0 0.0
      %5098 = vmatprep.subr.mxu0 0.0
      %5099 = vmatpush1.msra.mxu0 0.0
      %5100 = vmatprep.subr.mxu0 0.0
      %5101 = vmatpush1.msra.mxu0 0.0
      %5102 = vmatprep.subr.mxu0 0.0
      %5103 = vmatpush1.msra.mxu0 0.0
      %5104 = vmatprep.subr.mxu0 0.0
      %5105 = vmatpush1.msra.mxu0 0.0
      %5106 = vmatprep.subr.mxu0 0.0
      %5107 = vmatpush1.msra.mxu0 0.0
      %5108 = vmatprep.subr.mxu0 0.0
      %5109 = vmatpush1.msra.mxu0 0.0
      %5110 = vmatprep.subr.mxu0 0.0
      %5111 = vmatpush1.msra.mxu0 0.0
      %5112 = vmatprep.subr.mxu0 0.0
      %5113 = vmatpush1.msra.mxu0 0.0
      %5114 = vmatprep.subr.mxu0 0.0
      %5115 = vmatpush1.msra.mxu0 0.0
      %5116 = vmatprep.subr.mxu0 0.0
      %5117 = vmatpush1.msra.mxu0 0.0
      %5118 = vmatprep.subr.mxu0 0.0
      %5119 = vmatpush1.msra.mxu0 0.0
      %5120 = vmatprep.subr.mxu0 0.0
      %5121 = vmatpush1.msra.mxu0 0.0
      %5122 = vmatprep.subr.mxu0 0.0
      %5123 = vmatpush1.msra.mxu0 0.0
      %5124 = vmatprep.subr.mxu0 0.0
      %5125 = vmatpush1.msra.mxu0 0.0
      %5126 = vmatprep.mubr.f32.mxu0 0.0
      %5127 = vmatmul.mubr.f32.gmra.mrb[0].mxu0 %v4962
      %v5128 = vpop.f32.mrb[0].mxu0
      %v5129 = vadd.f32 0.0, %v5128
      %v5130 = vpop.f32.mrb[0].mxu0
      %v5131 = vadd.f32 0.0, %v5130
      %5132 = vdwg.mxu0
      %5133 = vmatprep.subr.mxu0 %v4980
      %5134 = vmatpush1.msra.mxu0 %v4977
      %5135 = vmatprep.subr.mxu0 0.0
      %5136 = vmatpush1.msra.mxu0 0.0
      %5137 = vmatprep.subr.mxu0 0.0
      %5138 = vmatpush1.msra.mxu0 0.0
      %5139 = vmatprep.subr.mxu0 0.0
      %5140 = vmatpush1.msra.mxu0 0.0
      %5141 = vmatprep.subr.mxu0 0.0
      %5142 = vmatpush1.msra.mxu0 0.0
      %5143 = vmatprep.subr.mxu0 0.0
      %5144 = vmatpush1.msra.mxu0 0.0
      %5145 = vmatprep.subr.mxu0 0.0
      %5146 = vmatpush1.msra.mxu0 0.0
      %5147 = vmatprep.subr.mxu0 0.0
      %5148 = vmatpush1.msra.mxu0 0.0
      %5149 = vmatprep.subr.mxu0 0.0
      %5150 = vmatpush1.msra.mxu0 0.0
      %5151 = vmatprep.subr.mxu0 0.0
      %5152 = vmatpush1.msra.mxu0 0.0
      %5153 = vmatprep.subr.mxu0 0.0
      %5154 = vmatpush1.msra.mxu0 0.0
      %5155 = vmatprep.subr.mxu0 0.0
      %5156 = vmatpush1.msra.mxu0 0.0
      %5157 = vmatprep.subr.mxu0 0.0
      %5158 = vmatpush1.msra.mxu0 0.0
      %5159 = vmatprep.subr.mxu0 0.0
      %5160 = vmatpush1.msra.mxu0 0.0
      %5161 = vmatprep.subr.mxu0 0.0
      %5162 = vmatpush1.msra.mxu0 0.0
      %5163 = vmatprep.subr.mxu0 0.0
      %5164 = vmatpush1.msra.mxu0 0.0
      %5165 = vmatprep.subr.mxu0 0.0
      %5166 = vmatpush1.msra.mxu0 0.0
      %5167 = vmatprep.subr.mxu0 0.0
      %5168 = vmatpush1.msra.mxu0 0.0
      %5169 = vmatprep.subr.mxu0 0.0
      %5170 = vmatpush1.msra.mxu0 0.0
      %5171 = vmatprep.subr.mxu0 0.0
      %5172 = vmatpush1.msra.mxu0 0.0
      %5173 = vmatprep.subr.mxu0 0.0
      %5174 = vmatpush1.msra.mxu0 0.0
      %5175 = vmatprep.subr.mxu0 0.0
      %5176 = vmatpush1.msra.mxu0 0.0
      %5177 = vmatprep.subr.mxu0 0.0
      %5178 = vmatpush1.msra.mxu0 0.0
      %5179 = vmatprep.subr.mxu0 0.0
      %5180 = vmatpush1.msra.mxu0 0.0
      %5181 = vmatprep.subr.mxu0 0.0
      %5182 = vmatpush1.msra.mxu0 0.0
      %5183 = vmatprep.subr.mxu0 0.0
      %5184 = vmatpush1.msra.mxu0 0.0
      %5185 = vmatprep.subr.mxu0 0.0
      %5186 = vmatpush1.msra.mxu0 0.0
      %5187 = vmatprep.subr.mxu0 0.0
      %5188 = vmatpush1.msra.mxu0 0.0
      %5189 = vmatprep.subr.mxu0 0.0
      %5190 = vmatpush1.msra.mxu0 0.0
      %5191 = vmatprep.subr.mxu0 0.0
      %5192 = vmatpush1.msra.mxu0 0.0
      %5193 = vmatprep.subr.mxu0 0.0
      %5194 = vmatpush1.msra.mxu0 0.0
      %5195 = vmatprep.subr.mxu0 0.0
      %5196 = vmatpush1.msra.mxu0 0.0
      %5197 = vmatprep.mubr.f32.mxu0 0.0
      %5198 = vmatmul.mubr.f32.gmra.mrb[0].mxu0 %v4962
      %v5199 = vpop.f32.mrb[0].mxu0
      %v5200 = vadd.f32 0.0, %v5199
      %v5201 = vpop.f32.mrb[0].mxu0
      %v5202 = vadd.f32 0.0, %v5201
      %5203 = vdwg.mxu0
      %5204 = vmatprep.subr.mxu0 %v4986
      %5205 = vmatpush1.msra.mxu0 %v4983
      %5206 = vmatprep.subr.mxu0 0.0
      %5207 = vmatpush1.msra.mxu0 0.0
      %5208 = vmatprep.subr.mxu0 0.0
      %5209 = vmatpush1.msra.mxu0 0.0
      %5210 = vmatprep.subr.mxu0 0.0
      %5211 = vmatpush1.msra.mxu0 0.0
      %5212 = vmatprep.subr.mxu0 0.0
      %5213 = vmatpush1.msra.mxu0 0.0
      %5214 = vmatprep.subr.mxu0 0.0
      %5215 = vmatpush1.msra.mxu0 0.0
      %5216 = vmatprep.subr.mxu0 0.0
      %5217 = vmatpush1.msra.mxu0 0.0
      %5218 = vmatprep.subr.mxu0 0.0
      %5219 = vmatpush1.msra.mxu0 0.0
      %5220 = vmatprep.subr.mxu0 0.0
      %5221 = vmatpush1.msra.mxu0 0.0
      %5222 = vmatprep.subr.mxu0 0.0
      %5223 = vmatpush1.msra.mxu0 0.0
      %5224 = vmatprep.subr.mxu0 0.0
      %5225 = vmatpush1.msra.mxu0 0.0
      %5226 = vmatprep.subr.mxu0 0.0
      %5227 = vmatpush1.msra.mxu0 0.0
      %5228 = vmatprep.subr.mxu0 0.0
      %5229 = vmatpush1.msra.mxu0 0.0
      %5230 = vmatprep.subr.mxu0 0.0
      %5231 = vmatpush1.msra.mxu0 0.0
      %5232 = vmatprep.subr.mxu0 0.0
      %5233 = vmatpush1.msra.mxu0 0.0
      %5234 = vmatprep.subr.mxu0 0.0
      %5235 = vmatpush1.msra.mxu0 0.0
      %5236 = vmatprep.subr.mxu0 0.0
      %5237 = vmatpush1.msra.mxu0 0.0
      %5238 = vmatprep.subr.mxu0 0.0
      %5239 = vmatpush1.msra.mxu0 0.0
      %5240 = vmatprep.subr.mxu0 0.0
      %5241 = vmatpush1.msra.mxu0 0.0
      %5242 = vmatprep.subr.mxu0 0.0
      %5243 = vmatpush1.msra.mxu0 0.0
      %5244 = vmatprep.subr.mxu0 0.0
      %5245 = vmatpush1.msra.mxu0 0.0
      %5246 = vmatprep.subr.mxu0 0.0
      %5247 = vmatpush1.msra.mxu0 0.0
      %5248 = vmatprep.subr.mxu0 0.0
      %5249 = vmatpush1.msra.mxu0 0.0
      %5250 = vmatprep.subr.mxu0 0.0
      %5251 = vmatpush1.msra.mxu0 0.0
      %5252 = vmatprep.subr.mxu0 0.0
      %5253 = vmatpush1.msra.mxu0 0.0
      %5254 = vmatprep.subr.mxu0 0.0
      %5255 = vmatpush1.msra.mxu0 0.0
      %5256 = vmatprep.subr.mxu0 0.0
      %5257 = vmatpush1.msra.mxu0 0.0
      %5258 = vmatprep.subr.mxu0 0.0
      %5259 = vmatpush1.msra.mxu0 0.0
      %5260 = vmatprep.subr.mxu0 0.0
      %5261 = vmatpush1.msra.mxu0 0.0
      %5262 = vmatprep.subr.mxu0 0.0
      %5263 = vmatpush1.msra.mxu0 0.0
      %5264 = vmatprep.subr.mxu0 0.0
      %5265 = vmatpush1.msra.mxu0 0.0
      %5266 = vmatprep.subr.mxu0 0.0
      %5267 = vmatpush1.msra.mxu0 0.0
      %5268 = vmatprep.mubr.f32.mxu0 0.0
      %5269 = vmatmul.mubr.f32.gmra.mrb[0].mxu0 %v4962
      %v5270 = vpop.f32.mrb[0].mxu0
      %v5271 = vadd.f32 0.0, %v5270
      %v5272 = vpop.f32.mrb[0].mxu0
      %v5273 = vadd.f32 0.0, %v5272
      %5274 = vdwg.mxu0
      %5275 = vmatprep.subr.mxu0 0.0
      %5276 = vmatpush1.msra.mxu0 %v4989
      %5277 = vmatprep.subr.mxu0 0.0
      %5278 = vmatpush1.msra.mxu0 0.0
      %5279 = vmatprep.subr.mxu0 0.0
      %5280 = vmatpush1.msra.mxu0 0.0
      %5281 = vmatprep.subr.mxu0 0.0
      %5282 = vmatpush1.msra.mxu0 0.0
      %5283 = vmatprep.subr.mxu0 0.0
      %5284 = vmatpush1.msra.mxu0 0.0
      %5285 = vmatprep.subr.mxu0 0.0
      %5286 = vmatpush1.msra.mxu0 0.0
      %5287 = vmatprep.subr.mxu0 0.0
      %5288 = vmatpush1.msra.mxu0 0.0
      %5289 = vmatprep.subr.mxu0 0.0
      %5290 = vmatpush1.msra.mxu0 0.0
      %5291 = vmatprep.subr.mxu0 0.0
      %5292 = vmatpush1.msra.mxu0 0.0
      %5293 = vmatprep.subr.mxu0 0.0
      %5294 = vmatpush1.msra.mxu0 0.0
      %5295 = vmatprep.subr.mxu0 0.0
      %5296 = vmatpush1.msra.mxu0 0.0
      %5297 = vmatprep.subr.mxu0 0.0
      %5298 = vmatpush1.msra.mxu0 0.0
      %5299 = vmatprep.subr.mxu0 0.0
      %5300 = vmatpush1.msra.mxu0 0.0
      %5301 = vmatprep.subr.mxu0 0.0
      %5302 = vmatpush1.msra.mxu0 0.0
      %5303 = vmatprep.subr.mxu0 0.0
      %5304 = vmatpush1.msra.mxu0 0.0
      %5305 = vmatprep.subr.mxu0 0.0
      %5306 = vmatpush1.msra.mxu0 0.0
      %5307 = vmatprep.subr.mxu0 0.0
      %5308 = vmatpush1.msra.mxu0 0.0
      %5309 = vmatprep.subr.mxu0 0.0
      %5310 = vmatpush1.msra.mxu0 0.0
      %5311 = vmatprep.subr.mxu0 0.0
      %5312 = vmatpush1.msra.mxu0 0.0
      %5313 = vmatprep.subr.mxu0 0.0
      %5314 = vmatpush1.msra.mxu0 0.0
      %5315 = vmatprep.subr.mxu0 0.0
      %5316 = vmatpush1.msra.mxu0 0.0
      %5317 = vmatprep.subr.mxu0 0.0
      %5318 = vmatpush1.msra.mxu0 0.0
      %5319 = vmatprep.subr.mxu0 0.0
      %5320 = vmatpush1.msra.mxu0 0.0
      %5321 = vmatprep.subr.mxu0 0.0
      %5322 = vmatpush1.msra.mxu0 0.0
      %5323 = vmatprep.subr.mxu0 0.0
      %5324 = vmatpush1.msra.mxu0 0.0
      %5325 = vmatprep.subr.mxu0 0.0
      %5326 = vmatpush1.msra.mxu0 0.0
      %5327 = vmatprep.subr.mxu0 0.0
      %5328 = vmatpush1.msra.mxu0 0.0
      %5329 = vmatprep.subr.mxu0 0.0
      %5330 = vmatpush1.msra.mxu0 0.0
      %5331 = vmatprep.subr.mxu0 0.0
      %5332 = vmatpush1.msra.mxu0 0.0
      %5333 = vmatprep.subr.mxu0 0.0
      %5334 = vmatpush1.msra.mxu0 0.0
      %5335 = vmatprep.subr.mxu0 0.0
      %5336 = vmatpush1.msra.mxu0 0.0
      %5337 = vmatprep.subr.mxu0 0.0
      %5338 = vmatpush1.msra.mxu0 0.0
      %5339 = vmatprep.mubr.f32.mxu0 0.0
      %5340 = vmatmul.mubr.f32.gmra.mrb[0].mxu0 %v4962
      %v5341 = vpop.f32.mrb[0].mxu0
      %v5342 = vadd.f32 0.0, %v5341
      %v5343 = vpop.f32.mrb[0].mxu0
      %5344 = vdwg.mxu0
      %v5345 = vadd.f32 %v4645, %v5058
      %v5346 = vadd.f32 %v4647, %v5060
      %v5347 = vadd.f32 %v4716, %v5129
      %v5348 = vadd.f32 %v4718, %v5131
      %v5349 = vadd.f32 %v4787, %v5200
      %v5350 = vadd.f32 %v4789, %v5202
      %v5351 = vadd.f32 %v4858, %v5271
      %v5352 = vadd.f32 %v4860, %v5273
      %v5353 = vadd.f32 %v4929, %v5342
      %5354 = vrot.lane.b32.xlu0 %v4098, 1
      %v5355 = vpop.permute.xlu0 %5354
      %5356 = vrot.lane.b32.xlu0 %v4099, 1
      %v5357 = vpop.permute.xlu0 %5356
      %5358 = vrot.lane.b32.xlu0 %v4100, 1
      %v5359 = vpop.permute.xlu0 %5358
      %5360 = vrot.lane.b32.xlu0 %v4101, 1
      %v5361 = vpop.permute.xlu0 %5360
      %5362 = vrot.lane.b32.xlu0 %v4102, 1
      %v5363 = vpop.permute.xlu0 %5362
      %5364 = vrot.lane.b32.xlu0 %v4103, 1
      %v5365 = vpop.permute.xlu0 %5364
      %5366 = vrot.lane.b32.xlu0 %v4104, 1
      %v5367 = vpop.permute.xlu0 %5366
      %5368 = vrot.lane.b32.xlu0 %v4105, 1
      %v5369 = vpop.permute.xlu0 %5368
      %5370 = vrot.lane.b32.xlu0 %v4106, 1
      %v5371 = vpop.permute.xlu0 %5370
      %v5372 = vsel %vm1542, %v5369, %v5371
      %v5373 = vsel %vm1542, %v5367, %v5369
      %v5374 = vsel %vm1542, %v5365, %v5367
      %v5375 = vsel %vm1542, %v5363, %v5365
      %v5376 = vsel %vm1542, %v5361, %v5363
      %v5377 = vsel %vm1542, %v5359, %v5361
      %v5378 = vsel %vm1542, %v5357, %v5359
      %v5379 = vsel %vm1542, %v5355, %v5357
      %v5380 = vsel %vm1542, %v5371, %v5355
      %s5381 = scalar_lea.vmem %s3, 12
      %v5382 = vld [vmem:[%s5381] sm:$0xf]
      %v5384 = vsel %vm331, %v5382, 0
      %v5387 = vsel %vm335, %v5380, 0
      %v5390 = vsel %vm335, %v5379, 0
      %v5393 = vsel %vm335, %v5378, 0
      %v5396 = vsel %vm335, %v5377, 0
      %v5399 = vsel %vm335, %v5376, 0
      %v5402 = vsel %vm335, %v5375, 0
      %v5405 = vsel %vm335, %v5374, 0
      %v5408 = vsel %vm335, %v5373, 0
      %v5411 = vsel %vm335, %v5372, 0
      %5413 = vmatprep.subr.mxu0 %v5390
      %5414 = vmatpush1.msra.mxu0 %v5387
      %5415 = vmatprep.subr.mxu0 0.0
      %5416 = vmatpush1.msra.mxu0 0.0
      %5417 = vmatprep.subr.mxu0 0.0
      %5418 = vmatpush1.msra.mxu0 0.0
      %5419 = vmatprep.subr.mxu0 0.0
      %5420 = vmatpush1.msra.mxu0 0.0
      %5421 = vmatprep.subr.mxu0 0.0
      %5422 = vmatpush1.msra.mxu0 0.0
      %5423 = vmatprep.subr.mxu0 0.0
      %5424 = vmatpush1.msra.mxu0 0.0
      %5425 = vmatprep.subr.mxu0 0.0
      %5426 = vmatpush1.msra.mxu0 0.0
      %5427 = vmatprep.subr.mxu0 0.0
      %5428 = vmatpush1.msra.mxu0 0.0
      %5429 = vmatprep.subr.mxu0 0.0
      %5430 = vmatpush1.msra.mxu0 0.0
      %5431 = vmatprep.subr.mxu0 0.0
      %5432 = vmatpush1.msra.mxu0 0.0
      %5433 = vmatprep.subr.mxu0 0.0
      %5434 = vmatpush1.msra.mxu0 0.0
      %5435 = vmatprep.subr.mxu0 0.0
      %5436 = vmatpush1.msra.mxu0 0.0
      %5437 = vmatprep.subr.mxu0 0.0
      %5438 = vmatpush1.msra.mxu0 0.0
      %5439 = vmatprep.subr.mxu0 0.0
      %5440 = vmatpush1.msra.mxu0 0.0
      %5441 = vmatprep.subr.mxu0 0.0
      %5442 = vmatpush1.msra.mxu0 0.0
      %5443 = vmatprep.subr.mxu0 0.0
      %5444 = vmatpush1.msra.mxu0 0.0
      %5445 = vmatprep.subr.mxu0 0.0
      %5446 = vmatpush1.msra.mxu0 0.0
      %5447 = vmatprep.subr.mxu0 0.0
      %5448 = vmatpush1.msra.mxu0 0.0
      %5449 = vmatprep.subr.mxu0 0.0
      %5450 = vmatpush1.msra.mxu0 0.0
      %5451 = vmatprep.subr.mxu0 0.0
      %5452 = vmatpush1.msra.mxu0 0.0
      %5453 = vmatprep.subr.mxu0 0.0
      %5454 = vmatpush1.msra.mxu0 0.0
      %5455 = vmatprep.subr.mxu0 0.0
      %5456 = vmatpush1.msra.mxu0 0.0
      %5457 = vmatprep.subr.mxu0 0.0
      %5458 = vmatpush1.msra.mxu0 0.0
      %5459 = vmatprep.subr.mxu0 0.0
      %5460 = vmatpush1.msra.mxu0 0.0
      %5461 = vmatprep.subr.mxu0 0.0
      %5462 = vmatpush1.msra.mxu0 0.0
      %5463 = vmatprep.subr.mxu0 0.0
      %5464 = vmatpush1.msra.mxu0 0.0
      %5465 = vmatprep.subr.mxu0 0.0
      %5466 = vmatpush1.msra.mxu0 0.0
      %5467 = vmatprep.subr.mxu0 0.0
      %5468 = vmatpush1.msra.mxu0 0.0
      %5469 = vmatprep.subr.mxu0 0.0
      %5470 = vmatpush1.msra.mxu0 0.0
      %5471 = vmatprep.subr.mxu0 0.0
      %5472 = vmatpush1.msra.mxu0 0.0
      %5473 = vmatprep.subr.mxu0 0.0
      %5474 = vmatpush1.msra.mxu0 0.0
      %5475 = vmatprep.subr.mxu0 0.0
      %5476 = vmatpush1.msra.mxu0 0.0
      %5477 = vmatprep.mubr.f32.mxu0 0.0
      %5478 = vmatmul.mubr.f32.gmra.mrb[0].mxu0 %v5384
      %v5479 = vpop.f32.mrb[0].mxu0
      %v5480 = vadd.f32 0.0, %v5479
      %v5481 = vpop.f32.mrb[0].mxu0
      %v5482 = vadd.f32 0.0, %v5481
      %5483 = vdwg.mxu0
      %5484 = vmatprep.subr.mxu0 %v5396
      %5485 = vmatpush1.msra.mxu0 %v5393
      %5486 = vmatprep.subr.mxu0 0.0
      %5487 = vmatpush1.msra.mxu0 0.0
      %5488 = vmatprep.subr.mxu0 0.0
      %5489 = vmatpush1.msra.mxu0 0.0
      %5490 = vmatprep.subr.mxu0 0.0
      %5491 = vmatpush1.msra.mxu0 0.0
      %5492 = vmatprep.subr.mxu0 0.0
      %5493 = vmatpush1.msra.mxu0 0.0
      %5494 = vmatprep.subr.mxu0 0.0
      %5495 = vmatpush1.msra.mxu0 0.0
      %5496 = vmatprep.subr.mxu0 0.0
      %5497 = vmatpush1.msra.mxu0 0.0
      %5498 = vmatprep.subr.mxu0 0.0
      %5499 = vmatpush1.msra.mxu0 0.0
      %5500 = vmatprep.subr.mxu0 0.0
      %5501 = vmatpush1.msra.mxu0 0.0
      %5502 = vmatprep.subr.mxu0 0.0
      %5503 = vmatpush1.msra.mxu0 0.0
      %5504 = vmatprep.subr.mxu0 0.0
      %5505 = vmatpush1.msra.mxu0 0.0
      %5506 = vmatprep.subr.mxu0 0.0
      %5507 = vmatpush1.msra.mxu0 0.0
      %5508 = vmatprep.subr.mxu0 0.0
      %5509 = vmatpush1.msra.mxu0 0.0
      %5510 = vmatprep.subr.mxu0 0.0
      %5511 = vmatpush1.msra.mxu0 0.0
      %5512 = vmatprep.subr.mxu0 0.0
      %5513 = vmatpush1.msra.mxu0 0.0
      %5514 = vmatprep.subr.mxu0 0.0
      %5515 = vmatpush1.msra.mxu0 0.0
      %5516 = vmatprep.subr.mxu0 0.0
      %5517 = vmatpush1.msra.mxu0 0.0
      %5518 = vmatprep.subr.mxu0 0.0
      %5519 = vmatpush1.msra.mxu0 0.0
      %5520 = vmatprep.subr.mxu0 0.0
      %5521 = vmatpush1.msra.mxu0 0.0
      %5522 = vmatprep.subr.mxu0 0.0
      %5523 = vmatpush1.msra.mxu0 0.0
      %5524 = vmatprep.subr.mxu0 0.0
      %5525 = vmatpush1.msra.mxu0 0.0
      %5526 = vmatprep.subr.mxu0 0.0
      %5527 = vmatpush1.msra.mxu0 0.0
      %5528 = vmatprep.subr.mxu0 0.0
      %5529 = vmatpush1.msra.mxu0 0.0
      %5530 = vmatprep.subr.mxu0 0.0
      %5531 = vmatpush1.msra.mxu0 0.0
      %5532 = vmatprep.subr.mxu0 0.0
      %5533 = vmatpush1.msra.mxu0 0.0
      %5534 = vmatprep.subr.mxu0 0.0
      %5535 = vmatpush1.msra.mxu0 0.0
      %5536 = vmatprep.subr.mxu0 0.0
      %5537 = vmatpush1.msra.mxu0 0.0
      %5538 = vmatprep.subr.mxu0 0.0
      %5539 = vmatpush1.msra.mxu0 0.0
      %5540 = vmatprep.subr.mxu0 0.0
      %5541 = vmatpush1.msra.mxu0 0.0
      %5542 = vmatprep.subr.mxu0 0.0
      %5543 = vmatpush1.msra.mxu0 0.0
      %5544 = vmatprep.subr.mxu0 0.0
      %5545 = vmatpush1.msra.mxu0 0.0
      %5546 = vmatprep.subr.mxu0 0.0
      %5547 = vmatpush1.msra.mxu0 0.0
      %5548 = vmatprep.mubr.f32.mxu0 0.0
      %5549 = vmatmul.mubr.f32.gmra.mrb[0].mxu0 %v5384
      %v5550 = vpop.f32.mrb[0].mxu0
      %v5551 = vadd.f32 0.0, %v5550
      %v5552 = vpop.f32.mrb[0].mxu0
      %v5553 = vadd.f32 0.0, %v5552
      %5554 = vdwg.mxu0
      %5555 = vmatprep.subr.mxu0 %v5402
      %5556 = vmatpush1.msra.mxu0 %v5399
      %5557 = vmatprep.subr.mxu0 0.0
      %5558 = vmatpush1.msra.mxu0 0.0
      %5559 = vmatprep.subr.mxu0 0.0
      %5560 = vmatpush1.msra.mxu0 0.0
      %5561 = vmatprep.subr.mxu0 0.0
      %5562 = vmatpush1.msra.mxu0 0.0
      %5563 = vmatprep.subr.mxu0 0.0
      %5564 = vmatpush1.msra.mxu0 0.0
      %5565 = vmatprep.subr.mxu0 0.0
      %5566 = vmatpush1.msra.mxu0 0.0
      %5567 = vmatprep.subr.mxu0 0.0
      %5568 = vmatpush1.msra.mxu0 0.0
      %5569 = vmatprep.subr.mxu0 0.0
      %5570 = vmatpush1.msra.mxu0 0.0
      %5571 = vmatprep.subr.mxu0 0.0
      %5572 = vmatpush1.msra.mxu0 0.0
      %5573 = vmatprep.subr.mxu0 0.0
      %5574 = vmatpush1.msra.mxu0 0.0
      %5575 = vmatprep.subr.mxu0 0.0
      %5576 = vmatpush1.msra.mxu0 0.0
      %5577 = vmatprep.subr.mxu0 0.0
      %5578 = vmatpush1.msra.mxu0 0.0
      %5579 = vmatprep.subr.mxu0 0.0
      %5580 = vmatpush1.msra.mxu0 0.0
      %5581 = vmatprep.subr.mxu0 0.0
      %5582 = vmatpush1.msra.mxu0 0.0
      %5583 = vmatprep.subr.mxu0 0.0
      %5584 = vmatpush1.msra.mxu0 0.0
      %5585 = vmatprep.subr.mxu0 0.0
      %5586 = vmatpush1.msra.mxu0 0.0
      %5587 = vmatprep.subr.mxu0 0.0
      %5588 = vmatpush1.msra.mxu0 0.0
      %5589 = vmatprep.subr.mxu0 0.0
      %5590 = vmatpush1.msra.mxu0 0.0
      %5591 = vmatprep.subr.mxu0 0.0
      %5592 = vmatpush1.msra.mxu0 0.0
      %5593 = vmatprep.subr.mxu0 0.0
      %5594 = vmatpush1.msra.mxu0 0.0
      %5595 = vmatprep.subr.mxu0 0.0
      %5596 = vmatpush1.msra.mxu0 0.0
      %5597 = vmatprep.subr.mxu0 0.0
      %5598 = vmatpush1.msra.mxu0 0.0
      %5599 = vmatprep.subr.mxu0 0.0
      %5600 = vmatpush1.msra.mxu0 0.0
      %5601 = vmatprep.subr.mxu0 0.0
      %5602 = vmatpush1.msra.mxu0 0.0
      %5603 = vmatprep.subr.mxu0 0.0
      %5604 = vmatpush1.msra.mxu0 0.0
      %5605 = vmatprep.subr.mxu0 0.0
      %5606 = vmatpush1.msra.mxu0 0.0
      %5607 = vmatprep.subr.mxu0 0.0
      %5608 = vmatpush1.msra.mxu0 0.0
      %5609 = vmatprep.subr.mxu0 0.0
      %5610 = vmatpush1.msra.mxu0 0.0
      %5611 = vmatprep.subr.mxu0 0.0
      %5612 = vmatpush1.msra.mxu0 0.0
      %5613 = vmatprep.subr.mxu0 0.0
      %5614 = vmatpush1.msra.mxu0 0.0
      %5615 = vmatprep.subr.mxu0 0.0
      %5616 = vmatpush1.msra.mxu0 0.0
      %5617 = vmatprep.subr.mxu0 0.0
      %5618 = vmatpush1.msra.mxu0 0.0
      %5619 = vmatprep.mubr.f32.mxu0 0.0
      %5620 = vmatmul.mubr.f32.gmra.mrb[0].mxu0 %v5384
      %v5621 = vpop.f32.mrb[0].mxu0
      %v5622 = vadd.f32 0.0, %v5621
      %v5623 = vpop.f32.mrb[0].mxu0
      %v5624 = vadd.f32 0.0, %v5623
      %5625 = vdwg.mxu0
      %5626 = vmatprep.subr.mxu0 %v5408
      %5627 = vmatpush1.msra.mxu0 %v5405
      %5628 = vmatprep.subr.mxu0 0.0
      %5629 = vmatpush1.msra.mxu0 0.0
      %5630 = vmatprep.subr.mxu0 0.0
      %5631 = vmatpush1.msra.mxu0 0.0
      %5632 = vmatprep.subr.mxu0 0.0
      %5633 = vmatpush1.msra.mxu0 0.0
      %5634 = vmatprep.subr.mxu0 0.0
      %5635 = vmatpush1.msra.mxu0 0.0
      %5636 = vmatprep.subr.mxu0 0.0
      %5637 = vmatpush1.msra.mxu0 0.0
      %5638 = vmatprep.subr.mxu0 0.0
      %5639 = vmatpush1.msra.mxu0 0.0
      %5640 = vmatprep.subr.mxu0 0.0
      %5641 = vmatpush1.msra.mxu0 0.0
      %5642 = vmatprep.subr.mxu0 0.0
      %5643 = vmatpush1.msra.mxu0 0.0
      %5644 = vmatprep.subr.mxu0 0.0
      %5645 = vmatpush1.msra.mxu0 0.0
      %5646 = vmatprep.subr.mxu0 0.0
      %5647 = vmatpush1.msra.mxu0 0.0
      %5648 = vmatprep.subr.mxu0 0.0
      %5649 = vmatpush1.msra.mxu0 0.0
      %5650 = vmatprep.subr.mxu0 0.0
      %5651 = vmatpush1.msra.mxu0 0.0
      %5652 = vmatprep.subr.mxu0 0.0
      %5653 = vmatpush1.msra.mxu0 0.0
      %5654 = vmatprep.subr.mxu0 0.0
      %5655 = vmatpush1.msra.mxu0 0.0
      %5656 = vmatprep.subr.mxu0 0.0
      %5657 = vmatpush1.msra.mxu0 0.0
      %5658 = vmatprep.subr.mxu0 0.0
      %5659 = vmatpush1.msra.mxu0 0.0
      %5660 = vmatprep.subr.mxu0 0.0
      %5661 = vmatpush1.msra.mxu0 0.0
      %5662 = vmatprep.subr.mxu0 0.0
      %5663 = vmatpush1.msra.mxu0 0.0
      %5664 = vmatprep.subr.mxu0 0.0
      %5665 = vmatpush1.msra.mxu0 0.0
      %5666 = vmatprep.subr.mxu0 0.0
      %5667 = vmatpush1.msra.mxu0 0.0
      %5668 = vmatprep.subr.mxu0 0.0
      %5669 = vmatpush1.msra.mxu0 0.0
      %5670 = vmatprep.subr.mxu0 0.0
      %5671 = vmatpush1.msra.mxu0 0.0
      %5672 = vmatprep.subr.mxu0 0.0
      %5673 = vmatpush1.msra.mxu0 0.0
      %5674 = vmatprep.subr.mxu0 0.0
      %5675 = vmatpush1.msra.mxu0 0.0
      %5676 = vmatprep.subr.mxu0 0.0
      %5677 = vmatpush1.msra.mxu0 0.0
      %5678 = vmatprep.subr.mxu0 0.0
      %5679 = vmatpush1.msra.mxu0 0.0
      %5680 = vmatprep.subr.mxu0 0.0
      %5681 = vmatpush1.msra.mxu0 0.0
      %5682 = vmatprep.subr.mxu0 0.0
      %5683 = vmatpush1.msra.mxu0 0.0
      %5684 = vmatprep.subr.mxu0 0.0
      %5685 = vmatpush1.msra.mxu0 0.0
      %5686 = vmatprep.subr.mxu0 0.0
      %5687 = vmatpush1.msra.mxu0 0.0
      %5688 = vmatprep.subr.mxu0 0.0
      %5689 = vmatpush1.msra.mxu0 0.0
      %5690 = vmatprep.mubr.f32.mxu0 0.0
      %5691 = vmatmul.mubr.f32.gmra.mrb[0].mxu0 %v5384
      %v5692 = vpop.f32.mrb[0].mxu0
      %v5693 = vadd.f32 0.0, %v5692
      %v5694 = vpop.f32.mrb[0].mxu0
      %v5695 = vadd.f32 0.0, %v5694
      %5696 = vdwg.mxu0
      %5697 = vmatprep.subr.mxu0 0.0
      %5698 = vmatpush1.msra.mxu0 %v5411
      %5699 = vmatprep.subr.mxu0 0.0
      %5700 = vmatpush1.msra.mxu0 0.0
      %5701 = vmatprep.subr.mxu0 0.0
      %5702 = vmatpush1.msra.mxu0 0.0
      %5703 = vmatprep.subr.mxu0 0.0
      %5704 = vmatpush1.msra.mxu0 0.0
      %5705 = vmatprep.subr.mxu0 0.0
      %5706 = vmatpush1.msra.mxu0 0.0
      %5707 = vmatprep.subr.mxu0 0.0
      %5708 = vmatpush1.msra.mxu0 0.0
      %5709 = vmatprep.subr.mxu0 0.0
      %5710 = vmatpush1.msra.mxu0 0.0
      %5711 = vmatprep.subr.mxu0 0.0
      %5712 = vmatpush1.msra.mxu0 0.0
      %5713 = vmatprep.subr.mxu0 0.0
      %5714 = vmatpush1.msra.mxu0 0.0
      %5715 = vmatprep.subr.mxu0 0.0
      %5716 = vmatpush1.msra.mxu0 0.0
      %5717 = vmatprep.subr.mxu0 0.0
      %5718 = vmatpush1.msra.mxu0 0.0
      %5719 = vmatprep.subr.mxu0 0.0
      %5720 = vmatpush1.msra.mxu0 0.0
      %5721 = vmatprep.subr.mxu0 0.0
      %5722 = vmatpush1.msra.mxu0 0.0
      %5723 = vmatprep.subr.mxu0 0.0
      %5724 = vmatpush1.msra.mxu0 0.0
      %5725 = vmatprep.subr.mxu0 0.0
      %5726 = vmatpush1.msra.mxu0 0.0
      %5727 = vmatprep.subr.mxu0 0.0
      %5728 = vmatpush1.msra.mxu0 0.0
      %5729 = vmatprep.subr.mxu0 0.0
      %5730 = vmatpush1.msra.mxu0 0.0
      %5731 = vmatprep.subr.mxu0 0.0
      %5732 = vmatpush1.msra.mxu0 0.0
      %5733 = vmatprep.subr.mxu0 0.0
      %5734 = vmatpush1.msra.mxu0 0.0
      %5735 = vmatprep.subr.mxu0 0.0
      %5736 = vmatpush1.msra.mxu0 0.0
      %5737 = vmatprep.subr.mxu0 0.0
      %5738 = vmatpush1.msra.mxu0 0.0
      %5739 = vmatprep.subr.mxu0 0.0
      %5740 = vmatpush1.msra.mxu0 0.0
      %5741 = vmatprep.subr.mxu0 0.0
      %5742 = vmatpush1.msra.mxu0 0.0
      %5743 = vmatprep.subr.mxu0 0.0
      %5744 = vmatpush1.msra.mxu0 0.0
      %5745 = vmatprep.subr.mxu0 0.0
      %5746 = vmatpush1.msra.mxu0 0.0
      %5747 = vmatprep.subr.mxu0 0.0
      %5748 = vmatpush1.msra.mxu0 0.0
      %5749 = vmatprep.subr.mxu0 0.0
      %5750 = vmatpush1.msra.mxu0 0.0
      %5751 = vmatprep.subr.mxu0 0.0
      %5752 = vmatpush1.msra.mxu0 0.0
      %5753 = vmatprep.subr.mxu0 0.0
      %5754 = vmatpush1.msra.mxu0 0.0
      %5755 = vmatprep.subr.mxu0 0.0
      %5756 = vmatpush1.msra.mxu0 0.0
      %5757 = vmatprep.subr.mxu0 0.0
      %5758 = vmatpush1.msra.mxu0 0.0
      %5759 = vmatprep.subr.mxu0 0.0
      %5760 = vmatpush1.msra.mxu0 0.0
      %5761 = vmatprep.mubr.f32.mxu0 0.0
      %5762 = vmatmul.mubr.f32.gmra.mrb[0].mxu0 %v5384
      %v5763 = vpop.f32.mrb[0].mxu0
      %v5764 = vadd.f32 0.0, %v5763
      %v5765 = vpop.f32.mrb[0].mxu0
      %5766 = vdwg.mxu0
      %v5767 = vadd.f32 %v5345, %v5480
      %v5768 = vadd.f32 %v5346, %v5482
      %v5769 = vadd.f32 %v5347, %v5551
      %v5770 = vadd.f32 %v5348, %v5553
      %v5771 = vadd.f32 %v5349, %v5622
      %v5772 = vadd.f32 %v5350, %v5624
      %v5773 = vadd.f32 %v5351, %v5693
      %v5774 = vadd.f32 %v5352, %v5695
      %v5775 = vadd.f32 %v5353, %v5764
      %s5776 = scalar_lea.vmem %s3, 16
      %v5777 = vld [vmem:[%s5776] sm:$0xf]
      %v5779 = vsel %vm331, %v5777, 0
      %v5782 = vsel %vm335, %v4098, 0
      %v5785 = vsel %vm335, %v4099, 0
      %v5788 = vsel %vm335, %v4100, 0
      %v5791 = vsel %vm335, %v4101, 0
      %v5794 = vsel %vm335, %v4102, 0
      %v5797 = vsel %vm335, %v4103, 0
      %v5800 = vsel %vm335, %v4104, 0
      %v5803 = vsel %vm335, %v4105, 0
      %v5806 = vsel %vm335, %v4106, 0
      %5808 = vmatprep.subr.mxu0 %v5785
      %5809 = vmatpush1.msra.mxu0 %v5782
      %5810 = vmatprep.subr.mxu0 0.0
      %5811 = vmatpush1.msra.mxu0 0.0
      %5812 = vmatprep.subr.mxu0 0.0
      %5813 = vmatpush1.msra.mxu0 0.0
      %5814 = vmatprep.subr.mxu0 0.0
      %5815 = vmatpush1.msra.mxu0 0.0
      %5816 = vmatprep.subr.mxu0 0.0
      %5817 = vmatpush1.msra.mxu0 0.0
      %5818 = vmatprep.subr.mxu0 0.0
      %5819 = vmatpush1.msra.mxu0 0.0
      %5820 = vmatprep.subr.mxu0 0.0
      %5821 = vmatpush1.msra.mxu0 0.0
      %5822 = vmatprep.subr.mxu0 0.0
      %5823 = vmatpush1.msra.mxu0 0.0
      %5824 = vmatprep.subr.mxu0 0.0
      %5825 = vmatpush1.msra.mxu0 0.0
      %5826 = vmatprep.subr.mxu0 0.0
      %5827 = vmatpush1.msra.mxu0 0.0
      %5828 = vmatprep.subr.mxu0 0.0
      %5829 = vmatpush1.msra.mxu0 0.0
      %5830 = vmatprep.subr.mxu0 0.0
      %5831 = vmatpush1.msra.mxu0 0.0
      %5832 = vmatprep.subr.mxu0 0.0
      %5833 = vmatpush1.msra.mxu0 0.0
      %5834 = vmatprep.subr.mxu0 0.0
      %5835 = vmatpush1.msra.mxu0 0.0
      %5836 = vmatprep.subr.mxu0 0.0
      %5837 = vmatpush1.msra.mxu0 0.0
      %5838 = vmatprep.subr.mxu0 0.0
      %5839 = vmatpush1.msra.mxu0 0.0
      %5840 = vmatprep.subr.mxu0 0.0
      %5841 = vmatpush1.msra.mxu0 0.0
      %5842 = vmatprep.subr.mxu0 0.0
      %5843 = vmatpush1.msra.mxu0 0.0
      %5844 = vmatprep.subr.mxu0 0.0
      %5845 = vmatpush1.msra.mxu0 0.0
      %5846 = vmatprep.subr.mxu0 0.0
      %5847 = vmatpush1.msra.mxu0 0.0
      %5848 = vmatprep.subr.mxu0 0.0
      %5849 = vmatpush1.msra.mxu0 0.0
      %5850 = vmatprep.subr.mxu0 0.0
      %5851 = vmatpush1.msra.mxu0 0.0
      %5852 = vmatprep.subr.mxu0 0.0
      %5853 = vmatpush1.msra.mxu0 0.0
      %5854 = vmatprep.subr.mxu0 0.0
      %5855 = vmatpush1.msra.mxu0 0.0
      %5856 = vmatprep.subr.mxu0 0.0
      %5857 = vmatpush1.msra.mxu0 0.0
      %5858 = vmatprep.subr.mxu0 0.0
      %5859 = vmatpush1.msra.mxu0 0.0
      %5860 = vmatprep.subr.mxu0 0.0
      %5861 = vmatpush1.msra.mxu0 0.0
      %5862 = vmatprep.subr.mxu0 0.0
      %5863 = vmatpush1.msra.mxu0 0.0
      %5864 = vmatprep.subr.mxu0 0.0
      %5865 = vmatpush1.msra.mxu0 0.0
      %5866 = vmatprep.subr.mxu0 0.0
      %5867 = vmatpush1.msra.mxu0 0.0
      %5868 = vmatprep.subr.mxu0 0.0
      %5869 = vmatpush1.msra.mxu0 0.0
      %5870 = vmatprep.subr.mxu0 0.0
      %5871 = vmatpush1.msra.mxu0 0.0
      %5872 = vmatprep.mubr.f32.mxu0 0.0
      %5873 = vmatmul.mubr.f32.gmra.mrb[0].mxu0 %v5779
      %v5874 = vpop.f32.mrb[0].mxu0
      %v5875 = vadd.f32 0.0, %v5874
      %v5876 = vpop.f32.mrb[0].mxu0
      %v5877 = vadd.f32 0.0, %v5876
      %5878 = vdwg.mxu0
      %5879 = vmatprep.subr.mxu0 %v5791
      %5880 = vmatpush1.msra.mxu0 %v5788
      %5881 = vmatprep.subr.mxu0 0.0
      %5882 = vmatpush1.msra.mxu0 0.0
      %5883 = vmatprep.subr.mxu0 0.0
      %5884 = vmatpush1.msra.mxu0 0.0
      %5885 = vmatprep.subr.mxu0 0.0
      %5886 = vmatpush1.msra.mxu0 0.0
      %5887 = vmatprep.subr.mxu0 0.0
      %5888 = vmatpush1.msra.mxu0 0.0
      %5889 = vmatprep.subr.mxu0 0.0
      %5890 = vmatpush1.msra.mxu0 0.0
      %5891 = vmatprep.subr.mxu0 0.0
      %5892 = vmatpush1.msra.mxu0 0.0
      %5893 = vmatprep.subr.mxu0 0.0
      %5894 = vmatpush1.msra.mxu0 0.0
      %5895 = vmatprep.subr.mxu0 0.0
      %5896 = vmatpush1.msra.mxu0 0.0
      %5897 = vmatprep.subr.mxu0 0.0
      %5898 = vmatpush1.msra.mxu0 0.0
      %5899 = vmatprep.subr.mxu0 0.0
      %5900 = vmatpush1.msra.mxu0 0.0
      %5901 = vmatprep.subr.mxu0 0.0
      %5902 = vmatpush1.msra.mxu0 0.0
      %5903 = vmatprep.subr.mxu0 0.0
      %5904 = vmatpush1.msra.mxu0 0.0
      %5905 = vmatprep.subr.mxu0 0.0
      %5906 = vmatpush1.msra.mxu0 0.0
      %5907 = vmatprep.subr.mxu0 0.0
      %5908 = vmatpush1.msra.mxu0 0.0
      %5909 = vmatprep.subr.mxu0 0.0
      %5910 = vmatpush1.msra.mxu0 0.0
      %5911 = vmatprep.subr.mxu0 0.0
      %5912 = vmatpush1.msra.mxu0 0.0
      %5913 = vmatprep.subr.mxu0 0.0
      %5914 = vmatpush1.msra.mxu0 0.0
      %5915 = vmatprep.subr.mxu0 0.0
      %5916 = vmatpush1.msra.mxu0 0.0
      %5917 = vmatprep.subr.mxu0 0.0
      %5918 = vmatpush1.msra.mxu0 0.0
      %5919 = vmatprep.subr.mxu0 0.0
      %5920 = vmatpush1.msra.mxu0 0.0
      %5921 = vmatprep.subr.mxu0 0.0
      %5922 = vmatpush1.msra.mxu0 0.0
      %5923 = vmatprep.subr.mxu0 0.0
      %5924 = vmatpush1.msra.mxu0 0.0
      %5925 = vmatprep.subr.mxu0 0.0
      %5926 = vmatpush1.msra.mxu0 0.0
      %5927 = vmatprep.subr.mxu0 0.0
      %5928 = vmatpush1.msra.mxu0 0.0
      %5929 = vmatprep.subr.mxu0 0.0
      %5930 = vmatpush1.msra.mxu0 0.0
      %5931 = vmatprep.subr.mxu0 0.0
      %5932 = vmatpush1.msra.mxu0 0.0
      %5933 = vmatprep.subr.mxu0 0.0
      %5934 = vmatpush1.msra.mxu0 0.0
      %5935 = vmatprep.subr.mxu0 0.0
      %5936 = vmatpush1.msra.mxu0 0.0
      %5937 = vmatprep.subr.mxu0 0.0
      %5938 = vmatpush1.msra.mxu0 0.0
      %5939 = vmatprep.subr.mxu0 0.0
      %5940 = vmatpush1.msra.mxu0 0.0
      %5941 = vmatprep.subr.mxu0 0.0
      %5942 = vmatpush1.msra.mxu0 0.0
      %5943 = vmatprep.mubr.f32.mxu0 0.0
      %5944 = vmatmul.mubr.f32.gmra.mrb[0].mxu0 %v5779
      %v5945 = vpop.f32.mrb[0].mxu0
      %v5946 = vadd.f32 0.0, %v5945
      %v5947 = vpop.f32.mrb[0].mxu0
      %v5948 = vadd.f32 0.0, %v5947
      %5949 = vdwg.mxu0
      %5950 = vmatprep.subr.mxu0 %v5797
      %5951 = vmatpush1.msra.mxu0 %v5794
      %5952 = vmatprep.subr.mxu0 0.0
      %5953 = vmatpush1.msra.mxu0 0.0
      %5954 = vmatprep.subr.mxu0 0.0
      %5955 = vmatpush1.msra.mxu0 0.0
      %5956 = vmatprep.subr.mxu0 0.0
      %5957 = vmatpush1.msra.mxu0 0.0
      %5958 = vmatprep.subr.mxu0 0.0
      %5959 = vmatpush1.msra.mxu0 0.0
      %5960 = vmatprep.subr.mxu0 0.0
      %5961 = vmatpush1.msra.mxu0 0.0
      %5962 = vmatprep.subr.mxu0 0.0
      %5963 = vmatpush1.msra.mxu0 0.0
      %5964 = vmatprep.subr.mxu0 0.0
      %5965 = vmatpush1.msra.mxu0 0.0
      %5966 = vmatprep.subr.mxu0 0.0
      %5967 = vmatpush1.msra.mxu0 0.0
      %5968 = vmatprep.subr.mxu0 0.0
      %5969 = vmatpush1.msra.mxu0 0.0
      %5970 = vmatprep.subr.mxu0 0.0
      %5971 = vmatpush1.msra.mxu0 0.0
      %5972 = vmatprep.subr.mxu0 0.0
      %5973 = vmatpush1.msra.mxu0 0.0
      %5974 = vmatprep.subr.mxu0 0.0
      %5975 = vmatpush1.msra.mxu0 0.0
      %5976 = vmatprep.subr.mxu0 0.0
      %5977 = vmatpush1.msra.mxu0 0.0
      %5978 = vmatprep.subr.mxu0 0.0
      %5979 = vmatpush1.msra.mxu0 0.0
      %5980 = vmatprep.subr.mxu0 0.0
      %5981 = vmatpush1.msra.mxu0 0.0
      %5982 = vmatprep.subr.mxu0 0.0
      %5983 = vmatpush1.msra.mxu0 0.0
      %5984 = vmatprep.subr.mxu0 0.0
      %5985 = vmatpush1.msra.mxu0 0.0
      %5986 = vmatprep.subr.mxu0 0.0
      %5987 = vmatpush1.msra.mxu0 0.0
      %5988 = vmatprep.subr.mxu0 0.0
      %5989 = vmatpush1.msra.mxu0 0.0
      %5990 = vmatprep.subr.mxu0 0.0
      %5991 = vmatpush1.msra.mxu0 0.0
      %5992 = vmatprep.subr.mxu0 0.0
      %5993 = vmatpush1.msra.mxu0 0.0
      %5994 = vmatprep.subr.mxu0 0.0
      %5995 = vmatpush1.msra.mxu0 0.0
      %5996 = vmatprep.subr.mxu0 0.0
      %5997 = vmatpush1.msra.mxu0 0.0
      %5998 = vmatprep.subr.mxu0 0.0
      %5999 = vmatpush1.msra.mxu0 0.0
      %6000 = vmatprep.subr.mxu0 0.0
      %6001 = vmatpush1.msra.mxu0 0.0
      %6002 = vmatprep.subr.mxu0 0.0
      %6003 = vmatpush1.msra.mxu0 0.0
      %6004 = vmatprep.subr.mxu0 0.0
      %6005 = vmatpush1.msra.mxu0 0.0
      %6006 = vmatprep.subr.mxu0 0.0
      %6007 = vmatpush1.msra.mxu0 0.0
      %6008 = vmatprep.subr.mxu0 0.0
      %6009 = vmatpush1.msra.mxu0 0.0
      %6010 = vmatprep.subr.mxu0 0.0
      %6011 = vmatpush1.msra.mxu0 0.0
      %6012 = vmatprep.subr.mxu0 0.0
      %6013 = vmatpush1.msra.mxu0 0.0
      %6014 = vmatprep.mubr.f32.mxu0 0.0
      %6015 = vmatmul.mubr.f32.gmra.mrb[0].mxu0 %v5779
      %v6016 = vpop.f32.mrb[0].mxu0
      %v6017 = vadd.f32 0.0, %v6016
      %v6018 = vpop.f32.mrb[0].mxu0
      %v6019 = vadd.f32 0.0, %v6018
      %6020 = vdwg.mxu0
      %6021 = vmatprep.subr.mxu0 %v5803
      %6022 = vmatpush1.msra.mxu0 %v5800
      %6023 = vmatprep.subr.mxu0 0.0
      %6024 = vmatpush1.msra.mxu0 0.0
      %6025 = vmatprep.subr.mxu0 0.0
      %6026 = vmatpush1.msra.mxu0 0.0
      %6027 = vmatprep.subr.mxu0 0.0
      %6028 = vmatpush1.msra.mxu0 0.0
      %6029 = vmatprep.subr.mxu0 0.0
      %6030 = vmatpush1.msra.mxu0 0.0
      %6031 = vmatprep.subr.mxu0 0.0
      %6032 = vmatpush1.msra.mxu0 0.0
      %6033 = vmatprep.subr.mxu0 0.0
      %6034 = vmatpush1.msra.mxu0 0.0
      %6035 = vmatprep.subr.mxu0 0.0
      %6036 = vmatpush1.msra.mxu0 0.0
      %6037 = vmatprep.subr.mxu0 0.0
      %6038 = vmatpush1.msra.mxu0 0.0
      %6039 = vmatprep.subr.mxu0 0.0
      %6040 = vmatpush1.msra.mxu0 0.0
      %6041 = vmatprep.subr.mxu0 0.0
      %6042 = vmatpush1.msra.mxu0 0.0
      %6043 = vmatprep.subr.mxu0 0.0
      %6044 = vmatpush1.msra.mxu0 0.0
      %6045 = vmatprep.subr.mxu0 0.0
      %6046 = vmatpush1.msra.mxu0 0.0
      %6047 = vmatprep.subr.mxu0 0.0
      %6048 = vmatpush1.msra.mxu0 0.0
      %6049 = vmatprep.subr.mxu0 0.0
      %6050 = vmatpush1.msra.mxu0 0.0
      %6051 = vmatprep.subr.mxu0 0.0
      %6052 = vmatpush1.msra.mxu0 0.0
      %6053 = vmatprep.subr.mxu0 0.0
      %6054 = vmatpush1.msra.mxu0 0.0
      %6055 = vmatprep.subr.mxu0 0.0
      %6056 = vmatpush1.msra.mxu0 0.0
      %6057 = vmatprep.subr.mxu0 0.0
      %6058 = vmatpush1.msra.mxu0 0.0
      %6059 = vmatprep.subr.mxu0 0.0
      %6060 = vmatpush1.msra.mxu0 0.0
      %6061 = vmatprep.subr.mxu0 0.0
      %6062 = vmatpush1.msra.mxu0 0.0
      %6063 = vmatprep.subr.mxu0 0.0
      %6064 = vmatpush1.msra.mxu0 0.0
      %6065 = vmatprep.subr.mxu0 0.0
      %6066 = vmatpush1.msra.mxu0 0.0
      %6067 = vmatprep.subr.mxu0 0.0
      %6068 = vmatpush1.msra.mxu0 0.0
      %6069 = vmatprep.subr.mxu0 0.0
      %6070 = vmatpush1.msra.mxu0 0.0
      %6071 = vmatprep.subr.mxu0 0.0
      %6072 = vmatpush1.msra.mxu0 0.0
      %6073 = vmatprep.subr.mxu0 0.0
      %6074 = vmatpush1.msra.mxu0 0.0
      %6075 = vmatprep.subr.mxu0 0.0
      %6076 = vmatpush1.msra.mxu0 0.0
      %6077 = vmatprep.subr.mxu0 0.0
      %6078 = vmatpush1.msra.mxu0 0.0
      %6079 = vmatprep.subr.mxu0 0.0
      %6080 = vmatpush1.msra.mxu0 0.0
      %6081 = vmatprep.subr.mxu0 0.0
      %6082 = vmatpush1.msra.mxu0 0.0
      %6083 = vmatprep.subr.mxu0 0.0
      %6084 = vmatpush1.msra.mxu0 0.0
      %6085 = vmatprep.mubr.f32.mxu0 0.0
      %6086 = vmatmul.mubr.f32.gmra.mrb[0].mxu0 %v5779
      %v6087 = vpop.f32.mrb[0].mxu0
      %v6088 = vadd.f32 0.0, %v6087
      %v6089 = vpop.f32.mrb[0].mxu0
      %v6090 = vadd.f32 0.0, %v6089
      %6091 = vdwg.mxu0
      %6092 = vmatprep.subr.mxu0 0.0
      %6093 = vmatpush1.msra.mxu0 %v5806
      %6094 = vmatprep.subr.mxu0 0.0
      %6095 = vmatpush1.msra.mxu0 0.0
      %6096 = vmatprep.subr.mxu0 0.0
      %6097 = vmatpush1.msra.mxu0 0.0
      %6098 = vmatprep.subr.mxu0 0.0
      %6099 = vmatpush1.msra.mxu0 0.0
      %6100 = vmatprep.subr.mxu0 0.0
      %6101 = vmatpush1.msra.mxu0 0.0
      %6102 = vmatprep.subr.mxu0 0.0
      %6103 = vmatpush1.msra.mxu0 0.0
      %6104 = vmatprep.subr.mxu0 0.0
      %6105 = vmatpush1.msra.mxu0 0.0
      %6106 = vmatprep.subr.mxu0 0.0
      %6107 = vmatpush1.msra.mxu0 0.0
      %6108 = vmatprep.subr.mxu0 0.0
      %6109 = vmatpush1.msra.mxu0 0.0
      %6110 = vmatprep.subr.mxu0 0.0
      %6111 = vmatpush1.msra.mxu0 0.0
      %6112 = vmatprep.subr.mxu0 0.0
      %6113 = vmatpush1.msra.mxu0 0.0
      %6114 = vmatprep.subr.mxu0 0.0
      %6115 = vmatpush1.msra.mxu0 0.0
      %6116 = vmatprep.subr.mxu0 0.0
      %6117 = vmatpush1.msra.mxu0 0.0
      %6118 = vmatprep.subr.mxu0 0.0
      %6119 = vmatpush1.msra.mxu0 0.0
      %6120 = vmatprep.subr.mxu0 0.0
      %6121 = vmatpush1.msra.mxu0 0.0
      %6122 = vmatprep.subr.mxu0 0.0
      %6123 = vmatpush1.msra.mxu0 0.0
      %6124 = vmatprep.subr.mxu0 0.0
      %6125 = vmatpush1.msra.mxu0 0.0
      %6126 = vmatprep.subr.mxu0 0.0
      %6127 = vmatpush1.msra.mxu0 0.0
      %6128 = vmatprep.subr.mxu0 0.0
      %6129 = vmatpush1.msra.mxu0 0.0
      %6130 = vmatprep.subr.mxu0 0.0
      %6131 = vmatpush1.msra.mxu0 0.0
      %6132 = vmatprep.subr.mxu0 0.0
      %6133 = vmatpush1.msra.mxu0 0.0
      %6134 = vmatprep.subr.mxu0 0.0
      %6135 = vmatpush1.msra.mxu0 0.0
      %6136 = vmatprep.subr.mxu0 0.0
      %6137 = vmatpush1.msra.mxu0 0.0
      %6138 = vmatprep.subr.mxu0 0.0
      %6139 = vmatpush1.msra.mxu0 0.0
      %6140 = vmatprep.subr.mxu0 0.0
      %6141 = vmatpush1.msra.mxu0 0.0
      %6142 = vmatprep.subr.mxu0 0.0
      %6143 = vmatpush1.msra.mxu0 0.0
      %6144 = vmatprep.subr.mxu0 0.0
      %6145 = vmatpush1.msra.mxu0 0.0
      %6146 = vmatprep.subr.mxu0 0.0
      %6147 = vmatpush1.msra.mxu0 0.0
      %6148 = vmatprep.subr.mxu0 0.0
      %6149 = vmatpush1.msra.mxu0 0.0
      %6150 = vmatprep.subr.mxu0 0.0
      %6151 = vmatpush1.msra.mxu0 0.0
      %6152 = vmatprep.subr.mxu0 0.0
      %6153 = vmatpush1.msra.mxu0 0.0
      %6154 = vmatprep.subr.mxu0 0.0
      %6155 = vmatpush1.msra.mxu0 0.0
      %6156 = vmatprep.mubr.f32.mxu0 0.0
      %6157 = vmatmul.mubr.f32.gmra.mrb[0].mxu0 %v5779
      %v6158 = vpop.f32.mrb[0].mxu0
      %v6159 = vadd.f32 0.0, %v6158
      %v6160 = vpop.f32.mrb[0].mxu0
      %6161 = vdwg.mxu0
      %v6162 = vadd.f32 %v5767, %v5875
      %v6163 = vadd.f32 %v5768, %v5877
      %v6164 = vadd.f32 %v5769, %v5946
      %v6165 = vadd.f32 %v5770, %v5948
      %v6166 = vadd.f32 %v5771, %v6017
      %v6167 = vadd.f32 %v5772, %v6019
      %v6168 = vadd.f32 %v5773, %v6088
      %v6169 = vadd.f32 %v5774, %v6090
      %v6170 = vadd.f32 %v5775, %v6159
      %6171 = vrot.lane.b32.xlu0 %v4098, 127
      %v6172 = vpop.permute.xlu0 %6171
      %6173 = vrot.lane.b32.xlu0 %v4099, 127
      %v6174 = vpop.permute.xlu0 %6173
      %6175 = vrot.lane.b32.xlu0 %v4100, 127
      %v6176 = vpop.permute.xlu0 %6175
      %6177 = vrot.lane.b32.xlu0 %v4101, 127
      %v6178 = vpop.permute.xlu0 %6177
      %6179 = vrot.lane.b32.xlu0 %v4102, 127
      %v6180 = vpop.permute.xlu0 %6179
      %6181 = vrot.lane.b32.xlu0 %v4103, 127
      %v6182 = vpop.permute.xlu0 %6181
      %6183 = vrot.lane.b32.xlu0 %v4104, 127
      %v6184 = vpop.permute.xlu0 %6183
      %6185 = vrot.lane.b32.xlu0 %v4105, 127
      %v6186 = vpop.permute.xlu0 %6185
      %6187 = vrot.lane.b32.xlu0 %v4106, 127
      %v6188 = vpop.permute.xlu0 %6187
      %v6189 = vsel %vm2351, %v6186, %v6188
      %v6190 = vsel %vm2351, %v6184, %v6186
      %v6191 = vsel %vm2351, %v6182, %v6184
      %v6192 = vsel %vm2351, %v6180, %v6182
      %v6193 = vsel %vm2351, %v6178, %v6180
      %v6194 = vsel %vm2351, %v6176, %v6178
      %v6195 = vsel %vm2351, %v6174, %v6176
      %v6196 = vsel %vm2351, %v6172, %v6174
      %v6197 = vsel %vm2351, %v6188, %v6172
      %s6198 = scalar_lea.vmem %s3, 20
      %v6199 = vld [vmem:[%s6198] sm:$0xf]
      %v6201 = vsel %vm331, %v6199, 0
      %v6204 = vsel %vm335, %v6196, 0
      %v6207 = vsel %vm335, %v6195, 0
      %v6210 = vsel %vm335, %v6194, 0
      %v6213 = vsel %vm335, %v6193, 0
      %v6216 = vsel %vm335, %v6192, 0
      %v6219 = vsel %vm335, %v6191, 0
      %v6222 = vsel %vm335, %v6190, 0
      %v6225 = vsel %vm335, %v6189, 0
      %v6228 = vsel %vm335, %v6197, 0
      %6230 = vmatprep.subr.mxu0 %v6207
      %6231 = vmatpush1.msra.mxu0 %v6204
      %6232 = vmatprep.subr.mxu0 0.0
      %6233 = vmatpush1.msra.mxu0 0.0
      %6234 = vmatprep.subr.mxu0 0.0
      %6235 = vmatpush1.msra.mxu0 0.0
      %6236 = vmatprep.subr.mxu0 0.0
      %6237 = vmatpush1.msra.mxu0 0.0
      %6238 = vmatprep.subr.mxu0 0.0
      %6239 = vmatpush1.msra.mxu0 0.0
      %6240 = vmatprep.subr.mxu0 0.0
      %6241 = vmatpush1.msra.mxu0 0.0
      %6242 = vmatprep.subr.mxu0 0.0
      %6243 = vmatpush1.msra.mxu0 0.0
      %6244 = vmatprep.subr.mxu0 0.0
      %6245 = vmatpush1.msra.mxu0 0.0
      %6246 = vmatprep.subr.mxu0 0.0
      %6247 = vmatpush1.msra.mxu0 0.0
      %6248 = vmatprep.subr.mxu0 0.0
      %6249 = vmatpush1.msra.mxu0 0.0
      %6250 = vmatprep.subr.mxu0 0.0
      %6251 = vmatpush1.msra.mxu0 0.0
      %6252 = vmatprep.subr.mxu0 0.0
      %6253 = vmatpush1.msra.mxu0 0.0
      %6254 = vmatprep.subr.mxu0 0.0
      %6255 = vmatpush1.msra.mxu0 0.0
      %6256 = vmatprep.subr.mxu0 0.0
      %6257 = vmatpush1.msra.mxu0 0.0
      %6258 = vmatprep.subr.mxu0 0.0
      %6259 = vmatpush1.msra.mxu0 0.0
      %6260 = vmatprep.subr.mxu0 0.0
      %6261 = vmatpush1.msra.mxu0 0.0
      %6262 = vmatprep.subr.mxu0 0.0
      %6263 = vmatpush1.msra.mxu0 0.0
      %6264 = vmatprep.subr.mxu0 0.0
      %6265 = vmatpush1.msra.mxu0 0.0
      %6266 = vmatprep.subr.mxu0 0.0
      %6267 = vmatpush1.msra.mxu0 0.0
      %6268 = vmatprep.subr.mxu0 0.0
      %6269 = vmatpush1.msra.mxu0 0.0
      %6270 = vmatprep.subr.mxu0 0.0
      %6271 = vmatpush1.msra.mxu0 0.0
      %6272 = vmatprep.subr.mxu0 0.0
      %6273 = vmatpush1.msra.mxu0 0.0
      %6274 = vmatprep.subr.mxu0 0.0
      %6275 = vmatpush1.msra.mxu0 0.0
      %6276 = vmatprep.subr.mxu0 0.0
      %6277 = vmatpush1.msra.mxu0 0.0
      %6278 = vmatprep.subr.mxu0 0.0
      %6279 = vmatpush1.msra.mxu0 0.0
      %6280 = vmatprep.subr.mxu0 0.0
      %6281 = vmatpush1.msra.mxu0 0.0
      %6282 = vmatprep.subr.mxu0 0.0
      %6283 = vmatpush1.msra.mxu0 0.0
      %6284 = vmatprep.subr.mxu0 0.0
      %6285 = vmatpush1.msra.mxu0 0.0
      %6286 = vmatprep.subr.mxu0 0.0
      %6287 = vmatpush1.msra.mxu0 0.0
      %6288 = vmatprep.subr.mxu0 0.0
      %6289 = vmatpush1.msra.mxu0 0.0
      %6290 = vmatprep.subr.mxu0 0.0
      %6291 = vmatpush1.msra.mxu0 0.0
      %6292 = vmatprep.subr.mxu0 0.0
      %6293 = vmatpush1.msra.mxu0 0.0
      %6294 = vmatprep.mubr.f32.mxu0 0.0
      %6295 = vmatmul.mubr.f32.gmra.mrb[0].mxu0 %v6201
      %v6296 = vpop.f32.mrb[0].mxu0
      %v6297 = vadd.f32 0.0, %v6296
      %v6298 = vpop.f32.mrb[0].mxu0
      %v6299 = vadd.f32 0.0, %v6298
      %6300 = vdwg.mxu0
      %6301 = vmatprep.subr.mxu0 %v6213
      %6302 = vmatpush1.msra.mxu0 %v6210
      %6303 = vmatprep.subr.mxu0 0.0
      %6304 = vmatpush1.msra.mxu0 0.0
      %6305 = vmatprep.subr.mxu0 0.0
      %6306 = vmatpush1.msra.mxu0 0.0
      %6307 = vmatprep.subr.mxu0 0.0
      %6308 = vmatpush1.msra.mxu0 0.0
      %6309 = vmatprep.subr.mxu0 0.0
      %6310 = vmatpush1.msra.mxu0 0.0
      %6311 = vmatprep.subr.mxu0 0.0
      %6312 = vmatpush1.msra.mxu0 0.0
      %6313 = vmatprep.subr.mxu0 0.0
      %6314 = vmatpush1.msra.mxu0 0.0
      %6315 = vmatprep.subr.mxu0 0.0
      %6316 = vmatpush1.msra.mxu0 0.0
      %6317 = vmatprep.subr.mxu0 0.0
      %6318 = vmatpush1.msra.mxu0 0.0
      %6319 = vmatprep.subr.mxu0 0.0
      %6320 = vmatpush1.msra.mxu0 0.0
      %6321 = vmatprep.subr.mxu0 0.0
      %6322 = vmatpush1.msra.mxu0 0.0
      %6323 = vmatprep.subr.mxu0 0.0
      %6324 = vmatpush1.msra.mxu0 0.0
      %6325 = vmatprep.subr.mxu0 0.0
      %6326 = vmatpush1.msra.mxu0 0.0
      %6327 = vmatprep.subr.mxu0 0.0
      %6328 = vmatpush1.msra.mxu0 0.0
      %6329 = vmatprep.subr.mxu0 0.0
      %6330 = vmatpush1.msra.mxu0 0.0
      %6331 = vmatprep.subr.mxu0 0.0
      %6332 = vmatpush1.msra.mxu0 0.0
      %6333 = vmatprep.subr.mxu0 0.0
      %6334 = vmatpush1.msra.mxu0 0.0
      %6335 = vmatprep.subr.mxu0 0.0
      %6336 = vmatpush1.msra.mxu0 0.0
      %6337 = vmatprep.subr.mxu0 0.0
      %6338 = vmatpush1.msra.mxu0 0.0
      %6339 = vmatprep.subr.mxu0 0.0
      %6340 = vmatpush1.msra.mxu0 0.0
      %6341 = vmatprep.subr.mxu0 0.0
      %6342 = vmatpush1.msra.mxu0 0.0
      %6343 = vmatprep.subr.mxu0 0.0
      %6344 = vmatpush1.msra.mxu0 0.0
      %6345 = vmatprep.subr.mxu0 0.0
      %6346 = vmatpush1.msra.mxu0 0.0
      %6347 = vmatprep.subr.mxu0 0.0
      %6348 = vmatpush1.msra.mxu0 0.0
      %6349 = vmatprep.subr.mxu0 0.0
      %6350 = vmatpush1.msra.mxu0 0.0
      %6351 = vmatprep.subr.mxu0 0.0
      %6352 = vmatpush1.msra.mxu0 0.0
      %6353 = vmatprep.subr.mxu0 0.0
      %6354 = vmatpush1.msra.mxu0 0.0
      %6355 = vmatprep.subr.mxu0 0.0
      %6356 = vmatpush1.msra.mxu0 0.0
      %6357 = vmatprep.subr.mxu0 0.0
      %6358 = vmatpush1.msra.mxu0 0.0
      %6359 = vmatprep.subr.mxu0 0.0
      %6360 = vmatpush1.msra.mxu0 0.0
      %6361 = vmatprep.subr.mxu0 0.0
      %6362 = vmatpush1.msra.mxu0 0.0
      %6363 = vmatprep.subr.mxu0 0.0
      %6364 = vmatpush1.msra.mxu0 0.0
      %6365 = vmatprep.mubr.f32.mxu0 0.0
      %6366 = vmatmul.mubr.f32.gmra.mrb[0].mxu0 %v6201
      %v6367 = vpop.f32.mrb[0].mxu0
      %v6368 = vadd.f32 0.0, %v6367
      %v6369 = vpop.f32.mrb[0].mxu0
      %v6370 = vadd.f32 0.0, %v6369
      %6371 = vdwg.mxu0
      %6372 = vmatprep.subr.mxu0 %v6219
      %6373 = vmatpush1.msra.mxu0 %v6216
      %6374 = vmatprep.subr.mxu0 0.0
      %6375 = vmatpush1.msra.mxu0 0.0
      %6376 = vmatprep.subr.mxu0 0.0
      %6377 = vmatpush1.msra.mxu0 0.0
      %6378 = vmatprep.subr.mxu0 0.0
      %6379 = vmatpush1.msra.mxu0 0.0
      %6380 = vmatprep.subr.mxu0 0.0
      %6381 = vmatpush1.msra.mxu0 0.0
      %6382 = vmatprep.subr.mxu0 0.0
      %6383 = vmatpush1.msra.mxu0 0.0
      %6384 = vmatprep.subr.mxu0 0.0
      %6385 = vmatpush1.msra.mxu0 0.0
      %6386 = vmatprep.subr.mxu0 0.0
      %6387 = vmatpush1.msra.mxu0 0.0
      %6388 = vmatprep.subr.mxu0 0.0
      %6389 = vmatpush1.msra.mxu0 0.0
      %6390 = vmatprep.subr.mxu0 0.0
      %6391 = vmatpush1.msra.mxu0 0.0
      %6392 = vmatprep.subr.mxu0 0.0
      %6393 = vmatpush1.msra.mxu0 0.0
      %6394 = vmatprep.subr.mxu0 0.0
      %6395 = vmatpush1.msra.mxu0 0.0
      %6396 = vmatprep.subr.mxu0 0.0
      %6397 = vmatpush1.msra.mxu0 0.0
      %6398 = vmatprep.subr.mxu0 0.0
      %6399 = vmatpush1.msra.mxu0 0.0
      %6400 = vmatprep.subr.mxu0 0.0
      %6401 = vmatpush1.msra.mxu0 0.0
      %6402 = vmatprep.subr.mxu0 0.0
      %6403 = vmatpush1.msra.mxu0 0.0
      %6404 = vmatprep.subr.mxu0 0.0
      %6405 = vmatpush1.msra.mxu0 0.0
      %6406 = vmatprep.subr.mxu0 0.0
      %6407 = vmatpush1.msra.mxu0 0.0
      %6408 = vmatprep.subr.mxu0 0.0
      %6409 = vmatpush1.msra.mxu0 0.0
      %6410 = vmatprep.subr.mxu0 0.0
      %6411 = vmatpush1.msra.mxu0 0.0
      %6412 = vmatprep.subr.mxu0 0.0
      %6413 = vmatpush1.msra.mxu0 0.0
      %6414 = vmatprep.subr.mxu0 0.0
      %6415 = vmatpush1.msra.mxu0 0.0
      %6416 = vmatprep.subr.mxu0 0.0
      %6417 = vmatpush1.msra.mxu0 0.0
      %6418 = vmatprep.subr.mxu0 0.0
      %6419 = vmatpush1.msra.mxu0 0.0
      %6420 = vmatprep.subr.mxu0 0.0
      %6421 = vmatpush1.msra.mxu0 0.0
      %6422 = vmatprep.subr.mxu0 0.0
      %6423 = vmatpush1.msra.mxu0 0.0
      %6424 = vmatprep.subr.mxu0 0.0
      %6425 = vmatpush1.msra.mxu0 0.0
      %6426 = vmatprep.subr.mxu0 0.0
      %6427 = vmatpush1.msra.mxu0 0.0
      %6428 = vmatprep.subr.mxu0 0.0
      %6429 = vmatpush1.msra.mxu0 0.0
      %6430 = vmatprep.subr.mxu0 0.0
      %6431 = vmatpush1.msra.mxu0 0.0
      %6432 = vmatprep.subr.mxu0 0.0
      %6433 = vmatpush1.msra.mxu0 0.0
      %6434 = vmatprep.subr.mxu0 0.0
      %6435 = vmatpush1.msra.mxu0 0.0
      %6436 = vmatprep.mubr.f32.mxu0 0.0
      %6437 = vmatmul.mubr.f32.gmra.mrb[0].mxu0 %v6201
      %v6438 = vpop.f32.mrb[0].mxu0
      %v6439 = vadd.f32 0.0, %v6438
      %v6440 = vpop.f32.mrb[0].mxu0
      %v6441 = vadd.f32 0.0, %v6440
      %6442 = vdwg.mxu0
      %6443 = vmatprep.subr.mxu0 %v6225
      %6444 = vmatpush1.msra.mxu0 %v6222
      %6445 = vmatprep.subr.mxu0 0.0
      %6446 = vmatpush1.msra.mxu0 0.0
      %6447 = vmatprep.subr.mxu0 0.0
      %6448 = vmatpush1.msra.mxu0 0.0
      %6449 = vmatprep.subr.mxu0 0.0
      %6450 = vmatpush1.msra.mxu0 0.0
      %6451 = vmatprep.subr.mxu0 0.0
      %6452 = vmatpush1.msra.mxu0 0.0
      %6453 = vmatprep.subr.mxu0 0.0
      %6454 = vmatpush1.msra.mxu0 0.0
      %6455 = vmatprep.subr.mxu0 0.0
      %6456 = vmatpush1.msra.mxu0 0.0
      %6457 = vmatprep.subr.mxu0 0.0
      %6458 = vmatpush1.msra.mxu0 0.0
      %6459 = vmatprep.subr.mxu0 0.0
      %6460 = vmatpush1.msra.mxu0 0.0
      %6461 = vmatprep.subr.mxu0 0.0
      %6462 = vmatpush1.msra.mxu0 0.0
      %6463 = vmatprep.subr.mxu0 0.0
      %6464 = vmatpush1.msra.mxu0 0.0
      %6465 = vmatprep.subr.mxu0 0.0
      %6466 = vmatpush1.msra.mxu0 0.0
      %6467 = vmatprep.subr.mxu0 0.0
      %6468 = vmatpush1.msra.mxu0 0.0
      %6469 = vmatprep.subr.mxu0 0.0
      %6470 = vmatpush1.msra.mxu0 0.0
      %6471 = vmatprep.subr.mxu0 0.0
      %6472 = vmatpush1.msra.mxu0 0.0
      %6473 = vmatprep.subr.mxu0 0.0
      %6474 = vmatpush1.msra.mxu0 0.0
      %6475 = vmatprep.subr.mxu0 0.0
      %6476 = vmatpush1.msra.mxu0 0.0
      %6477 = vmatprep.subr.mxu0 0.0
      %6478 = vmatpush1.msra.mxu0 0.0
      %6479 = vmatprep.subr.mxu0 0.0
      %6480 = vmatpush1.msra.mxu0 0.0
      %6481 = vmatprep.subr.mxu0 0.0
      %6482 = vmatpush1.msra.mxu0 0.0
      %6483 = vmatprep.subr.mxu0 0.0
      %6484 = vmatpush1.msra.mxu0 0.0
      %6485 = vmatprep.subr.mxu0 0.0
      %6486 = vmatpush1.msra.mxu0 0.0
      %6487 = vmatprep.subr.mxu0 0.0
      %6488 = vmatpush1.msra.mxu0 0.0
      %6489 = vmatprep.subr.mxu0 0.0
      %6490 = vmatpush1.msra.mxu0 0.0
      %6491 = vmatprep.subr.mxu0 0.0
      %6492 = vmatpush1.msra.mxu0 0.0
      %6493 = vmatprep.subr.mxu0 0.0
      %6494 = vmatpush1.msra.mxu0 0.0
      %6495 = vmatprep.subr.mxu0 0.0
      %6496 = vmatpush1.msra.mxu0 0.0
      %6497 = vmatprep.subr.mxu0 0.0
      %6498 = vmatpush1.msra.mxu0 0.0
      %6499 = vmatprep.subr.mxu0 0.0
      %6500 = vmatpush1.msra.mxu0 0.0
      %6501 = vmatprep.subr.mxu0 0.0
      %6502 = vmatpush1.msra.mxu0 0.0
      %6503 = vmatprep.subr.mxu0 0.0
      %6504 = vmatpush1.msra.mxu0 0.0
      %6505 = vmatprep.subr.mxu0 0.0
      %6506 = vmatpush1.msra.mxu0 0.0
      %6507 = vmatprep.mubr.f32.mxu0 0.0
      %6508 = vmatmul.mubr.f32.gmra.mrb[0].mxu0 %v6201
      %v6509 = vpop.f32.mrb[0].mxu0
      %v6510 = vadd.f32 0.0, %v6509
      %v6511 = vpop.f32.mrb[0].mxu0
      %v6512 = vadd.f32 0.0, %v6511
      %6513 = vdwg.mxu0
      %6514 = vmatprep.subr.mxu0 0.0
      %6515 = vmatpush1.msra.mxu0 %v6228
      %6516 = vmatprep.subr.mxu0 0.0
      %6517 = vmatpush1.msra.mxu0 0.0
      %6518 = vmatprep.subr.mxu0 0.0
      %6519 = vmatpush1.msra.mxu0 0.0
      %6520 = vmatprep.subr.mxu0 0.0
      %6521 = vmatpush1.msra.mxu0 0.0
      %6522 = vmatprep.subr.mxu0 0.0
      %6523 = vmatpush1.msra.mxu0 0.0
      %6524 = vmatprep.subr.mxu0 0.0
      %6525 = vmatpush1.msra.mxu0 0.0
      %6526 = vmatprep.subr.mxu0 0.0
      %6527 = vmatpush1.msra.mxu0 0.0
      %6528 = vmatprep.subr.mxu0 0.0
      %6529 = vmatpush1.msra.mxu0 0.0
      %6530 = vmatprep.subr.mxu0 0.0
      %6531 = vmatpush1.msra.mxu0 0.0
      %6532 = vmatprep.subr.mxu0 0.0
      %6533 = vmatpush1.msra.mxu0 0.0
      %6534 = vmatprep.subr.mxu0 0.0
      %6535 = vmatpush1.msra.mxu0 0.0
      %6536 = vmatprep.subr.mxu0 0.0
      %6537 = vmatpush1.msra.mxu0 0.0
      %6538 = vmatprep.subr.mxu0 0.0
      %6539 = vmatpush1.msra.mxu0 0.0
      %6540 = vmatprep.subr.mxu0 0.0
      %6541 = vmatpush1.msra.mxu0 0.0
      %6542 = vmatprep.subr.mxu0 0.0
      %6543 = vmatpush1.msra.mxu0 0.0
      %6544 = vmatprep.subr.mxu0 0.0
      %6545 = vmatpush1.msra.mxu0 0.0
      %6546 = vmatprep.subr.mxu0 0.0
      %6547 = vmatpush1.msra.mxu0 0.0
      %6548 = vmatprep.subr.mxu0 0.0
      %6549 = vmatpush1.msra.mxu0 0.0
      %6550 = vmatprep.subr.mxu0 0.0
      %6551 = vmatpush1.msra.mxu0 0.0
      %6552 = vmatprep.subr.mxu0 0.0
      %6553 = vmatpush1.msra.mxu0 0.0
      %6554 = vmatprep.subr.mxu0 0.0
      %6555 = vmatpush1.msra.mxu0 0.0
      %6556 = vmatprep.subr.mxu0 0.0
      %6557 = vmatpush1.msra.mxu0 0.0
      %6558 = vmatprep.subr.mxu0 0.0
      %6559 = vmatpush1.msra.mxu0 0.0
      %6560 = vmatprep.subr.mxu0 0.0
      %6561 = vmatpush1.msra.mxu0 0.0
      %6562 = vmatprep.subr.mxu0 0.0
      %6563 = vmatpush1.msra.mxu0 0.0
      %6564 = vmatprep.subr.mxu0 0.0
      %6565 = vmatpush1.msra.mxu0 0.0
      %6566 = vmatprep.subr.mxu0 0.0
      %6567 = vmatpush1.msra.mxu0 0.0
      %6568 = vmatprep.subr.mxu0 0.0
      %6569 = vmatpush1.msra.mxu0 0.0
      %6570 = vmatprep.subr.mxu0 0.0
      %6571 = vmatpush1.msra.mxu0 0.0
      %6572 = vmatprep.subr.mxu0 0.0
      %6573 = vmatpush1.msra.mxu0 0.0
      %6574 = vmatprep.subr.mxu0 0.0
      %6575 = vmatpush1.msra.mxu0 0.0
      %6576 = vmatprep.subr.mxu0 0.0
      %6577 = vmatpush1.msra.mxu0 0.0
      %6578 = vmatprep.mubr.f32.mxu0 0.0
      %6579 = vmatmul.mubr.f32.gmra.mrb[0].mxu0 %v6201
      %v6580 = vpop.f32.mrb[0].mxu0
      %v6581 = vadd.f32 0.0, %v6580
      %v6582 = vpop.f32.mrb[0].mxu0
      %6583 = vdwg.mxu0
      %v6584 = vadd.f32 %v6162, %v6297
      %v6585 = vadd.f32 %v6163, %v6299
      %v6586 = vadd.f32 %v6164, %v6368
      %v6587 = vadd.f32 %v6165, %v6370
      %v6588 = vadd.f32 %v6166, %v6439
      %v6589 = vadd.f32 %v6167, %v6441
      %v6590 = vadd.f32 %v6168, %v6510
      %v6591 = vadd.f32 %v6169, %v6512
      %v6592 = vadd.f32 %v6170, %v6581
      %6593 = vrot.lane.b32.xlu0 %v4098, 111
      %v6594 = vpop.permute.xlu0 %6593
      %6595 = vrot.lane.b32.xlu0 %v4099, 111
      %v6596 = vpop.permute.xlu0 %6595
      %6597 = vrot.lane.b32.xlu0 %v4100, 111
      %v6598 = vpop.permute.xlu0 %6597
      %6599 = vrot.lane.b32.xlu0 %v4101, 111
      %v6600 = vpop.permute.xlu0 %6599
      %6601 = vrot.lane.b32.xlu0 %v4102, 111
      %v6602 = vpop.permute.xlu0 %6601
      %6603 = vrot.lane.b32.xlu0 %v4103, 111
      %v6604 = vpop.permute.xlu0 %6603
      %6605 = vrot.lane.b32.xlu0 %v4104, 111
      %v6606 = vpop.permute.xlu0 %6605
      %6607 = vrot.lane.b32.xlu0 %v4105, 111
      %v6608 = vpop.permute.xlu0 %6607
      %6609 = vrot.lane.b32.xlu0 %v4106, 111
      %v6610 = vpop.permute.xlu0 %6609
      %v6611 = vsel %vm2774, %v6608, %v6610
      %v6612 = vsel %vm2774, %v6606, %v6608
      %v6613 = vsel %vm2774, %v6604, %v6606
      %v6614 = vsel %vm2774, %v6602, %v6604
      %v6615 = vsel %vm2774, %v6600, %v6602
      %v6616 = vsel %vm2774, %v6598, %v6600
      %v6617 = vsel %vm2774, %v6596, %v6598
      %v6618 = vsel %vm2774, %v6594, %v6596
      %v6619 = vsel %vm2774, %v6610, %v6594
      %s6620 = scalar_lea.vmem %s3, 24
      %v6621 = vld [vmem:[%s6620] sm:$0xf]
      %v6623 = vsel %vm331, %v6621, 0
      %v6626 = vsel %vm335, %v6618, 0
      %v6629 = vsel %vm335, %v6617, 0
      %v6632 = vsel %vm335, %v6616, 0
      %v6635 = vsel %vm335, %v6615, 0
      %v6638 = vsel %vm335, %v6614, 0
      %v6641 = vsel %vm335, %v6613, 0
      %v6644 = vsel %vm335, %v6612, 0
      %v6647 = vsel %vm335, %v6611, 0
      %v6650 = vsel %vm335, %v6619, 0
      %6652 = vmatprep.subr.mxu0 %v6629
      %6653 = vmatpush1.msra.mxu0 %v6626
      %6654 = vmatprep.subr.mxu0 0.0
      %6655 = vmatpush1.msra.mxu0 0.0
      %6656 = vmatprep.subr.mxu0 0.0
      %6657 = vmatpush1.msra.mxu0 0.0
      %6658 = vmatprep.subr.mxu0 0.0
      %6659 = vmatpush1.msra.mxu0 0.0
      %6660 = vmatprep.subr.mxu0 0.0
      %6661 = vmatpush1.msra.mxu0 0.0
      %6662 = vmatprep.subr.mxu0 0.0
      %6663 = vmatpush1.msra.mxu0 0.0
      %6664 = vmatprep.subr.mxu0 0.0
      %6665 = vmatpush1.msra.mxu0 0.0
      %6666 = vmatprep.subr.mxu0 0.0
      %6667 = vmatpush1.msra.mxu0 0.0
      %6668 = vmatprep.subr.mxu0 0.0
      %6669 = vmatpush1.msra.mxu0 0.0
      %6670 = vmatprep.subr.mxu0 0.0
      %6671 = vmatpush1.msra.mxu0 0.0
      %6672 = vmatprep.subr.mxu0 0.0
      %6673 = vmatpush1.msra.mxu0 0.0
      %6674 = vmatprep.subr.mxu0 0.0
      %6675 = vmatpush1.msra.mxu0 0.0
      %6676 = vmatprep.subr.mxu0 0.0
      %6677 = vmatpush1.msra.mxu0 0.0
      %6678 = vmatprep.subr.mxu0 0.0
      %6679 = vmatpush1.msra.mxu0 0.0
      %6680 = vmatprep.subr.mxu0 0.0
      %6681 = vmatpush1.msra.mxu0 0.0
      %6682 = vmatprep.subr.mxu0 0.0
      %6683 = vmatpush1.msra.mxu0 0.0
      %6684 = vmatprep.subr.mxu0 0.0
      %6685 = vmatpush1.msra.mxu0 0.0
      %6686 = vmatprep.subr.mxu0 0.0
      %6687 = vmatpush1.msra.mxu0 0.0
      %6688 = vmatprep.subr.mxu0 0.0
      %6689 = vmatpush1.msra.mxu0 0.0
      %6690 = vmatprep.subr.mxu0 0.0
      %6691 = vmatpush1.msra.mxu0 0.0
      %6692 = vmatprep.subr.mxu0 0.0
      %6693 = vmatpush1.msra.mxu0 0.0
      %6694 = vmatprep.subr.mxu0 0.0
      %6695 = vmatpush1.msra.mxu0 0.0
      %6696 = vmatprep.subr.mxu0 0.0
      %6697 = vmatpush1.msra.mxu0 0.0
      %6698 = vmatprep.subr.mxu0 0.0
      %6699 = vmatpush1.msra.mxu0 0.0
      %6700 = vmatprep.subr.mxu0 0.0
      %6701 = vmatpush1.msra.mxu0 0.0
      %6702 = vmatprep.subr.mxu0 0.0
      %6703 = vmatpush1.msra.mxu0 0.0
      %6704 = vmatprep.subr.mxu0 0.0
      %6705 = vmatpush1.msra.mxu0 0.0
      %6706 = vmatprep.subr.mxu0 0.0
      %6707 = vmatpush1.msra.mxu0 0.0
      %6708 = vmatprep.subr.mxu0 0.0
      %6709 = vmatpush1.msra.mxu0 0.0
      %6710 = vmatprep.subr.mxu0 0.0
      %6711 = vmatpush1.msra.mxu0 0.0
      %6712 = vmatprep.subr.mxu0 0.0
      %6713 = vmatpush1.msra.mxu0 0.0
      %6714 = vmatprep.subr.mxu0 0.0
      %6715 = vmatpush1.msra.mxu0 0.0
      %6716 = vmatprep.mubr.f32.mxu0 0.0
      %6717 = vmatmul.mubr.f32.gmra.mrb[0].mxu0 %v6623
      %v6718 = vpop.f32.mrb[0].mxu0
      %v6719 = vadd.f32 0.0, %v6718
      %v6720 = vpop.f32.mrb[0].mxu0
      %v6721 = vadd.f32 0.0, %v6720
      %6722 = vdwg.mxu0
      %6723 = vmatprep.subr.mxu0 %v6635
      %6724 = vmatpush1.msra.mxu0 %v6632
      %6725 = vmatprep.subr.mxu0 0.0
      %6726 = vmatpush1.msra.mxu0 0.0
      %6727 = vmatprep.subr.mxu0 0.0
      %6728 = vmatpush1.msra.mxu0 0.0
      %6729 = vmatprep.subr.mxu0 0.0
      %6730 = vmatpush1.msra.mxu0 0.0
      %6731 = vmatprep.subr.mxu0 0.0
      %6732 = vmatpush1.msra.mxu0 0.0
      %6733 = vmatprep.subr.mxu0 0.0
      %6734 = vmatpush1.msra.mxu0 0.0
      %6735 = vmatprep.subr.mxu0 0.0
      %6736 = vmatpush1.msra.mxu0 0.0
      %6737 = vmatprep.subr.mxu0 0.0
      %6738 = vmatpush1.msra.mxu0 0.0
      %6739 = vmatprep.subr.mxu0 0.0
      %6740 = vmatpush1.msra.mxu0 0.0
      %6741 = vmatprep.subr.mxu0 0.0
      %6742 = vmatpush1.msra.mxu0 0.0
      %6743 = vmatprep.subr.mxu0 0.0
      %6744 = vmatpush1.msra.mxu0 0.0
      %6745 = vmatprep.subr.mxu0 0.0
      %6746 = vmatpush1.msra.mxu0 0.0
      %6747 = vmatprep.subr.mxu0 0.0
      %6748 = vmatpush1.msra.mxu0 0.0
      %6749 = vmatprep.subr.mxu0 0.0
      %6750 = vmatpush1.msra.mxu0 0.0
      %6751 = vmatprep.subr.mxu0 0.0
      %6752 = vmatpush1.msra.mxu0 0.0
      %6753 = vmatprep.subr.mxu0 0.0
      %6754 = vmatpush1.msra.mxu0 0.0
      %6755 = vmatprep.subr.mxu0 0.0
      %6756 = vmatpush1.msra.mxu0 0.0
      %6757 = vmatprep.subr.mxu0 0.0
      %6758 = vmatpush1.msra.mxu0 0.0
      %6759 = vmatprep.subr.mxu0 0.0
      %6760 = vmatpush1.msra.mxu0 0.0
      %6761 = vmatprep.subr.mxu0 0.0
      %6762 = vmatpush1.msra.mxu0 0.0
      %6763 = vmatprep.subr.mxu0 0.0
      %6764 = vmatpush1.msra.mxu0 0.0
      %6765 = vmatprep.subr.mxu0 0.0
      %6766 = vmatpush1.msra.mxu0 0.0
      %6767 = vmatprep.subr.mxu0 0.0
      %6768 = vmatpush1.msra.mxu0 0.0
      %6769 = vmatprep.subr.mxu0 0.0
      %6770 = vmatpush1.msra.mxu0 0.0
      %6771 = vmatprep.subr.mxu0 0.0
      %6772 = vmatpush1.msra.mxu0 0.0
      %6773 = vmatprep.subr.mxu0 0.0
      %6774 = vmatpush1.msra.mxu0 0.0
      %6775 = vmatprep.subr.mxu0 0.0
      %6776 = vmatpush1.msra.mxu0 0.0
      %6777 = vmatprep.subr.mxu0 0.0
      %6778 = vmatpush1.msra.mxu0 0.0
      %6779 = vmatprep.subr.mxu0 0.0
      %6780 = vmatpush1.msra.mxu0 0.0
      %6781 = vmatprep.subr.mxu0 0.0
      %6782 = vmatpush1.msra.mxu0 0.0
      %6783 = vmatprep.subr.mxu0 0.0
      %6784 = vmatpush1.msra.mxu0 0.0
      %6785 = vmatprep.subr.mxu0 0.0
      %6786 = vmatpush1.msra.mxu0 0.0
      %6787 = vmatprep.mubr.f32.mxu0 0.0
      %6788 = vmatmul.mubr.f32.gmra.mrb[0].mxu0 %v6623
      %v6789 = vpop.f32.mrb[0].mxu0
      %v6790 = vadd.f32 0.0, %v6789
      %v6791 = vpop.f32.mrb[0].mxu0
      %v6792 = vadd.f32 0.0, %v6791
      %6793 = vdwg.mxu0
      %6794 = vmatprep.subr.mxu0 %v6641
      %6795 = vmatpush1.msra.mxu0 %v6638
      %6796 = vmatprep.subr.mxu0 0.0
      %6797 = vmatpush1.msra.mxu0 0.0
      %6798 = vmatprep.subr.mxu0 0.0
      %6799 = vmatpush1.msra.mxu0 0.0
      %6800 = vmatprep.subr.mxu0 0.0
      %6801 = vmatpush1.msra.mxu0 0.0
      %6802 = vmatprep.subr.mxu0 0.0
      %6803 = vmatpush1.msra.mxu0 0.0
      %6804 = vmatprep.subr.mxu0 0.0
      %6805 = vmatpush1.msra.mxu0 0.0
      %6806 = vmatprep.subr.mxu0 0.0
      %6807 = vmatpush1.msra.mxu0 0.0
      %6808 = vmatprep.subr.mxu0 0.0
      %6809 = vmatpush1.msra.mxu0 0.0
      %6810 = vmatprep.subr.mxu0 0.0
      %6811 = vmatpush1.msra.mxu0 0.0
      %6812 = vmatprep.subr.mxu0 0.0
      %6813 = vmatpush1.msra.mxu0 0.0
      %6814 = vmatprep.subr.mxu0 0.0
      %6815 = vmatpush1.msra.mxu0 0.0
      %6816 = vmatprep.subr.mxu0 0.0
      %6817 = vmatpush1.msra.mxu0 0.0
      %6818 = vmatprep.subr.mxu0 0.0
      %6819 = vmatpush1.msra.mxu0 0.0
      %6820 = vmatprep.subr.mxu0 0.0
      %6821 = vmatpush1.msra.mxu0 0.0
      %6822 = vmatprep.subr.mxu0 0.0
      %6823 = vmatpush1.msra.mxu0 0.0
      %6824 = vmatprep.subr.mxu0 0.0
      %6825 = vmatpush1.msra.mxu0 0.0
      %6826 = vmatprep.subr.mxu0 0.0
      %6827 = vmatpush1.msra.mxu0 0.0
      %6828 = vmatprep.subr.mxu0 0.0
      %6829 = vmatpush1.msra.mxu0 0.0
      %6830 = vmatprep.subr.mxu0 0.0
      %6831 = vmatpush1.msra.mxu0 0.0
      %6832 = vmatprep.subr.mxu0 0.0
      %6833 = vmatpush1.msra.mxu0 0.0
      %6834 = vmatprep.subr.mxu0 0.0
      %6835 = vmatpush1.msra.mxu0 0.0
      %6836 = vmatprep.subr.mxu0 0.0
      %6837 = vmatpush1.msra.mxu0 0.0
      %6838 = vmatprep.subr.mxu0 0.0
      %6839 = vmatpush1.msra.mxu0 0.0
      %6840 = vmatprep.subr.mxu0 0.0
      %6841 = vmatpush1.msra.mxu0 0.0
      %6842 = vmatprep.subr.mxu0 0.0
      %6843 = vmatpush1.msra.mxu0 0.0
      %6844 = vmatprep.subr.mxu0 0.0
      %6845 = vmatpush1.msra.mxu0 0.0
      %6846 = vmatprep.subr.mxu0 0.0
      %6847 = vmatpush1.msra.mxu0 0.0
      %6848 = vmatprep.subr.mxu0 0.0
      %6849 = vmatpush1.msra.mxu0 0.0
      %6850 = vmatprep.subr.mxu0 0.0
      %6851 = vmatpush1.msra.mxu0 0.0
      %6852 = vmatprep.subr.mxu0 0.0
      %6853 = vmatpush1.msra.mxu0 0.0
      %6854 = vmatprep.subr.mxu0 0.0
      %6855 = vmatpush1.msra.mxu0 0.0
      %6856 = vmatprep.subr.mxu0 0.0
      %6857 = vmatpush1.msra.mxu0 0.0
      %6858 = vmatprep.mubr.f32.mxu0 0.0
      %6859 = vmatmul.mubr.f32.gmra.mrb[0].mxu0 %v6623
      %v6860 = vpop.f32.mrb[0].mxu0
      %v6861 = vadd.f32 0.0, %v6860
      %v6862 = vpop.f32.mrb[0].mxu0
      %v6863 = vadd.f32 0.0, %v6862
      %6864 = vdwg.mxu0
      %6865 = vmatprep.subr.mxu0 %v6647
      %6866 = vmatpush1.msra.mxu0 %v6644
      %6867 = vmatprep.subr.mxu0 0.0
      %6868 = vmatpush1.msra.mxu0 0.0
      %6869 = vmatprep.subr.mxu0 0.0
      %6870 = vmatpush1.msra.mxu0 0.0
      %6871 = vmatprep.subr.mxu0 0.0
      %6872 = vmatpush1.msra.mxu0 0.0
      %6873 = vmatprep.subr.mxu0 0.0
      %6874 = vmatpush1.msra.mxu0 0.0
      %6875 = vmatprep.subr.mxu0 0.0
      %6876 = vmatpush1.msra.mxu0 0.0
      %6877 = vmatprep.subr.mxu0 0.0
      %6878 = vmatpush1.msra.mxu0 0.0
      %6879 = vmatprep.subr.mxu0 0.0
      %6880 = vmatpush1.msra.mxu0 0.0
      %6881 = vmatprep.subr.mxu0 0.0
      %6882 = vmatpush1.msra.mxu0 0.0
      %6883 = vmatprep.subr.mxu0 0.0
      %6884 = vmatpush1.msra.mxu0 0.0
      %6885 = vmatprep.subr.mxu0 0.0
      %6886 = vmatpush1.msra.mxu0 0.0
      %6887 = vmatprep.subr.mxu0 0.0
      %6888 = vmatpush1.msra.mxu0 0.0
      %6889 = vmatprep.subr.mxu0 0.0
      %6890 = vmatpush1.msra.mxu0 0.0
      %6891 = vmatprep.subr.mxu0 0.0
      %6892 = vmatpush1.msra.mxu0 0.0
      %6893 = vmatprep.subr.mxu0 0.0
      %6894 = vmatpush1.msra.mxu0 0.0
      %6895 = vmatprep.subr.mxu0 0.0
      %6896 = vmatpush1.msra.mxu0 0.0
      %6897 = vmatprep.subr.mxu0 0.0
      %6898 = vmatpush1.msra.mxu0 0.0
      %6899 = vmatprep.subr.mxu0 0.0
      %6900 = vmatpush1.msra.mxu0 0.0
      %6901 = vmatprep.subr.mxu0 0.0
      %6902 = vmatpush1.msra.mxu0 0.0
      %6903 = vmatprep.subr.mxu0 0.0
      %6904 = vmatpush1.msra.mxu0 0.0
      %6905 = vmatprep.subr.mxu0 0.0
      %6906 = vmatpush1.msra.mxu0 0.0
      %6907 = vmatprep.subr.mxu0 0.0
      %6908 = vmatpush1.msra.mxu0 0.0
      %6909 = vmatprep.subr.mxu0 0.0
      %6910 = vmatpush1.msra.mxu0 0.0
      %6911 = vmatprep.subr.mxu0 0.0
      %6912 = vmatpush1.msra.mxu0 0.0
      %6913 = vmatprep.subr.mxu0 0.0
      %6914 = vmatpush1.msra.mxu0 0.0
      %6915 = vmatprep.subr.mxu0 0.0
      %6916 = vmatpush1.msra.mxu0 0.0
      %6917 = vmatprep.subr.mxu0 0.0
      %6918 = vmatpush1.msra.mxu0 0.0
      %6919 = vmatprep.subr.mxu0 0.0
      %6920 = vmatpush1.msra.mxu0 0.0
      %6921 = vmatprep.subr.mxu0 0.0
      %6922 = vmatpush1.msra.mxu0 0.0
      %6923 = vmatprep.subr.mxu0 0.0
      %6924 = vmatpush1.msra.mxu0 0.0
      %6925 = vmatprep.subr.mxu0 0.0
      %6926 = vmatpush1.msra.mxu0 0.0
      %6927 = vmatprep.subr.mxu0 0.0
      %6928 = vmatpush1.msra.mxu0 0.0
      %6929 = vmatprep.mubr.f32.mxu0 0.0
      %6930 = vmatmul.mubr.f32.gmra.mrb[0].mxu0 %v6623
      %v6931 = vpop.f32.mrb[0].mxu0
      %v6932 = vadd.f32 0.0, %v6931
      %v6933 = vpop.f32.mrb[0].mxu0
      %v6934 = vadd.f32 0.0, %v6933
      %6935 = vdwg.mxu0
      %6936 = vmatprep.subr.mxu0 0.0
      %6937 = vmatpush1.msra.mxu0 %v6650
      %6938 = vmatprep.subr.mxu0 0.0
      %6939 = vmatpush1.msra.mxu0 0.0
      %6940 = vmatprep.subr.mxu0 0.0
      %6941 = vmatpush1.msra.mxu0 0.0
      %6942 = vmatprep.subr.mxu0 0.0
      %6943 = vmatpush1.msra.mxu0 0.0
      %6944 = vmatprep.subr.mxu0 0.0
      %6945 = vmatpush1.msra.mxu0 0.0
      %6946 = vmatprep.subr.mxu0 0.0
      %6947 = vmatpush1.msra.mxu0 0.0
      %6948 = vmatprep.subr.mxu0 0.0
      %6949 = vmatpush1.msra.mxu0 0.0
      %6950 = vmatprep.subr.mxu0 0.0
      %6951 = vmatpush1.msra.mxu0 0.0
      %6952 = vmatprep.subr.mxu0 0.0
      %6953 = vmatpush1.msra.mxu0 0.0
      %6954 = vmatprep.subr.mxu0 0.0
      %6955 = vmatpush1.msra.mxu0 0.0
      %6956 = vmatprep.subr.mxu0 0.0
      %6957 = vmatpush1.msra.mxu0 0.0
      %6958 = vmatprep.subr.mxu0 0.0
      %6959 = vmatpush1.msra.mxu0 0.0
      %6960 = vmatprep.subr.mxu0 0.0
      %6961 = vmatpush1.msra.mxu0 0.0
      %6962 = vmatprep.subr.mxu0 0.0
      %6963 = vmatpush1.msra.mxu0 0.0
      %6964 = vmatprep.subr.mxu0 0.0
      %6965 = vmatpush1.msra.mxu0 0.0
      %6966 = vmatprep.subr.mxu0 0.0
      %6967 = vmatpush1.msra.mxu0 0.0
      %6968 = vmatprep.subr.mxu0 0.0
      %6969 = vmatpush1.msra.mxu0 0.0
      %6970 = vmatprep.subr.mxu0 0.0
      %6971 = vmatpush1.msra.mxu0 0.0
      %6972 = vmatprep.subr.mxu0 0.0
      %6973 = vmatpush1.msra.mxu0 0.0
      %6974 = vmatprep.subr.mxu0 0.0
      %6975 = vmatpush1.msra.mxu0 0.0
      %6976 = vmatprep.subr.mxu0 0.0
      %6977 = vmatpush1.msra.mxu0 0.0
      %6978 = vmatprep.subr.mxu0 0.0
      %6979 = vmatpush1.msra.mxu0 0.0
      %6980 = vmatprep.subr.mxu0 0.0
      %6981 = vmatpush1.msra.mxu0 0.0
      %6982 = vmatprep.subr.mxu0 0.0
      %6983 = vmatpush1.msra.mxu0 0.0
      %6984 = vmatprep.subr.mxu0 0.0
      %6985 = vmatpush1.msra.mxu0 0.0
      %6986 = vmatprep.subr.mxu0 0.0
      %6987 = vmatpush1.msra.mxu0 0.0
      %6988 = vmatprep.subr.mxu0 0.0
      %6989 = vmatpush1.msra.mxu0 0.0
      %6990 = vmatprep.subr.mxu0 0.0
      %6991 = vmatpush1.msra.mxu0 0.0
      %6992 = vmatprep.subr.mxu0 0.0
      %6993 = vmatpush1.msra.mxu0 0.0
      %6994 = vmatprep.subr.mxu0 0.0
      %6995 = vmatpush1.msra.mxu0 0.0
      %6996 = vmatprep.subr.mxu0 0.0
      %6997 = vmatpush1.msra.mxu0 0.0
      %6998 = vmatprep.subr.mxu0 0.0
      %6999 = vmatpush1.msra.mxu0 0.0
      %7000 = vmatprep.mubr.f32.mxu0 0.0
      %7001 = vmatmul.mubr.f32.gmra.mrb[0].mxu0 %v6623
      %v7002 = vpop.f32.mrb[0].mxu0
      %v7003 = vadd.f32 0.0, %v7002
      %v7004 = vpop.f32.mrb[0].mxu0
      %7005 = vdwg.mxu0
      %v7006 = vadd.f32 %v6584, %v6719
      %v7007 = vadd.f32 %v6585, %v6721
      %v7008 = vadd.f32 %v6586, %v6790
      %v7009 = vadd.f32 %v6587, %v6792
      %v7010 = vadd.f32 %v6588, %v6861
      %v7011 = vadd.f32 %v6589, %v6863
      %v7012 = vadd.f32 %v6590, %v6932
      %v7013 = vadd.f32 %v6591, %v6934
      %v7014 = vadd.f32 %v6592, %v7003
      %7015 = vrot.lane.b32.xlu0 %v4098, 110
      %v7016 = vpop.permute.xlu0 %7015
      %7017 = vrot.lane.b32.xlu0 %v4099, 110
      %v7018 = vpop.permute.xlu0 %7017
      %7019 = vrot.lane.b32.xlu0 %v4100, 110
      %v7020 = vpop.permute.xlu0 %7019
      %7021 = vrot.lane.b32.xlu0 %v4101, 110
      %v7022 = vpop.permute.xlu0 %7021
      %7023 = vrot.lane.b32.xlu0 %v4102, 110
      %v7024 = vpop.permute.xlu0 %7023
      %7025 = vrot.lane.b32.xlu0 %v4103, 110
      %v7026 = vpop.permute.xlu0 %7025
      %7027 = vrot.lane.b32.xlu0 %v4104, 110
      %v7028 = vpop.permute.xlu0 %7027
      %7029 = vrot.lane.b32.xlu0 %v4105, 110
      %v7030 = vpop.permute.xlu0 %7029
      %7031 = vrot.lane.b32.xlu0 %v4106, 110
      %v7032 = vpop.permute.xlu0 %7031
      %v7033 = vsel %vm3197, %v7030, %v7032
      %v7034 = vsel %vm3197, %v7028, %v7030
      %v7035 = vsel %vm3197, %v7026, %v7028
      %v7036 = vsel %vm3197, %v7024, %v7026
      %v7037 = vsel %vm3197, %v7022, %v7024
      %v7038 = vsel %vm3197, %v7020, %v7022
      %v7039 = vsel %vm3197, %v7018, %v7020
      %v7040 = vsel %vm3197, %v7016, %v7018
      %v7041 = vsel %vm3197, %v7032, %v7016
      %s7042 = scalar_lea.vmem %s3, 28
      %v7043 = vld [vmem:[%s7042] sm:$0xf]
      %v7045 = vsel %vm331, %v7043, 0
      %v7048 = vsel %vm335, %v7040, 0
      %v7051 = vsel %vm335, %v7039, 0
      %v7054 = vsel %vm335, %v7038, 0
      %v7057 = vsel %vm335, %v7037, 0
      %v7060 = vsel %vm335, %v7036, 0
      %v7063 = vsel %vm335, %v7035, 0
      %v7066 = vsel %vm335, %v7034, 0
      %v7069 = vsel %vm335, %v7033, 0
      %v7072 = vsel %vm335, %v7041, 0
      %7074 = vmatprep.subr.mxu0 %v7051
      %7075 = vmatpush1.msra.mxu0 %v7048
      %7076 = vmatprep.subr.mxu0 0.0
      %7077 = vmatpush1.msra.mxu0 0.0
      %7078 = vmatprep.subr.mxu0 0.0
      %7079 = vmatpush1.msra.mxu0 0.0
      %7080 = vmatprep.subr.mxu0 0.0
      %7081 = vmatpush1.msra.mxu0 0.0
      %7082 = vmatprep.subr.mxu0 0.0
      %7083 = vmatpush1.msra.mxu0 0.0
      %7084 = vmatprep.subr.mxu0 0.0
      %7085 = vmatpush1.msra.mxu0 0.0
      %7086 = vmatprep.subr.mxu0 0.0
      %7087 = vmatpush1.msra.mxu0 0.0
      %7088 = vmatprep.subr.mxu0 0.0
      %7089 = vmatpush1.msra.mxu0 0.0
      %7090 = vmatprep.subr.mxu0 0.0
      %7091 = vmatpush1.msra.mxu0 0.0
      %7092 = vmatprep.subr.mxu0 0.0
      %7093 = vmatpush1.msra.mxu0 0.0
      %7094 = vmatprep.subr.mxu0 0.0
      %7095 = vmatpush1.msra.mxu0 0.0
      %7096 = vmatprep.subr.mxu0 0.0
      %7097 = vmatpush1.msra.mxu0 0.0
      %7098 = vmatprep.subr.mxu0 0.0
      %7099 = vmatpush1.msra.mxu0 0.0
      %7100 = vmatprep.subr.mxu0 0.0
      %7101 = vmatpush1.msra.mxu0 0.0
      %7102 = vmatprep.subr.mxu0 0.0
      %7103 = vmatpush1.msra.mxu0 0.0
      %7104 = vmatprep.subr.mxu0 0.0
      %7105 = vmatpush1.msra.mxu0 0.0
      %7106 = vmatprep.subr.mxu0 0.0
      %7107 = vmatpush1.msra.mxu0 0.0
      %7108 = vmatprep.subr.mxu0 0.0
      %7109 = vmatpush1.msra.mxu0 0.0
      %7110 = vmatprep.subr.mxu0 0.0
      %7111 = vmatpush1.msra.mxu0 0.0
      %7112 = vmatprep.subr.mxu0 0.0
      %7113 = vmatpush1.msra.mxu0 0.0
      %7114 = vmatprep.subr.mxu0 0.0
      %7115 = vmatpush1.msra.mxu0 0.0
      %7116 = vmatprep.subr.mxu0 0.0
      %7117 = vmatpush1.msra.mxu0 0.0
      %7118 = vmatprep.subr.mxu0 0.0
      %7119 = vmatpush1.msra.mxu0 0.0
      %7120 = vmatprep.subr.mxu0 0.0
      %7121 = vmatpush1.msra.mxu0 0.0
      %7122 = vmatprep.subr.mxu0 0.0
      %7123 = vmatpush1.msra.mxu0 0.0
      %7124 = vmatprep.subr.mxu0 0.0
      %7125 = vmatpush1.msra.mxu0 0.0
      %7126 = vmatprep.subr.mxu0 0.0
      %7127 = vmatpush1.msra.mxu0 0.0
      %7128 = vmatprep.subr.mxu0 0.0
      %7129 = vmatpush1.msra.mxu0 0.0
      %7130 = vmatprep.subr.mxu0 0.0
      %7131 = vmatpush1.msra.mxu0 0.0
      %7132 = vmatprep.subr.mxu0 0.0
      %7133 = vmatpush1.msra.mxu0 0.0
      %7134 = vmatprep.subr.mxu0 0.0
      %7135 = vmatpush1.msra.mxu0 0.0
      %7136 = vmatprep.subr.mxu0 0.0
      %7137 = vmatpush1.msra.mxu0 0.0
      %7138 = vmatprep.mubr.f32.mxu0 0.0
      %7139 = vmatmul.mubr.f32.gmra.mrb[0].mxu0 %v7045
      %v7140 = vpop.f32.mrb[0].mxu0
      %v7141 = vadd.f32 0.0, %v7140
      %v7142 = vpop.f32.mrb[0].mxu0
      %v7143 = vadd.f32 0.0, %v7142
      %7144 = vdwg.mxu0
      %7145 = vmatprep.subr.mxu0 %v7057
      %7146 = vmatpush1.msra.mxu0 %v7054
      %7147 = vmatprep.subr.mxu0 0.0
      %7148 = vmatpush1.msra.mxu0 0.0
      %7149 = vmatprep.subr.mxu0 0.0
      %7150 = vmatpush1.msra.mxu0 0.0
      %7151 = vmatprep.subr.mxu0 0.0
      %7152 = vmatpush1.msra.mxu0 0.0
      %7153 = vmatprep.subr.mxu0 0.0
      %7154 = vmatpush1.msra.mxu0 0.0
      %7155 = vmatprep.subr.mxu0 0.0
      %7156 = vmatpush1.msra.mxu0 0.0
      %7157 = vmatprep.subr.mxu0 0.0
      %7158 = vmatpush1.msra.mxu0 0.0
      %7159 = vmatprep.subr.mxu0 0.0
      %7160 = vmatpush1.msra.mxu0 0.0
      %7161 = vmatprep.subr.mxu0 0.0
      %7162 = vmatpush1.msra.mxu0 0.0
      %7163 = vmatprep.subr.mxu0 0.0
      %7164 = vmatpush1.msra.mxu0 0.0
      %7165 = vmatprep.subr.mxu0 0.0
      %7166 = vmatpush1.msra.mxu0 0.0
      %7167 = vmatprep.subr.mxu0 0.0
      %7168 = vmatpush1.msra.mxu0 0.0
      %7169 = vmatprep.subr.mxu0 0.0
      %7170 = vmatpush1.msra.mxu0 0.0
      %7171 = vmatprep.subr.mxu0 0.0
      %7172 = vmatpush1.msra.mxu0 0.0
      %7173 = vmatprep.subr.mxu0 0.0
      %7174 = vmatpush1.msra.mxu0 0.0
      %7175 = vmatprep.subr.mxu0 0.0
      %7176 = vmatpush1.msra.mxu0 0.0
      %7177 = vmatprep.subr.mxu0 0.0
      %7178 = vmatpush1.msra.mxu0 0.0
      %7179 = vmatprep.subr.mxu0 0.0
      %7180 = vmatpush1.msra.mxu0 0.0
      %7181 = vmatprep.subr.mxu0 0.0
      %7182 = vmatpush1.msra.mxu0 0.0
      %7183 = vmatprep.subr.mxu0 0.0
      %7184 = vmatpush1.msra.mxu0 0.0
      %7185 = vmatprep.subr.mxu0 0.0
      %7186 = vmatpush1.msra.mxu0 0.0
      %7187 = vmatprep.subr.mxu0 0.0
      %7188 = vmatpush1.msra.mxu0 0.0
      %7189 = vmatprep.subr.mxu0 0.0
      %7190 = vmatpush1.msra.mxu0 0.0
      %7191 = vmatprep.subr.mxu0 0.0
      %7192 = vmatpush1.msra.mxu0 0.0
      %7193 = vmatprep.subr.mxu0 0.0
      %7194 = vmatpush1.msra.mxu0 0.0
      %7195 = vmatprep.subr.mxu0 0.0
      %7196 = vmatpush1.msra.mxu0 0.0
      %7197 = vmatprep.subr.mxu0 0.0
      %7198 = vmatpush1.msra.mxu0 0.0
      %7199 = vmatprep.subr.mxu0 0.0
      %7200 = vmatpush1.msra.mxu0 0.0
      %7201 = vmatprep.subr.mxu0 0.0
      %7202 = vmatpush1.msra.mxu0 0.0
      %7203 = vmatprep.subr.mxu0 0.0
      %7204 = vmatpush1.msra.mxu0 0.0
      %7205 = vmatprep.subr.mxu0 0.0
      %7206 = vmatpush1.msra.mxu0 0.0
      %7207 = vmatprep.subr.mxu0 0.0
      %7208 = vmatpush1.msra.mxu0 0.0
      %7209 = vmatprep.mubr.f32.mxu0 0.0
      %7210 = vmatmul.mubr.f32.gmra.mrb[0].mxu0 %v7045
      %v7211 = vpop.f32.mrb[0].mxu0
      %v7212 = vadd.f32 0.0, %v7211
      %v7213 = vpop.f32.mrb[0].mxu0
      %v7214 = vadd.f32 0.0, %v7213
      %7215 = vdwg.mxu0
      %7216 = vmatprep.subr.mxu0 %v7063
      %7217 = vmatpush1.msra.mxu0 %v7060
      %7218 = vmatprep.subr.mxu0 0.0
      %7219 = vmatpush1.msra.mxu0 0.0
      %7220 = vmatprep.subr.mxu0 0.0
      %7221 = vmatpush1.msra.mxu0 0.0
      %7222 = vmatprep.subr.mxu0 0.0
      %7223 = vmatpush1.msra.mxu0 0.0
      %7224 = vmatprep.subr.mxu0 0.0
      %7225 = vmatpush1.msra.mxu0 0.0
      %7226 = vmatprep.subr.mxu0 0.0
      %7227 = vmatpush1.msra.mxu0 0.0
      %7228 = vmatprep.subr.mxu0 0.0
      %7229 = vmatpush1.msra.mxu0 0.0
      %7230 = vmatprep.subr.mxu0 0.0
      %7231 = vmatpush1.msra.mxu0 0.0
      %7232 = vmatprep.subr.mxu0 0.0
      %7233 = vmatpush1.msra.mxu0 0.0
      %7234 = vmatprep.subr.mxu0 0.0
      %7235 = vmatpush1.msra.mxu0 0.0
      %7236 = vmatprep.subr.mxu0 0.0
      %7237 = vmatpush1.msra.mxu0 0.0
      %7238 = vmatprep.subr.mxu0 0.0
      %7239 = vmatpush1.msra.mxu0 0.0
      %7240 = vmatprep.subr.mxu0 0.0
      %7241 = vmatpush1.msra.mxu0 0.0
      %7242 = vmatprep.subr.mxu0 0.0
      %7243 = vmatpush1.msra.mxu0 0.0
      %7244 = vmatprep.subr.mxu0 0.0
      %7245 = vmatpush1.msra.mxu0 0.0
      %7246 = vmatprep.subr.mxu0 0.0
      %7247 = vmatpush1.msra.mxu0 0.0
      %7248 = vmatprep.subr.mxu0 0.0
      %7249 = vmatpush1.msra.mxu0 0.0
      %7250 = vmatprep.subr.mxu0 0.0
      %7251 = vmatpush1.msra.mxu0 0.0
      %7252 = vmatprep.subr.mxu0 0.0
      %7253 = vmatpush1.msra.mxu0 0.0
      %7254 = vmatprep.subr.mxu0 0.0
      %7255 = vmatpush1.msra.mxu0 0.0
      %7256 = vmatprep.subr.mxu0 0.0
      %7257 = vmatpush1.msra.mxu0 0.0
      %7258 = vmatprep.subr.mxu0 0.0
      %7259 = vmatpush1.msra.mxu0 0.0
      %7260 = vmatprep.subr.mxu0 0.0
      %7261 = vmatpush1.msra.mxu0 0.0
      %7262 = vmatprep.subr.mxu0 0.0
      %7263 = vmatpush1.msra.mxu0 0.0
      %7264 = vmatprep.subr.mxu0 0.0
      %7265 = vmatpush1.msra.mxu0 0.0
      %7266 = vmatprep.subr.mxu0 0.0
      %7267 = vmatpush1.msra.mxu0 0.0
      %7268 = vmatprep.subr.mxu0 0.0
      %7269 = vmatpush1.msra.mxu0 0.0
      %7270 = vmatprep.subr.mxu0 0.0
      %7271 = vmatpush1.msra.mxu0 0.0
      %7272 = vmatprep.subr.mxu0 0.0
      %7273 = vmatpush1.msra.mxu0 0.0
      %7274 = vmatprep.subr.mxu0 0.0
      %7275 = vmatpush1.msra.mxu0 0.0
      %7276 = vmatprep.subr.mxu0 0.0
      %7277 = vmatpush1.msra.mxu0 0.0
      %7278 = vmatprep.subr.mxu0 0.0
      %7279 = vmatpush1.msra.mxu0 0.0
      %7280 = vmatprep.mubr.f32.mxu0 0.0
      %7281 = vmatmul.mubr.f32.gmra.mrb[0].mxu0 %v7045
      %v7282 = vpop.f32.mrb[0].mxu0
      %v7283 = vadd.f32 0.0, %v7282
      %v7284 = vpop.f32.mrb[0].mxu0
      %v7285 = vadd.f32 0.0, %v7284
      %7286 = vdwg.mxu0
      %7287 = vmatprep.subr.mxu0 %v7069
      %7288 = vmatpush1.msra.mxu0 %v7066
      %7289 = vmatprep.subr.mxu0 0.0
      %7290 = vmatpush1.msra.mxu0 0.0
      %7291 = vmatprep.subr.mxu0 0.0
      %7292 = vmatpush1.msra.mxu0 0.0
      %7293 = vmatprep.subr.mxu0 0.0
      %7294 = vmatpush1.msra.mxu0 0.0
      %7295 = vmatprep.subr.mxu0 0.0
      %7296 = vmatpush1.msra.mxu0 0.0
      %7297 = vmatprep.subr.mxu0 0.0
      %7298 = vmatpush1.msra.mxu0 0.0
      %7299 = vmatprep.subr.mxu0 0.0
      %7300 = vmatpush1.msra.mxu0 0.0
      %7301 = vmatprep.subr.mxu0 0.0
      %7302 = vmatpush1.msra.mxu0 0.0
      %7303 = vmatprep.subr.mxu0 0.0
      %7304 = vmatpush1.msra.mxu0 0.0
      %7305 = vmatprep.subr.mxu0 0.0
      %7306 = vmatpush1.msra.mxu0 0.0
      %7307 = vmatprep.subr.mxu0 0.0
      %7308 = vmatpush1.msra.mxu0 0.0
      %7309 = vmatprep.subr.mxu0 0.0
      %7310 = vmatpush1.msra.mxu0 0.0
      %7311 = vmatprep.subr.mxu0 0.0
      %7312 = vmatpush1.msra.mxu0 0.0
      %7313 = vmatprep.subr.mxu0 0.0
      %7314 = vmatpush1.msra.mxu0 0.0
      %7315 = vmatprep.subr.mxu0 0.0
      %7316 = vmatpush1.msra.mxu0 0.0
      %7317 = vmatprep.subr.mxu0 0.0
      %7318 = vmatpush1.msra.mxu0 0.0
      %7319 = vmatprep.subr.mxu0 0.0
      %7320 = vmatpush1.msra.mxu0 0.0
      %7321 = vmatprep.subr.mxu0 0.0
      %7322 = vmatpush1.msra.mxu0 0.0
      %7323 = vmatprep.subr.mxu0 0.0
      %7324 = vmatpush1.msra.mxu0 0.0
      %7325 = vmatprep.subr.mxu0 0.0
      %7326 = vmatpush1.msra.mxu0 0.0
      %7327 = vmatprep.subr.mxu0 0.0
      %7328 = vmatpush1.msra.mxu0 0.0
      %7329 = vmatprep.subr.mxu0 0.0
      %7330 = vmatpush1.msra.mxu0 0.0
      %7331 = vmatprep.subr.mxu0 0.0
      %7332 = vmatpush1.msra.mxu0 0.0
      %7333 = vmatprep.subr.mxu0 0.0
      %7334 = vmatpush1.msra.mxu0 0.0
      %7335 = vmatprep.subr.mxu0 0.0
      %7336 = vmatpush1.msra.mxu0 0.0
      %7337 = vmatprep.subr.mxu0 0.0
      %7338 = vmatpush1.msra.mxu0 0.0
      %7339 = vmatprep.subr.mxu0 0.0
      %7340 = vmatpush1.msra.mxu0 0.0
      %7341 = vmatprep.subr.mxu0 0.0
      %7342 = vmatpush1.msra.mxu0 0.0
      %7343 = vmatprep.subr.mxu0 0.0
      %7344 = vmatpush1.msra.mxu0 0.0
      %7345 = vmatprep.subr.mxu0 0.0
      %7346 = vmatpush1.msra.mxu0 0.0
      %7347 = vmatprep.subr.mxu0 0.0
      %7348 = vmatpush1.msra.mxu0 0.0
      %7349 = vmatprep.subr.mxu0 0.0
      %7350 = vmatpush1.msra.mxu0 0.0
      %7351 = vmatprep.mubr.f32.mxu0 0.0
      %7352 = vmatmul.mubr.f32.gmra.mrb[0].mxu0 %v7045
      %v7353 = vpop.f32.mrb[0].mxu0
      %v7354 = vadd.f32 0.0, %v7353
      %v7355 = vpop.f32.mrb[0].mxu0
      %v7356 = vadd.f32 0.0, %v7355
      %7357 = vdwg.mxu0
      %7358 = vmatprep.subr.mxu0 0.0
      %7359 = vmatpush1.msra.mxu0 %v7072
      %7360 = vmatprep.subr.mxu0 0.0
      %7361 = vmatpush1.msra.mxu0 0.0
      %7362 = vmatprep.subr.mxu0 0.0
      %7363 = vmatpush1.msra.mxu0 0.0
      %7364 = vmatprep.subr.mxu0 0.0
      %7365 = vmatpush1.msra.mxu0 0.0
      %7366 = vmatprep.subr.mxu0 0.0
      %7367 = vmatpush1.msra.mxu0 0.0
      %7368 = vmatprep.subr.mxu0 0.0
      %7369 = vmatpush1.msra.mxu0 0.0
      %7370 = vmatprep.subr.mxu0 0.0
      %7371 = vmatpush1.msra.mxu0 0.0
      %7372 = vmatprep.subr.mxu0 0.0
      %7373 = vmatpush1.msra.mxu0 0.0
      %7374 = vmatprep.subr.mxu0 0.0
      %7375 = vmatpush1.msra.mxu0 0.0
      %7376 = vmatprep.subr.mxu0 0.0
      %7377 = vmatpush1.msra.mxu0 0.0
      %7378 = vmatprep.subr.mxu0 0.0
      %7379 = vmatpush1.msra.mxu0 0.0
      %7380 = vmatprep.subr.mxu0 0.0
      %7381 = vmatpush1.msra.mxu0 0.0
      %7382 = vmatprep.subr.mxu0 0.0
      %7383 = vmatpush1.msra.mxu0 0.0
      %7384 = vmatprep.subr.mxu0 0.0
      %7385 = vmatpush1.msra.mxu0 0.0
      %7386 = vmatprep.subr.mxu0 0.0
      %7387 = vmatpush1.msra.mxu0 0.0
      %7388 = vmatprep.subr.mxu0 0.0
      %7389 = vmatpush1.msra.mxu0 0.0
      %7390 = vmatprep.subr.mxu0 0.0
      %7391 = vmatpush1.msra.mxu0 0.0
      %7392 = vmatprep.subr.mxu0 0.0
      %7393 = vmatpush1.msra.mxu0 0.0
      %7394 = vmatprep.subr.mxu0 0.0
      %7395 = vmatpush1.msra.mxu0 0.0
      %7396 = vmatprep.subr.mxu0 0.0
      %7397 = vmatpush1.msra.mxu0 0.0
      %7398 = vmatprep.subr.mxu0 0.0
      %7399 = vmatpush1.msra.mxu0 0.0
      %7400 = vmatprep.subr.mxu0 0.0
      %7401 = vmatpush1.msra.mxu0 0.0
      %7402 = vmatprep.subr.mxu0 0.0
      %7403 = vmatpush1.msra.mxu0 0.0
      %7404 = vmatprep.subr.mxu0 0.0
      %7405 = vmatpush1.msra.mxu0 0.0
      %7406 = vmatprep.subr.mxu0 0.0
      %7407 = vmatpush1.msra.mxu0 0.0
      %7408 = vmatprep.subr.mxu0 0.0
      %7409 = vmatpush1.msra.mxu0 0.0
      %7410 = vmatprep.subr.mxu0 0.0
      %7411 = vmatpush1.msra.mxu0 0.0
      %7412 = vmatprep.subr.mxu0 0.0
      %7413 = vmatpush1.msra.mxu0 0.0
      %7414 = vmatprep.subr.mxu0 0.0
      %7415 = vmatpush1.msra.mxu0 0.0
      %7416 = vmatprep.subr.mxu0 0.0
      %7417 = vmatpush1.msra.mxu0 0.0
      %7418 = vmatprep.subr.mxu0 0.0
      %7419 = vmatpush1.msra.mxu0 0.0
      %7420 = vmatprep.subr.mxu0 0.0
      %7421 = vmatpush1.msra.mxu0 0.0
      %7422 = vmatprep.mubr.f32.mxu0 0.0
      %7423 = vmatmul.mubr.f32.gmra.mrb[0].mxu0 %v7045
      %v7424 = vpop.f32.mrb[0].mxu0
      %v7425 = vadd.f32 0.0, %v7424
      %v7426 = vpop.f32.mrb[0].mxu0
      %7427 = vdwg.mxu0
      %v7428 = vadd.f32 %v7006, %v7141
      %v7429 = vadd.f32 %v7007, %v7143
      %v7430 = vadd.f32 %v7008, %v7212
      %v7431 = vadd.f32 %v7009, %v7214
      %v7432 = vadd.f32 %v7010, %v7283
      %v7433 = vadd.f32 %v7011, %v7285
      %v7434 = vadd.f32 %v7012, %v7354
      %v7435 = vadd.f32 %v7013, %v7356
      %v7436 = vadd.f32 %v7014, %v7425
      %7437 = vrot.lane.b32.xlu0 %v4098, 109
      %v7438 = vpop.permute.xlu0 %7437
      %7439 = vrot.lane.b32.xlu0 %v4099, 109
      %v7440 = vpop.permute.xlu0 %7439
      %7441 = vrot.lane.b32.xlu0 %v4100, 109
      %v7442 = vpop.permute.xlu0 %7441
      %7443 = vrot.lane.b32.xlu0 %v4101, 109
      %v7444 = vpop.permute.xlu0 %7443
      %7445 = vrot.lane.b32.xlu0 %v4102, 109
      %v7446 = vpop.permute.xlu0 %7445
      %7447 = vrot.lane.b32.xlu0 %v4103, 109
      %v7448 = vpop.permute.xlu0 %7447
      %7449 = vrot.lane.b32.xlu0 %v4104, 109
      %v7450 = vpop.permute.xlu0 %7449
      %7451 = vrot.lane.b32.xlu0 %v4105, 109
      %v7452 = vpop.permute.xlu0 %7451
      %7453 = vrot.lane.b32.xlu0 %v4106, 109
      %v7454 = vpop.permute.xlu0 %7453
      %v7455 = vsel %vm3620, %v7452, %v7454
      %v7456 = vsel %vm3620, %v7450, %v7452
      %v7457 = vsel %vm3620, %v7448, %v7450
      %v7458 = vsel %vm3620, %v7446, %v7448
      %v7459 = vsel %vm3620, %v7444, %v7446
      %v7460 = vsel %vm3620, %v7442, %v7444
      %v7461 = vsel %vm3620, %v7440, %v7442
      %v7462 = vsel %vm3620, %v7438, %v7440
      %v7463 = vsel %vm3620, %v7454, %v7438
      %s7464 = scalar_lea.vmem %s3, 32
      %v7465 = vld [vmem:[%s7464] sm:$0xf]
      %v7467 = vsel %vm331, %v7465, 0
      %v7470 = vsel %vm335, %v7462, 0
      %v7473 = vsel %vm335, %v7461, 0
      %v7476 = vsel %vm335, %v7460, 0
      %v7479 = vsel %vm335, %v7459, 0
      %v7482 = vsel %vm335, %v7458, 0
      %v7485 = vsel %vm335, %v7457, 0
      %v7488 = vsel %vm335, %v7456, 0
      %v7491 = vsel %vm335, %v7455, 0
      %v7494 = vsel %vm335, %v7463, 0
      %7496 = vmatprep.subr.mxu0 %v7473
      %7497 = vmatpush1.msra.mxu0 %v7470
      %7498 = vmatprep.subr.mxu0 0.0
      %7499 = vmatpush1.msra.mxu0 0.0
      %7500 = vmatprep.subr.mxu0 0.0
      %7501 = vmatpush1.msra.mxu0 0.0
      %7502 = vmatprep.subr.mxu0 0.0
      %7503 = vmatpush1.msra.mxu0 0.0
      %7504 = vmatprep.subr.mxu0 0.0
      %7505 = vmatpush1.msra.mxu0 0.0
      %7506 = vmatprep.subr.mxu0 0.0
      %7507 = vmatpush1.msra.mxu0 0.0
      %7508 = vmatprep.subr.mxu0 0.0
      %7509 = vmatpush1.msra.mxu0 0.0
      %7510 = vmatprep.subr.mxu0 0.0
      %7511 = vmatpush1.msra.mxu0 0.0
      %7512 = vmatprep.subr.mxu0 0.0
      %7513 = vmatpush1.msra.mxu0 0.0
      %7514 = vmatprep.subr.mxu0 0.0
      %7515 = vmatpush1.msra.mxu0 0.0
      %7516 = vmatprep.subr.mxu0 0.0
      %7517 = vmatpush1.msra.mxu0 0.0
      %7518 = vmatprep.subr.mxu0 0.0
      %7519 = vmatpush1.msra.mxu0 0.0
      %7520 = vmatprep.subr.mxu0 0.0
      %7521 = vmatpush1.msra.mxu0 0.0
      %7522 = vmatprep.subr.mxu0 0.0
      %7523 = vmatpush1.msra.mxu0 0.0
      %7524 = vmatprep.subr.mxu0 0.0
      %7525 = vmatpush1.msra.mxu0 0.0
      %7526 = vmatprep.subr.mxu0 0.0
      %7527 = vmatpush1.msra.mxu0 0.0
      %7528 = vmatprep.subr.mxu0 0.0
      %7529 = vmatpush1.msra.mxu0 0.0
      %7530 = vmatprep.subr.mxu0 0.0
      %7531 = vmatpush1.msra.mxu0 0.0
      %7532 = vmatprep.subr.mxu0 0.0
      %7533 = vmatpush1.msra.mxu0 0.0
      %7534 = vmatprep.subr.mxu0 0.0
      %7535 = vmatpush1.msra.mxu0 0.0
      %7536 = vmatprep.subr.mxu0 0.0
      %7537 = vmatpush1.msra.mxu0 0.0
      %7538 = vmatprep.subr.mxu0 0.0
      %7539 = vmatpush1.msra.mxu0 0.0
      %7540 = vmatprep.subr.mxu0 0.0
      %7541 = vmatpush1.msra.mxu0 0.0
      %7542 = vmatprep.subr.mxu0 0.0
      %7543 = vmatpush1.msra.mxu0 0.0
      %7544 = vmatprep.subr.mxu0 0.0
      %7545 = vmatpush1.msra.mxu0 0.0
      %7546 = vmatprep.subr.mxu0 0.0
      %7547 = vmatpush1.msra.mxu0 0.0
      %7548 = vmatprep.subr.mxu0 0.0
      %7549 = vmatpush1.msra.mxu0 0.0
      %7550 = vmatprep.subr.mxu0 0.0
      %7551 = vmatpush1.msra.mxu0 0.0
      %7552 = vmatprep.subr.mxu0 0.0
      %7553 = vmatpush1.msra.mxu0 0.0
      %7554 = vmatprep.subr.mxu0 0.0
      %7555 = vmatpush1.msra.mxu0 0.0
      %7556 = vmatprep.subr.mxu0 0.0
      %7557 = vmatpush1.msra.mxu0 0.0
      %7558 = vmatprep.subr.mxu0 0.0
      %7559 = vmatpush1.msra.mxu0 0.0
      %7560 = vmatprep.mubr.f32.mxu0 0.0
      %7561 = vmatmul.mubr.f32.gmra.mrb[0].mxu0 %v7467
      %v7562 = vpop.f32.mrb[0].mxu0
      %v7563 = vadd.f32 0.0, %v7562
      %v7564 = vpop.f32.mrb[0].mxu0
      %v7565 = vadd.f32 0.0, %v7564
      %7566 = vdwg.mxu0
      %7567 = vmatprep.subr.mxu0 %v7479
      %7568 = vmatpush1.msra.mxu0 %v7476
      %7569 = vmatprep.subr.mxu0 0.0
      %7570 = vmatpush1.msra.mxu0 0.0
      %7571 = vmatprep.subr.mxu0 0.0
      %7572 = vmatpush1.msra.mxu0 0.0
      %7573 = vmatprep.subr.mxu0 0.0
      %7574 = vmatpush1.msra.mxu0 0.0
      %7575 = vmatprep.subr.mxu0 0.0
      %7576 = vmatpush1.msra.mxu0 0.0
      %7577 = vmatprep.subr.mxu0 0.0
      %7578 = vmatpush1.msra.mxu0 0.0
      %7579 = vmatprep.subr.mxu0 0.0
      %7580 = vmatpush1.msra.mxu0 0.0
      %7581 = vmatprep.subr.mxu0 0.0
      %7582 = vmatpush1.msra.mxu0 0.0
      %7583 = vmatprep.subr.mxu0 0.0
      %7584 = vmatpush1.msra.mxu0 0.0
      %7585 = vmatprep.subr.mxu0 0.0
      %7586 = vmatpush1.msra.mxu0 0.0
      %7587 = vmatprep.subr.mxu0 0.0
      %7588 = vmatpush1.msra.mxu0 0.0
      %7589 = vmatprep.subr.mxu0 0.0
      %7590 = vmatpush1.msra.mxu0 0.0
      %7591 = vmatprep.subr.mxu0 0.0
      %7592 = vmatpush1.msra.mxu0 0.0
      %7593 = vmatprep.subr.mxu0 0.0
      %7594 = vmatpush1.msra.mxu0 0.0
      %7595 = vmatprep.subr.mxu0 0.0
      %7596 = vmatpush1.msra.mxu0 0.0
      %7597 = vmatprep.subr.mxu0 0.0
      %7598 = vmatpush1.msra.mxu0 0.0
      %7599 = vmatprep.subr.mxu0 0.0
      %7600 = vmatpush1.msra.mxu0 0.0
      %7601 = vmatprep.subr.mxu0 0.0
      %7602 = vmatpush1.msra.mxu0 0.0
      %7603 = vmatprep.subr.mxu0 0.0
      %7604 = vmatpush1.msra.mxu0 0.0
      %7605 = vmatprep.subr.mxu0 0.0
      %7606 = vmatpush1.msra.mxu0 0.0
      %7607 = vmatprep.subr.mxu0 0.0
      %7608 = vmatpush1.msra.mxu0 0.0
      %7609 = vmatprep.subr.mxu0 0.0
      %7610 = vmatpush1.msra.mxu0 0.0
      %7611 = vmatprep.subr.mxu0 0.0
      %7612 = vmatpush1.msra.mxu0 0.0
      %7613 = vmatprep.subr.mxu0 0.0
      %7614 = vmatpush1.msra.mxu0 0.0
      %7615 = vmatprep.subr.mxu0 0.0
      %7616 = vmatpush1.msra.mxu0 0.0
      %7617 = vmatprep.subr.mxu0 0.0
      %7618 = vmatpush1.msra.mxu0 0.0
      %7619 = vmatprep.subr.mxu0 0.0
      %7620 = vmatpush1.msra.mxu0 0.0
      %7621 = vmatprep.subr.mxu0 0.0
      %7622 = vmatpush1.msra.mxu0 0.0
      %7623 = vmatprep.subr.mxu0 0.0
      %7624 = vmatpush1.msra.mxu0 0.0
      %7625 = vmatprep.subr.mxu0 0.0
      %7626 = vmatpush1.msra.mxu0 0.0
      %7627 = vmatprep.subr.mxu0 0.0
      %7628 = vmatpush1.msra.mxu0 0.0
      %7629 = vmatprep.subr.mxu0 0.0
      %7630 = vmatpush1.msra.mxu0 0.0
      %7631 = vmatprep.mubr.f32.mxu0 0.0
      %7632 = vmatmul.mubr.f32.gmra.mrb[0].mxu0 %v7467
      %v7633 = vpop.f32.mrb[0].mxu0
      %v7634 = vadd.f32 0.0, %v7633
      %v7635 = vpop.f32.mrb[0].mxu0
      %v7636 = vadd.f32 0.0, %v7635
      %7637 = vdwg.mxu0
      %7638 = vmatprep.subr.mxu0 %v7485
      %7639 = vmatpush1.msra.mxu0 %v7482
      %7640 = vmatprep.subr.mxu0 0.0
      %7641 = vmatpush1.msra.mxu0 0.0
      %7642 = vmatprep.subr.mxu0 0.0
      %7643 = vmatpush1.msra.mxu0 0.0
      %7644 = vmatprep.subr.mxu0 0.0
      %7645 = vmatpush1.msra.mxu0 0.0
      %7646 = vmatprep.subr.mxu0 0.0
      %7647 = vmatpush1.msra.mxu0 0.0
      %7648 = vmatprep.subr.mxu0 0.0
      %7649 = vmatpush1.msra.mxu0 0.0
      %7650 = vmatprep.subr.mxu0 0.0
      %7651 = vmatpush1.msra.mxu0 0.0
      %7652 = vmatprep.subr.mxu0 0.0
      %7653 = vmatpush1.msra.mxu0 0.0
      %7654 = vmatprep.subr.mxu0 0.0
      %7655 = vmatpush1.msra.mxu0 0.0
      %7656 = vmatprep.subr.mxu0 0.0
      %7657 = vmatpush1.msra.mxu0 0.0
      %7658 = vmatprep.subr.mxu0 0.0
      %7659 = vmatpush1.msra.mxu0 0.0
      %7660 = vmatprep.subr.mxu0 0.0
      %7661 = vmatpush1.msra.mxu0 0.0
      %7662 = vmatprep.subr.mxu0 0.0
      %7663 = vmatpush1.msra.mxu0 0.0
      %7664 = vmatprep.subr.mxu0 0.0
      %7665 = vmatpush1.msra.mxu0 0.0
      %7666 = vmatprep.subr.mxu0 0.0
      %7667 = vmatpush1.msra.mxu0 0.0
      %7668 = vmatprep.subr.mxu0 0.0
      %7669 = vmatpush1.msra.mxu0 0.0
      %7670 = vmatprep.subr.mxu0 0.0
      %7671 = vmatpush1.msra.mxu0 0.0
      %7672 = vmatprep.subr.mxu0 0.0
      %7673 = vmatpush1.msra.mxu0 0.0
      %7674 = vmatprep.subr.mxu0 0.0
      %7675 = vmatpush1.msra.mxu0 0.0
      %7676 = vmatprep.subr.mxu0 0.0
      %7677 = vmatpush1.msra.mxu0 0.0
      %7678 = vmatprep.subr.mxu0 0.0
      %7679 = vmatpush1.msra.mxu0 0.0
      %7680 = vmatprep.subr.mxu0 0.0
      %7681 = vmatpush1.msra.mxu0 0.0
      %7682 = vmatprep.subr.mxu0 0.0
      %7683 = vmatpush1.msra.mxu0 0.0
      %7684 = vmatprep.subr.mxu0 0.0
      %7685 = vmatpush1.msra.mxu0 0.0
      %7686 = vmatprep.subr.mxu0 0.0
      %7687 = vmatpush1.msra.mxu0 0.0
      %7688 = vmatprep.subr.mxu0 0.0
      %7689 = vmatpush1.msra.mxu0 0.0
      %7690 = vmatprep.subr.mxu0 0.0
      %7691 = vmatpush1.msra.mxu0 0.0
      %7692 = vmatprep.subr.mxu0 0.0
      %7693 = vmatpush1.msra.mxu0 0.0
      %7694 = vmatprep.subr.mxu0 0.0
      %7695 = vmatpush1.msra.mxu0 0.0
      %7696 = vmatprep.subr.mxu0 0.0
      %7697 = vmatpush1.msra.mxu0 0.0
      %7698 = vmatprep.subr.mxu0 0.0
      %7699 = vmatpush1.msra.mxu0 0.0
      %7700 = vmatprep.subr.mxu0 0.0
      %7701 = vmatpush1.msra.mxu0 0.0
      %7702 = vmatprep.mubr.f32.mxu0 0.0
      %7703 = vmatmul.mubr.f32.gmra.mrb[0].mxu0 %v7467
      %v7704 = vpop.f32.mrb[0].mxu0
      %v7705 = vadd.f32 0.0, %v7704
      %v7706 = vpop.f32.mrb[0].mxu0
      %v7707 = vadd.f32 0.0, %v7706
      %7708 = vdwg.mxu0
      %7709 = vmatprep.subr.mxu0 %v7491
      %7710 = vmatpush1.msra.mxu0 %v7488
      %7711 = vmatprep.subr.mxu0 0.0
      %7712 = vmatpush1.msra.mxu0 0.0
      %7713 = vmatprep.subr.mxu0 0.0
      %7714 = vmatpush1.msra.mxu0 0.0
      %7715 = vmatprep.subr.mxu0 0.0
      %7716 = vmatpush1.msra.mxu0 0.0
      %7717 = vmatprep.subr.mxu0 0.0
      %7718 = vmatpush1.msra.mxu0 0.0
      %7719 = vmatprep.subr.mxu0 0.0
      %7720 = vmatpush1.msra.mxu0 0.0
      %7721 = vmatprep.subr.mxu0 0.0
      %7722 = vmatpush1.msra.mxu0 0.0
      %7723 = vmatprep.subr.mxu0 0.0
      %7724 = vmatpush1.msra.mxu0 0.0
      %7725 = vmatprep.subr.mxu0 0.0
      %7726 = vmatpush1.msra.mxu0 0.0
      %7727 = vmatprep.subr.mxu0 0.0
      %7728 = vmatpush1.msra.mxu0 0.0
      %7729 = vmatprep.subr.mxu0 0.0
      %7730 = vmatpush1.msra.mxu0 0.0
      %7731 = vmatprep.subr.mxu0 0.0
      %7732 = vmatpush1.msra.mxu0 0.0
      %7733 = vmatprep.subr.mxu0 0.0
      %7734 = vmatpush1.msra.mxu0 0.0
      %7735 = vmatprep.subr.mxu0 0.0
      %7736 = vmatpush1.msra.mxu0 0.0
      %7737 = vmatprep.subr.mxu0 0.0
      %7738 = vmatpush1.msra.mxu0 0.0
      %7739 = vmatprep.subr.mxu0 0.0
      %7740 = vmatpush1.msra.mxu0 0.0
      %7741 = vmatprep.subr.mxu0 0.0
      %7742 = vmatpush1.msra.mxu0 0.0
      %7743 = vmatprep.subr.mxu0 0.0
      %7744 = vmatpush1.msra.mxu0 0.0
      %7745 = vmatprep.subr.mxu0 0.0
      %7746 = vmatpush1.msra.mxu0 0.0
      %7747 = vmatprep.subr.mxu0 0.0
      %7748 = vmatpush1.msra.mxu0 0.0
      %7749 = vmatprep.subr.mxu0 0.0
      %7750 = vmatpush1.msra.mxu0 0.0
      %7751 = vmatprep.subr.mxu0 0.0
      %7752 = vmatpush1.msra.mxu0 0.0
      %7753 = vmatprep.subr.mxu0 0.0
      %7754 = vmatpush1.msra.mxu0 0.0
      %7755 = vmatprep.subr.mxu0 0.0
      %7756 = vmatpush1.msra.mxu0 0.0
      %7757 = vmatprep.subr.mxu0 0.0
      %7758 = vmatpush1.msra.mxu0 0.0
      %7759 = vmatprep.subr.mxu0 0.0
      %7760 = vmatpush1.msra.mxu0 0.0
      %7761 = vmatprep.subr.mxu0 0.0
      %7762 = vmatpush1.msra.mxu0 0.0
      %7763 = vmatprep.subr.mxu0 0.0
      %7764 = vmatpush1.msra.mxu0 0.0
      %7765 = vmatprep.subr.mxu0 0.0
      %7766 = vmatpush1.msra.mxu0 0.0
      %7767 = vmatprep.subr.mxu0 0.0
      %7768 = vmatpush1.msra.mxu0 0.0
      %7769 = vmatprep.subr.mxu0 0.0
      %7770 = vmatpush1.msra.mxu0 0.0
      %7771 = vmatprep.subr.mxu0 0.0
      %7772 = vmatpush1.msra.mxu0 0.0
      %7773 = vmatprep.mubr.f32.mxu0 0.0
      %7774 = vmatmul.mubr.f32.gmra.mrb[0].mxu0 %v7467
      %v7775 = vpop.f32.mrb[0].mxu0
      %v7776 = vadd.f32 0.0, %v7775
      %v7777 = vpop.f32.mrb[0].mxu0
      %v7778 = vadd.f32 0.0, %v7777
      %7779 = vdwg.mxu0
      %7780 = vmatprep.subr.mxu0 0.0
      %7781 = vmatpush1.msra.mxu0 %v7494
      %7782 = vmatprep.subr.mxu0 0.0
      %7783 = vmatpush1.msra.mxu0 0.0
      %7784 = vmatprep.subr.mxu0 0.0
      %7785 = vmatpush1.msra.mxu0 0.0
      %7786 = vmatprep.subr.mxu0 0.0
      %7787 = vmatpush1.msra.mxu0 0.0
      %7788 = vmatprep.subr.mxu0 0.0
      %7789 = vmatpush1.msra.mxu0 0.0
      %7790 = vmatprep.subr.mxu0 0.0
      %7791 = vmatpush1.msra.mxu0 0.0
      %7792 = vmatprep.subr.mxu0 0.0
      %7793 = vmatpush1.msra.mxu0 0.0
      %7794 = vmatprep.subr.mxu0 0.0
      %7795 = vmatpush1.msra.mxu0 0.0
      %7796 = vmatprep.subr.mxu0 0.0
      %7797 = vmatpush1.msra.mxu0 0.0
      %7798 = vmatprep.subr.mxu0 0.0
      %7799 = vmatpush1.msra.mxu0 0.0
      %7800 = vmatprep.subr.mxu0 0.0
      %7801 = vmatpush1.msra.mxu0 0.0
      %7802 = vmatprep.subr.mxu0 0.0
      %7803 = vmatpush1.msra.mxu0 0.0
      %7804 = vmatprep.subr.mxu0 0.0
      %7805 = vmatpush1.msra.mxu0 0.0
      %7806 = vmatprep.subr.mxu0 0.0
      %7807 = vmatpush1.msra.mxu0 0.0
      %7808 = vmatprep.subr.mxu0 0.0
      %7809 = vmatpush1.msra.mxu0 0.0
      %7810 = vmatprep.subr.mxu0 0.0
      %7811 = vmatpush1.msra.mxu0 0.0
      %7812 = vmatprep.subr.mxu0 0.0
      %7813 = vmatpush1.msra.mxu0 0.0
      %7814 = vmatprep.subr.mxu0 0.0
      %7815 = vmatpush1.msra.mxu0 0.0
      %7816 = vmatprep.subr.mxu0 0.0
      %7817 = vmatpush1.msra.mxu0 0.0
      %7818 = vmatprep.subr.mxu0 0.0
      %7819 = vmatpush1.msra.mxu0 0.0
      %7820 = vmatprep.subr.mxu0 0.0
      %7821 = vmatpush1.msra.mxu0 0.0
      %7822 = vmatprep.subr.mxu0 0.0
      %7823 = vmatpush1.msra.mxu0 0.0
      %7824 = vmatprep.subr.mxu0 0.0
      %7825 = vmatpush1.msra.mxu0 0.0
      %7826 = vmatprep.subr.mxu0 0.0
      %7827 = vmatpush1.msra.mxu0 0.0
      %7828 = vmatprep.subr.mxu0 0.0
      %7829 = vmatpush1.msra.mxu0 0.0
      %7830 = vmatprep.subr.mxu0 0.0
      %7831 = vmatpush1.msra.mxu0 0.0
      %7832 = vmatprep.subr.mxu0 0.0
      %7833 = vmatpush1.msra.mxu0 0.0
      %7834 = vmatprep.subr.mxu0 0.0
      %7835 = vmatpush1.msra.mxu0 0.0
      %7836 = vmatprep.subr.mxu0 0.0
      %7837 = vmatpush1.msra.mxu0 0.0
      %7838 = vmatprep.subr.mxu0 0.0
      %7839 = vmatpush1.msra.mxu0 0.0
      %7840 = vmatprep.subr.mxu0 0.0
      %7841 = vmatpush1.msra.mxu0 0.0
      %7842 = vmatprep.subr.mxu0 0.0
      %7843 = vmatpush1.msra.mxu0 0.0
      %7844 = vmatprep.mubr.f32.mxu0 0.0
      %7845 = vmatmul.mubr.f32.gmra.mrb[0].mxu0 %v7467
      %v7846 = vpop.f32.mrb[0].mxu0
      %v7847 = vadd.f32 0.0, %v7846
      %v7848 = vpop.f32.mrb[0].mxu0
      %7849 = vdwg.mxu0
      %v7850 = vadd.f32 %v7428, %v7563
      %v7851 = vadd.f32 %v7429, %v7565
      %v7852 = vadd.f32 %v7430, %v7634
      %v7853 = vadd.f32 %v7431, %v7636
      %v7854 = vadd.f32 %v7432, %v7705
      %v7855 = vadd.f32 %v7433, %v7707
      %v7856 = vadd.f32 %v7434, %v7776
      %v7857 = vadd.f32 %v7435, %v7778
      %v7858 = vadd.f32 %v7436, %v7847
      %v7859 = vld [vmem:[%s4] sm:$0xf]
      %7861 = vset.pattern.permute.xlu0 0
      %7862 = vperm.xlu0 %7861, %v7859
      %v7863 = vpop.permute.xlu0 %7862
      %v7865 = vadd.f32 %v7850, %v7863
      %v7866 = vadd.f32 %v7851, %v7863
      %v7867 = vadd.f32 %v7852, %v7863
      %v7868 = vadd.f32 %v7853, %v7863
      %v7869 = vadd.f32 %v7854, %v7863
      %v7870 = vadd.f32 %v7855, %v7863
      %v7871 = vadd.f32 %v7856, %v7863
      %v7872 = vadd.f32 %v7857, %v7863
      %v7873 = vadd.f32 %v7858, %v7863
      %v7874 = vadd.f32 %v7865, %v252
      %v7875 = vadd.f32 %v7866, %v262
      %v7876 = vadd.f32 %v7867, %v253
      %v7877 = vadd.f32 %v7868, %v263
      %v7878 = vadd.f32 %v7869, %v254
      %v7879 = vadd.f32 %v7870, %v264
      %v7880 = vadd.f32 %v7871, %v255
      %v7881 = vadd.f32 %v7872, %v265
      %v7882 = vadd.f32 %v7873, %v256
      %v7891 = vcombine.low %v7874, %v7875
      %v7892 = vcombine.low %v7876, %v7877
      %v7893 = vcombine.low %v7878, %v7879
      %v7894 = vcombine.low %v7880, %v7881
      %7899 = vst [vmem:[%s251] sm:$0xff] %v7891
      %7900 = vst [vmem:[%s251 + $0x8] sm:$0xff] %v7892
      %7901 = vst [vmem:[%s251 + $0x10] sm:$0xff] %v7893
      %7902 = vst [vmem:[%s251 + $0x18] sm:$0xff] %v7894
      %7903 = vst [vmem:[%s251 + $0x20] sm:$0xf] %v7882
      %p7904 = scmp.lt.s32.totalorder %s17, 1
      %s7905 = scalar_select %p7904, %s17, 1
      %s7906 = smul.addr %s7905, 9
      %s7907 = smul.addr %s7906, 4
      %s7908 = scalar_lea.vmem %s6, %s7907
      // Predicated region
      $region45: #{resblock_pallas.1} parent=43 // pred_check
        %p7909 = pneg %p166
      $region46: #{resblock_pallas.1} parent=43 // pred_check_branch
        %7911 = sbr.rel (%p7909) target = $region48
      $region47: #{resblock_pallas.1} parent=43 // pred_region
        _
      $region48: #{resblock_pallas.1} parent=43 // pred_fallthru
        _
    $region44: #{resblock_pallas.1} parent=5 // pred_fallthru
      _
    %p7912 = scmp.le.s32.totalorder 2, %s12
    // Predicated region
    $region49: #{resblock_pallas.1} parent=5 // pred_check
      %p7913 = pneg %p7912
    $region50: #{resblock_pallas.1} parent=5 // pred_check_branch
      %7915 = sbr.rel (%p7913) target = $region52
    $region51: #{resblock_pallas.1} parent=5 // pred_region
      %s7916 = ssub.s32 %s12, 2
      // Predicated region
      $region53: #{resblock_pallas.1} parent=51 // pred_check
        %p7917 = pneg %p172
      $region54: #{resblock_pallas.1} parent=51 // pred_check_branch
        %7919 = sbr.rel (%p7917) target = $region56
      $region55: #{resblock_pallas.1} parent=51 // pred_region
        %p7920 = scmp.lt.s32.totalorder %s18, 1
        %s7921 = scalar_select %p7920, %s18, 1
        %s7922 = smul.addr %s7921, 9
        %s7923 = smul.addr %s7922, 4
        %s7924 = scalar_lea.vmem %s6, %s7923
      $region56: #{resblock_pallas.1} parent=51 // pred_fallthru
        _
    $region52: #{resblock_pallas.1} parent=5 // pred_fallthru
      _
  $region6: #{resblock_pallas.1} parent=0 // loop_footer
    %s16 = sadd.s32 1, %s12
  $region7: #{resblock_pallas.1} parent=0 // loop_footer_branch
    %11 = sbr.rel target = $region3
  $region8: #{resblock_pallas.1} parent=0 // loop_exit
    _

</llo_original>
